<compile_context>
chip_gen: v6e
topology: v6e:2x2x1
jax: 0.10.0
libtpu: 0.0.40
codegen_flags: <defaults>
</compile_context>

<pallas_src>
import jax
import jax.numpy as jnp
from jax import lax
from jax.experimental import pallas as pl
from jax.experimental.pallas import tpu as pltpu

BN_EPS = 1e-3
_HALO = 8  # left halo of scratch buffers: keeps interior writes sublane-aligned


# ----------------------------------------------------------------------------
# Fused Inception-A kernel (one batch element per grid step)
# ----------------------------------------------------------------------------
def _inception_a_kernel(x_ref, wstem_ref, wpool_ref, w5_ref, w3b_ref, w3c_ref,
                        bstem_ref, b3mid_ref, bout_ref,
                        o_ref, t5_ref, t3a_ref, t3b_ref, txp_ref):
    """Whole InceptionBlockA for one image.

    x_ref    : (1, H, W, Cin)     bf16  unpadded input (aligned stem read)
    wstem_ref: (Cin, 176)         bf16  [w1x1(64) | w5x5_1(48) | w3x3_1(64)], BN folded
    wpool_ref: (Cin, Cp)          bf16  pool-branch 1x1 weights
    w5_ref   : (5, 5*48, 64)      bf16  per-dy im2col slabs of the 5x5 conv
    w3b_ref  : (3, 3*64, 96)      bf16  per-dy slabs of branch3x3dbl_2
    w3c_ref  : (3, 3*96, 96)      bf16  per-dy slabs of branch3x3dbl_3
    bstem_ref: (1, 176)           f32   folded BN biases of the three stem 1x1s
    b3mid_ref: (1, 96)            f32   bias of branch3x3dbl_2
    bout_ref : (1, 160+Cp)        f32   [b5x5_2(64) | b3x3_3(96) | bpool(Cp)]
    o_ref    : (1, H, W, 224+Cp)  bf16  all four branches, channel-concatenated
    t5/t3a/t3b/txp : zero-halo VMEM scratch for the spatially padded conv/pool
                     inputs, interior at [p:p+H, _HALO:_HALO+W, :].
    """
    H = o_ref.shape[1]
    W = o_ref.shape[2]
    Cin = x_ref.shape[-1]
    HW = H * W
    f32 = jnp.float32
    bf16 = jnp.bfloat16

    def zero_halo(ref, p):
        """Zero only the halo strips the conv reads; interior is overwritten."""
        c = ref.shape[-1]
        rows = ref.shape[0]
        ref[0:p, :, :] = jnp.zeros((p, W + 2 * _HALO, c), ref.dtype)
        ref[p + H:p + H + p, :, :] = jnp.zeros((p, W + 2 * _HALO, c), ref.dtype)
        ref[:, _HALO - p:_HALO, :] = jnp.zeros((rows, p, c), ref.dtype)
        ref[:, _HALO + W:_HALO + W + p, :] = jnp.zeros((rows, p, c), ref.dtype)

    def conv_kxk(src_ref, w_ref, p, c):
        """KxK 'same' conv via hoisted im2col: one lane-concat of K shifted
        reads of the halo buffer, then K per-dy deep matmuls."""
        k = 2 * p + 1
        slabs = [src_ref[:, _HALO - p + dx:_HALO - p + dx + W, :]
                 for dx in range(k)]
        im2col = jnp.concatenate(slabs, axis=-1)            # (H+2p, W, K*C)
        acc = jnp.dot(im2col[0:H].reshape(HW, k * c), w_ref[0],
                      preferred_element_type=f32)
        for dy in range(1, k):
            acc = acc + jnp.dot(im2col[dy:dy + H].reshape(HW, k * c), w_ref[dy],
                                preferred_element_type=f32)
        return acc                                          # (HW, Cout) f32

    # ---- fused stem: branch1x1 + branch5x5_1 + branch3x3dbl_1 (all 1x1) ----
    x_bf = x_ref[0]                                         # (H, W, Cin) bf16
    y0 = jnp.dot(x_bf.reshape(HW, Cin), wstem_ref[...], preferred_element_type=f32)
    y0 = jnp.maximum(y0 + bstem_ref[0, :], 0.0)             # (HW, 176) f32
    b1 = y0[:, 0:64].astype(bf16)                           # branch1x1: final
    y5a = y0[:, 64:112].astype(bf16)                        # 48ch -> feeds 5x5
    y3a = y0[:, 112:176].astype(bf16)                       # 64ch -> feeds 3x3 dbl

    # ---- branch5x5: zero-halo pad(2), 5 deep matmuls (contraction 240) ------
    zero_halo(t5_ref, 2)
    t5_ref[2:2 + H, _HALO:_HALO + W, :] = y5a.reshape(H, W, 48)
    acc5 = conv_kxk(t5_ref, w5_ref, 2, 48)
    b5 = jnp.maximum(acc5 + bout_ref[0, 0:64], 0.0).astype(bf16)

    # ---- branch3x3dbl: two 3x3 convs, intermediate kept in VMEM -------------
    zero_halo(t3a_ref, 1)
    t3a_ref[1:1 + H, _HALO:_HALO + W, :] = y3a.reshape(H, W, 64)
    acc3b = conv_kxk(t3a_ref, w3b_ref, 1, 64)
    y3b = jnp.maximum(acc3b + b3mid_ref[0, :], 0.0).astype(bf16)   # (HW, 96)

    zero_halo(t3b_ref, 1)
    t3b_ref[1:1 + H, _HALO:_HALO + W, :] = y3b.reshape(H, W, 96)
    acc3c = conv_kxk(t3b_ref, w3c_ref, 1, 96)
    b3 = jnp.maximum(acc3c + bout_ref[0, 64:160], 0.0).astype(bf16)

    # ---- pool branch: separable 3x3 avg-pool (divisor 9) + 1x1 conv ---------
    zero_halo(txp_ref, 1)
    txp_ref[1:1 + H, _HALO:_HALO + W, :] = x_bf
    rows = (txp_ref[:, _HALO - 1:_HALO - 1 + W, :].astype(f32)
            + txp_ref[:, _HALO:_HALO + W, :].astype(f32)
            + txp_ref[:, _HALO + 1:_HALO + 1 + W, :].astype(f32))  # (H+2, W, Cin)
    colsum = rows[0:H] + rows[1:1 + H] + rows[2:2 + H]             # (H, W, Cin)
    pooled = (colsum * (1.0 / 9.0)).astype(bf16).reshape(HW, Cin)
    accp = jnp.dot(pooled, wpool_ref[...], preferred_element_type=f32)
    Cp = wpool_ref.shape[1]
    bp = jnp.maximum(accp + bout_ref[0, 160:160 + Cp], 0.0).astype(bf16)

    # ---- concatenate branches (bf16) -> single lane-dense store -------------
    full = jnp.concatenate([b1, b5, b3, bp], axis=-1)        # (HW, 224+Cp) bf16
    o_ref[...] = full.reshape(1, H, W, o_ref.shape[-1])


# ----------------------------------------------------------------------------
# Wrapper
# ----------------------------------------------------------------------------
def inception_block_a(x_nchw, kp):
    """x_nchw: (N, Cin, H, W) f32 -> (N, 224 + pool_features, H, W) f32."""
    N, Cin, H, W = x_nchw.shape
    Cp = kp["wpool"].shape[1]
    Cout = 224 + Cp

    # NCHW -> NHWC (channels on the lane axis), bf16.
    # TODO(synk): in a full network keep activations NHWC bf16 between blocks so
    # this transpose/cast (and the trailing one) happens once per model, not per block.
    x = jnp.transpose(x_nchw, (0, 2, 3, 1)).astype(jnp.bfloat16)

    out_nhwc = pl.pallas_call(
        _inception_a_kernel,
        out_shape=jax.ShapeDtypeStruct((N, H, W, Cout), jnp.bfloat16),
        grid=(N,),
        in_specs=[
            pl.BlockSpec((1, H, W, Cin), lambda n: (n, 0, 0, 0)),
            pl.BlockSpec(kp["wstem"].shape, lambda n: (0, 0)),
            pl.BlockSpec(kp["wpool"].shape, lambda n: (0, 0)),
            pl.BlockSpec(kp["w5"].shape, lambda n: (0, 0, 0)),
            pl.BlockSpec(kp["w3b"].shape, lambda n: (0, 0, 0)),
            pl.BlockSpec(kp["w3c"].shape, lambda n: (0, 0, 0)),
            pl.BlockSpec(kp["bstem"].shape, lambda n: (0, 0)),
            pl.BlockSpec(kp["b3mid"].shape, lambda n: (0, 0)),
            pl.BlockSpec(kp["bout"].shape, lambda n: (0, 0)),
        ],
        out_specs=pl.BlockSpec((1, H, W, Cout), lambda n: (n, 0, 0, 0)),
        scratch_shapes=[
            pltpu.VMEM((H + 4, W + 2 * _HALO, 48), jnp.bfloat16),   # padded 5x5 input
            pltpu.VMEM((H + 2, W + 2 * _HALO, 64), jnp.bfloat16),   # padded 3x3_2 input
            pltpu.VMEM((H + 2, W + 2 * _HALO, 96), jnp.bfloat16),   # padded 3x3_3 input
            pltpu.VMEM((H + 2, W + 2 * _HALO, Cin), jnp.bfloat16),  # padded pool input
        ],
        compiler_params=pltpu.CompilerParams(
            dimension_semantics=("parallel",),          # v7x: 2 TCs share the batch
            vmem_limit_bytes=32 * 1024 * 1024,
        ),
    )(x, kp["wstem"], kp["wpool"], kp["w5"], kp["w3b"], kp["w3c"],
      kp["bstem"], kp["b3mid"], kp["bout"])

    # NHWC -> NCHW (torch.cat dim=1), cast back to f32 for the module's output dtype.
    return jnp.transpose(out_nhwc, (0, 3, 1, 2)).astype(jnp.float32)


# ----------------------------------------------------------------------------
# Parameter construction (deterministic, synthetic), BN folded at build time
# ----------------------------------------------------------------------------
def make_convblock_params(key, cin, cout, k):
    kw, kg, kb, km, kv = jax.random.split(key, 5)
    w = 0.1 * jax.random.normal(kw, (k, k, cin, cout), jnp.float32)      # HWIO
    gamma = 1.0 + 0.1 * jax.random.normal(kg, (cout,), jnp.float32)
    beta = 0.1 * jax.random.normal(kb, (cout,), jnp.float32)
    rmean = 0.05 * jax.random.normal(km, (cout,), jnp.float32)
    rvar = 1.0 + 0.1 * jax.random.uniform(kv, (cout,), jnp.float32)
    scale = gamma / jnp.sqrt(rvar + BN_EPS)
    bias = beta - rmean * scale
    return {"w": (w * scale).astype(jnp.bfloat16),   # BN scale folded, bf16
            "b": bias.astype(jnp.float32)}


def make_inception_a_params(key, in_channels, pool_features):
    keys = jax.random.split(key, 7)
    return {
        "b1x1":   make_convblock_params(keys[0], in_channels, 64, 1),
        "b5x5_1": make_convblock_params(keys[1], in_channels, 48, 1),
        "b5x5_2": make_convblock_params(keys[2], 48, 64, 5),
        "b3x3_1": make_convblock_params(keys[3], in_channels, 64, 1),
        "b3x3_2": make_convblock_params(keys[4], 64, 96, 3),
        "b3x3_3": make_convblock_params(keys[5], 96, 96, 3),
        "bpool":  make_convblock_params(keys[6], in_channels, pool_features, 1),
    }


def pack_inception_a_params(p):
    """Rearrange per-conv params into the slabs the fused kernel consumes."""
    def as_mat(q):                       # 1x1 HWIO -> (Cin, Cout)
        _, _, ci, co = q["w"].shape
        return q["w"].reshape(ci, co)

    def as_rows(q):                      # KxK HWIO -> (K, K*Cin, Cout) per-dy slabs
        k, _, ci, co = q["w"].shape
        return q["w"].reshape(k, k * ci, co)

    return {
        "wstem": jnp.concatenate(
            [as_mat(p["b1x1"]), as_mat(p["b5x5_1"]), as_mat(p["b3x3_1"])], axis=1),
        "bstem": jnp.concatenate(
            [p["b1x1"]["b"], p["b5x5_1"]["b"], p["b3x3_1"]["b"]])[None, :],
        "wpool": as_mat(p["bpool"]),
        "w5": as_rows(p["b5x5_2"]),
        "w3b": as_rows(p["b3x3_2"]),
        "w3c": as_rows(p["b3x3_3"]),
        "b3mid": p["b3x3_2"]["b"][None, :],
        "bout": jnp.concatenate(
            [p["b5x5_2"]["b"], p["b3x3_3"]["b"], p["bpool"]["b"]])[None, :],
    }


# ----------------------------------------------------------------------------
# Pure-JAX reference (same bf16-weight / f32-accumulate numerics)
# ----------------------------------------------------------------------------
def _ref_convblock(x_bf16, q):
    y = lax.conv_general_dilated(
        x_bf16, q["w"], window_strides=(1, 1), padding="SAME",
        dimension_numbers=("NHWC", "HWIO", "NHWC"),
        preferred_element_type=jnp.float32)
    return jnp.maximum(y + q["b"], 0.0)


def inception_block_a_ref(x_nchw, p):
    bf16 = jnp.bfloat16
    x = jnp.transpose(x_nchw, (0, 2, 3, 1)).astype(bf16)
    b1 = _ref_convblock(x, p["b1x1"])
    b5 = _ref_convblock(_ref_convblock(x, p["b5x5_1"]).astype(bf16), p["b5x5_2"])
    y3 = _ref_convblock(x, p["b3x3_1"]).astype(bf16)
    y3 = _ref_convblock(y3, p["b3x3_2"]).astype(bf16)
    b3 = _ref_convblock(y3, p["b3x3_3"])
    xpad = jnp.pad(x.astype(jnp.float32), ((0, 0), (1, 1), (1, 1), (0, 0)))
    pooled = (lax.reduce_window(xpad, 0.0, lax.add, (1, 3, 3, 1), (1, 1, 1, 1), "VALID")
              * (1.0 / 9.0)).astype(bf16)
    bp = _ref_convblock(pooled, p["bpool"])
    out = jnp.concatenate([b1, b5, b3, bp], axis=-1)
    return jnp.transpose(out, (0, 3, 1, 2))


# ----------------------------------------------------------------------------
if __name__ == "__main__":
    key = jax.random.PRNGKey(0)
    kx, kparams = jax.random.split(key)

    N, C, H, W = 2, 4, 16, 16
    pool_features = 32
    x = jax.random.normal(kx, (N, C, H, W), jnp.float32)
    params = make_inception_a_params(kparams, C, pool_features)
    packed = pack_inception_a_params(params)

    fwd = jax.jit(inception_block_a)
    out = jax.block_until_ready(fwd(x, packed))

    expected_channels = 64 + 64 + 96 + pool_features     # 256
    assert out.shape == (N, expected_channels, H, W), out.shape

    ref = jax.block_until_ready(inception_block_a_ref(x, params))
    max_err = float(jnp.max(jnp.abs(out - ref)))
    assert jnp.allclose(out, ref, rtol=3e-2, atol=3e-2), max_err

    print("KERNEL_OK")
</pallas_src>

<mosaic_0001>
module attributes {stable_mosaic.version = 11 : i64} {
  func.func @_inception_a_kernel(%arg0: i32, %arg1: memref<1x16x16x4xbf16, #tpu.memory_space<vmem>>, %arg2: memref<4x176xbf16, #tpu.memory_space<vmem>>, %arg3: memref<4x32xbf16, #tpu.memory_space<vmem>>, %arg4: memref<5x240x64xbf16, #tpu.memory_space<vmem>>, %arg5: memref<3x192x96xbf16, #tpu.memory_space<vmem>>, %arg6: memref<3x288x96xbf16, #tpu.memory_space<vmem>>, %arg7: memref<1x176xf32, #tpu.memory_space<vmem>>, %arg8: memref<1x96xf32, #tpu.memory_space<vmem>>, %arg9: memref<1x192xf32, #tpu.memory_space<vmem>>, %arg10: memref<1x16x16x256xbf16, #tpu.memory_space<vmem>>, %arg11: memref<20x32x48xbf16, #tpu.memory_space<vmem>>, %arg12: memref<18x32x64xbf16, #tpu.memory_space<vmem>>, %arg13: memref<18x32x96xbf16, #tpu.memory_space<vmem>>, %arg14: memref<18x32x4xbf16, #tpu.memory_space<vmem>>) attributes {dimension_semantics = [#tpu.dimension_semantics<parallel>], iteration_bounds = array<i64: 2>, scalar_prefetch = 0 : i64, scratch_operands = 4 : i64, tpu.core_type = #tpu.core_type<tc>, window_params = [{transform_indices = @transform_0, window_bounds = array<i64: 1, 16, 16, 4>}, {pipeline_mode = #tpu.pipeline_mode<synchronous>, transform_indices = @transform_1, window_bounds = array<i64: 4, 176>}, {pipeline_mode = #tpu.pipeline_mode<synchronous>, transform_indices = @transform_2, window_bounds = array<i64: 4, 32>}, {pipeline_mode = #tpu.pipeline_mode<synchronous>, transform_indices = @transform_3, window_bounds = array<i64: 5, 240, 64>}, {pipeline_mode = #tpu.pipeline_mode<synchronous>, transform_indices = @transform_4, window_bounds = array<i64: 3, 192, 96>}, {pipeline_mode = #tpu.pipeline_mode<synchronous>, transform_indices = @transform_5, window_bounds = array<i64: 3, 288, 96>}, {pipeline_mode = #tpu.pipeline_mode<synchronous>, transform_indices = @transform_6, window_bounds = array<i64: 1, 176>}, {pipeline_mode = #tpu.pipeline_mode<synchronous>, transform_indices = @transform_7, window_bounds = array<i64: 1, 96>}, {pipeline_mode = #tpu.pipeline_mode<synchronous>, transform_indices = @transform_8, window_bounds = array<i64: 1, 192>}, {transform_indices = @transform_9, window_bounds = array<i64: 1, 16, 16, 256>}]} {
    %c0 = arith.constant 0 : index
    %c0_0 = arith.constant 0 : index
    %c0_1 = arith.constant 0 : index
    %c0_2 = arith.constant 0 : index
    %0 = vector.load %arg1[%c0, %c0_0, %c0_1, %c0_2] : memref<1x16x16x4xbf16, #tpu.memory_space<vmem>>, vector<1x16x16x4xbf16>
    %1 = vector.shape_cast %0 : vector<1x16x16x4xbf16> to vector<16x16x4xbf16>
    %2 = vector.shape_cast %1 : vector<16x16x4xbf16> to vector<256x4xbf16>
    %c0_3 = arith.constant 0 : index
    %c0_4 = arith.constant 0 : index
    %3 = vector.load %arg2[%c0_3, %c0_4] : memref<4x176xbf16, #tpu.memory_space<vmem>>, vector<4x176xbf16>
    %cst = arith.constant dense<0.000000e+00> : vector<256x176xf32>
    %4 = tpu.matmul %2, %3, %cst {dimension_numbers = #tpu.dot_dimension_numbers<[1], [0], [0], [1], [0, 0, 1, 1], [], []>} : vector<256x4xbf16>, vector<4x176xbf16>, vector<256x176xf32> -> vector<256x176xf32>
    %c0_5 = arith.constant 0 : index
    %c0_6 = arith.constant 0 : index
    %5 = vector.load %arg7[%c0_5, %c0_6] : memref<1x176xf32, #tpu.memory_space<vmem>>, vector<1x176xf32>
    %6 = vector.shape_cast %5 : vector<1x176xf32> to vector<176xf32>
    %7 = vector.shape_cast %6 : vector<176xf32> to vector<1x176xf32>
    %8 = vector.broadcast %7 : vector<1x176xf32> to vector<256x176xf32>
    %9 = arith.addf %4, %8 : vector<256x176xf32>
    %cst_7 = arith.constant 0.000000e+00 : f32
    %10 = vector.broadcast %cst_7 : f32 to vector<256x176xf32>
    %11 = arith.maximumf %9, %10 : vector<256x176xf32>
    %12 = vector.extract_strided_slice %11 {offsets = [0, 0], sizes = [256, 64], strides = [1, 1]} : vector<256x176xf32> to vector<256x64xf32>
    %13 = arith.truncf %12 : vector<256x64xf32> to vector<256x64xbf16>
    %14 = vector.extract_strided_slice %11 {offsets = [0, 64], sizes = [256, 48], strides = [1, 1]} : vector<256x176xf32> to vector<256x48xf32>
    %15 = arith.truncf %14 : vector<256x48xf32> to vector<256x48xbf16>
    %16 = vector.extract_strided_slice %11 {offsets = [0, 112], sizes = [256, 64], strides = [1, 1]} : vector<256x176xf32> to vector<256x64xf32>
    %17 = arith.truncf %16 : vector<256x64xf32> to vector<256x64xbf16>
    %cst_8 = arith.constant 0.000000e+00 : bf16
    %18 = vector.broadcast %cst_8 : bf16 to vector<2x32x48xbf16>
    %c0_9 = arith.constant 0 : index
    %c0_10 = arith.constant 0 : index
    %c0_11 = arith.constant 0 : index
    %19 = vector.load %arg11[%c0_9, %c0_10, %c0_11] : memref<20x32x48xbf16, #tpu.memory_space<vmem>>, vector<2x32x48xbf16>
    tpu.vector_store %arg11[%c0_9, %c0_10, %c0_11], %18 {strides = array<i32>} : memref<20x32x48xbf16, #tpu.memory_space<vmem>>, vector<2x32x48xbf16>,
    %cst_12 = arith.constant 0.000000e+00 : bf16
    %20 = vector.broadcast %cst_12 : bf16 to vector<2x32x48xbf16>
    %c18 = arith.constant 18 : index
    %c0_13 = arith.constant 0 : index
    %c0_14 = arith.constant 0 : index
    %21 = vector.load %arg11[%c18, %c0_13, %c0_14] : memref<20x32x48xbf16, #tpu.memory_space<vmem>>, vector<2x32x48xbf16>
    tpu.vector_store %arg11[%c18, %c0_13, %c0_14], %20 {strides = array<i32>} : memref<20x32x48xbf16, #tpu.memory_space<vmem>>, vector<2x32x48xbf16>,
    %cst_15 = arith.constant 0.000000e+00 : bf16
    %22 = vector.broadcast %cst_15 : bf16 to vector<20x2x48xbf16>
    %c0_16 = arith.constant 0 : index
    %c6 = arith.constant 6 : index
    %c0_17 = arith.constant 0 : index
    %23 = vector.load %arg11[%c0_16, %c6, %c0_17] : memref<20x32x48xbf16, #tpu.memory_space<vmem>>, vector<20x2x48xbf16>
    tpu.vector_store %arg11[%c0_16, %c6, %c0_17], %22 {strides = array<i32>} : memref<20x32x48xbf16, #tpu.memory_space<vmem>>, vector<20x2x48xbf16>,
    %cst_18 = arith.constant 0.000000e+00 : bf16
    %24 = vector.broadcast %cst_18 : bf16 to vector<20x2x48xbf16>
    %c0_19 = arith.constant 0 : index
    %c24 = arith.constant 24 : index
    %c0_20 = arith.constant 0 : index
    %25 = vector.load %arg11[%c0_19, %c24, %c0_20] : memref<20x32x48xbf16, #tpu.memory_space<vmem>>, vector<20x2x48xbf16>
    tpu.vector_store %arg11[%c0_19, %c24, %c0_20], %24 {strides = array<i32>} : memref<20x32x48xbf16, #tpu.memory_space<vmem>>, vector<20x2x48xbf16>,
    %26 = vector.shape_cast %15 : vector<256x48xbf16> to vector<16x16x48xbf16>
    %c2 = arith.constant 2 : index
    %c8 = arith.constant 8 : index
    %c0_21 = arith.constant 0 : index
    %27 = vector.load %arg11[%c2, %c8, %c0_21] : memref<20x32x48xbf16, #tpu.memory_space<vmem>>, vector<16x16x48xbf16>
    tpu.vector_store %arg11[%c2, %c8, %c0_21], %26 {strides = array<i32>} : memref<20x32x48xbf16, #tpu.memory_space<vmem>>, vector<16x16x48xbf16>,
    %c0_22 = arith.constant 0 : index
    %c6_23 = arith.constant 6 : index
    %c0_24 = arith.constant 0 : index
    %28 = vector.load %arg11[%c0_22, %c6_23, %c0_24] : memref<20x32x48xbf16, #tpu.memory_space<vmem>>, vector<20x16x48xbf16>
    %c0_25 = arith.constant 0 : index
    %c7 = arith.constant 7 : index
    %c0_26 = arith.constant 0 : index
    %29 = vector.load %arg11[%c0_25, %c7, %c0_26] : memref<20x32x48xbf16, #tpu.memory_space<vmem>>, vector<20x16x48xbf16>
    %c0_27 = arith.constant 0 : index
    %c8_28 = arith.constant 8 : index
    %c0_29 = arith.constant 0 : index
    %30 = vector.load %arg11[%c0_27, %c8_28, %c0_29] : memref<20x32x48xbf16, #tpu.memory_space<vmem>>, vector<20x16x48xbf16>
    %c0_30 = arith.constant 0 : index
    %c9 = arith.constant 9 : index
    %c0_31 = arith.constant 0 : index
    %31 = vector.load %arg11[%c0_30, %c9, %c0_31] : memref<20x32x48xbf16, #tpu.memory_space<vmem>>, vector<20x16x48xbf16>
    %c0_32 = arith.constant 0 : index
    %c10 = arith.constant 10 : index
    %c0_33 = arith.constant 0 : index
    %32 = vector.load %arg11[%c0_32, %c10, %c0_33] : memref<20x32x48xbf16, #tpu.memory_space<vmem>>, vector<20x16x48xbf16>
    %33 = tpu.concatenate %28, %29, %30, %31, %32 in 2 : vector<20x16x48xbf16>, vector<20x16x48xbf16>, vector<20x16x48xbf16>, vector<20x16x48xbf16>, vector<20x16x48xbf16> -> vector<20x16x240xbf16>
    %34 = vector.extract_strided_slice %33 {offsets = [0, 0, 0], sizes = [16, 16, 240], strides = [1, 1, 1]} : vector<20x16x240xbf16> to vector<16x16x240xbf16>
    %35 = vector.shape_cast %34 : vector<16x16x240xbf16> to vector<256x240xbf16>
    %c0_34 = arith.constant 0 : index
    %c0_35 = arith.constant 0 : index
    %c0_36 = arith.constant 0 : index
    %36 = vector.load %arg4[%c0_34, %c0_35, %c0_36] : memref<5x240x64xbf16, #tpu.memory_space<vmem>>, vector<1x240x64xbf16>
    %37 = vector.shape_cast %36 : vector<1x240x64xbf16> to vector<240x64xbf16>
    %cst_37 = arith.constant dense<0.000000e+00> : vector<256x64xf32>
    %38 = tpu.matmul %35, %37, %cst_37 {dimension_numbers = #tpu.dot_dimension_numbers<[1], [0], [0], [1], [0, 0, 1, 1], [], []>} : vector<256x240xbf16>, vector<240x64xbf16>, vector<256x64xf32> -> vector<256x64xf32>
    %39 = vector.extract_strided_slice %33 {offsets = [1, 0, 0], sizes = [16, 16, 240], strides = [1, 1, 1]} : vector<20x16x240xbf16> to vector<16x16x240xbf16>
    %40 = vector.shape_cast %39 : vector<16x16x240xbf16> to vector<256x240xbf16>
    %c1 = arith.constant 1 : index
    %c0_38 = arith.constant 0 : index
    %c0_39 = arith.constant 0 : index
    %41 = vector.load %arg4[%c1, %c0_38, %c0_39] : memref<5x240x64xbf16, #tpu.memory_space<vmem>>, vector<1x240x64xbf16>
    %42 = vector.shape_cast %41 : vector<1x240x64xbf16> to vector<240x64xbf16>
    %cst_40 = arith.constant dense<0.000000e+00> : vector<256x64xf32>
    %43 = tpu.matmul %40, %42, %cst_40 {dimension_numbers = #tpu.dot_dimension_numbers<[1], [0], [0], [1], [0, 0, 1, 1], [], []>} : vector<256x240xbf16>, vector<240x64xbf16>, vector<256x64xf32> -> vector<256x64xf32>
    %44 = arith.addf %38, %43 : vector<256x64xf32>
    %45 = vector.extract_strided_slice %33 {offsets = [2, 0, 0], sizes = [16, 16, 240], strides = [1, 1, 1]} : vector<20x16x240xbf16> to vector<16x16x240xbf16>
    %46 = vector.shape_cast %45 : vector<16x16x240xbf16> to vector<256x240xbf16>
    %c2_41 = arith.constant 2 : index
    %c0_42 = arith.constant 0 : index
    %c0_43 = arith.constant 0 : index
    %47 = vector.load %arg4[%c2_41, %c0_42, %c0_43] : memref<5x240x64xbf16, #tpu.memory_space<vmem>>, vector<1x240x64xbf16>
    %48 = vector.shape_cast %47 : vector<1x240x64xbf16> to vector<240x64xbf16>
    %cst_44 = arith.constant dense<0.000000e+00> : vector<256x64xf32>
    %49 = tpu.matmul %46, %48, %cst_44 {dimension_numbers = #tpu.dot_dimension_numbers<[1], [0], [0], [1], [0, 0, 1, 1], [], []>} : vector<256x240xbf16>, vector<240x64xbf16>, vector<256x64xf32> -> vector<256x64xf32>
    %50 = arith.addf %44, %49 : vector<256x64xf32>
    %51 = vector.extract_strided_slice %33 {offsets = [3, 0, 0], sizes = [16, 16, 240], strides = [1, 1, 1]} : vector<20x16x240xbf16> to vector<16x16x240xbf16>
    %52 = vector.shape_cast %51 : vector<16x16x240xbf16> to vector<256x240xbf16>
    %c3 = arith.constant 3 : index
    %c0_45 = arith.constant 0 : index
    %c0_46 = arith.constant 0 : index
    %53 = vector.load %arg4[%c3, %c0_45, %c0_46] : memref<5x240x64xbf16, #tpu.memory_space<vmem>>, vector<1x240x64xbf16>
    %54 = vector.shape_cast %53 : vector<1x240x64xbf16> to vector<240x64xbf16>
    %cst_47 = arith.constant dense<0.000000e+00> : vector<256x64xf32>
    %55 = tpu.matmul %52, %54, %cst_47 {dimension_numbers = #tpu.dot_dimension_numbers<[1], [0], [0], [1], [0, 0, 1, 1], [], []>} : vector<256x240xbf16>, vector<240x64xbf16>, vector<256x64xf32> -> vector<256x64xf32>
    %56 = arith.addf %50, %55 : vector<256x64xf32>
    %57 = vector.extract_strided_slice %33 {offsets = [4, 0, 0], sizes = [16, 16, 240], strides = [1, 1, 1]} : vector<20x16x240xbf16> to vector<16x16x240xbf16>
    %58 = vector.shape_cast %57 : vector<16x16x240xbf16> to vector<256x240xbf16>
    %c4 = arith.constant 4 : index
    %c0_48 = arith.constant 0 : index
    %c0_49 = arith.constant 0 : index
    %59 = vector.load %arg4[%c4, %c0_48, %c0_49] : memref<5x240x64xbf16, #tpu.memory_space<vmem>>, vector<1x240x64xbf16>
    %60 = vector.shape_cast %59 : vector<1x240x64xbf16> to vector<240x64xbf16>
    %cst_50 = arith.constant dense<0.000000e+00> : vector<256x64xf32>
    %61 = tpu.matmul %58, %60, %cst_50 {dimension_numbers = #tpu.dot_dimension_numbers<[1], [0], [0], [1], [0, 0, 1, 1], [], []>} : vector<256x240xbf16>, vector<240x64xbf16>, vector<256x64xf32> -> vector<256x64xf32>
    %62 = arith.addf %56, %61 : vector<256x64xf32>
    %c0_51 = arith.constant 0 : index
    %c0_52 = arith.constant 0 : index
    %63 = vector.load %arg9[%c0_51, %c0_52] : memref<1x192xf32, #tpu.memory_space<vmem>>, vector<1x64xf32>
    %64 = vector.shape_cast %63 : vector<1x64xf32> to vector<64xf32>
    %65 = vector.shape_cast %64 : vector<64xf32> to vector<1x64xf32>
    %66 = vector.broadcast %65 : vector<1x64xf32> to vector<256x64xf32>
    %67 = arith.addf %62, %66 : vector<256x64xf32>
    %cst_53 = arith.constant 0.000000e+00 : f32
    %68 = vector.broadcast %cst_53 : f32 to vector<256x64xf32>
    %69 = arith.maximumf %67, %68 : vector<256x64xf32>
    %70 = arith.truncf %69 : vector<256x64xf32> to vector<256x64xbf16>
    %cst_54 = arith.constant 0.000000e+00 : bf16
    %71 = vector.broadcast %cst_54 : bf16 to vector<1x32x64xbf16>
    %c0_55 = arith.constant 0 : index
    %c0_56 = arith.constant 0 : index
    %c0_57 = arith.constant 0 : index
    %72 = vector.load %arg12[%c0_55, %c0_56, %c0_57] : memref<18x32x64xbf16, #tpu.memory_space<vmem>>, vector<1x32x64xbf16>
    tpu.vector_store %arg12[%c0_55, %c0_56, %c0_57], %71 {strides = array<i32>} : memref<18x32x64xbf16, #tpu.memory_space<vmem>>, vector<1x32x64xbf16>,
    %cst_58 = arith.constant 0.000000e+00 : bf16
    %73 = vector.broadcast %cst_58 : bf16 to vector<1x32x64xbf16>
    %c17 = arith.constant 17 : index
    %c0_59 = arith.constant 0 : index
    %c0_60 = arith.constant 0 : index
    %74 = vector.load %arg12[%c17, %c0_59, %c0_60] : memref<18x32x64xbf16, #tpu.memory_space<vmem>>, vector<1x32x64xbf16>
    tpu.vector_store %arg12[%c17, %c0_59, %c0_60], %73 {strides = array<i32>} : memref<18x32x64xbf16, #tpu.memory_space<vmem>>, vector<1x32x64xbf16>,
    %cst_61 = arith.constant 0.000000e+00 : bf16
    %75 = vector.broadcast %cst_61 : bf16 to vector<18x1x64xbf16>
    %c0_62 = arith.constant 0 : index
    %c7_63 = arith.constant 7 : index
    %c0_64 = arith.constant 0 : index
    %76 = vector.load %arg12[%c0_62, %c7_63, %c0_64] : memref<18x32x64xbf16, #tpu.memory_space<vmem>>, vector<18x1x64xbf16>
    tpu.vector_store %arg12[%c0_62, %c7_63, %c0_64], %75 {strides = array<i32>} : memref<18x32x64xbf16, #tpu.memory_space<vmem>>, vector<18x1x64xbf16>,
    %cst_65 = arith.constant 0.000000e+00 : bf16
    %77 = vector.broadcast %cst_65 : bf16 to vector<18x1x64xbf16>
    %c0_66 = arith.constant 0 : index
    %c24_67 = arith.constant 24 : index
    %c0_68 = arith.constant 0 : index
    %78 = vector.load %arg12[%c0_66, %c24_67, %c0_68] : memref<18x32x64xbf16, #tpu.memory_space<vmem>>, vector<18x1x64xbf16>
    tpu.vector_store %arg12[%c0_66, %c24_67, %c0_68], %77 {strides = array<i32>} : memref<18x32x64xbf16, #tpu.memory_space<vmem>>, vector<18x1x64xbf16>,
    %79 = vector.shape_cast %17 : vector<256x64xbf16> to vector<16x16x64xbf16>
    %c1_69 = arith.constant 1 : index
    %c8_70 = arith.constant 8 : index
    %c0_71 = arith.constant 0 : index
    %80 = vector.load %arg12[%c1_69, %c8_70, %c0_71] : memref<18x32x64xbf16, #tpu.memory_space<vmem>>, vector<16x16x64xbf16>
    tpu.vector_store %arg12[%c1_69, %c8_70, %c0_71], %79 {strides = array<i32>} : memref<18x32x64xbf16, #tpu.memory_space<vmem>>, vector<16x16x64xbf16>,
    %c0_72 = arith.constant 0 : index
    %c7_73 = arith.constant 7 : index
    %c0_74 = arith.constant 0 : index
    %81 = vector.load %arg12[%c0_72, %c7_73, %c0_74] : memref<18x32x64xbf16, #tpu.memory_space<vmem>>, vector<18x16x64xbf16>
    %c0_75 = arith.constant 0 : index
    %c8_76 = arith.constant 8 : index
    %c0_77 = arith.constant 0 : index
    %82 = vector.load %arg12[%c0_75, %c8_76, %c0_77] : memref<18x32x64xbf16, #tpu.memory_space<vmem>>, vector<18x16x64xbf16>
    %c0_78 = arith.constant 0 : index
    %c9_79 = arith.constant 9 : index
    %c0_80 = arith.constant 0 : index
    %83 = vector.load %arg12[%c0_78, %c9_79, %c0_80] : memref<18x32x64xbf16, #tpu.memory_space<vmem>>, vector<18x16x64xbf16>
    %84 = tpu.concatenate %81, %82, %83 in 2 : vector<18x16x64xbf16>, vector<18x16x64xbf16>, vector<18x16x64xbf16> -> vector<18x16x192xbf16>
    %85 = vector.extract_strided_slice %84 {offsets = [0, 0, 0], sizes = [16, 16, 192], strides = [1, 1, 1]} : vector<18x16x192xbf16> to vector<16x16x192xbf16>
    %86 = vector.shape_cast %85 : vector<16x16x192xbf16> to vector<256x192xbf16>
    %c0_81 = arith.constant 0 : index
    %c0_82 = arith.constant 0 : index
    %c0_83 = arith.constant 0 : index
    %87 = vector.load %arg5[%c0_81, %c0_82, %c0_83] : memref<3x192x96xbf16, #tpu.memory_space<vmem>>, vector<1x192x96xbf16>
    %88 = vector.shape_cast %87 : vector<1x192x96xbf16> to vector<192x96xbf16>
    %cst_84 = arith.constant dense<0.000000e+00> : vector<256x96xf32>
    %89 = tpu.matmul %86, %88, %cst_84 {dimension_numbers = #tpu.dot_dimension_numbers<[1], [0], [0], [1], [0, 0, 1, 1], [], []>} : vector<256x192xbf16>, vector<192x96xbf16>, vector<256x96xf32> -> vector<256x96xf32>
    %90 = vector.extract_strided_slice %84 {offsets = [1, 0, 0], sizes = [16, 16, 192], strides = [1, 1, 1]} : vector<18x16x192xbf16> to vector<16x16x192xbf16>
    %91 = vector.shape_cast %90 : vector<16x16x192xbf16> to vector<256x192xbf16>
    %c1_85 = arith.constant 1 : index
    %c0_86 = arith.constant 0 : index
    %c0_87 = arith.constant 0 : index
    %92 = vector.load %arg5[%c1_85, %c0_86, %c0_87] : memref<3x192x96xbf16, #tpu.memory_space<vmem>>, vector<1x192x96xbf16>
    %93 = vector.shape_cast %92 : vector<1x192x96xbf16> to vector<192x96xbf16>
    %cst_88 = arith.constant dense<0.000000e+00> : vector<256x96xf32>
    %94 = tpu.matmul %91, %93, %cst_88 {dimension_numbers = #tpu.dot_dimension_numbers<[1], [0], [0], [1], [0, 0, 1, 1], [], []>} : vector<256x192xbf16>, vector<192x96xbf16>, vector<256x96xf32> -> vector<256x96xf32>
    %95 = arith.addf %89, %94 : vector<256x96xf32>
    %96 = vector.extract_strided_slice %84 {offsets = [2, 0, 0], sizes = [16, 16, 192], strides = [1, 1, 1]} : vector<18x16x192xbf16> to vector<16x16x192xbf16>
    %97 = vector.shape_cast %96 : vector<16x16x192xbf16> to vector<256x192xbf16>
    %c2_89 = arith.constant 2 : index
    %c0_90 = arith.constant 0 : index
    %c0_91 = arith.constant 0 : index
    %98 = vector.load %arg5[%c2_89, %c0_90, %c0_91] : memref<3x192x96xbf16, #tpu.memory_space<vmem>>, vector<1x192x96xbf16>
    %99 = vector.shape_cast %98 : vector<1x192x96xbf16> to vector<192x96xbf16>
    %cst_92 = arith.constant dense<0.000000e+00> : vector<256x96xf32>
    %100 = tpu.matmul %97, %99, %cst_92 {dimension_numbers = #tpu.dot_dimension_numbers<[1], [0], [0], [1], [0, 0, 1, 1], [], []>} : vector<256x192xbf16>, vector<192x96xbf16>, vector<256x96xf32> -> vector<256x96xf32>
    %101 = arith.addf %95, %100 : vector<256x96xf32>
    %c0_93 = arith.constant 0 : index
    %c0_94 = arith.constant 0 : index
    %102 = vector.load %arg8[%c0_93, %c0_94] : memref<1x96xf32, #tpu.memory_space<vmem>>, vector<1x96xf32>
    %103 = vector.shape_cast %102 : vector<1x96xf32> to vector<96xf32>
    %104 = vector.shape_cast %103 : vector<96xf32> to vector<1x96xf32>
    %105 = vector.broadcast %104 : vector<1x96xf32> to vector<256x96xf32>
    %106 = arith.addf %101, %105 : vector<256x96xf32>
    %cst_95 = arith.constant 0.000000e+00 : f32
    %107 = vector.broadcast %cst_95 : f32 to vector<256x96xf32>
    %108 = arith.maximumf %106, %107 : vector<256x96xf32>
    %109 = arith.truncf %108 : vector<256x96xf32> to vector<256x96xbf16>
    %cst_96 = arith.constant 0.000000e+00 : bf16
    %110 = vector.broadcast %cst_96 : bf16 to vector<1x32x96xbf16>
    %c0_97 = arith.constant 0 : index
    %c0_98 = arith.constant 0 : index
    %c0_99 = arith.constant 0 : index
    %111 = vector.load %arg13[%c0_97, %c0_98, %c0_99] : memref<18x32x96xbf16, #tpu.memory_space<vmem>>, vector<1x32x96xbf16>
    tpu.vector_store %arg13[%c0_97, %c0_98, %c0_99], %110 {strides = array<i32>} : memref<18x32x96xbf16, #tpu.memory_space<vmem>>, vector<1x32x96xbf16>,
    %cst_100 = arith.constant 0.000000e+00 : bf16
    %112 = vector.broadcast %cst_100 : bf16 to vector<1x32x96xbf16>
    %c17_101 = arith.constant 17 : index
    %c0_102 = arith.constant 0 : index
    %c0_103 = arith.constant 0 : index
    %113 = vector.load %arg13[%c17_101, %c0_102, %c0_103] : memref<18x32x96xbf16, #tpu.memory_space<vmem>>, vector<1x32x96xbf16>
    tpu.vector_store %arg13[%c17_101, %c0_102, %c0_103], %112 {strides = array<i32>} : memref<18x32x96xbf16, #tpu.memory_space<vmem>>, vector<1x32x96xbf16>,
    %cst_104 = arith.constant 0.000000e+00 : bf16
    %114 = vector.broadcast %cst_104 : bf16 to vector<18x1x96xbf16>
    %c0_105 = arith.constant 0 : index
    %c7_106 = arith.constant 7 : index
    %c0_107 = arith.constant 0 : index
    %115 = vector.load %arg13[%c0_105, %c7_106, %c0_107] : memref<18x32x96xbf16, #tpu.memory_space<vmem>>, vector<18x1x96xbf16>
    tpu.vector_store %arg13[%c0_105, %c7_106, %c0_107], %114 {strides = array<i32>} : memref<18x32x96xbf16, #tpu.memory_space<vmem>>, vector<18x1x96xbf16>,
    %cst_108 = arith.constant 0.000000e+00 : bf16
    %116 = vector.broadcast %cst_108 : bf16 to vector<18x1x96xbf16>
    %c0_109 = arith.constant 0 : index
    %c24_110 = arith.constant 24 : index
    %c0_111 = arith.constant 0 : index
    %117 = vector.load %arg13[%c0_109, %c24_110, %c0_111] : memref<18x32x96xbf16, #tpu.memory_space<vmem>>, vector<18x1x96xbf16>
    tpu.vector_store %arg13[%c0_109, %c24_110, %c0_111], %116 {strides = array<i32>} : memref<18x32x96xbf16, #tpu.memory_space<vmem>>, vector<18x1x96xbf16>,
    %118 = vector.shape_cast %109 : vector<256x96xbf16> to vector<16x16x96xbf16>
    %c1_112 = arith.constant 1 : index
    %c8_113 = arith.constant 8 : index
    %c0_114 = arith.constant 0 : index
    %119 = vector.load %arg13[%c1_112, %c8_113, %c0_114] : memref<18x32x96xbf16, #tpu.memory_space<vmem>>, vector<16x16x96xbf16>
    tpu.vector_store %arg13[%c1_112, %c8_113, %c0_114], %118 {strides = array<i32>} : memref<18x32x96xbf16, #tpu.memory_space<vmem>>, vector<16x16x96xbf16>,
    %c0_115 = arith.constant 0 : index
    %c7_116 = arith.constant 7 : index
    %c0_117 = arith.constant 0 : index
    %120 = vector.load %arg13[%c0_115, %c7_116, %c0_117] : memref<18x32x96xbf16, #tpu.memory_space<vmem>>, vector<18x16x96xbf16>
    %c0_118 = arith.constant 0 : index
    %c8_119 = arith.constant 8 : index
    %c0_120 = arith.constant 0 : index
    %121 = vector.load %arg13[%c0_118, %c8_119, %c0_120] : memref<18x32x96xbf16, #tpu.memory_space<vmem>>, vector<18x16x96xbf16>
    %c0_121 = arith.constant 0 : index
    %c9_122 = arith.constant 9 : index
    %c0_123 = arith.constant 0 : index
    %122 = vector.load %arg13[%c0_121, %c9_122, %c0_123] : memref<18x32x96xbf16, #tpu.memory_space<vmem>>, vector<18x16x96xbf16>
    %123 = tpu.concatenate %120, %121, %122 in 2 : vector<18x16x96xbf16>, vector<18x16x96xbf16>, vector<18x16x96xbf16> -> vector<18x16x288xbf16>
    %124 = vector.extract_strided_slice %123 {offsets = [0, 0, 0], sizes = [16, 16, 288], strides = [1, 1, 1]} : vector<18x16x288xbf16> to vector<16x16x288xbf16>
    %125 = vector.shape_cast %124 : vector<16x16x288xbf16> to vector<256x288xbf16>
    %c0_124 = arith.constant 0 : index
    %c0_125 = arith.constant 0 : index
    %c0_126 = arith.constant 0 : index
    %126 = vector.load %arg6[%c0_124, %c0_125, %c0_126] : memref<3x288x96xbf16, #tpu.memory_space<vmem>>, vector<1x288x96xbf16>
    %127 = vector.shape_cast %126 : vector<1x288x96xbf16> to vector<288x96xbf16>
    %cst_127 = arith.constant dense<0.000000e+00> : vector<256x96xf32>
    %128 = tpu.matmul %125, %127, %cst_127 {dimension_numbers = #tpu.dot_dimension_numbers<[1], [0], [0], [1], [0, 0, 1, 1], [], []>} : vector<256x288xbf16>, vector<288x96xbf16>, vector<256x96xf32> -> vector<256x96xf32>
    %129 = vector.extract_strided_slice %123 {offsets = [1, 0, 0], sizes = [16, 16, 288], strides = [1, 1, 1]} : vector<18x16x288xbf16> to vector<16x16x288xbf16>
    %130 = vector.shape_cast %129 : vector<16x16x288xbf16> to vector<256x288xbf16>
    %c1_128 = arith.constant 1 : index
    %c0_129 = arith.constant 0 : index
    %c0_130 = arith.constant 0 : index
    %131 = vector.load %arg6[%c1_128, %c0_129, %c0_130] : memref<3x288x96xbf16, #tpu.memory_space<vmem>>, vector<1x288x96xbf16>
    %132 = vector.shape_cast %131 : vector<1x288x96xbf16> to vector<288x96xbf16>
    %cst_131 = arith.constant dense<0.000000e+00> : vector<256x96xf32>
    %133 = tpu.matmul %130, %132, %cst_131 {dimension_numbers = #tpu.dot_dimension_numbers<[1], [0], [0], [1], [0, 0, 1, 1], [], []>} : vector<256x288xbf16>, vector<288x96xbf16>, vector<256x96xf32> -> vector<256x96xf32>
    %134 = arith.addf %128, %133 : vector<256x96xf32>
    %135 = vector.extract_strided_slice %123 {offsets = [2, 0, 0], sizes = [16, 16, 288], strides = [1, 1, 1]} : vector<18x16x288xbf16> to vector<16x16x288xbf16>
    %136 = vector.shape_cast %135 : vector<16x16x288xbf16> to vector<256x288xbf16>
    %c2_132 = arith.constant 2 : index
    %c0_133 = arith.constant 0 : index
    %c0_134 = arith.constant 0 : index
    %137 = vector.load %arg6[%c2_132, %c0_133, %c0_134] : memref<3x288x96xbf16, #tpu.memory_space<vmem>>, vector<1x288x96xbf16>
    %138 = vector.shape_cast %137 : vector<1x288x96xbf16> to vector<288x96xbf16>
    %cst_135 = arith.constant dense<0.000000e+00> : vector<256x96xf32>
    %139 = tpu.matmul %136, %138, %cst_135 {dimension_numbers = #tpu.dot_dimension_numbers<[1], [0], [0], [1], [0, 0, 1, 1], [], []>} : vector<256x288xbf16>, vector<288x96xbf16>, vector<256x96xf32> -> vector<256x96xf32>
    %140 = arith.addf %134, %139 : vector<256x96xf32>
    %c0_136 = arith.constant 0 : index
    %c64 = arith.constant 64 : index
    %141 = vector.load %arg9[%c0_136, %c64] : memref<1x192xf32, #tpu.memory_space<vmem>>, vector<1x96xf32>
    %142 = vector.shape_cast %141 : vector<1x96xf32> to vector<96xf32>
    %143 = vector.shape_cast %142 : vector<96xf32> to vector<1x96xf32>
    %144 = vector.broadcast %143 : vector<1x96xf32> to vector<256x96xf32>
    %145 = arith.addf %140, %144 : vector<256x96xf32>
    %cst_137 = arith.constant 0.000000e+00 : f32
    %146 = vector.broadcast %cst_137 : f32 to vector<256x96xf32>
    %147 = arith.maximumf %145, %146 : vector<256x96xf32>
    %148 = arith.truncf %147 : vector<256x96xf32> to vector<256x96xbf16>
    %cst_138 = arith.constant 0.000000e+00 : bf16
    %149 = vector.broadcast %cst_138 : bf16 to vector<1x32x4xbf16>
    %c0_139 = arith.constant 0 : index
    %c0_140 = arith.constant 0 : index
    %c0_141 = arith.constant 0 : index
    %150 = vector.load %arg14[%c0_139, %c0_140, %c0_141] : memref<18x32x4xbf16, #tpu.memory_space<vmem>>, vector<1x32x4xbf16>
    tpu.vector_store %arg14[%c0_139, %c0_140, %c0_141], %149 {strides = array<i32>} : memref<18x32x4xbf16, #tpu.memory_space<vmem>>, vector<1x32x4xbf16>,
    %cst_142 = arith.constant 0.000000e+00 : bf16
    %151 = vector.broadcast %cst_142 : bf16 to vector<1x32x4xbf16>
    %c17_143 = arith.constant 17 : index
    %c0_144 = arith.constant 0 : index
    %c0_145 = arith.constant 0 : index
    %152 = vector.load %arg14[%c17_143, %c0_144, %c0_145] : memref<18x32x4xbf16, #tpu.memory_space<vmem>>, vector<1x32x4xbf16>
    tpu.vector_store %arg14[%c17_143, %c0_144, %c0_145], %151 {strides = array<i32>} : memref<18x32x4xbf16, #tpu.memory_space<vmem>>, vector<1x32x4xbf16>,
    %cst_146 = arith.constant 0.000000e+00 : bf16
    %153 = vector.broadcast %cst_146 : bf16 to vector<18x1x4xbf16>
    %c0_147 = arith.constant 0 : index
    %c7_148 = arith.constant 7 : index
    %c0_149 = arith.constant 0 : index
    %154 = vector.load %arg14[%c0_147, %c7_148, %c0_149] : memref<18x32x4xbf16, #tpu.memory_space<vmem>>, vector<18x1x4xbf16>
    tpu.vector_store %arg14[%c0_147, %c7_148, %c0_149], %153 {strides = array<i32>} : memref<18x32x4xbf16, #tpu.memory_space<vmem>>, vector<18x1x4xbf16>,
    %cst_150 = arith.constant 0.000000e+00 : bf16
    %155 = vector.broadcast %cst_150 : bf16 to vector<18x1x4xbf16>
    %c0_151 = arith.constant 0 : index
    %c24_152 = arith.constant 24 : index
    %c0_153 = arith.constant 0 : index
    %156 = vector.load %arg14[%c0_151, %c24_152, %c0_153] : memref<18x32x4xbf16, #tpu.memory_space<vmem>>, vector<18x1x4xbf16>
    tpu.vector_store %arg14[%c0_151, %c24_152, %c0_153], %155 {strides = array<i32>} : memref<18x32x4xbf16, #tpu.memory_space<vmem>>, vector<18x1x4xbf16>,
    %c1_154 = arith.constant 1 : index
    %c8_155 = arith.constant 8 : index
    %c0_156 = arith.constant 0 : index
    %157 = vector.load %arg14[%c1_154, %c8_155, %c0_156] : memref<18x32x4xbf16, #tpu.memory_space<vmem>>, vector<16x16x4xbf16>
    tpu.vector_store %arg14[%c1_154, %c8_155, %c0_156], %1 {strides = array<i32>} : memref<18x32x4xbf16, #tpu.memory_space<vmem>>, vector<16x16x4xbf16>,
    %c0_157 = arith.constant 0 : index
    %c7_158 = arith.constant 7 : index
    %c0_159 = arith.constant 0 : index
    %158 = vector.load %arg14[%c0_157, %c7_158, %c0_159] : memref<18x32x4xbf16, #tpu.memory_space<vmem>>, vector<18x16x4xbf16>
    %159 = arith.extf %158 : vector<18x16x4xbf16> to vector<18x16x4xf32>
    %c0_160 = arith.constant 0 : index
    %c8_161 = arith.constant 8 : index
    %c0_162 = arith.constant 0 : index
    %160 = vector.load %arg14[%c0_160, %c8_161, %c0_162] : memref<18x32x4xbf16, #tpu.memory_space<vmem>>, vector<18x16x4xbf16>
    %161 = arith.extf %160 : vector<18x16x4xbf16> to vector<18x16x4xf32>
    %162 = arith.addf %159, %161 : vector<18x16x4xf32>
    %c0_163 = arith.constant 0 : index
    %c9_164 = arith.constant 9 : index
    %c0_165 = arith.constant 0 : index
    %163 = vector.load %arg14[%c0_163, %c9_164, %c0_165] : memref<18x32x4xbf16, #tpu.memory_space<vmem>>, vector<18x16x4xbf16>
    %164 = arith.extf %163 : vector<18x16x4xbf16> to vector<18x16x4xf32>
    %165 = arith.addf %162, %164 : vector<18x16x4xf32>
    %166 = vector.extract_strided_slice %165 {offsets = [0, 0, 0], sizes = [16, 16, 4], strides = [1, 1, 1]} : vector<18x16x4xf32> to vector<16x16x4xf32>
    %167 = vector.extract_strided_slice %165 {offsets = [1, 0, 0], sizes = [16, 16, 4], strides = [1, 1, 1]} : vector<18x16x4xf32> to vector<16x16x4xf32>
    %168 = arith.addf %166, %167 : vector<16x16x4xf32>
    %169 = vector.extract_strided_slice %165 {offsets = [2, 0, 0], sizes = [16, 16, 4], strides = [1, 1, 1]} : vector<18x16x4xf32> to vector<16x16x4xf32>
    %170 = arith.addf %168, %169 : vector<16x16x4xf32>
    %cst_166 = arith.constant 0.111111112 : f32
    %171 = vector.broadcast %cst_166 : f32 to vector<16x16x4xf32>
    %172 = arith.mulf %170, %171 : vector<16x16x4xf32>
    %173 = arith.truncf %172 : vector<16x16x4xf32> to vector<16x16x4xbf16>
    %174 = vector.shape_cast %173 : vector<16x16x4xbf16> to vector<256x4xbf16>
    %c0_167 = arith.constant 0 : index
    %c0_168 = arith.constant 0 : index
    %175 = vector.load %arg3[%c0_167, %c0_168] : memref<4x32xbf16, #tpu.memory_space<vmem>>, vector<4x32xbf16>
    %cst_169 = arith.constant dense<0.000000e+00> : vector<256x32xf32>
    %176 = tpu.matmul %174, %175, %cst_169 {dimension_numbers = #tpu.dot_dimension_numbers<[1], [0], [0], [1], [0, 0, 1, 1], [], []>} : vector<256x4xbf16>, vector<4x32xbf16>, vector<256x32xf32> -> vector<256x32xf32>
    %c0_170 = arith.constant 0 : index
    %c160 = arith.constant 160 : index
    %177 = vector.load %arg9[%c0_170, %c160] : memref<1x192xf32, #tpu.memory_space<vmem>>, vector<1x32xf32>
    %178 = vector.shape_cast %177 : vector<1x32xf32> to vector<32xf32>
    %179 = vector.shape_cast %178 : vector<32xf32> to vector<1x32xf32>
    %180 = vector.broadcast %179 : vector<1x32xf32> to vector<256x32xf32>
    %181 = arith.addf %176, %180 : vector<256x32xf32>
    %cst_171 = arith.constant 0.000000e+00 : f32
    %182 = vector.broadcast %cst_171 : f32 to vector<256x32xf32>
    %183 = arith.maximumf %181, %182 : vector<256x32xf32>
    %184 = arith.truncf %183 : vector<256x32xf32> to vector<256x32xbf16>
    %185 = tpu.concatenate %13, %70, %148, %184 in 1 : vector<256x64xbf16>, vector<256x64xbf16>, vector<256x96xbf16>, vector<256x32xbf16> -> vector<256x256xbf16>
    %186 = vector.shape_cast %185 : vector<256x256xbf16> to vector<1x16x16x256xbf16>
    %c0_172 = arith.constant 0 : index
    %c0_173 = arith.constant 0 : index
    %c0_174 = arith.constant 0 : index
    %c0_175 = arith.constant 0 : index
    %187 = vector.load %arg10[%c0_172, %c0_173, %c0_174, %c0_175] : memref<1x16x16x256xbf16, #tpu.memory_space<vmem>>, vector<1x16x16x256xbf16>
    tpu.vector_store %arg10[%c0_172, %c0_173, %c0_174, %c0_175], %186 {strides = array<i32>} : memref<1x16x16x256xbf16, #tpu.memory_space<vmem>>, vector<1x16x16x256xbf16>,
    return
  }
  func.func @transform_0(%arg0: i32) -> (i32, i32, i32, i32) {
    %c0_i32 = arith.constant 0 : i32
    %c0_i32_0 = arith.constant 0 : i32
    %c0_i32_1 = arith.constant 0 : i32
    %c0_i32_2 = arith.constant 0 : i32
    return %arg0, %c0_i32, %c0_i32_0, %c0_i32_1 : i32, i32, i32, i32
  }
  func.func @transform_1(%arg0: i32) -> (i32, i32) {
    %c0_i32 = arith.constant 0 : i32
    %c0_i32_0 = arith.constant 0 : i32
    %c0_i32_1 = arith.constant 0 : i32
    return %c0_i32, %c0_i32_0 : i32, i32
  }
  func.func @transform_2(%arg0: i32) -> (i32, i32) {
    %c0_i32 = arith.constant 0 : i32
    %c0_i32_0 = arith.constant 0 : i32
    %c0_i32_1 = arith.constant 0 : i32
    return %c0_i32, %c0_i32_0 : i32, i32
  }
  func.func @transform_3(%arg0: i32) -> (i32, i32, i32) {
    %c0_i32 = arith.constant 0 : i32
    %c0_i32_0 = arith.constant 0 : i32
    %c0_i32_1 = arith.constant 0 : i32
    %c0_i32_2 = arith.constant 0 : i32
    return %c0_i32, %c0_i32_0, %c0_i32_1 : i32, i32, i32
  }
  func.func @transform_4(%arg0: i32) -> (i32, i32, i32) {
    %c0_i32 = arith.constant 0 : i32
    %c0_i32_0 = arith.constant 0 : i32
    %c0_i32_1 = arith.constant 0 : i32
    %c0_i32_2 = arith.constant 0 : i32
    return %c0_i32, %c0_i32_0, %c0_i32_1 : i32, i32, i32
  }
  func.func @transform_5(%arg0: i32) -> (i32, i32, i32) {
    %c0_i32 = arith.constant 0 : i32
    %c0_i32_0 = arith.constant 0 : i32
    %c0_i32_1 = arith.constant 0 : i32
    %c0_i32_2 = arith.constant 0 : i32
    return %c0_i32, %c0_i32_0, %c0_i32_1 : i32, i32, i32
  }
  func.func @transform_6(%arg0: i32) -> (i32, i32) {
    %c0_i32 = arith.constant 0 : i32
    %c0_i32_0 = arith.constant 0 : i32
    %c0_i32_1 = arith.constant 0 : i32
    return %c0_i32, %c0_i32_0 : i32, i32
  }
  func.func @transform_7(%arg0: i32) -> (i32, i32) {
    %c0_i32 = arith.constant 0 : i32
    %c0_i32_0 = arith.constant 0 : i32
    %c0_i32_1 = arith.constant 0 : i32
    return %c0_i32, %c0_i32_0 : i32, i32
  }
  func.func @transform_8(%arg0: i32) -> (i32, i32) {
    %c0_i32 = arith.constant 0 : i32
    %c0_i32_0 = arith.constant 0 : i32
    %c0_i32_1 = arith.constant 0 : i32
    return %c0_i32, %c0_i32_0 : i32, i32
  }
  func.func @transform_9(%arg0: i32) -> (i32, i32, i32, i32) {
    %c0_i32 = arith.constant 0 : i32
    %c0_i32_0 = arith.constant 0 : i32
    %c0_i32_1 = arith.constant 0 : i32
    %c0_i32_2 = arith.constant 0 : i32
    return %arg0, %c0_i32, %c0_i32_0, %c0_i32_1 : i32, i32, i32, i32
  }
}

</mosaic_0001>

<llo_original>
// kernel: inception_block_a.1
$region0: #{inception_block_a.1}
  #allocation0 [shape = 'u32[]', space=smem, size = 0x4, offset = 0x4, fixed_abs, tag = 'smem constant byte address 0x4 - core index']
  #allocation1 [shape = 'u32[144,128]{1,0:T(1,128)}', space=vmem, size = 0x12000, scoped, tag = 'internal scratch']
  #allocation2 [shape = 'bf16[20,32,48]{2,1,0:T(8,128)(2,1)}', space=vmem, size = 0x28000, scoped, tag = 'scratch operand']
  #allocation3 [shape = 'bf16[18,32,64]{2,1,0:T(8,128)(2,1)}', space=vmem, size = 0x24000, scoped, tag = 'scratch operand']
  #allocation4 [shape = 'bf16[18,32,96]{2,1,0:T(8,128)(2,1)}', space=vmem, size = 0x24000, scoped, tag = 'scratch operand']
  #allocation5 [shape = 'bf16[18,32,4]{2,1,0:T(8,128)(2,1)}', space=vmem, size = 0x24000, scoped, tag = 'scratch operand']
  %s0 = inlined_call_operand.vmem [shape: bf16[2,16,16,4], index: 0, kind: input, shape index: {}]
  %s1 = inlined_call_operand.vmem [shape: bf16[4,176], index: 1, kind: input, shape index: {}]
  %s2 = inlined_call_operand.vmem [shape: bf16[4,32], index: 2, kind: input, shape index: {}]
  %s3 = inlined_call_operand.vmem [shape: bf16[5,240,64], index: 3, kind: input, shape index: {}]
  %s4 = inlined_call_operand.vmem [shape: bf16[3,192,96], index: 4, kind: input, shape index: {}]
  %s5 = inlined_call_operand.vmem [shape: bf16[3,288,96], index: 5, kind: input, shape index: {}]
  %s6 = inlined_call_operand.vmem [shape: f32[1,176], index: 6, kind: input, shape index: {}]
  %s7 = inlined_call_operand.vmem [shape: f32[1,96], index: 7, kind: input, shape index: {}]
  %s8 = inlined_call_operand.vmem [shape: f32[1,192], index: 8, kind: input, shape index: {}]
  %s9 = inlined_call_operand.vmem [shape: bf16[2,16,16,256], index: 9, kind: output, shape index: {}]
  %s10 = sld [smem:[#allocation0]]
  $region69: #{inception_block_a.1} parent=0
    _
  %s12 = ssub.s32 1, %s10
  %s13 = scalar_select 0, %s12, %s10
  loop: start=0, step=1, limit=4
  $region2: #{inception_block_a.1} parent=0 // loop_pre_header
    _
  $region3: #{inception_block_a.1} parent=0 // loop_header
    %s15 = sphi 0, %s19
    %p16 = scmp.ge.s32.totalorder %s15, 4
    %s25 = sphi 0, %s27
    %s28 = sphi 0, %s25
    %s29 = sphi 0, %s28
    %s45 = sphi 0, %s29
    %s49 = sphi 0, %s49
    %s51 = sphi 0, %s49
    %s52 = sphi 0, %s51
    %s66 = sphi 0, %s52
    %s70 = sphi 0, %s70
    %s72 = sphi 0, %s70
    %s73 = sphi 0, %s72
    %s87 = sphi 0, %s73
    %s91 = sphi 0, %s91
    %s93 = sphi 0, %s91
    %s94 = sphi 0, %s93
    %s108 = sphi 0, %s94
    %s112 = sphi 0, %s112
    %s114 = sphi 0, %s112
    %s115 = sphi 0, %s114
    %s129 = sphi 0, %s115
    %s133 = sphi 0, %s133
    %s135 = sphi 0, %s133
    %s136 = sphi 0, %s135
    %s150 = sphi 0, %s136
    %s154 = sphi 0, %s154
    %s156 = sphi 0, %s154
    %s157 = sphi 0, %s156
    %s171 = sphi 0, %s157
    %s175 = sphi 0, %s175
    %s177 = sphi 0, %s175
    %s178 = sphi 0, %s177
    %s192 = sphi 0, %s178
    %s196 = sphi 0, %s196
    %s198 = sphi 0, %s196
    %s199 = sphi 0, %s198
    %s213 = sphi 0, %s199
    %s219 = sphi 0, %s221
    %s222 = sphi 0, %s219
    %s223 = sphi 0, %s222
    %s239 = sphi 0, %s223
  $region4: #{inception_block_a.1} parent=0 // loop_header_branch
    %18 = sbr.rel (%p16) target = $region8
  $region5: #{inception_block_a.1} parent=0 // loop_body
    %s20 = ssub.s32 %s15, 1
    %s21 = ssub.s32 %s15, 2
    %s22 = sadd.s32 %s15, 1
    %s23 = ssub.s32 %s15, %s22
    %p24 = scmp.eq.s32.totalorder %s23, 0
    %s26 = sadd.s32 %s25, 1
    %s27 = scalar_select %p24, %s25, %s26
    %p30 = pneg %p24
    %p31 = scmp.eq.s32.totalorder %s15, 1
    %p32 = por %p30, %p31
    %p33 = scmp.ne.s32.totalorder %s25, %s28
    %p34 = scmp.eq.s32.totalorder %s15, 0
    %p35 = por %p33, %p34
    %p36 = scmp.ne.s32.totalorder %s25, %s28
    %p37 = scmp.eq.s32.totalorder %s20, 1
    %p38 = por %p36, %p37
    %p39 = scmp.ne.s32.totalorder %s28, %s29
    %p40 = scmp.eq.s32.totalorder %s20, 0
    %p41 = por %p39, %p40
    %p42 = scmp.ne.s32.totalorder %s28, %s29
    %p43 = scmp.eq.s32.totalorder %s21, 1
    %p44 = por %p42, %p43
    %p46 = scmp.ne.s32.totalorder %s29, %s45
    %p47 = scmp.eq.s32.totalorder %s21, 0
    %p48 = por %p46, %p47
    %s50 = sadd.s32 %s49, 1
    %p53 = scmp.eq.s32.totalorder %s15, 1
    %p54 = scmp.ne.s32.totalorder %s49, %s51
    %p55 = scmp.eq.s32.totalorder %s15, 0
    %p56 = por %p54, %p55
    %p57 = scmp.ne.s32.totalorder %s49, %s51
    %p58 = scmp.eq.s32.totalorder %s20, 1
    %p59 = por %p57, %p58
    %p60 = scmp.ne.s32.totalorder %s51, %s52
    %p61 = scmp.eq.s32.totalorder %s20, 0
    %p62 = por %p60, %p61
    %p63 = scmp.ne.s32.totalorder %s51, %s52
    %p64 = scmp.eq.s32.totalorder %s21, 1
    %p65 = por %p63, %p64
    %p67 = scmp.ne.s32.totalorder %s52, %s66
    %p68 = scmp.eq.s32.totalorder %s21, 0
    %p69 = por %p67, %p68
    %s71 = sadd.s32 %s70, 1
    %p74 = scmp.eq.s32.totalorder %s15, 1
    %p75 = scmp.ne.s32.totalorder %s70, %s72
    %p76 = scmp.eq.s32.totalorder %s15, 0
    %p77 = por %p75, %p76
    %p78 = scmp.ne.s32.totalorder %s70, %s72
    %p79 = scmp.eq.s32.totalorder %s20, 1
    %p80 = por %p78, %p79
    %p81 = scmp.ne.s32.totalorder %s72, %s73
    %p82 = scmp.eq.s32.totalorder %s20, 0
    %p83 = por %p81, %p82
    %p84 = scmp.ne.s32.totalorder %s72, %s73
    %p85 = scmp.eq.s32.totalorder %s21, 1
    %p86 = por %p84, %p85
    %p88 = scmp.ne.s32.totalorder %s73, %s87
    %p89 = scmp.eq.s32.totalorder %s21, 0
    %p90 = por %p88, %p89
    %s92 = sadd.s32 %s91, 1
    %p95 = scmp.eq.s32.totalorder %s15, 1
    %p96 = scmp.ne.s32.totalorder %s91, %s93
    %p97 = scmp.eq.s32.totalorder %s15, 0
    %p98 = por %p96, %p97
    %p99 = scmp.ne.s32.totalorder %s91, %s93
    %p100 = scmp.eq.s32.totalorder %s20, 1
    %p101 = por %p99, %p100
    %p102 = scmp.ne.s32.totalorder %s93, %s94
    %p103 = scmp.eq.s32.totalorder %s20, 0
    %p104 = por %p102, %p103
    %p105 = scmp.ne.s32.totalorder %s93, %s94
    %p106 = scmp.eq.s32.totalorder %s21, 1
    %p107 = por %p105, %p106
    %p109 = scmp.ne.s32.totalorder %s94, %s108
    %p110 = scmp.eq.s32.totalorder %s21, 0
    %p111 = por %p109, %p110
    %s113 = sadd.s32 %s112, 1
    %p116 = scmp.eq.s32.totalorder %s15, 1
    %p117 = scmp.ne.s32.totalorder %s112, %s114
    %p118 = scmp.eq.s32.totalorder %s15, 0
    %p119 = por %p117, %p118
    %p120 = scmp.ne.s32.totalorder %s112, %s114
    %p121 = scmp.eq.s32.totalorder %s20, 1
    %p122 = por %p120, %p121
    %p123 = scmp.ne.s32.totalorder %s114, %s115
    %p124 = scmp.eq.s32.totalorder %s20, 0
    %p125 = por %p123, %p124
    %p126 = scmp.ne.s32.totalorder %s114, %s115
    %p127 = scmp.eq.s32.totalorder %s21, 1
    %p128 = por %p126, %p127
    %p130 = scmp.ne.s32.totalorder %s115, %s129
    %p131 = scmp.eq.s32.totalorder %s21, 0
    %p132 = por %p130, %p131
    %s134 = sadd.s32 %s133, 1
    %p137 = scmp.eq.s32.totalorder %s15, 1
    %p138 = scmp.ne.s32.totalorder %s133, %s135
    %p139 = scmp.eq.s32.totalorder %s15, 0
    %p140 = por %p138, %p139
    %p141 = scmp.ne.s32.totalorder %s133, %s135
    %p142 = scmp.eq.s32.totalorder %s20, 1
    %p143 = por %p141, %p142
    %p144 = scmp.ne.s32.totalorder %s135, %s136
    %p145 = scmp.eq.s32.totalorder %s20, 0
    %p146 = por %p144, %p145
    %p147 = scmp.ne.s32.totalorder %s135, %s136
    %p148 = scmp.eq.s32.totalorder %s21, 1
    %p149 = por %p147, %p148
    %p151 = scmp.ne.s32.totalorder %s136, %s150
    %p152 = scmp.eq.s32.totalorder %s21, 0
    %p153 = por %p151, %p152
    %s155 = sadd.s32 %s154, 1
    %p158 = scmp.eq.s32.totalorder %s15, 1
    %p159 = scmp.ne.s32.totalorder %s154, %s156
    %p160 = scmp.eq.s32.totalorder %s15, 0
    %p161 = por %p159, %p160
    %p162 = scmp.ne.s32.totalorder %s154, %s156
    %p163 = scmp.eq.s32.totalorder %s20, 1
    %p164 = por %p162, %p163
    %p165 = scmp.ne.s32.totalorder %s156, %s157
    %p166 = scmp.eq.s32.totalorder %s20, 0
    %p167 = por %p165, %p166
    %p168 = scmp.ne.s32.totalorder %s156, %s157
    %p169 = scmp.eq.s32.totalorder %s21, 1
    %p170 = por %p168, %p169
    %p172 = scmp.ne.s32.totalorder %s157, %s171
    %p173 = scmp.eq.s32.totalorder %s21, 0
    %p174 = por %p172, %p173
    %s176 = sadd.s32 %s175, 1
    %p179 = scmp.eq.s32.totalorder %s15, 1
    %p180 = scmp.ne.s32.totalorder %s175, %s177
    %p181 = scmp.eq.s32.totalorder %s15, 0
    %p182 = por %p180, %p181
    %p183 = scmp.ne.s32.totalorder %s175, %s177
    %p184 = scmp.eq.s32.totalorder %s20, 1
    %p185 = por %p183, %p184
    %p186 = scmp.ne.s32.totalorder %s177, %s178
    %p187 = scmp.eq.s32.totalorder %s20, 0
    %p188 = por %p186, %p187
    %p189 = scmp.ne.s32.totalorder %s177, %s178
    %p190 = scmp.eq.s32.totalorder %s21, 1
    %p191 = por %p189, %p190
    %p193 = scmp.ne.s32.totalorder %s178, %s192
    %p194 = scmp.eq.s32.totalorder %s21, 0
    %p195 = por %p193, %p194
    %s197 = sadd.s32 %s196, 1
    %p200 = scmp.eq.s32.totalorder %s15, 1
    %p201 = scmp.ne.s32.totalorder %s196, %s198
    %p202 = scmp.eq.s32.totalorder %s15, 0
    %p203 = por %p201, %p202
    %p204 = scmp.ne.s32.totalorder %s196, %s198
    %p205 = scmp.eq.s32.totalorder %s20, 1
    %p206 = por %p204, %p205
    %p207 = scmp.ne.s32.totalorder %s198, %s199
    %p208 = scmp.eq.s32.totalorder %s20, 0
    %p209 = por %p207, %p208
    %p210 = scmp.ne.s32.totalorder %s198, %s199
    %p211 = scmp.eq.s32.totalorder %s21, 1
    %p212 = por %p210, %p211
    %p214 = scmp.ne.s32.totalorder %s199, %s213
    %p215 = scmp.eq.s32.totalorder %s21, 0
    %p216 = por %p214, %p215
    %s217 = ssub.s32 %s15, %s22
    %p218 = scmp.eq.s32.totalorder %s217, 0
    %s220 = sadd.s32 %s219, 1
    %s221 = scalar_select %p218, %s219, %s220
    %p224 = pneg %p218
    %p225 = scmp.eq.s32.totalorder %s15, 1
    %p226 = por %p224, %p225
    %p227 = scmp.ne.s32.totalorder %s219, %s222
    %p228 = scmp.eq.s32.totalorder %s15, 0
    %p229 = por %p227, %p228
    %p230 = scmp.ne.s32.totalorder %s219, %s222
    %p231 = scmp.eq.s32.totalorder %s20, 1
    %p232 = por %p230, %p231
    %p233 = scmp.ne.s32.totalorder %s222, %s223
    %p234 = scmp.eq.s32.totalorder %s20, 0
    %p235 = por %p233, %p234
    %p236 = scmp.ne.s32.totalorder %s222, %s223
    %p237 = scmp.eq.s32.totalorder %s21, 1
    %p238 = por %p236, %p237
    %p240 = scmp.ne.s32.totalorder %s223, %s239
    %p241 = scmp.eq.s32.totalorder %s21, 0
    %p242 = por %p240, %p241
    %p243 = scmp.le.s32.totalorder 1, %s15
    %p244 = scmp.lt.s32.totalorder %s15, 3
    %p245 = pnand %p243, %p244
    %p246 = pneg %p245
    // Predicated region
    $region9: #{inception_block_a.1} parent=5 // pred_check
      _
    $region10: #{inception_block_a.1} parent=5 // pred_check_branch
      %248 = sbr.rel (%p245) target = $region12
    $region11: #{inception_block_a.1} parent=5 // pred_region
      %s249 = ssub.s32 %s15, 1
      // Predicated region
      $region13: #{inception_block_a.1} parent=11 // pred_check
        %p250 = pneg %p62
      $region14: #{inception_block_a.1} parent=11 // pred_check_branch
        %252 = sbr.rel (%p250) target = $region16
      $region15: #{inception_block_a.1} parent=11 // pred_region
        _
      $region16: #{inception_block_a.1} parent=11 // pred_fallthru
        _
      // Predicated region
      $region17: #{inception_block_a.1} parent=11 // pred_check
        %p253 = pneg %p83
      $region18: #{inception_block_a.1} parent=11 // pred_check_branch
        %255 = sbr.rel (%p253) target = $region20
      $region19: #{inception_block_a.1} parent=11 // pred_region
        _
      $region20: #{inception_block_a.1} parent=11 // pred_fallthru
        _
      // Predicated region
      $region21: #{inception_block_a.1} parent=11 // pred_check
        %p256 = pneg %p104
      $region22: #{inception_block_a.1} parent=11 // pred_check_branch
        %258 = sbr.rel (%p256) target = $region24
      $region23: #{inception_block_a.1} parent=11 // pred_region
        _
      $region24: #{inception_block_a.1} parent=11 // pred_fallthru
        _
      // Predicated region
      $region25: #{inception_block_a.1} parent=11 // pred_check
        %p259 = pneg %p125
      $region26: #{inception_block_a.1} parent=11 // pred_check_branch
        %261 = sbr.rel (%p259) target = $region28
      $region27: #{inception_block_a.1} parent=11 // pred_region
        _
      $region28: #{inception_block_a.1} parent=11 // pred_fallthru
        _
      // Predicated region
      $region29: #{inception_block_a.1} parent=11 // pred_check
        %p262 = pneg %p146
      $region30: #{inception_block_a.1} parent=11 // pred_check_branch
        %264 = sbr.rel (%p262) target = $region32
      $region31: #{inception_block_a.1} parent=11 // pred_region
        _
      $region32: #{inception_block_a.1} parent=11 // pred_fallthru
        _
      // Predicated region
      $region33: #{inception_block_a.1} parent=11 // pred_check
        %p265 = pneg %p167
      $region34: #{inception_block_a.1} parent=11 // pred_check_branch
        %267 = sbr.rel (%p265) target = $region36
      $region35: #{inception_block_a.1} parent=11 // pred_region
        _
      $region36: #{inception_block_a.1} parent=11 // pred_fallthru
        _
      // Predicated region
      $region37: #{inception_block_a.1} parent=11 // pred_check
        %p268 = pneg %p188
      $region38: #{inception_block_a.1} parent=11 // pred_check_branch
        %270 = sbr.rel (%p268) target = $region40
      $region39: #{inception_block_a.1} parent=11 // pred_region
        _
      $region40: #{inception_block_a.1} parent=11 // pred_fallthru
        _
      // Predicated region
      $region41: #{inception_block_a.1} parent=11 // pred_check
        %p271 = pneg %p209
      $region42: #{inception_block_a.1} parent=11 // pred_check_branch
        %273 = sbr.rel (%p271) target = $region44
      $region43: #{inception_block_a.1} parent=11 // pred_region
        _
      $region44: #{inception_block_a.1} parent=11 // pred_fallthru
        _
    $region12: #{inception_block_a.1} parent=5 // pred_fallthru
      _
    %p274 = scmp.lt.s32.totalorder %s15, 2
    // Predicated region
    $region45: #{inception_block_a.1} parent=5 // pred_check
      %p275 = pneg %p274
    $region46: #{inception_block_a.1} parent=5 // pred_check_branch
      %277 = sbr.rel (%p275) target = $region48
    $region47: #{inception_block_a.1} parent=5 // pred_region
      // Predicated region
      $region49: #{inception_block_a.1} parent=47 // pred_check
        %p278 = pneg %p35
      $region50: #{inception_block_a.1} parent=47 // pred_check_branch
        %280 = sbr.rel (%p278) target = $region52
      $region51: #{inception_block_a.1} parent=47 // pred_region
        %p281 = scmp.lt.s32.totalorder %s15, 1
        %s282 = scalar_select %p281, %s15, 1
        %s283 = smul.addr %s282, 32
        %s284 = smul.addr %s283, 4
        %s285 = scalar_lea.vmem %s0, %s284
      $region52: #{inception_block_a.1} parent=47 // pred_fallthru
        _
    $region48: #{inception_block_a.1} parent=5 // pred_fallthru
      _
    %p286 = scmp.le.s32.totalorder 1, %s15
    %p287 = scmp.lt.s32.totalorder %s15, 3
    %p288 = pnand %p286, %p287
    %p289 = pneg %p288
    // Predicated region
    $region53: #{inception_block_a.1} parent=5 // pred_check
      _
    $region54: #{inception_block_a.1} parent=5 // pred_check_branch
      %291 = sbr.rel (%p288) target = $region56
    $region55: #{inception_block_a.1} parent=5 // pred_region
      %s292 = ssub.s32 %s15, 1
      %p293 = scmp.lt.s32.totalorder %s20, 1
      %s294 = scalar_select %p293, %s20, 1
      %s295 = smul.addr %s294, 32
      %s296 = smul.addr %s295, 4
      %s297 = scalar_lea.vmem %s0, %s296
      %p298 = pneg %p41
      %p299 = pneg %p38
      %p300 = pneg %p62
      %p301 = pneg %p59
      %p302 = pneg %p83
      %p303 = pneg %p80
      %p304 = pneg %p104
      %p305 = pneg %p101
      %p306 = pneg %p125
      %p307 = pneg %p122
      %p308 = pneg %p146
      %p309 = pneg %p143
      %p310 = pneg %p167
      %p311 = pneg %p164
      %p312 = pneg %p188
      %p313 = pneg %p185
      %p314 = pneg %p209
      %p315 = pneg %p206
      %p316 = pneg %p235
      %p317 = pneg %p232
      %p318 = scmp.lt.s32.totalorder %s20, 1
      %s319 = scalar_select %p318, %s20, 1
      %s320 = smul.addr %s319, 64
      %s321 = smul.addr %s320, 4
      %s322 = scalar_lea.vmem %s9, %s321
      %p323 = scmp.lt.s32.totalorder %s20, 1
      %s324 = scalar_select %p323, %s20, 1
      %s325 = smul.addr %s324, 32
      %s326 = smul.addr %s325, 4
      %s327 = scalar_lea.vmem %s0, %s326
      %p328 = scmp.lt.s32.totalorder %s20, 1
      %s329 = scalar_select %p328, %s20, 1
      %s330 = smul.addr %s329, 64
      %s331 = smul.addr %s330, 4
      %s332 = scalar_lea.vmem %s9, %s331
      %v334 = vld [vmem:[%s327] sm:$0xf]
      %v335 = vld [vmem:[%s327 + $0x4] sm:$0xf]
      %v336 = vld [vmem:[%s327 + $0x8] sm:$0xf]
      %v337 = vld [vmem:[%s327 + $0xc] sm:$0xf]
      %v338 = vld [vmem:[%s327 + $0x10] sm:$0xf]
      %v339 = vld [vmem:[%s327 + $0x14] sm:$0xf]
      %v340 = vld [vmem:[%s327 + $0x18] sm:$0xf]
      %v341 = vld [vmem:[%s327 + $0x1c] sm:$0xf]
      %v342 = vld [vmem:[%s327 + $0x20] sm:$0xf]
      %v343 = vld [vmem:[%s327 + $0x24] sm:$0xf]
      %v344 = vld [vmem:[%s327 + $0x28] sm:$0xf]
      %v345 = vld [vmem:[%s327 + $0x2c] sm:$0xf]
      %v346 = vld [vmem:[%s327 + $0x30] sm:$0xf]
      %v347 = vld [vmem:[%s327 + $0x34] sm:$0xf]
      %v348 = vld [vmem:[%s327 + $0x38] sm:$0xf]
      %v349 = vld [vmem:[%s327 + $0x3c] sm:$0xf]
      %v350 = vld [vmem:[%s327 + $0x40] sm:$0xf]
      %v351 = vld [vmem:[%s327 + $0x44] sm:$0xf]
      %v352 = vld [vmem:[%s327 + $0x48] sm:$0xf]
      %v353 = vld [vmem:[%s327 + $0x4c] sm:$0xf]
      %v354 = vld [vmem:[%s327 + $0x50] sm:$0xf]
      %v355 = vld [vmem:[%s327 + $0x54] sm:$0xf]
      %v356 = vld [vmem:[%s327 + $0x58] sm:$0xf]
      %v357 = vld [vmem:[%s327 + $0x5c] sm:$0xf]
      %v358 = vld [vmem:[%s327 + $0x60] sm:$0xf]
      %v359 = vld [vmem:[%s327 + $0x64] sm:$0xf]
      %v360 = vld [vmem:[%s327 + $0x68] sm:$0xf]
      %v361 = vld [vmem:[%s327 + $0x6c] sm:$0xf]
      %v362 = vld [vmem:[%s327 + $0x70] sm:$0xf]
      %v363 = vld [vmem:[%s327 + $0x74] sm:$0xf]
      %v364 = vld [vmem:[%s327 + $0x78] sm:$0xf]
      %v365 = vld [vmem:[%s327 + $0x7c] sm:$0xf]
      %v366 = vld [vmem:[%s1] sm:$0xf]
      %v367 = vld [vmem:[%s6] sm:$0x3]
      %v369 = vlaneseq
      %v370 = vshrl.u32 %v369, 7
      %v371 = vsub.s32 0, %v370
      %v372 = vrot.slane %v367, %v371
      %v373 = vlaneseq
      %v374 = vshrl.u32 %v373, 7
      %v375 = vsub.s32 1, %v374
      %v376 = vrot.slane %v367, %v375
      %v411 = vunpack.c.l.b16 %v334
      %v412 = vunpack.c.l.b16 %v335
      %v413 = vunpack.c.l.b16 %v336
      %v414 = vunpack.c.l.b16 %v337
      %v415 = vunpack.c.l.b16 %v338
      %v416 = vunpack.c.l.b16 %v339
      %v417 = vunpack.c.l.b16 %v340
      %v418 = vunpack.c.l.b16 %v341
      %v419 = vunpack.c.l.b16 %v342
      %v420 = vunpack.c.l.b16 %v343
      %v421 = vunpack.c.l.b16 %v344
      %v422 = vunpack.c.l.b16 %v345
      %v423 = vunpack.c.l.b16 %v346
      %v424 = vunpack.c.l.b16 %v347
      %v425 = vunpack.c.l.b16 %v348
      %v426 = vunpack.c.l.b16 %v349
      %v427 = vunpack.c.l.b16 %v350
      %v428 = vunpack.c.l.b16 %v351
      %v429 = vunpack.c.l.b16 %v352
      %v430 = vunpack.c.l.b16 %v353
      %v431 = vunpack.c.l.b16 %v354
      %v432 = vunpack.c.l.b16 %v355
      %v433 = vunpack.c.l.b16 %v356
      %v434 = vunpack.c.l.b16 %v357
      %v435 = vunpack.c.l.b16 %v358
      %v436 = vunpack.c.l.b16 %v359
      %v437 = vunpack.c.l.b16 %v360
      %v438 = vunpack.c.l.b16 %v361
      %v439 = vunpack.c.l.b16 %v362
      %v440 = vunpack.c.l.b16 %v363
      %v441 = vunpack.c.l.b16 %v364
      %v442 = vunpack.c.l.b16 %v365
      %v443 = vpack.c.b16 %v412, %v411
      %v444 = vpack.c.b16 %v414, %v413
      %v445 = vpack.c.b16 %v416, %v415
      %v446 = vpack.c.b16 %v418, %v417
      %v447 = vpack.c.b16 %v420, %v419
      %v448 = vpack.c.b16 %v422, %v421
      %v449 = vpack.c.b16 %v424, %v423
      %v450 = vpack.c.b16 %v426, %v425
      %v451 = vpack.c.b16 %v428, %v427
      %v452 = vpack.c.b16 %v430, %v429
      %v453 = vpack.c.b16 %v432, %v431
      %v454 = vpack.c.b16 %v434, %v433
      %v455 = vpack.c.b16 %v436, %v435
      %v456 = vpack.c.b16 %v438, %v437
      %v457 = vpack.c.b16 %v440, %v439
      %v458 = vpack.c.b16 %v442, %v441
      %v461 = vunpack.c.l.s4 1983009808
      %v462 = vunpack.c.0.s8 %v461
      %v463 = vlaneseq
      %v464 = vshrl.u32 %v463, 7
      %v465 = vsub.s32 %v462, %v464
      %v466 = vrot.slane %v366, %v465
      %v467 = vcombine.high %v466, %v466
      %vm468 = vcmask 31744
      %v470 = vsel %vm468, %v443, 0
      %v473 = vsel %vm468, %v444, 0
      %v476 = vsel %vm468, %v445, 0
      %v479 = vsel %vm468, %v446, 0
      %v482 = vsel %vm468, %v447, 0
      %v485 = vsel %vm468, %v448, 0
      %v488 = vsel %vm468, %v449, 0
      %v491 = vsel %vm468, %v450, 0
      %v494 = vsel %vm468, %v451, 0
      %v497 = vsel %vm468, %v452, 0
      %v500 = vsel %vm468, %v453, 0
      %v503 = vsel %vm468, %v454, 0
      %v506 = vsel %vm468, %v455, 0
      %v509 = vsel %vm468, %v456, 0
      %v512 = vsel %vm468, %v457, 0
      %v515 = vsel %vm468, %v458, 0
      %vm517 = vcmask 1041408
      %v519 = vsel %vm517, %v466, 0
      %v522 = vsel %vm517, %v467, 0
      %524 = vmatprep.subr.bf16.mxu0 0
      %525 = vmatpush1.bf16.msra.mxu0 0
      %526 = vmatprep.subr.bf16.mxu0 0
      %527 = vmatpush1.bf16.msra.mxu0 0
      %528 = vmatprep.subr.bf16.mxu0 0
      %529 = vmatpush1.bf16.msra.mxu0 0
      %530 = vmatprep.subr.bf16.mxu0 0
      %531 = vmatpush1.bf16.msra.mxu0 0
      %532 = vmatprep.subr.bf16.mxu0 0
      %533 = vmatpush1.bf16.msra.mxu0 0
      %534 = vmatprep.subr.bf16.mxu0 0
      %535 = vmatpush1.bf16.msra.mxu0 0
      %536 = vmatprep.subr.bf16.mxu0 0
      %537 = vmatpush1.bf16.msra.mxu0 0
      %538 = vmatprep.subr.bf16.mxu0 %v522
      %539 = vmatpush1.bf16.msra.mxu0 %v519
      %540 = vmatprep.subr.bf16.mxu0 0
      %541 = vmatpush2.bf16.msra.mxu0 0
      %542 = vmatprep.subr.bf16.mxu0 0
      %543 = vmatpush2.bf16.msra.mxu0 0
      %544 = vmatprep.subr.bf16.mxu0 0
      %545 = vmatpush2.bf16.msra.mxu0 0
      %546 = vmatprep.subr.bf16.mxu0 0
      %547 = vmatpush2.bf16.msra.mxu0 0
      %548 = vmatprep.subr.bf16.mxu0 0
      %549 = vmatpush2.bf16.msra.mxu0 0
      %550 = vmatprep.subr.bf16.mxu0 0
      %551 = vmatpush2.bf16.msra.mxu0 0
      %552 = vmatprep.subr.bf16.mxu0 0
      %553 = vmatpush2.bf16.msra.mxu0 0
      %554 = vmatprep.subr.bf16.mxu0 0
      %555 = vmatpush2.bf16.msra.mxu0 0
      %556 = vmatprep.mubr.bf16.mxu0 0
      %557 = vmatmul.mubr.bf16.gmra.mxu0 %v470
      %v558 = vpop.f32.mrf.mxu0
      %v559 = vadd.f32 %v372, %v558
      %v560 = vpop.f32.mrf.mxu0
      %v561 = vadd.f32 %v376, %v560
      %v562 = vpop.f32.mrf.mxu0
      %v563 = vadd.f32 %v372, %v562
      %v564 = vpop.f32.mrf.mxu0
      %v565 = vadd.f32 %v376, %v564
      %566 = vmatprep.mubr.bf16.mxu0 0
      %567 = vmatmul.mubr.bf16.gmra.mxu0 %v473
      %v568 = vpop.f32.mrf.mxu0
      %v569 = vadd.f32 %v372, %v568
      %v570 = vpop.f32.mrf.mxu0
      %v571 = vadd.f32 %v376, %v570
      %v572 = vpop.f32.mrf.mxu0
      %v573 = vadd.f32 %v372, %v572
      %v574 = vpop.f32.mrf.mxu0
      %v575 = vadd.f32 %v376, %v574
      %576 = vmatprep.mubr.bf16.mxu0 0
      %577 = vmatmul.mubr.bf16.gmra.mxu0 %v476
      %v578 = vpop.f32.mrf.mxu0
      %v579 = vadd.f32 %v372, %v578
      %v580 = vpop.f32.mrf.mxu0
      %v581 = vadd.f32 %v376, %v580
      %v582 = vpop.f32.mrf.mxu0
      %v583 = vadd.f32 %v372, %v582
      %v584 = vpop.f32.mrf.mxu0
      %v585 = vadd.f32 %v376, %v584
      %586 = vmatprep.mubr.bf16.mxu0 0
      %587 = vmatmul.mubr.bf16.gmra.mxu0 %v479
      %v588 = vpop.f32.mrf.mxu0
      %v589 = vadd.f32 %v372, %v588
      %v590 = vpop.f32.mrf.mxu0
      %v591 = vadd.f32 %v376, %v590
      %v592 = vpop.f32.mrf.mxu0
      %v593 = vadd.f32 %v372, %v592
      %v594 = vpop.f32.mrf.mxu0
      %v595 = vadd.f32 %v376, %v594
      %596 = vmatprep.mubr.bf16.mxu0 0
      %597 = vmatmul.mubr.bf16.gmra.mxu0 %v482
      %v598 = vpop.f32.mrf.mxu0
      %v599 = vadd.f32 %v372, %v598
      %v600 = vpop.f32.mrf.mxu0
      %v601 = vadd.f32 %v376, %v600
      %v602 = vpop.f32.mrf.mxu0
      %v603 = vadd.f32 %v372, %v602
      %v604 = vpop.f32.mrf.mxu0
      %v605 = vadd.f32 %v376, %v604
      %606 = vmatprep.mubr.bf16.mxu0 0
      %607 = vmatmul.mubr.bf16.gmra.mxu0 %v485
      %v608 = vpop.f32.mrf.mxu0
      %v609 = vadd.f32 %v372, %v608
      %v610 = vpop.f32.mrf.mxu0
      %v611 = vadd.f32 %v376, %v610
      %v612 = vpop.f32.mrf.mxu0
      %v613 = vadd.f32 %v372, %v612
      %v614 = vpop.f32.mrf.mxu0
      %v615 = vadd.f32 %v376, %v614
      %616 = vmatprep.mubr.bf16.mxu0 0
      %617 = vmatmul.mubr.bf16.gmra.mxu0 %v488
      %v618 = vpop.f32.mrf.mxu0
      %v619 = vadd.f32 %v372, %v618
      %v620 = vpop.f32.mrf.mxu0
      %v621 = vadd.f32 %v376, %v620
      %v622 = vpop.f32.mrf.mxu0
      %v623 = vadd.f32 %v372, %v622
      %v624 = vpop.f32.mrf.mxu0
      %v625 = vadd.f32 %v376, %v624
      %626 = vmatprep.mubr.bf16.mxu0 0
      %627 = vmatmul.mubr.bf16.gmra.mxu0 %v491
      %v628 = vpop.f32.mrf.mxu0
      %v629 = vadd.f32 %v372, %v628
      %v630 = vpop.f32.mrf.mxu0
      %v631 = vadd.f32 %v376, %v630
      %v632 = vpop.f32.mrf.mxu0
      %v633 = vadd.f32 %v372, %v632
      %v634 = vpop.f32.mrf.mxu0
      %v635 = vadd.f32 %v376, %v634
      %636 = vmatprep.mubr.bf16.mxu0 0
      %637 = vmatmul.mubr.bf16.gmra.mxu0 %v494
      %v638 = vpop.f32.mrf.mxu0
      %v639 = vadd.f32 %v372, %v638
      %v640 = vpop.f32.mrf.mxu0
      %v641 = vadd.f32 %v376, %v640
      %v642 = vpop.f32.mrf.mxu0
      %v643 = vadd.f32 %v372, %v642
      %v644 = vpop.f32.mrf.mxu0
      %v645 = vadd.f32 %v376, %v644
      %646 = vmatprep.mubr.bf16.mxu0 0
      %647 = vmatmul.mubr.bf16.gmra.mxu0 %v497
      %v648 = vpop.f32.mrf.mxu0
      %v649 = vadd.f32 %v372, %v648
      %v650 = vpop.f32.mrf.mxu0
      %v651 = vadd.f32 %v376, %v650
      %v652 = vpop.f32.mrf.mxu0
      %v653 = vadd.f32 %v372, %v652
      %v654 = vpop.f32.mrf.mxu0
      %v655 = vadd.f32 %v376, %v654
      %656 = vmatprep.mubr.bf16.mxu0 0
      %657 = vmatmul.mubr.bf16.gmra.mxu0 %v500
      %v658 = vpop.f32.mrf.mxu0
      %v659 = vadd.f32 %v372, %v658
      %v660 = vpop.f32.mrf.mxu0
      %v661 = vadd.f32 %v376, %v660
      %v662 = vpop.f32.mrf.mxu0
      %v663 = vadd.f32 %v372, %v662
      %v664 = vpop.f32.mrf.mxu0
      %v665 = vadd.f32 %v376, %v664
      %666 = vmatprep.mubr.bf16.mxu0 0
      %667 = vmatmul.mubr.bf16.gmra.mxu0 %v503
      %v668 = vpop.f32.mrf.mxu0
      %v669 = vadd.f32 %v372, %v668
      %v670 = vpop.f32.mrf.mxu0
      %v671 = vadd.f32 %v376, %v670
      %v672 = vpop.f32.mrf.mxu0
      %v673 = vadd.f32 %v372, %v672
      %v674 = vpop.f32.mrf.mxu0
      %v675 = vadd.f32 %v376, %v674
      %676 = vmatprep.mubr.bf16.mxu0 0
      %677 = vmatmul.mubr.bf16.gmra.mxu0 %v506
      %v678 = vpop.f32.mrf.mxu0
      %v679 = vadd.f32 %v372, %v678
      %v680 = vpop.f32.mrf.mxu0
      %v681 = vadd.f32 %v376, %v680
      %v682 = vpop.f32.mrf.mxu0
      %v683 = vadd.f32 %v372, %v682
      %v684 = vpop.f32.mrf.mxu0
      %v685 = vadd.f32 %v376, %v684
      %686 = vmatprep.mubr.bf16.mxu0 0
      %687 = vmatmul.mubr.bf16.gmra.mxu0 %v509
      %v688 = vpop.f32.mrf.mxu0
      %v689 = vadd.f32 %v372, %v688
      %v690 = vpop.f32.mrf.mxu0
      %v691 = vadd.f32 %v376, %v690
      %v692 = vpop.f32.mrf.mxu0
      %v693 = vadd.f32 %v372, %v692
      %v694 = vpop.f32.mrf.mxu0
      %v695 = vadd.f32 %v376, %v694
      %696 = vmatprep.mubr.bf16.mxu0 0
      %697 = vmatmul.mubr.bf16.gmra.mxu0 %v512
      %v698 = vpop.f32.mrf.mxu0
      %v699 = vadd.f32 %v372, %v698
      %v700 = vpop.f32.mrf.mxu0
      %v701 = vadd.f32 %v376, %v700
      %v702 = vpop.f32.mrf.mxu0
      %v703 = vadd.f32 %v372, %v702
      %v704 = vpop.f32.mrf.mxu0
      %v705 = vadd.f32 %v376, %v704
      %706 = vmatprep.mubr.bf16.mxu0 0
      %707 = vmatmul.mubr.bf16.gmra.mxu0 %v515
      %v708 = vpop.f32.mrf.mxu0
      %v709 = vadd.f32 %v372, %v708
      %v710 = vpop.f32.mrf.mxu0
      %v711 = vadd.f32 %v376, %v710
      %v712 = vpop.f32.mrf.mxu0
      %v713 = vadd.f32 %v372, %v712
      %v714 = vpop.f32.mrf.mxu0
      %v715 = vadd.f32 %v376, %v714
      %716 = vdwg.mxu0
      %v717 = vmax.f32 %v559, 0.0
      %v718 = vmax.f32 %v561, 0.0
      %v719 = vmax.f32 %v563, 0.0
      %v720 = vmax.f32 %v565, 0.0
      %v721 = vmax.f32 %v569, 0.0
      %v722 = vmax.f32 %v571, 0.0
      %v723 = vmax.f32 %v573, 0.0
      %v724 = vmax.f32 %v575, 0.0
      %v725 = vmax.f32 %v579, 0.0
      %v726 = vmax.f32 %v581, 0.0
      %v727 = vmax.f32 %v583, 0.0
      %v728 = vmax.f32 %v585, 0.0
      %v729 = vmax.f32 %v589, 0.0
      %v730 = vmax.f32 %v591, 0.0
      %v731 = vmax.f32 %v593, 0.0
      %v732 = vmax.f32 %v595, 0.0
      %v733 = vmax.f32 %v599, 0.0
      %v734 = vmax.f32 %v601, 0.0
      %v735 = vmax.f32 %v603, 0.0
      %v736 = vmax.f32 %v605, 0.0
      %v737 = vmax.f32 %v609, 0.0
      %v738 = vmax.f32 %v611, 0.0
      %v739 = vmax.f32 %v613, 0.0
      %v740 = vmax.f32 %v615, 0.0
      %v741 = vmax.f32 %v619, 0.0
      %v742 = vmax.f32 %v621, 0.0
      %v743 = vmax.f32 %v623, 0.0
      %v744 = vmax.f32 %v625, 0.0
      %v745 = vmax.f32 %v629, 0.0
      %v746 = vmax.f32 %v631, 0.0
      %v747 = vmax.f32 %v633, 0.0
      %v748 = vmax.f32 %v635, 0.0
      %v749 = vmax.f32 %v639, 0.0
      %v750 = vmax.f32 %v641, 0.0
      %v751 = vmax.f32 %v643, 0.0
      %v752 = vmax.f32 %v645, 0.0
      %v753 = vmax.f32 %v649, 0.0
      %v754 = vmax.f32 %v651, 0.0
      %v755 = vmax.f32 %v653, 0.0
      %v756 = vmax.f32 %v655, 0.0
      %v757 = vmax.f32 %v659, 0.0
      %v758 = vmax.f32 %v661, 0.0
      %v759 = vmax.f32 %v663, 0.0
      %v760 = vmax.f32 %v665, 0.0
      %v761 = vmax.f32 %v669, 0.0
      %v762 = vmax.f32 %v671, 0.0
      %v763 = vmax.f32 %v673, 0.0
      %v764 = vmax.f32 %v675, 0.0
      %v765 = vmax.f32 %v679, 0.0
      %v766 = vmax.f32 %v681, 0.0
      %v767 = vmax.f32 %v683, 0.0
      %v768 = vmax.f32 %v685, 0.0
      %v769 = vmax.f32 %v689, 0.0
      %v770 = vmax.f32 %v691, 0.0
      %v771 = vmax.f32 %v693, 0.0
      %v772 = vmax.f32 %v695, 0.0
      %v773 = vmax.f32 %v699, 0.0
      %v774 = vmax.f32 %v701, 0.0
      %v775 = vmax.f32 %v703, 0.0
      %v776 = vmax.f32 %v705, 0.0
      %v777 = vmax.f32 %v709, 0.0
      %v778 = vmax.f32 %v711, 0.0
      %v779 = vmax.f32 %v713, 0.0
      %v780 = vmax.f32 %v715, 0.0
      %v781 = vpack.c.bf16 %v719, %v717
      %v782 = vpack.c.bf16 %v723, %v721
      %v783 = vpack.c.bf16 %v727, %v725
      %v784 = vpack.c.bf16 %v731, %v729
      %v785 = vpack.c.bf16 %v735, %v733
      %v786 = vpack.c.bf16 %v739, %v737
      %v787 = vpack.c.bf16 %v743, %v741
      %v788 = vpack.c.bf16 %v747, %v745
      %v789 = vpack.c.bf16 %v751, %v749
      %v790 = vpack.c.bf16 %v755, %v753
      %v791 = vpack.c.bf16 %v759, %v757
      %v792 = vpack.c.bf16 %v763, %v761
      %v793 = vpack.c.bf16 %v767, %v765
      %v794 = vpack.c.bf16 %v771, %v769
      %v795 = vpack.c.bf16 %v775, %v773
      %v796 = vpack.c.bf16 %v779, %v777
      %v797 = vpack.c.bf16 %v720, %v718
      %v798 = vpack.c.bf16 %v724, %v722
      %v799 = vpack.c.bf16 %v728, %v726
      %v800 = vpack.c.bf16 %v732, %v730
      %v801 = vpack.c.bf16 %v736, %v734
      %v802 = vpack.c.bf16 %v740, %v738
      %v803 = vpack.c.bf16 %v744, %v742
      %v804 = vpack.c.bf16 %v748, %v746
      %v805 = vpack.c.bf16 %v752, %v750
      %v806 = vpack.c.bf16 %v756, %v754
      %v807 = vpack.c.bf16 %v760, %v758
      %v808 = vpack.c.bf16 %v764, %v762
      %v809 = vpack.c.bf16 %v768, %v766
      %v810 = vpack.c.bf16 %v772, %v770
      %v811 = vpack.c.bf16 %v776, %v774
      %v812 = vpack.c.bf16 %v780, %v778
      %vm813 = vcmask 388096
      %814 = vst.msk [vmem:[#allocation2] sm:$0xf] %vm813, 0
      %815 = vst.msk [vmem:[#allocation2 + $0x4] sm:$0xf] %vm813, 0
      %816 = vst.msk [vmem:[#allocation2 + $0x8] sm:$0xf] %vm813, 0
      %817 = vst.msk [vmem:[#allocation2 + $0xc] sm:$0xf] %vm813, 0
      %818 = vst.msk [vmem:[#allocation2 + $0x10] sm:$0xf] %vm813, 0
      %819 = vst.msk [vmem:[#allocation2 + $0x14] sm:$0xf] %vm813, 0
      %820 = vst.msk [vmem:[#allocation2 + $0x18] sm:$0xf] %vm813, 0
      %821 = vst.msk [vmem:[#allocation2 + $0x1c] sm:$0xf] %vm813, 0
      %s822 = scalar_lea.vmem [#allocation2], 288
      %823 = vst.msk [vmem:[%s822] sm:$0xf] %vm813, 0
      %824 = vst.msk [vmem:[%s822 + $0x4] sm:$0xf] %vm813, 0
      %825 = vst.msk [vmem:[%s822 + $0x8] sm:$0xf] %vm813, 0
      %826 = vst.msk [vmem:[%s822 + $0xc] sm:$0xf] %vm813, 0
      %827 = vst.msk [vmem:[%s822 + $0x10] sm:$0xf] %vm813, 0
      %828 = vst.msk [vmem:[%s822 + $0x14] sm:$0xf] %vm813, 0
      %829 = vst.msk [vmem:[%s822 + $0x18] sm:$0xf] %vm813, 0
      %830 = vst.msk [vmem:[%s822 + $0x1c] sm:$0xf] %vm813, 0
      %vm831 = vcmask 388099
      %832 = vst.msk [vmem:[#allocation2] sm:$0x8] %vm831, 0
      %833 = vst.msk [vmem:[#allocation2 + $0x10] sm:$0x8] %vm831, 0
      %834 = vst.msk [vmem:[#allocation2 + $0x20] sm:$0x8] %vm831, 0
      %835 = vst.msk [vmem:[#allocation2 + $0x30] sm:$0x8] %vm831, 0
      %836 = vst.msk [vmem:[#allocation2 + $0x40] sm:$0x8] %vm831, 0
      %837 = vst.msk [vmem:[#allocation2 + $0x50] sm:$0x8] %vm831, 0
      %838 = vst.msk [vmem:[#allocation2 + $0x60] sm:$0x8] %vm831, 0
      %839 = vst.msk [vmem:[#allocation2 + $0x70] sm:$0x8] %vm831, 0
      %840 = vst.msk [vmem:[#allocation2 + $0x80] sm:$0x8] %vm831, 0
      %841 = vst.msk [vmem:[#allocation2 + $0x90] sm:$0x8] %vm831, 0
      %842 = vst.msk [vmem:[#allocation2 + $0xa0] sm:$0x8] %vm831, 0
      %843 = vst.msk [vmem:[#allocation2 + $0xb0] sm:$0x8] %vm831, 0
      %844 = vst.msk [vmem:[#allocation2 + $0xc0] sm:$0x8] %vm831, 0
      %845 = vst.msk [vmem:[#allocation2 + $0xd0] sm:$0x8] %vm831, 0
      %846 = vst.msk [vmem:[#allocation2 + $0xe0] sm:$0x8] %vm831, 0
      %847 = vst.msk [vmem:[#allocation2 + $0xf0] sm:$0x8] %vm831, 0
      %848 = vst.msk [vmem:[#allocation2 + $0x100] sm:$0x8] %vm831, 0
      %849 = vst.msk [vmem:[#allocation2 + $0x110] sm:$0x8] %vm831, 0
      %850 = vst.msk [vmem:[#allocation2 + $0x120] sm:$0x8] %vm831, 0
      %851 = vst.msk [vmem:[#allocation2 + $0x130] sm:$0x8] %vm831, 0
      %vm852 = vcmask 385024
      %853 = vst.msk [vmem:[#allocation2 + $0xc] sm:$0x1] %vm852, 0
      %854 = vst.msk [vmem:[#allocation2 + $0x1c] sm:$0x1] %vm852, 0
      %855 = vst.msk [vmem:[#allocation2 + $0x2c] sm:$0x1] %vm852, 0
      %856 = vst.msk [vmem:[#allocation2 + $0x3c] sm:$0x1] %vm852, 0
      %857 = vst.msk [vmem:[#allocation2 + $0x4c] sm:$0x1] %vm852, 0
      %858 = vst.msk [vmem:[#allocation2 + $0x5c] sm:$0x1] %vm852, 0
      %859 = vst.msk [vmem:[#allocation2 + $0x6c] sm:$0x1] %vm852, 0
      %860 = vst.msk [vmem:[#allocation2 + $0x7c] sm:$0x1] %vm852, 0
      %861 = vst.msk [vmem:[#allocation2 + $0x8c] sm:$0x1] %vm852, 0
      %862 = vst.msk [vmem:[#allocation2 + $0x9c] sm:$0x1] %vm852, 0
      %863 = vst.msk [vmem:[#allocation2 + $0xac] sm:$0x1] %vm852, 0
      %864 = vst.msk [vmem:[#allocation2 + $0xbc] sm:$0x1] %vm852, 0
      %865 = vst.msk [vmem:[#allocation2 + $0xcc] sm:$0x1] %vm852, 0
      %866 = vst.msk [vmem:[#allocation2 + $0xdc] sm:$0x1] %vm852, 0
      %867 = vst.msk [vmem:[#allocation2 + $0xec] sm:$0x1] %vm852, 0
      %868 = vst.msk [vmem:[#allocation2 + $0xfc] sm:$0x1] %vm852, 0
      %869 = vst.msk [vmem:[#allocation2 + $0x10c] sm:$0x1] %vm852, 0
      %870 = vst.msk [vmem:[#allocation2 + $0x11c] sm:$0x1] %vm852, 0
      %871 = vst.msk [vmem:[#allocation2 + $0x12c] sm:$0x1] %vm852, 0
      %872 = vst.msk [vmem:[#allocation2 + $0x13c] sm:$0x1] %vm852, 0
      %v889 = vunpack.c.l.b16 %v781
      %v890 = vunpack.c.h.b16 %v781
      %v891 = vunpack.c.l.b16 %v782
      %v892 = vunpack.c.h.b16 %v782
      %v893 = vunpack.c.l.b16 %v783
      %v894 = vunpack.c.h.b16 %v783
      %v895 = vunpack.c.l.b16 %v784
      %v896 = vunpack.c.h.b16 %v784
      %v897 = vunpack.c.l.b16 %v785
      %v898 = vunpack.c.h.b16 %v785
      %v899 = vunpack.c.l.b16 %v786
      %v900 = vunpack.c.h.b16 %v786
      %v901 = vunpack.c.l.b16 %v787
      %v902 = vunpack.c.h.b16 %v787
      %v903 = vunpack.c.l.b16 %v788
      %v904 = vunpack.c.h.b16 %v788
      %v905 = vunpack.c.l.b16 %v789
      %v906 = vunpack.c.h.b16 %v789
      %v907 = vunpack.c.l.b16 %v790
      %v908 = vunpack.c.h.b16 %v790
      %v909 = vunpack.c.l.b16 %v791
      %v910 = vunpack.c.h.b16 %v791
      %v911 = vunpack.c.l.b16 %v792
      %v912 = vunpack.c.h.b16 %v792
      %v913 = vunpack.c.l.b16 %v793
      %v914 = vunpack.c.h.b16 %v793
      %v915 = vunpack.c.l.b16 %v794
      %v916 = vunpack.c.h.b16 %v794
      %v917 = vunpack.c.l.b16 %v795
      %v918 = vunpack.c.h.b16 %v795
      %v919 = vunpack.c.l.b16 %v796
      %v920 = vunpack.c.h.b16 %v796
      %v921 = vpack.c.b16 %v889, %v889
      %v922 = vpack.c.b16 %v890, %v890
      %v923 = vpack.c.b16 %v891, %v891
      %v924 = vpack.c.b16 %v892, %v892
      %v925 = vpack.c.b16 %v893, %v893
      %v926 = vpack.c.b16 %v894, %v894
      %v927 = vpack.c.b16 %v895, %v895
      %v928 = vpack.c.b16 %v896, %v896
      %v929 = vpack.c.b16 %v897, %v897
      %v930 = vpack.c.b16 %v898, %v898
      %v931 = vpack.c.b16 %v899, %v899
      %v932 = vpack.c.b16 %v900, %v900
      %v933 = vpack.c.b16 %v901, %v901
      %v934 = vpack.c.b16 %v902, %v902
      %v935 = vpack.c.b16 %v903, %v903
      %v936 = vpack.c.b16 %v904, %v904
      %v937 = vpack.c.b16 %v905, %v905
      %v938 = vpack.c.b16 %v906, %v906
      %v939 = vpack.c.b16 %v907, %v907
      %v940 = vpack.c.b16 %v908, %v908
      %v941 = vpack.c.b16 %v909, %v909
      %v942 = vpack.c.b16 %v910, %v910
      %v943 = vpack.c.b16 %v911, %v911
      %v944 = vpack.c.b16 %v912, %v912
      %v945 = vpack.c.b16 %v913, %v913
      %v946 = vpack.c.b16 %v914, %v914
      %v947 = vpack.c.b16 %v915, %v915
      %v948 = vpack.c.b16 %v916, %v916
      %v949 = vpack.c.b16 %v917, %v917
      %v950 = vpack.c.b16 %v918, %v918
      %v951 = vpack.c.b16 %v919, %v919
      %v952 = vpack.c.b16 %v920, %v920
      %953 = vrot.lane.b32.xlu0 %v921, 64
      %v954 = vpop.permute.xlu0 %953
      %955 = vrot.lane.b32.xlu0 %v922, 64
      %v956 = vpop.permute.xlu0 %955
      %957 = vrot.lane.b32.xlu0 %v923, 64
      %v958 = vpop.permute.xlu0 %957
      %959 = vrot.lane.b32.xlu0 %v924, 64
      %v960 = vpop.permute.xlu0 %959
      %961 = vrot.lane.b32.xlu0 %v925, 64
      %v962 = vpop.permute.xlu0 %961
      %963 = vrot.lane.b32.xlu0 %v926, 64
      %v964 = vpop.permute.xlu0 %963
      %965 = vrot.lane.b32.xlu0 %v927, 64
      %v966 = vpop.permute.xlu0 %965
      %967 = vrot.lane.b32.xlu0 %v928, 64
      %v968 = vpop.permute.xlu0 %967
      %969 = vrot.lane.b32.xlu0 %v929, 64
      %v970 = vpop.permute.xlu0 %969
      %971 = vrot.lane.b32.xlu0 %v930, 64
      %v972 = vpop.permute.xlu0 %971
      %973 = vrot.lane.b32.xlu0 %v931, 64
      %v974 = vpop.permute.xlu0 %973
      %975 = vrot.lane.b32.xlu0 %v932, 64
      %v976 = vpop.permute.xlu0 %975
      %977 = vrot.lane.b32.xlu0 %v933, 64
      %v978 = vpop.permute.xlu0 %977
      %979 = vrot.lane.b32.xlu0 %v934, 64
      %v980 = vpop.permute.xlu0 %979
      %981 = vrot.lane.b32.xlu0 %v935, 64
      %v982 = vpop.permute.xlu0 %981
      %983 = vrot.lane.b32.xlu0 %v936, 64
      %v984 = vpop.permute.xlu0 %983
      %985 = vrot.lane.b32.xlu0 %v937, 64
      %v986 = vpop.permute.xlu0 %985
      %987 = vrot.lane.b32.xlu0 %v938, 64
      %v988 = vpop.permute.xlu0 %987
      %989 = vrot.lane.b32.xlu0 %v939, 64
      %v990 = vpop.permute.xlu0 %989
      %991 = vrot.lane.b32.xlu0 %v940, 64
      %v992 = vpop.permute.xlu0 %991
      %993 = vrot.lane.b32.xlu0 %v941, 64
      %v994 = vpop.permute.xlu0 %993
      %995 = vrot.lane.b32.xlu0 %v942, 64
      %v996 = vpop.permute.xlu0 %995
      %997 = vrot.lane.b32.xlu0 %v943, 64
      %v998 = vpop.permute.xlu0 %997
      %999 = vrot.lane.b32.xlu0 %v944, 64
      %v1000 = vpop.permute.xlu0 %999
      %1001 = vrot.lane.b32.xlu0 %v945, 64
      %v1002 = vpop.permute.xlu0 %1001
      %1003 = vrot.lane.b32.xlu0 %v946, 64
      %v1004 = vpop.permute.xlu0 %1003
      %1005 = vrot.lane.b32.xlu0 %v947, 64
      %v1006 = vpop.permute.xlu0 %1005
      %1007 = vrot.lane.b32.xlu0 %v948, 64
      %v1008 = vpop.permute.xlu0 %1007
      %1009 = vrot.lane.b32.xlu0 %v949, 64
      %v1010 = vpop.permute.xlu0 %1009
      %1011 = vrot.lane.b32.xlu0 %v950, 64
      %v1012 = vpop.permute.xlu0 %1011
      %1013 = vrot.lane.b32.xlu0 %v951, 64
      %v1014 = vpop.permute.xlu0 %1013
      %1015 = vrot.lane.b32.xlu0 %v952, 64
      %v1016 = vpop.permute.xlu0 %1015
      %s1049 = scalar_lea.vmem [#allocation2], 32
      %1050 = vst.msk [vmem:[%s1049 + $0x4] sm:$0xf] %vm813, %v954
      %1051 = vst.msk [vmem:[%s1049 + $0x8] sm:$0xf] %vm813, %v956
      %1052 = vst.msk [vmem:[%s1049 + $0x14] sm:$0xf] %vm813, %v958
      %1053 = vst.msk [vmem:[%s1049 + $0x18] sm:$0xf] %vm813, %v960
      %1054 = vst.msk [vmem:[%s1049 + $0x24] sm:$0xf] %vm813, %v962
      %1055 = vst.msk [vmem:[%s1049 + $0x28] sm:$0xf] %vm813, %v964
      %1056 = vst.msk [vmem:[%s1049 + $0x34] sm:$0xf] %vm813, %v966
      %1057 = vst.msk [vmem:[%s1049 + $0x38] sm:$0xf] %vm813, %v968
      %1058 = vst.msk [vmem:[%s1049 + $0x44] sm:$0xf] %vm813, %v970
      %1059 = vst.msk [vmem:[%s1049 + $0x48] sm:$0xf] %vm813, %v972
      %1060 = vst.msk [vmem:[%s1049 + $0x54] sm:$0xf] %vm813, %v974
      %1061 = vst.msk [vmem:[%s1049 + $0x58] sm:$0xf] %vm813, %v976
      %1062 = vst.msk [vmem:[%s1049 + $0x64] sm:$0xf] %vm813, %v978
      %1063 = vst.msk [vmem:[%s1049 + $0x68] sm:$0xf] %vm813, %v980
      %1064 = vst.msk [vmem:[%s1049 + $0x74] sm:$0xf] %vm813, %v982
      %1065 = vst.msk [vmem:[%s1049 + $0x78] sm:$0xf] %vm813, %v984
      %1066 = vst.msk [vmem:[%s1049 + $0x84] sm:$0xf] %vm813, %v986
      %1067 = vst.msk [vmem:[%s1049 + $0x88] sm:$0xf] %vm813, %v988
      %1068 = vst.msk [vmem:[%s1049 + $0x94] sm:$0xf] %vm813, %v990
      %1069 = vst.msk [vmem:[%s1049 + $0x98] sm:$0xf] %vm813, %v992
      %1070 = vst.msk [vmem:[%s1049 + $0xa4] sm:$0xf] %vm813, %v994
      %1071 = vst.msk [vmem:[%s1049 + $0xa8] sm:$0xf] %vm813, %v996
      %1072 = vst.msk [vmem:[%s1049 + $0xb4] sm:$0xf] %vm813, %v998
      %1073 = vst.msk [vmem:[%s1049 + $0xb8] sm:$0xf] %vm813, %v1000
      %1074 = vst.msk [vmem:[%s1049 + $0xc4] sm:$0xf] %vm813, %v1002
      %1075 = vst.msk [vmem:[%s1049 + $0xc8] sm:$0xf] %vm813, %v1004
      %1076 = vst.msk [vmem:[%s1049 + $0xd4] sm:$0xf] %vm813, %v1006
      %1077 = vst.msk [vmem:[%s1049 + $0xd8] sm:$0xf] %vm813, %v1008
      %1078 = vst.msk [vmem:[%s1049 + $0xe4] sm:$0xf] %vm813, %v1010
      %1079 = vst.msk [vmem:[%s1049 + $0xe8] sm:$0xf] %vm813, %v1012
      %1080 = vst.msk [vmem:[%s1049 + $0xf4] sm:$0xf] %vm813, %v1014
      %1081 = vst.msk [vmem:[%s1049 + $0xf8] sm:$0xf] %vm813, %v1016
      %v1082 = vld [vmem:[#allocation2] sm:$0x8]
      %v1083 = vld [vmem:[#allocation2 + $0x4] sm:$0xf]
      %v1084 = vld [vmem:[#allocation2 + $0x8] sm:$0x7]
      %v1085 = vld [vmem:[#allocation2 + $0x10] sm:$0x8]
      %v1086 = vld [vmem:[#allocation2 + $0x14] sm:$0xf]
      %v1087 = vld [vmem:[#allocation2 + $0x18] sm:$0x7]
      %v1088 = vld [vmem:[#allocation2 + $0x20] sm:$0x8]
      %v1089 = vld [vmem:[#allocation2 + $0x24] sm:$0xf]
      %v1090 = vld [vmem:[#allocation2 + $0x28] sm:$0x7]
      %v1091 = vld [vmem:[#allocation2 + $0x30] sm:$0x8]
      %v1092 = vld [vmem:[#allocation2 + $0x34] sm:$0xf]
      %v1093 = vld [vmem:[#allocation2 + $0x38] sm:$0x7]
      %v1094 = vld [vmem:[#allocation2 + $0x40] sm:$0x8]
      %v1095 = vld [vmem:[#allocation2 + $0x44] sm:$0xf]
      %v1096 = vld [vmem:[#allocation2 + $0x48] sm:$0x7]
      %v1097 = vld [vmem:[#allocation2 + $0x50] sm:$0x8]
      %v1098 = vld [vmem:[#allocation2 + $0x54] sm:$0xf]
      %v1099 = vld [vmem:[#allocation2 + $0x58] sm:$0x7]
      %v1100 = vld [vmem:[#allocation2 + $0x60] sm:$0x8]
      %v1101 = vld [vmem:[#allocation2 + $0x64] sm:$0xf]
      %v1102 = vld [vmem:[#allocation2 + $0x68] sm:$0x7]
      %v1103 = vld [vmem:[#allocation2 + $0x70] sm:$0x8]
      %v1104 = vld [vmem:[#allocation2 + $0x74] sm:$0xf]
      %v1105 = vld [vmem:[#allocation2 + $0x78] sm:$0x7]
      %v1106 = vld [vmem:[#allocation2 + $0x80] sm:$0x8]
      %v1107 = vld [vmem:[#allocation2 + $0x84] sm:$0xf]
      %v1108 = vld [vmem:[#allocation2 + $0x88] sm:$0x7]
      %v1109 = vld [vmem:[#allocation2 + $0x90] sm:$0x8]
      %v1110 = vld [vmem:[#allocation2 + $0x94] sm:$0xf]
      %v1111 = vld [vmem:[#allocation2 + $0x98] sm:$0x7]
      %v1112 = vld [vmem:[#allocation2 + $0xa0] sm:$0x8]
      %v1113 = vld [vmem:[#allocation2 + $0xa4] sm:$0xf]
      %v1114 = vld [vmem:[#allocation2 + $0xa8] sm:$0x7]
      %v1115 = vld [vmem:[#allocation2 + $0xb0] sm:$0x8]
      %v1116 = vld [vmem:[#allocation2 + $0xb4] sm:$0xf]
      %v1117 = vld [vmem:[#allocation2 + $0xb8] sm:$0x7]
      %v1118 = vld [vmem:[#allocation2 + $0xc0] sm:$0x8]
      %v1119 = vld [vmem:[#allocation2 + $0xc4] sm:$0xf]
      %v1120 = vld [vmem:[#allocation2 + $0xc8] sm:$0x7]
      %v1121 = vld [vmem:[#allocation2 + $0xd0] sm:$0x8]
      %v1122 = vld [vmem:[#allocation2 + $0xd4] sm:$0xf]
      %v1123 = vld [vmem:[#allocation2 + $0xd8] sm:$0x7]
      %v1124 = vld [vmem:[#allocation2 + $0xe0] sm:$0x8]
      %v1125 = vld [vmem:[#allocation2 + $0xe4] sm:$0xf]
      %v1126 = vld [vmem:[#allocation2 + $0xe8] sm:$0x7]
      %v1127 = vld [vmem:[#allocation2 + $0xf0] sm:$0x8]
      %v1128 = vld [vmem:[#allocation2 + $0xf4] sm:$0xf]
      %v1129 = vld [vmem:[#allocation2 + $0xf8] sm:$0x7]
      %v1130 = vld [vmem:[#allocation2 + $0x100] sm:$0x8]
      %v1131 = vld [vmem:[#allocation2 + $0x104] sm:$0xf]
      %v1132 = vld [vmem:[#allocation2 + $0x108] sm:$0x7]
      %v1133 = vld [vmem:[#allocation2 + $0x110] sm:$0x8]
      %v1134 = vld [vmem:[#allocation2 + $0x114] sm:$0xf]
      %v1135 = vld [vmem:[#allocation2 + $0x118] sm:$0x7]
      %v1136 = vld [vmem:[#allocation2 + $0x120] sm:$0x8]
      %v1137 = vld [vmem:[#allocation2 + $0x124] sm:$0xf]
      %v1138 = vld [vmem:[#allocation2 + $0x128] sm:$0x7]
      %v1139 = vld [vmem:[#allocation2 + $0x130] sm:$0x8]
      %v1140 = vld [vmem:[#allocation2 + $0x134] sm:$0xf]
      %v1141 = vld [vmem:[#allocation2 + $0x138] sm:$0x7]
      %v1142 = vld [vmem:[#allocation2 + $0x8] sm:$0xf]
      %v1143 = vld [vmem:[#allocation2 + $0x18] sm:$0xf]
      %v1144 = vld [vmem:[#allocation2 + $0x28] sm:$0xf]
      %v1145 = vld [vmem:[#allocation2 + $0x38] sm:$0xf]
      %v1146 = vld [vmem:[#allocation2 + $0x48] sm:$0xf]
      %v1147 = vld [vmem:[#allocation2 + $0x58] sm:$0xf]
      %v1148 = vld [vmem:[#allocation2 + $0x68] sm:$0xf]
      %v1149 = vld [vmem:[#allocation2 + $0x78] sm:$0xf]
      %v1150 = vld [vmem:[#allocation2 + $0x88] sm:$0xf]
      %v1151 = vld [vmem:[#allocation2 + $0x98] sm:$0xf]
      %v1152 = vld [vmem:[#allocation2 + $0xa8] sm:$0xf]
      %v1153 = vld [vmem:[#allocation2 + $0xb8] sm:$0xf]
      %v1154 = vld [vmem:[#allocation2 + $0xc8] sm:$0xf]
      %v1155 = vld [vmem:[#allocation2 + $0xd8] sm:$0xf]
      %v1156 = vld [vmem:[#allocation2 + $0xe8] sm:$0xf]
      %v1157 = vld [vmem:[#allocation2 + $0xf8] sm:$0xf]
      %v1158 = vld [vmem:[#allocation2 + $0x108] sm:$0xf]
      %v1159 = vld [vmem:[#allocation2 + $0x118] sm:$0xf]
      %v1160 = vld [vmem:[#allocation2 + $0x128] sm:$0xf]
      %v1161 = vld [vmem:[#allocation2 + $0x138] sm:$0xf]
      %v1162 = vld [vmem:[#allocation2 + $0xc] sm:$0x1]
      %v1163 = vld [vmem:[#allocation2 + $0x1c] sm:$0x1]
      %v1164 = vld [vmem:[#allocation2 + $0x2c] sm:$0x1]
      %v1165 = vld [vmem:[#allocation2 + $0x3c] sm:$0x1]
      %v1166 = vld [vmem:[#allocation2 + $0x4c] sm:$0x1]
      %v1167 = vld [vmem:[#allocation2 + $0x5c] sm:$0x1]
      %v1168 = vld [vmem:[#allocation2 + $0x6c] sm:$0x1]
      %v1169 = vld [vmem:[#allocation2 + $0x7c] sm:$0x1]
      %v1170 = vld [vmem:[#allocation2 + $0x8c] sm:$0x1]
      %v1171 = vld [vmem:[#allocation2 + $0x9c] sm:$0x1]
      %v1172 = vld [vmem:[#allocation2 + $0xac] sm:$0x1]
      %v1173 = vld [vmem:[#allocation2 + $0xbc] sm:$0x1]
      %v1174 = vld [vmem:[#allocation2 + $0xcc] sm:$0x1]
      %v1175 = vld [vmem:[#allocation2 + $0xdc] sm:$0x1]
      %v1176 = vld [vmem:[#allocation2 + $0xec] sm:$0x1]
      %v1177 = vld [vmem:[#allocation2 + $0xfc] sm:$0x1]
      %v1178 = vld [vmem:[#allocation2 + $0x10c] sm:$0x1]
      %v1179 = vld [vmem:[#allocation2 + $0x11c] sm:$0x1]
      %v1180 = vld [vmem:[#allocation2 + $0x12c] sm:$0x1]
      %v1181 = vld [vmem:[#allocation2 + $0x13c] sm:$0x1]
      %v1182 = vld [vmem:[#allocation2 + $0x4] sm:$0xe]
      %v1183 = vld [vmem:[#allocation2 + $0x14] sm:$0xe]
      %v1184 = vld [vmem:[#allocation2 + $0x24] sm:$0xe]
      %v1185 = vld [vmem:[#allocation2 + $0x34] sm:$0xe]
      %v1186 = vld [vmem:[#allocation2 + $0x44] sm:$0xe]
      %v1187 = vld [vmem:[#allocation2 + $0x54] sm:$0xe]
      %v1188 = vld [vmem:[#allocation2 + $0x64] sm:$0xe]
      %v1189 = vld [vmem:[#allocation2 + $0x74] sm:$0xe]
      %v1190 = vld [vmem:[#allocation2 + $0x84] sm:$0xe]
      %v1191 = vld [vmem:[#allocation2 + $0x94] sm:$0xe]
      %v1192 = vld [vmem:[#allocation2 + $0xa4] sm:$0xe]
      %v1193 = vld [vmem:[#allocation2 + $0xb4] sm:$0xe]
      %v1194 = vld [vmem:[#allocation2 + $0xc4] sm:$0xe]
      %v1195 = vld [vmem:[#allocation2 + $0xd4] sm:$0xe]
      %v1196 = vld [vmem:[#allocation2 + $0xe4] sm:$0xe]
      %v1197 = vld [vmem:[#allocation2 + $0xf4] sm:$0xe]
      %v1198 = vld [vmem:[#allocation2 + $0x104] sm:$0xe]
      %v1199 = vld [vmem:[#allocation2 + $0x114] sm:$0xe]
      %v1200 = vld [vmem:[#allocation2 + $0x124] sm:$0xe]
      %v1201 = vld [vmem:[#allocation2 + $0x134] sm:$0xe]
      %v1262 = vunpack.c.l.b16 %v1082
      %v1263 = vunpack.c.l.b16 %v1083
      %v1264 = vunpack.c.l.b16 %v1084
      %v1265 = vunpack.c.l.b16 %v1085
      %v1266 = vunpack.c.l.b16 %v1086
      %v1267 = vunpack.c.l.b16 %v1087
      %v1268 = vunpack.c.l.b16 %v1088
      %v1269 = vunpack.c.l.b16 %v1089
      %v1270 = vunpack.c.l.b16 %v1090
      %v1271 = vunpack.c.l.b16 %v1091
      %v1272 = vunpack.c.l.b16 %v1092
      %v1273 = vunpack.c.l.b16 %v1093
      %v1274 = vunpack.c.l.b16 %v1094
      %v1275 = vunpack.c.l.b16 %v1095
      %v1276 = vunpack.c.l.b16 %v1096
      %v1277 = vunpack.c.l.b16 %v1097
      %v1278 = vunpack.c.l.b16 %v1098
      %v1279 = vunpack.c.l.b16 %v1099
      %v1280 = vunpack.c.l.b16 %v1100
      %v1281 = vunpack.c.l.b16 %v1101
      %v1282 = vunpack.c.l.b16 %v1102
      %v1283 = vunpack.c.l.b16 %v1103
      %v1284 = vunpack.c.l.b16 %v1104
      %v1285 = vunpack.c.l.b16 %v1105
      %v1286 = vunpack.c.l.b16 %v1106
      %v1287 = vunpack.c.l.b16 %v1107
      %v1288 = vunpack.c.l.b16 %v1108
      %v1289 = vunpack.c.l.b16 %v1109
      %v1290 = vunpack.c.l.b16 %v1110
      %v1291 = vunpack.c.l.b16 %v1111
      %v1292 = vunpack.c.l.b16 %v1112
      %v1293 = vunpack.c.l.b16 %v1113
      %v1294 = vunpack.c.l.b16 %v1114
      %v1295 = vunpack.c.l.b16 %v1115
      %v1296 = vunpack.c.l.b16 %v1116
      %v1297 = vunpack.c.l.b16 %v1117
      %v1298 = vunpack.c.l.b16 %v1118
      %v1299 = vunpack.c.l.b16 %v1119
      %v1300 = vunpack.c.l.b16 %v1120
      %v1301 = vunpack.c.l.b16 %v1121
      %v1302 = vunpack.c.l.b16 %v1122
      %v1303 = vunpack.c.l.b16 %v1123
      %v1304 = vunpack.c.l.b16 %v1124
      %v1305 = vunpack.c.l.b16 %v1125
      %v1306 = vunpack.c.l.b16 %v1126
      %v1307 = vunpack.c.l.b16 %v1127
      %v1308 = vunpack.c.l.b16 %v1128
      %v1309 = vunpack.c.l.b16 %v1129
      %v1310 = vunpack.c.l.b16 %v1130
      %v1311 = vunpack.c.l.b16 %v1131
      %v1312 = vunpack.c.l.b16 %v1132
      %v1313 = vunpack.c.l.b16 %v1133
      %v1314 = vunpack.c.l.b16 %v1134
      %v1315 = vunpack.c.l.b16 %v1135
      %v1316 = vunpack.c.l.b16 %v1136
      %v1317 = vunpack.c.l.b16 %v1137
      %v1318 = vunpack.c.l.b16 %v1138
      %v1319 = vunpack.c.l.b16 %v1139
      %v1320 = vunpack.c.l.b16 %v1140
      %v1321 = vunpack.c.l.b16 %v1141
      %v1322 = vpack.c.b16 %v1263, %v1262
      %v1323 = vpack.c.b16 %v1264, %v1264
      %v1324 = vpack.c.b16 %v1266, %v1265
      %v1325 = vpack.c.b16 %v1267, %v1267
      %v1326 = vpack.c.b16 %v1269, %v1268
      %v1327 = vpack.c.b16 %v1270, %v1270
      %v1328 = vpack.c.b16 %v1272, %v1271
      %v1329 = vpack.c.b16 %v1273, %v1273
      %v1330 = vpack.c.b16 %v1275, %v1274
      %v1331 = vpack.c.b16 %v1276, %v1276
      %v1332 = vpack.c.b16 %v1278, %v1277
      %v1333 = vpack.c.b16 %v1279, %v1279
      %v1334 = vpack.c.b16 %v1281, %v1280
      %v1335 = vpack.c.b16 %v1282, %v1282
      %v1336 = vpack.c.b16 %v1284, %v1283
      %v1337 = vpack.c.b16 %v1285, %v1285
      %v1338 = vpack.c.b16 %v1287, %v1286
      %v1339 = vpack.c.b16 %v1288, %v1288
      %v1340 = vpack.c.b16 %v1290, %v1289
      %v1341 = vpack.c.b16 %v1291, %v1291
      %v1342 = vpack.c.b16 %v1293, %v1292
      %v1343 = vpack.c.b16 %v1294, %v1294
      %v1344 = vpack.c.b16 %v1296, %v1295
      %v1345 = vpack.c.b16 %v1297, %v1297
      %v1346 = vpack.c.b16 %v1299, %v1298
      %v1347 = vpack.c.b16 %v1300, %v1300
      %v1348 = vpack.c.b16 %v1302, %v1301
      %v1349 = vpack.c.b16 %v1303, %v1303
      %v1350 = vpack.c.b16 %v1305, %v1304
      %v1351 = vpack.c.b16 %v1306, %v1306
      %v1352 = vpack.c.b16 %v1308, %v1307
      %v1353 = vpack.c.b16 %v1309, %v1309
      %v1354 = vpack.c.b16 %v1311, %v1310
      %v1355 = vpack.c.b16 %v1312, %v1312
      %v1356 = vpack.c.b16 %v1314, %v1313
      %v1357 = vpack.c.b16 %v1315, %v1315
      %v1358 = vpack.c.b16 %v1317, %v1316
      %v1359 = vpack.c.b16 %v1318, %v1318
      %v1360 = vpack.c.b16 %v1320, %v1319
      %v1361 = vpack.c.b16 %v1321, %v1321
      %v1382 = vunpack.c.l.b16 %v1142
      %v1383 = vunpack.c.l.b16 %v1143
      %v1384 = vunpack.c.l.b16 %v1144
      %v1385 = vunpack.c.l.b16 %v1145
      %v1386 = vunpack.c.l.b16 %v1146
      %v1387 = vunpack.c.l.b16 %v1147
      %v1388 = vunpack.c.l.b16 %v1148
      %v1389 = vunpack.c.l.b16 %v1149
      %v1390 = vunpack.c.l.b16 %v1150
      %v1391 = vunpack.c.l.b16 %v1151
      %v1392 = vunpack.c.l.b16 %v1152
      %v1393 = vunpack.c.l.b16 %v1153
      %v1394 = vunpack.c.l.b16 %v1154
      %v1395 = vunpack.c.l.b16 %v1155
      %v1396 = vunpack.c.l.b16 %v1156
      %v1397 = vunpack.c.l.b16 %v1157
      %v1398 = vunpack.c.l.b16 %v1158
      %v1399 = vunpack.c.l.b16 %v1159
      %v1400 = vunpack.c.l.b16 %v1160
      %v1401 = vunpack.c.l.b16 %v1161
      %v1402 = vpack.c.b16 %v1382, %v1382
      %v1403 = vpack.c.b16 %v1383, %v1383
      %v1404 = vpack.c.b16 %v1384, %v1384
      %v1405 = vpack.c.b16 %v1385, %v1385
      %v1406 = vpack.c.b16 %v1386, %v1386
      %v1407 = vpack.c.b16 %v1387, %v1387
      %v1408 = vpack.c.b16 %v1388, %v1388
      %v1409 = vpack.c.b16 %v1389, %v1389
      %v1410 = vpack.c.b16 %v1390, %v1390
      %v1411 = vpack.c.b16 %v1391, %v1391
      %v1412 = vpack.c.b16 %v1392, %v1392
      %v1413 = vpack.c.b16 %v1393, %v1393
      %v1414 = vpack.c.b16 %v1394, %v1394
      %v1415 = vpack.c.b16 %v1395, %v1395
      %v1416 = vpack.c.b16 %v1396, %v1396
      %v1417 = vpack.c.b16 %v1397, %v1397
      %v1418 = vpack.c.b16 %v1398, %v1398
      %v1419 = vpack.c.b16 %v1399, %v1399
      %v1420 = vpack.c.b16 %v1400, %v1400
      %v1421 = vpack.c.b16 %v1401, %v1401
      %vm1422 = vsmask.f32 7424
      %v1424 = vshrl.u32 %v1322, 16
      %v1426 = vshll.u32 %v1322, 16
      %v1428 = vrot.slane %v1426, 1
      %v1429 = vor.u32 %v1424, %v1428
      %v1431 = vshll.u32 %v1402, 16
      %v1433 = vrot.slane %v1431, 1
      %v1434 = vsel %vm1422, %v1429, %v1433
      %v1435 = vshrl.u32 %v1402, 16
      %v1437 = vor.u32 %v1435, %v1433
      %v1439 = vshrl.u32 %v1324, 16
      %v1441 = vshll.u32 %v1324, 16
      %v1443 = vrot.slane %v1441, 1
      %v1444 = vor.u32 %v1439, %v1443
      %v1446 = vshll.u32 %v1403, 16
      %v1448 = vrot.slane %v1446, 1
      %v1449 = vsel %vm1422, %v1444, %v1448
      %v1450 = vshrl.u32 %v1403, 16
      %v1452 = vor.u32 %v1450, %v1448
      %v1454 = vshrl.u32 %v1326, 16
      %v1456 = vshll.u32 %v1326, 16
      %v1458 = vrot.slane %v1456, 1
      %v1459 = vor.u32 %v1454, %v1458
      %v1461 = vshll.u32 %v1404, 16
      %v1463 = vrot.slane %v1461, 1
      %v1464 = vsel %vm1422, %v1459, %v1463
      %v1465 = vshrl.u32 %v1404, 16
      %v1467 = vor.u32 %v1465, %v1463
      %v1469 = vshrl.u32 %v1328, 16
      %v1471 = vshll.u32 %v1328, 16
      %v1473 = vrot.slane %v1471, 1
      %v1474 = vor.u32 %v1469, %v1473
      %v1476 = vshll.u32 %v1405, 16
      %v1478 = vrot.slane %v1476, 1
      %v1479 = vsel %vm1422, %v1474, %v1478
      %v1480 = vshrl.u32 %v1405, 16
      %v1482 = vor.u32 %v1480, %v1478
      %v1484 = vshrl.u32 %v1330, 16
      %v1486 = vshll.u32 %v1330, 16
      %v1488 = vrot.slane %v1486, 1
      %v1489 = vor.u32 %v1484, %v1488
      %v1491 = vshll.u32 %v1406, 16
      %v1493 = vrot.slane %v1491, 1
      %v1494 = vsel %vm1422, %v1489, %v1493
      %v1495 = vshrl.u32 %v1406, 16
      %v1497 = vor.u32 %v1495, %v1493
      %v1499 = vshrl.u32 %v1332, 16
      %v1501 = vshll.u32 %v1332, 16
      %v1503 = vrot.slane %v1501, 1
      %v1504 = vor.u32 %v1499, %v1503
      %v1506 = vshll.u32 %v1407, 16
      %v1508 = vrot.slane %v1506, 1
      %v1509 = vsel %vm1422, %v1504, %v1508
      %v1510 = vshrl.u32 %v1407, 16
      %v1512 = vor.u32 %v1510, %v1508
      %v1514 = vshrl.u32 %v1334, 16
      %v1516 = vshll.u32 %v1334, 16
      %v1518 = vrot.slane %v1516, 1
      %v1519 = vor.u32 %v1514, %v1518
      %v1521 = vshll.u32 %v1408, 16
      %v1523 = vrot.slane %v1521, 1
      %v1524 = vsel %vm1422, %v1519, %v1523
      %v1525 = vshrl.u32 %v1408, 16
      %v1527 = vor.u32 %v1525, %v1523
      %v1529 = vshrl.u32 %v1336, 16
      %v1531 = vshll.u32 %v1336, 16
      %v1533 = vrot.slane %v1531, 1
      %v1534 = vor.u32 %v1529, %v1533
      %v1536 = vshll.u32 %v1409, 16
      %v1538 = vrot.slane %v1536, 1
      %v1539 = vsel %vm1422, %v1534, %v1538
      %v1540 = vshrl.u32 %v1409, 16
      %v1542 = vor.u32 %v1540, %v1538
      %v1544 = vshrl.u32 %v1338, 16
      %v1546 = vshll.u32 %v1338, 16
      %v1548 = vrot.slane %v1546, 1
      %v1549 = vor.u32 %v1544, %v1548
      %v1551 = vshll.u32 %v1410, 16
      %v1553 = vrot.slane %v1551, 1
      %v1554 = vsel %vm1422, %v1549, %v1553
      %v1555 = vshrl.u32 %v1410, 16
      %v1557 = vor.u32 %v1555, %v1553
      %v1559 = vshrl.u32 %v1340, 16
      %v1561 = vshll.u32 %v1340, 16
      %v1563 = vrot.slane %v1561, 1
      %v1564 = vor.u32 %v1559, %v1563
      %v1566 = vshll.u32 %v1411, 16
      %v1568 = vrot.slane %v1566, 1
      %v1569 = vsel %vm1422, %v1564, %v1568
      %v1570 = vshrl.u32 %v1411, 16
      %v1572 = vor.u32 %v1570, %v1568
      %v1574 = vshrl.u32 %v1342, 16
      %v1576 = vshll.u32 %v1342, 16
      %v1578 = vrot.slane %v1576, 1
      %v1579 = vor.u32 %v1574, %v1578
      %v1581 = vshll.u32 %v1412, 16
      %v1583 = vrot.slane %v1581, 1
      %v1584 = vsel %vm1422, %v1579, %v1583
      %v1585 = vshrl.u32 %v1412, 16
      %v1587 = vor.u32 %v1585, %v1583
      %v1589 = vshrl.u32 %v1344, 16
      %v1591 = vshll.u32 %v1344, 16
      %v1593 = vrot.slane %v1591, 1
      %v1594 = vor.u32 %v1589, %v1593
      %v1596 = vshll.u32 %v1413, 16
      %v1598 = vrot.slane %v1596, 1
      %v1599 = vsel %vm1422, %v1594, %v1598
      %v1600 = vshrl.u32 %v1413, 16
      %v1602 = vor.u32 %v1600, %v1598
      %v1604 = vshrl.u32 %v1346, 16
      %v1606 = vshll.u32 %v1346, 16
      %v1608 = vrot.slane %v1606, 1
      %v1609 = vor.u32 %v1604, %v1608
      %v1611 = vshll.u32 %v1414, 16
      %v1613 = vrot.slane %v1611, 1
      %v1614 = vsel %vm1422, %v1609, %v1613
      %v1615 = vshrl.u32 %v1414, 16
      %v1617 = vor.u32 %v1615, %v1613
      %v1619 = vshrl.u32 %v1348, 16
      %v1621 = vshll.u32 %v1348, 16
      %v1623 = vrot.slane %v1621, 1
      %v1624 = vor.u32 %v1619, %v1623
      %v1626 = vshll.u32 %v1415, 16
      %v1628 = vrot.slane %v1626, 1
      %v1629 = vsel %vm1422, %v1624, %v1628
      %v1630 = vshrl.u32 %v1415, 16
      %v1632 = vor.u32 %v1630, %v1628
      %v1634 = vshrl.u32 %v1350, 16
      %v1636 = vshll.u32 %v1350, 16
      %v1638 = vrot.slane %v1636, 1
      %v1639 = vor.u32 %v1634, %v1638
      %v1641 = vshll.u32 %v1416, 16
      %v1643 = vrot.slane %v1641, 1
      %v1644 = vsel %vm1422, %v1639, %v1643
      %v1645 = vshrl.u32 %v1416, 16
      %v1647 = vor.u32 %v1645, %v1643
      %v1649 = vshrl.u32 %v1352, 16
      %v1651 = vshll.u32 %v1352, 16
      %v1653 = vrot.slane %v1651, 1
      %v1654 = vor.u32 %v1649, %v1653
      %v1656 = vshll.u32 %v1417, 16
      %v1658 = vrot.slane %v1656, 1
      %v1659 = vsel %vm1422, %v1654, %v1658
      %v1660 = vshrl.u32 %v1417, 16
      %v1662 = vor.u32 %v1660, %v1658
      %v1664 = vshrl.u32 %v1354, 16
      %v1666 = vshll.u32 %v1354, 16
      %v1668 = vrot.slane %v1666, 1
      %v1669 = vor.u32 %v1664, %v1668
      %v1671 = vshll.u32 %v1418, 16
      %v1673 = vrot.slane %v1671, 1
      %v1674 = vsel %vm1422, %v1669, %v1673
      %v1675 = vshrl.u32 %v1418, 16
      %v1677 = vor.u32 %v1675, %v1673
      %v1679 = vshrl.u32 %v1356, 16
      %v1681 = vshll.u32 %v1356, 16
      %v1683 = vrot.slane %v1681, 1
      %v1684 = vor.u32 %v1679, %v1683
      %v1686 = vshll.u32 %v1419, 16
      %v1688 = vrot.slane %v1686, 1
      %v1689 = vsel %vm1422, %v1684, %v1688
      %v1690 = vshrl.u32 %v1419, 16
      %v1692 = vor.u32 %v1690, %v1688
      %v1694 = vshrl.u32 %v1358, 16
      %v1696 = vshll.u32 %v1358, 16
      %v1698 = vrot.slane %v1696, 1
      %v1699 = vor.u32 %v1694, %v1698
      %v1701 = vshll.u32 %v1420, 16
      %v1703 = vrot.slane %v1701, 1
      %v1704 = vsel %vm1422, %v1699, %v1703
      %v1705 = vshrl.u32 %v1420, 16
      %v1707 = vor.u32 %v1705, %v1703
      %v1709 = vshrl.u32 %v1360, 16
      %v1711 = vshll.u32 %v1360, 16
      %v1713 = vrot.slane %v1711, 1
      %v1714 = vor.u32 %v1709, %v1713
      %v1716 = vshll.u32 %v1421, 16
      %v1718 = vrot.slane %v1716, 1
      %v1719 = vsel %vm1422, %v1714, %v1718
      %v1720 = vshrl.u32 %v1421, 16
      %v1722 = vor.u32 %v1720, %v1718
      %1723 = vrot.lane.b32.xlu0 %v1434, 48
      %v1724 = vpop.permute.xlu0 %1723
      %1725 = vrot.lane.b32.xlu0 %v1437, 48
      %v1726 = vpop.permute.xlu0 %1725
      %1727 = vrot.lane.b32.xlu0 %v1449, 48
      %v1728 = vpop.permute.xlu0 %1727
      %1729 = vrot.lane.b32.xlu0 %v1452, 48
      %v1730 = vpop.permute.xlu0 %1729
      %1731 = vrot.lane.b32.xlu0 %v1464, 48
      %v1732 = vpop.permute.xlu0 %1731
      %1733 = vrot.lane.b32.xlu0 %v1467, 48
      %v1734 = vpop.permute.xlu0 %1733
      %1735 = vrot.lane.b32.xlu0 %v1479, 48
      %v1736 = vpop.permute.xlu0 %1735
      %1737 = vrot.lane.b32.xlu0 %v1482, 48
      %v1738 = vpop.permute.xlu0 %1737
      %1739 = vrot.lane.b32.xlu0 %v1494, 48
      %v1740 = vpop.permute.xlu0 %1739
      %1741 = vrot.lane.b32.xlu0 %v1497, 48
      %v1742 = vpop.permute.xlu0 %1741
      %1743 = vrot.lane.b32.xlu0 %v1509, 48
      %v1744 = vpop.permute.xlu0 %1743
      %1745 = vrot.lane.b32.xlu0 %v1512, 48
      %v1746 = vpop.permute.xlu0 %1745
      %1747 = vrot.lane.b32.xlu0 %v1524, 48
      %v1748 = vpop.permute.xlu0 %1747
      %1749 = vrot.lane.b32.xlu0 %v1527, 48
      %v1750 = vpop.permute.xlu0 %1749
      %1751 = vrot.lane.b32.xlu0 %v1539, 48
      %v1752 = vpop.permute.xlu0 %1751
      %1753 = vrot.lane.b32.xlu0 %v1542, 48
      %v1754 = vpop.permute.xlu0 %1753
      %1755 = vrot.lane.b32.xlu0 %v1554, 48
      %v1756 = vpop.permute.xlu0 %1755
      %1757 = vrot.lane.b32.xlu0 %v1557, 48
      %v1758 = vpop.permute.xlu0 %1757
      %1759 = vrot.lane.b32.xlu0 %v1569, 48
      %v1760 = vpop.permute.xlu0 %1759
      %1761 = vrot.lane.b32.xlu0 %v1572, 48
      %v1762 = vpop.permute.xlu0 %1761
      %1763 = vrot.lane.b32.xlu0 %v1584, 48
      %v1764 = vpop.permute.xlu0 %1763
      %1765 = vrot.lane.b32.xlu0 %v1587, 48
      %v1766 = vpop.permute.xlu0 %1765
      %1767 = vrot.lane.b32.xlu0 %v1599, 48
      %v1768 = vpop.permute.xlu0 %1767
      %1769 = vrot.lane.b32.xlu0 %v1602, 48
      %v1770 = vpop.permute.xlu0 %1769
      %1771 = vrot.lane.b32.xlu0 %v1614, 48
      %v1772 = vpop.permute.xlu0 %1771
      %1773 = vrot.lane.b32.xlu0 %v1617, 48
      %v1774 = vpop.permute.xlu0 %1773
      %1775 = vrot.lane.b32.xlu0 %v1629, 48
      %v1776 = vpop.permute.xlu0 %1775
      %1777 = vrot.lane.b32.xlu0 %v1632, 48
      %v1778 = vpop.permute.xlu0 %1777
      %1779 = vrot.lane.b32.xlu0 %v1644, 48
      %v1780 = vpop.permute.xlu0 %1779
      %1781 = vrot.lane.b32.xlu0 %v1647, 48
      %v1782 = vpop.permute.xlu0 %1781
      %1783 = vrot.lane.b32.xlu0 %v1659, 48
      %v1784 = vpop.permute.xlu0 %1783
      %1785 = vrot.lane.b32.xlu0 %v1662, 48
      %v1786 = vpop.permute.xlu0 %1785
      %1787 = vrot.lane.b32.xlu0 %v1674, 48
      %v1788 = vpop.permute.xlu0 %1787
      %1789 = vrot.lane.b32.xlu0 %v1677, 48
      %v1790 = vpop.permute.xlu0 %1789
      %1791 = vrot.lane.b32.xlu0 %v1689, 48
      %v1792 = vpop.permute.xlu0 %1791
      %1793 = vrot.lane.b32.xlu0 %v1692, 48
      %v1794 = vpop.permute.xlu0 %1793
      %1795 = vrot.lane.b32.xlu0 %v1704, 48
      %v1796 = vpop.permute.xlu0 %1795
      %1797 = vrot.lane.b32.xlu0 %v1707, 48
      %v1798 = vpop.permute.xlu0 %1797
      %1799 = vrot.lane.b32.xlu0 %v1719, 48
      %v1800 = vpop.permute.xlu0 %1799
      %1801 = vrot.lane.b32.xlu0 %v1722, 48
      %v1802 = vpop.permute.xlu0 %1801
      %v1803 = vpack.c.b16 %v1382, %v1263
      %v1804 = vpack.c.b16 %v1383, %v1266
      %v1805 = vpack.c.b16 %v1384, %v1269
      %v1806 = vpack.c.b16 %v1385, %v1272
      %v1807 = vpack.c.b16 %v1386, %v1275
      %v1808 = vpack.c.b16 %v1387, %v1278
      %v1809 = vpack.c.b16 %v1388, %v1281
      %v1810 = vpack.c.b16 %v1389, %v1284
      %v1811 = vpack.c.b16 %v1390, %v1287
      %v1812 = vpack.c.b16 %v1391, %v1290
      %v1813 = vpack.c.b16 %v1392, %v1293
      %v1814 = vpack.c.b16 %v1393, %v1296
      %v1815 = vpack.c.b16 %v1394, %v1299
      %v1816 = vpack.c.b16 %v1395, %v1302
      %v1817 = vpack.c.b16 %v1396, %v1305
      %v1818 = vpack.c.b16 %v1397, %v1308
      %v1819 = vpack.c.b16 %v1398, %v1311
      %v1820 = vpack.c.b16 %v1399, %v1314
      %v1821 = vpack.c.b16 %v1400, %v1317
      %v1822 = vpack.c.b16 %v1401, %v1320
      %v1823 = vrot.slane %v1803, 5
      %v1824 = vrot.slane %v1804, 5
      %v1825 = vrot.slane %v1805, 5
      %v1826 = vrot.slane %v1806, 5
      %v1827 = vrot.slane %v1807, 5
      %v1828 = vrot.slane %v1808, 5
      %v1829 = vrot.slane %v1809, 5
      %v1830 = vrot.slane %v1810, 5
      %v1831 = vrot.slane %v1811, 5
      %v1832 = vrot.slane %v1812, 5
      %v1833 = vrot.slane %v1813, 5
      %v1834 = vrot.slane %v1814, 5
      %v1835 = vrot.slane %v1815, 5
      %v1836 = vrot.slane %v1816, 5
      %v1837 = vrot.slane %v1817, 5
      %v1838 = vrot.slane %v1818, 5
      %v1839 = vrot.slane %v1819, 5
      %v1840 = vrot.slane %v1820, 5
      %v1841 = vrot.slane %v1821, 5
      %v1842 = vrot.slane %v1822, 5
      %1843 = vrot.lane.b32.xlu0 %v1823, 96
      %v1844 = vpop.permute.xlu0 %1843
      %1845 = vrot.lane.b32.xlu0 %v1824, 96
      %v1846 = vpop.permute.xlu0 %1845
      %1847 = vrot.lane.b32.xlu0 %v1825, 96
      %v1848 = vpop.permute.xlu0 %1847
      %1849 = vrot.lane.b32.xlu0 %v1826, 96
      %v1850 = vpop.permute.xlu0 %1849
      %1851 = vrot.lane.b32.xlu0 %v1827, 96
      %v1852 = vpop.permute.xlu0 %1851
      %1853 = vrot.lane.b32.xlu0 %v1828, 96
      %v1854 = vpop.permute.xlu0 %1853
      %1855 = vrot.lane.b32.xlu0 %v1829, 96
      %v1856 = vpop.permute.xlu0 %1855
      %1857 = vrot.lane.b32.xlu0 %v1830, 96
      %v1858 = vpop.permute.xlu0 %1857
      %1859 = vrot.lane.b32.xlu0 %v1831, 96
      %v1860 = vpop.permute.xlu0 %1859
      %1861 = vrot.lane.b32.xlu0 %v1832, 96
      %v1862 = vpop.permute.xlu0 %1861
      %1863 = vrot.lane.b32.xlu0 %v1833, 96
      %v1864 = vpop.permute.xlu0 %1863
      %1865 = vrot.lane.b32.xlu0 %v1834, 96
      %v1866 = vpop.permute.xlu0 %1865
      %1867 = vrot.lane.b32.xlu0 %v1835, 96
      %v1868 = vpop.permute.xlu0 %1867
      %1869 = vrot.lane.b32.xlu0 %v1836, 96
      %v1870 = vpop.permute.xlu0 %1869
      %1871 = vrot.lane.b32.xlu0 %v1837, 96
      %v1872 = vpop.permute.xlu0 %1871
      %1873 = vrot.lane.b32.xlu0 %v1838, 96
      %v1874 = vpop.permute.xlu0 %1873
      %1875 = vrot.lane.b32.xlu0 %v1839, 96
      %v1876 = vpop.permute.xlu0 %1875
      %1877 = vrot.lane.b32.xlu0 %v1840, 96
      %v1878 = vpop.permute.xlu0 %1877
      %1879 = vrot.lane.b32.xlu0 %v1841, 96
      %v1880 = vpop.permute.xlu0 %1879
      %1881 = vrot.lane.b32.xlu0 %v1842, 96
      %v1882 = vpop.permute.xlu0 %1881
      %v1903 = vunpack.c.l.b16 %v1162
      %v1904 = vunpack.c.l.b16 %v1163
      %v1905 = vunpack.c.l.b16 %v1164
      %v1906 = vunpack.c.l.b16 %v1165
      %v1907 = vunpack.c.l.b16 %v1166
      %v1908 = vunpack.c.l.b16 %v1167
      %v1909 = vunpack.c.l.b16 %v1168
      %v1910 = vunpack.c.l.b16 %v1169
      %v1911 = vunpack.c.l.b16 %v1170
      %v1912 = vunpack.c.l.b16 %v1171
      %v1913 = vunpack.c.l.b16 %v1172
      %v1914 = vunpack.c.l.b16 %v1173
      %v1915 = vunpack.c.l.b16 %v1174
      %v1916 = vunpack.c.l.b16 %v1175
      %v1917 = vunpack.c.l.b16 %v1176
      %v1918 = vunpack.c.l.b16 %v1177
      %v1919 = vunpack.c.l.b16 %v1178
      %v1920 = vunpack.c.l.b16 %v1179
      %v1921 = vunpack.c.l.b16 %v1180
      %v1922 = vunpack.c.l.b16 %v1181
      %v1923 = vpack.c.b16 %v1903, %v1903
      %v1924 = vpack.c.b16 %v1904, %v1904
      %v1925 = vpack.c.b16 %v1905, %v1905
      %v1926 = vpack.c.b16 %v1906, %v1906
      %v1927 = vpack.c.b16 %v1907, %v1907
      %v1928 = vpack.c.b16 %v1908, %v1908
      %v1929 = vpack.c.b16 %v1909, %v1909
      %v1930 = vpack.c.b16 %v1910, %v1910
      %v1931 = vpack.c.b16 %v1911, %v1911
      %v1932 = vpack.c.b16 %v1912, %v1912
      %v1933 = vpack.c.b16 %v1913, %v1913
      %v1934 = vpack.c.b16 %v1914, %v1914
      %v1935 = vpack.c.b16 %v1915, %v1915
      %v1936 = vpack.c.b16 %v1916, %v1916
      %v1937 = vpack.c.b16 %v1917, %v1917
      %v1938 = vpack.c.b16 %v1918, %v1918
      %v1939 = vpack.c.b16 %v1919, %v1919
      %v1940 = vpack.c.b16 %v1920, %v1920
      %v1941 = vpack.c.b16 %v1921, %v1921
      %v1942 = vpack.c.b16 %v1922, %v1922
      %vm1943 = vsmask.f32 2304
      %v1945 = vshrl.u32 %v1803, 16
      %v1947 = vrot.slane %v1945, 5
      %v1948 = vshll.u32 %v1803, 16
      %v1950 = vrot.slane %v1948, 6
      %v1951 = vor.u32 %v1947, %v1950
      %v1953 = vshll.u32 %v1923, 16
      %v1955 = vrot.slane %v1953, 6
      %v1956 = vsel %vm1943, %v1951, %v1955
      %v1958 = vshrl.u32 %v1804, 16
      %v1960 = vrot.slane %v1958, 5
      %v1961 = vshll.u32 %v1804, 16
      %v1963 = vrot.slane %v1961, 6
      %v1964 = vor.u32 %v1960, %v1963
      %v1966 = vshll.u32 %v1924, 16
      %v1968 = vrot.slane %v1966, 6
      %v1969 = vsel %vm1943, %v1964, %v1968
      %v1971 = vshrl.u32 %v1805, 16
      %v1973 = vrot.slane %v1971, 5
      %v1974 = vshll.u32 %v1805, 16
      %v1976 = vrot.slane %v1974, 6
      %v1977 = vor.u32 %v1973, %v1976
      %v1979 = vshll.u32 %v1925, 16
      %v1981 = vrot.slane %v1979, 6
      %v1982 = vsel %vm1943, %v1977, %v1981
      %v1984 = vshrl.u32 %v1806, 16
      %v1986 = vrot.slane %v1984, 5
      %v1987 = vshll.u32 %v1806, 16
      %v1989 = vrot.slane %v1987, 6
      %v1990 = vor.u32 %v1986, %v1989
      %v1992 = vshll.u32 %v1926, 16
      %v1994 = vrot.slane %v1992, 6
      %v1995 = vsel %vm1943, %v1990, %v1994
      %v1997 = vshrl.u32 %v1807, 16
      %v1999 = vrot.slane %v1997, 5
      %v2000 = vshll.u32 %v1807, 16
      %v2002 = vrot.slane %v2000, 6
      %v2003 = vor.u32 %v1999, %v2002
      %v2005 = vshll.u32 %v1927, 16
      %v2007 = vrot.slane %v2005, 6
      %v2008 = vsel %vm1943, %v2003, %v2007
      %v2010 = vshrl.u32 %v1808, 16
      %v2012 = vrot.slane %v2010, 5
      %v2013 = vshll.u32 %v1808, 16
      %v2015 = vrot.slane %v2013, 6
      %v2016 = vor.u32 %v2012, %v2015
      %v2018 = vshll.u32 %v1928, 16
      %v2020 = vrot.slane %v2018, 6
      %v2021 = vsel %vm1943, %v2016, %v2020
      %v2023 = vshrl.u32 %v1809, 16
      %v2025 = vrot.slane %v2023, 5
      %v2026 = vshll.u32 %v1809, 16
      %v2028 = vrot.slane %v2026, 6
      %v2029 = vor.u32 %v2025, %v2028
      %v2031 = vshll.u32 %v1929, 16
      %v2033 = vrot.slane %v2031, 6
      %v2034 = vsel %vm1943, %v2029, %v2033
      %v2036 = vshrl.u32 %v1810, 16
      %v2038 = vrot.slane %v2036, 5
      %v2039 = vshll.u32 %v1810, 16
      %v2041 = vrot.slane %v2039, 6
      %v2042 = vor.u32 %v2038, %v2041
      %v2044 = vshll.u32 %v1930, 16
      %v2046 = vrot.slane %v2044, 6
      %v2047 = vsel %vm1943, %v2042, %v2046
      %v2049 = vshrl.u32 %v1811, 16
      %v2051 = vrot.slane %v2049, 5
      %v2052 = vshll.u32 %v1811, 16
      %v2054 = vrot.slane %v2052, 6
      %v2055 = vor.u32 %v2051, %v2054
      %v2057 = vshll.u32 %v1931, 16
      %v2059 = vrot.slane %v2057, 6
      %v2060 = vsel %vm1943, %v2055, %v2059
      %v2062 = vshrl.u32 %v1812, 16
      %v2064 = vrot.slane %v2062, 5
      %v2065 = vshll.u32 %v1812, 16
      %v2067 = vrot.slane %v2065, 6
      %v2068 = vor.u32 %v2064, %v2067
      %v2070 = vshll.u32 %v1932, 16
      %v2072 = vrot.slane %v2070, 6
      %v2073 = vsel %vm1943, %v2068, %v2072
      %v2075 = vshrl.u32 %v1813, 16
      %v2077 = vrot.slane %v2075, 5
      %v2078 = vshll.u32 %v1813, 16
      %v2080 = vrot.slane %v2078, 6
      %v2081 = vor.u32 %v2077, %v2080
      %v2083 = vshll.u32 %v1933, 16
      %v2085 = vrot.slane %v2083, 6
      %v2086 = vsel %vm1943, %v2081, %v2085
      %v2088 = vshrl.u32 %v1814, 16
      %v2090 = vrot.slane %v2088, 5
      %v2091 = vshll.u32 %v1814, 16
      %v2093 = vrot.slane %v2091, 6
      %v2094 = vor.u32 %v2090, %v2093
      %v2096 = vshll.u32 %v1934, 16
      %v2098 = vrot.slane %v2096, 6
      %v2099 = vsel %vm1943, %v2094, %v2098
      %v2101 = vshrl.u32 %v1815, 16
      %v2103 = vrot.slane %v2101, 5
      %v2104 = vshll.u32 %v1815, 16
      %v2106 = vrot.slane %v2104, 6
      %v2107 = vor.u32 %v2103, %v2106
      %v2109 = vshll.u32 %v1935, 16
      %v2111 = vrot.slane %v2109, 6
      %v2112 = vsel %vm1943, %v2107, %v2111
      %v2114 = vshrl.u32 %v1816, 16
      %v2116 = vrot.slane %v2114, 5
      %v2117 = vshll.u32 %v1816, 16
      %v2119 = vrot.slane %v2117, 6
      %v2120 = vor.u32 %v2116, %v2119
      %v2122 = vshll.u32 %v1936, 16
      %v2124 = vrot.slane %v2122, 6
      %v2125 = vsel %vm1943, %v2120, %v2124
      %v2127 = vshrl.u32 %v1817, 16
      %v2129 = vrot.slane %v2127, 5
      %v2130 = vshll.u32 %v1817, 16
      %v2132 = vrot.slane %v2130, 6
      %v2133 = vor.u32 %v2129, %v2132
      %v2135 = vshll.u32 %v1937, 16
      %v2137 = vrot.slane %v2135, 6
      %v2138 = vsel %vm1943, %v2133, %v2137
      %v2140 = vshrl.u32 %v1818, 16
      %v2142 = vrot.slane %v2140, 5
      %v2143 = vshll.u32 %v1818, 16
      %v2145 = vrot.slane %v2143, 6
      %v2146 = vor.u32 %v2142, %v2145
      %v2148 = vshll.u32 %v1938, 16
      %v2150 = vrot.slane %v2148, 6
      %v2151 = vsel %vm1943, %v2146, %v2150
      %v2153 = vshrl.u32 %v1819, 16
      %v2155 = vrot.slane %v2153, 5
      %v2156 = vshll.u32 %v1819, 16
      %v2158 = vrot.slane %v2156, 6
      %v2159 = vor.u32 %v2155, %v2158
      %v2161 = vshll.u32 %v1939, 16
      %v2163 = vrot.slane %v2161, 6
      %v2164 = vsel %vm1943, %v2159, %v2163
      %v2166 = vshrl.u32 %v1820, 16
      %v2168 = vrot.slane %v2166, 5
      %v2169 = vshll.u32 %v1820, 16
      %v2171 = vrot.slane %v2169, 6
      %v2172 = vor.u32 %v2168, %v2171
      %v2174 = vshll.u32 %v1940, 16
      %v2176 = vrot.slane %v2174, 6
      %v2177 = vsel %vm1943, %v2172, %v2176
      %v2179 = vshrl.u32 %v1821, 16
      %v2181 = vrot.slane %v2179, 5
      %v2182 = vshll.u32 %v1821, 16
      %v2184 = vrot.slane %v2182, 6
      %v2185 = vor.u32 %v2181, %v2184
      %v2187 = vshll.u32 %v1941, 16
      %v2189 = vrot.slane %v2187, 6
      %v2190 = vsel %vm1943, %v2185, %v2189
      %v2192 = vshrl.u32 %v1822, 16
      %v2194 = vrot.slane %v2192, 5
      %v2195 = vshll.u32 %v1822, 16
      %v2197 = vrot.slane %v2195, 6
      %v2198 = vor.u32 %v2194, %v2197
      %v2200 = vshll.u32 %v1942, 16
      %v2202 = vrot.slane %v2200, 6
      %v2203 = vsel %vm1943, %v2198, %v2202
      %2204 = vrot.lane.b32.xlu0 %v1951, 16
      %v2205 = vpop.permute.xlu0 %2204
      %2206 = vrot.lane.b32.xlu0 %v1956, 16
      %v2207 = vpop.permute.xlu0 %2206
      %2208 = vrot.lane.b32.xlu0 %v1964, 16
      %v2209 = vpop.permute.xlu0 %2208
      %2210 = vrot.lane.b32.xlu0 %v1969, 16
      %v2211 = vpop.permute.xlu0 %2210
      %2212 = vrot.lane.b32.xlu0 %v1977, 16
      %v2213 = vpop.permute.xlu0 %2212
      %2214 = vrot.lane.b32.xlu0 %v1982, 16
      %v2215 = vpop.permute.xlu0 %2214
      %2216 = vrot.lane.b32.xlu0 %v1990, 16
      %v2217 = vpop.permute.xlu0 %2216
      %2218 = vrot.lane.b32.xlu0 %v1995, 16
      %v2219 = vpop.permute.xlu0 %2218
      %2220 = vrot.lane.b32.xlu0 %v2003, 16
      %v2221 = vpop.permute.xlu0 %2220
      %2222 = vrot.lane.b32.xlu0 %v2008, 16
      %v2223 = vpop.permute.xlu0 %2222
      %2224 = vrot.lane.b32.xlu0 %v2016, 16
      %v2225 = vpop.permute.xlu0 %2224
      %2226 = vrot.lane.b32.xlu0 %v2021, 16
      %v2227 = vpop.permute.xlu0 %2226
      %2228 = vrot.lane.b32.xlu0 %v2029, 16
      %v2229 = vpop.permute.xlu0 %2228
      %2230 = vrot.lane.b32.xlu0 %v2034, 16
      %v2231 = vpop.permute.xlu0 %2230
      %2232 = vrot.lane.b32.xlu0 %v2042, 16
      %v2233 = vpop.permute.xlu0 %2232
      %2234 = vrot.lane.b32.xlu0 %v2047, 16
      %v2235 = vpop.permute.xlu0 %2234
      %2236 = vrot.lane.b32.xlu0 %v2055, 16
      %v2237 = vpop.permute.xlu0 %2236
      %2238 = vrot.lane.b32.xlu0 %v2060, 16
      %v2239 = vpop.permute.xlu0 %2238
      %2240 = vrot.lane.b32.xlu0 %v2068, 16
      %v2241 = vpop.permute.xlu0 %2240
      %2242 = vrot.lane.b32.xlu0 %v2073, 16
      %v2243 = vpop.permute.xlu0 %2242
      %2244 = vrot.lane.b32.xlu0 %v2081, 16
      %v2245 = vpop.permute.xlu0 %2244
      %2246 = vrot.lane.b32.xlu0 %v2086, 16
      %v2247 = vpop.permute.xlu0 %2246
      %2248 = vrot.lane.b32.xlu0 %v2094, 16
      %v2249 = vpop.permute.xlu0 %2248
      %2250 = vrot.lane.b32.xlu0 %v2099, 16
      %v2251 = vpop.permute.xlu0 %2250
      %2252 = vrot.lane.b32.xlu0 %v2107, 16
      %v2253 = vpop.permute.xlu0 %2252
      %2254 = vrot.lane.b32.xlu0 %v2112, 16
      %v2255 = vpop.permute.xlu0 %2254
      %2256 = vrot.lane.b32.xlu0 %v2120, 16
      %v2257 = vpop.permute.xlu0 %2256
      %2258 = vrot.lane.b32.xlu0 %v2125, 16
      %v2259 = vpop.permute.xlu0 %2258
      %2260 = vrot.lane.b32.xlu0 %v2133, 16
      %v2261 = vpop.permute.xlu0 %2260
      %2262 = vrot.lane.b32.xlu0 %v2138, 16
      %v2263 = vpop.permute.xlu0 %2262
      %2264 = vrot.lane.b32.xlu0 %v2146, 16
      %v2265 = vpop.permute.xlu0 %2264
      %2266 = vrot.lane.b32.xlu0 %v2151, 16
      %v2267 = vpop.permute.xlu0 %2266
      %2268 = vrot.lane.b32.xlu0 %v2159, 16
      %v2269 = vpop.permute.xlu0 %2268
      %2270 = vrot.lane.b32.xlu0 %v2164, 16
      %v2271 = vpop.permute.xlu0 %2270
      %2272 = vrot.lane.b32.xlu0 %v2172, 16
      %v2273 = vpop.permute.xlu0 %2272
      %2274 = vrot.lane.b32.xlu0 %v2177, 16
      %v2275 = vpop.permute.xlu0 %2274
      %2276 = vrot.lane.b32.xlu0 %v2185, 16
      %v2277 = vpop.permute.xlu0 %2276
      %2278 = vrot.lane.b32.xlu0 %v2190, 16
      %v2279 = vpop.permute.xlu0 %2278
      %2280 = vrot.lane.b32.xlu0 %v2198, 16
      %v2281 = vpop.permute.xlu0 %2280
      %2282 = vrot.lane.b32.xlu0 %v2203, 16
      %v2283 = vpop.permute.xlu0 %2282
      %v2304 = vunpack.c.l.b16 %v1182
      %v2305 = vunpack.c.l.b16 %v1183
      %v2306 = vunpack.c.l.b16 %v1184
      %v2307 = vunpack.c.l.b16 %v1185
      %v2308 = vunpack.c.l.b16 %v1186
      %v2309 = vunpack.c.l.b16 %v1187
      %v2310 = vunpack.c.l.b16 %v1188
      %v2311 = vunpack.c.l.b16 %v1189
      %v2312 = vunpack.c.l.b16 %v1190
      %v2313 = vunpack.c.l.b16 %v1191
      %v2314 = vunpack.c.l.b16 %v1192
      %v2315 = vunpack.c.l.b16 %v1193
      %v2316 = vunpack.c.l.b16 %v1194
      %v2317 = vunpack.c.l.b16 %v1195
      %v2318 = vunpack.c.l.b16 %v1196
      %v2319 = vunpack.c.l.b16 %v1197
      %v2320 = vunpack.c.l.b16 %v1198
      %v2321 = vunpack.c.l.b16 %v1199
      %v2322 = vunpack.c.l.b16 %v1200
      %v2323 = vunpack.c.l.b16 %v1201
      %v2324 = vpack.c.b16 %v1382, %v2304
      %v2325 = vpack.c.b16 %v1383, %v2305
      %v2326 = vpack.c.b16 %v1384, %v2306
      %v2327 = vpack.c.b16 %v1385, %v2307
      %v2328 = vpack.c.b16 %v1386, %v2308
      %v2329 = vpack.c.b16 %v1387, %v2309
      %v2330 = vpack.c.b16 %v1388, %v2310
      %v2331 = vpack.c.b16 %v1389, %v2311
      %v2332 = vpack.c.b16 %v1390, %v2312
      %v2333 = vpack.c.b16 %v1391, %v2313
      %v2334 = vpack.c.b16 %v1392, %v2314
      %v2335 = vpack.c.b16 %v1393, %v2315
      %v2336 = vpack.c.b16 %v1394, %v2316
      %v2337 = vpack.c.b16 %v1395, %v2317
      %v2338 = vpack.c.b16 %v1396, %v2318
      %v2339 = vpack.c.b16 %v1397, %v2319
      %v2340 = vpack.c.b16 %v1398, %v2320
      %v2341 = vpack.c.b16 %v1399, %v2321
      %v2342 = vpack.c.b16 %v1400, %v2322
      %v2343 = vpack.c.b16 %v1401, %v2323
      %vm2344 = vcmask 1041408
      %v2345 = vrot.slane %v2324, 6
      %v2346 = vrot.slane %v1923, 6
      %v2347 = vsel %vm2344, %v2345, %v2346
      %v2348 = vrot.slane %v2325, 6
      %v2349 = vrot.slane %v1924, 6
      %v2350 = vsel %vm2344, %v2348, %v2349
      %v2351 = vrot.slane %v2326, 6
      %v2352 = vrot.slane %v1925, 6
      %v2353 = vsel %vm2344, %v2351, %v2352
      %v2354 = vrot.slane %v2327, 6
      %v2355 = vrot.slane %v1926, 6
      %v2356 = vsel %vm2344, %v2354, %v2355
      %v2357 = vrot.slane %v2328, 6
      %v2358 = vrot.slane %v1927, 6
      %v2359 = vsel %vm2344, %v2357, %v2358
      %v2360 = vrot.slane %v2329, 6
      %v2361 = vrot.slane %v1928, 6
      %v2362 = vsel %vm2344, %v2360, %v2361
      %v2363 = vrot.slane %v2330, 6
      %v2364 = vrot.slane %v1929, 6
      %v2365 = vsel %vm2344, %v2363, %v2364
      %v2366 = vrot.slane %v2331, 6
      %v2367 = vrot.slane %v1930, 6
      %v2368 = vsel %vm2344, %v2366, %v2367
      %v2369 = vrot.slane %v2332, 6
      %v2370 = vrot.slane %v1931, 6
      %v2371 = vsel %vm2344, %v2369, %v2370
      %v2372 = vrot.slane %v2333, 6
      %v2373 = vrot.slane %v1932, 6
      %v2374 = vsel %vm2344, %v2372, %v2373
      %v2375 = vrot.slane %v2334, 6
      %v2376 = vrot.slane %v1933, 6
      %v2377 = vsel %vm2344, %v2375, %v2376
      %v2378 = vrot.slane %v2335, 6
      %v2379 = vrot.slane %v1934, 6
      %v2380 = vsel %vm2344, %v2378, %v2379
      %v2381 = vrot.slane %v2336, 6
      %v2382 = vrot.slane %v1935, 6
      %v2383 = vsel %vm2344, %v2381, %v2382
      %v2384 = vrot.slane %v2337, 6
      %v2385 = vrot.slane %v1936, 6
      %v2386 = vsel %vm2344, %v2384, %v2385
      %v2387 = vrot.slane %v2338, 6
      %v2388 = vrot.slane %v1937, 6
      %v2389 = vsel %vm2344, %v2387, %v2388
      %v2390 = vrot.slane %v2339, 6
      %v2391 = vrot.slane %v1938, 6
      %v2392 = vsel %vm2344, %v2390, %v2391
      %v2393 = vrot.slane %v2340, 6
      %v2394 = vrot.slane %v1939, 6
      %v2395 = vsel %vm2344, %v2393, %v2394
      %v2396 = vrot.slane %v2341, 6
      %v2397 = vrot.slane %v1940, 6
      %v2398 = vsel %vm2344, %v2396, %v2397
      %v2399 = vrot.slane %v2342, 6
      %v2400 = vrot.slane %v1941, 6
      %v2401 = vsel %vm2344, %v2399, %v2400
      %v2402 = vrot.slane %v2343, 6
      %v2403 = vrot.slane %v1942, 6
      %v2404 = vsel %vm2344, %v2402, %v2403
      %2405 = vrot.lane.b32.xlu0 %v2345, 64
      %v2406 = vpop.permute.xlu0 %2405
      %2407 = vrot.lane.b32.xlu0 %v2347, 64
      %v2408 = vpop.permute.xlu0 %2407
      %2409 = vrot.lane.b32.xlu0 %v2348, 64
      %v2410 = vpop.permute.xlu0 %2409
      %2411 = vrot.lane.b32.xlu0 %v2350, 64
      %v2412 = vpop.permute.xlu0 %2411
      %2413 = vrot.lane.b32.xlu0 %v2351, 64
      %v2414 = vpop.permute.xlu0 %2413
      %2415 = vrot.lane.b32.xlu0 %v2353, 64
      %v2416 = vpop.permute.xlu0 %2415
      %2417 = vrot.lane.b32.xlu0 %v2354, 64
      %v2418 = vpop.permute.xlu0 %2417
      %2419 = vrot.lane.b32.xlu0 %v2356, 64
      %v2420 = vpop.permute.xlu0 %2419
      %2421 = vrot.lane.b32.xlu0 %v2357, 64
      %v2422 = vpop.permute.xlu0 %2421
      %2423 = vrot.lane.b32.xlu0 %v2359, 64
      %v2424 = vpop.permute.xlu0 %2423
      %2425 = vrot.lane.b32.xlu0 %v2360, 64
      %v2426 = vpop.permute.xlu0 %2425
      %2427 = vrot.lane.b32.xlu0 %v2362, 64
      %v2428 = vpop.permute.xlu0 %2427
      %2429 = vrot.lane.b32.xlu0 %v2363, 64
      %v2430 = vpop.permute.xlu0 %2429
      %2431 = vrot.lane.b32.xlu0 %v2365, 64
      %v2432 = vpop.permute.xlu0 %2431
      %2433 = vrot.lane.b32.xlu0 %v2366, 64
      %v2434 = vpop.permute.xlu0 %2433
      %2435 = vrot.lane.b32.xlu0 %v2368, 64
      %v2436 = vpop.permute.xlu0 %2435
      %2437 = vrot.lane.b32.xlu0 %v2369, 64
      %v2438 = vpop.permute.xlu0 %2437
      %2439 = vrot.lane.b32.xlu0 %v2371, 64
      %v2440 = vpop.permute.xlu0 %2439
      %2441 = vrot.lane.b32.xlu0 %v2372, 64
      %v2442 = vpop.permute.xlu0 %2441
      %2443 = vrot.lane.b32.xlu0 %v2374, 64
      %v2444 = vpop.permute.xlu0 %2443
      %2445 = vrot.lane.b32.xlu0 %v2375, 64
      %v2446 = vpop.permute.xlu0 %2445
      %2447 = vrot.lane.b32.xlu0 %v2377, 64
      %v2448 = vpop.permute.xlu0 %2447
      %2449 = vrot.lane.b32.xlu0 %v2378, 64
      %v2450 = vpop.permute.xlu0 %2449
      %2451 = vrot.lane.b32.xlu0 %v2380, 64
      %v2452 = vpop.permute.xlu0 %2451
      %2453 = vrot.lane.b32.xlu0 %v2381, 64
      %v2454 = vpop.permute.xlu0 %2453
      %2455 = vrot.lane.b32.xlu0 %v2383, 64
      %v2456 = vpop.permute.xlu0 %2455
      %2457 = vrot.lane.b32.xlu0 %v2384, 64
      %v2458 = vpop.permute.xlu0 %2457
      %2459 = vrot.lane.b32.xlu0 %v2386, 64
      %v2460 = vpop.permute.xlu0 %2459
      %2461 = vrot.lane.b32.xlu0 %v2387, 64
      %v2462 = vpop.permute.xlu0 %2461
      %2463 = vrot.lane.b32.xlu0 %v2389, 64
      %v2464 = vpop.permute.xlu0 %2463
      %2465 = vrot.lane.b32.xlu0 %v2390, 64
      %v2466 = vpop.permute.xlu0 %2465
      %2467 = vrot.lane.b32.xlu0 %v2392, 64
      %v2468 = vpop.permute.xlu0 %2467
      %2469 = vrot.lane.b32.xlu0 %v2393, 64
      %v2470 = vpop.permute.xlu0 %2469
      %2471 = vrot.lane.b32.xlu0 %v2395, 64
      %v2472 = vpop.permute.xlu0 %2471
      %2473 = vrot.lane.b32.xlu0 %v2396, 64
      %v2474 = vpop.permute.xlu0 %2473
      %2475 = vrot.lane.b32.xlu0 %v2398, 64
      %v2476 = vpop.permute.xlu0 %2475
      %2477 = vrot.lane.b32.xlu0 %v2399, 64
      %v2478 = vpop.permute.xlu0 %2477
      %2479 = vrot.lane.b32.xlu0 %v2401, 64
      %v2480 = vpop.permute.xlu0 %2479
      %2481 = vrot.lane.b32.xlu0 %v2402, 64
      %v2482 = vpop.permute.xlu0 %2481
      %2483 = vrot.lane.b32.xlu0 %v2404, 64
      %v2484 = vpop.permute.xlu0 %2483
      %vm2485 = vcmask 392192
      %v2487 = vsel %vm2485, %v1322, %v1724
      %v2490 = vsel %vm2485, %v1323, %v1726
      %v2492 = vsel %vm2485, %v1324, %v1728
      %v2495 = vsel %vm2485, %v1325, %v1730
      %v2497 = vsel %vm2485, %v1326, %v1732
      %v2500 = vsel %vm2485, %v1327, %v1734
      %v2502 = vsel %vm2485, %v1328, %v1736
      %v2505 = vsel %vm2485, %v1329, %v1738
      %v2507 = vsel %vm2485, %v1330, %v1740
      %v2510 = vsel %vm2485, %v1331, %v1742
      %v2512 = vsel %vm2485, %v1332, %v1744
      %v2515 = vsel %vm2485, %v1333, %v1746
      %v2517 = vsel %vm2485, %v1334, %v1748
      %v2520 = vsel %vm2485, %v1335, %v1750
      %v2522 = vsel %vm2485, %v1336, %v1752
      %v2525 = vsel %vm2485, %v1337, %v1754
      %v2527 = vsel %vm2485, %v1338, %v1756
      %v2530 = vsel %vm2485, %v1339, %v1758
      %v2532 = vsel %vm2485, %v1340, %v1760
      %v2535 = vsel %vm2485, %v1341, %v1762
      %v2537 = vsel %vm2485, %v1342, %v1764
      %v2540 = vsel %vm2485, %v1343, %v1766
      %v2542 = vsel %vm2485, %v1344, %v1768
      %v2545 = vsel %vm2485, %v1345, %v1770
      %v2547 = vsel %vm2485, %v1346, %v1772
      %v2550 = vsel %vm2485, %v1347, %v1774
      %v2552 = vsel %vm2485, %v1348, %v1776
      %v2555 = vsel %vm2485, %v1349, %v1778
      %v2557 = vsel %vm2485, %v1350, %v1780
      %v2560 = vsel %vm2485, %v1351, %v1782
      %v2562 = vsel %vm2485, %v1352, %v1784
      %v2565 = vsel %vm2485, %v1353, %v1786
      %v2567 = vsel %vm2485, %v1354, %v1788
      %v2570 = vsel %vm2485, %v1355, %v1790
      %v2572 = vsel %vm2485, %v1356, %v1792
      %v2575 = vsel %vm2485, %v1357, %v1794
      %v2577 = vsel %vm2485, %v1358, %v1796
      %v2580 = vsel %vm2485, %v1359, %v1798
      %v2582 = vsel %vm2485, %v1360, %v1800
      %v2585 = vsel %vm2485, %v1361, %v1802
      %vm2586 = vcmask 785408
      %v2588 = vsel %vm2586, %v2487, %v1844
      %v2589 = vsel %vm2586, %v2490, %v1844
      %v2591 = vsel %vm2586, %v2492, %v1846
      %v2592 = vsel %vm2586, %v2495, %v1846
      %v2594 = vsel %vm2586, %v2497, %v1848
      %v2595 = vsel %vm2586, %v2500, %v1848
      %v2597 = vsel %vm2586, %v2502, %v1850
      %v2598 = vsel %vm2586, %v2505, %v1850
      %v2600 = vsel %vm2586, %v2507, %v1852
      %v2601 = vsel %vm2586, %v2510, %v1852
      %v2603 = vsel %vm2586, %v2512, %v1854
      %v2604 = vsel %vm2586, %v2515, %v1854
      %v2606 = vsel %vm2586, %v2517, %v1856
      %v2607 = vsel %vm2586, %v2520, %v1856
      %v2609 = vsel %vm2586, %v2522, %v1858
      %v2610 = vsel %vm2586, %v2525, %v1858
      %v2612 = vsel %vm2586, %v2527, %v1860
      %v2613 = vsel %vm2586, %v2530, %v1860
      %v2615 = vsel %vm2586, %v2532, %v1862
      %v2616 = vsel %vm2586, %v2535, %v1862
      %v2618 = vsel %vm2586, %v2537, %v1864
      %v2619 = vsel %vm2586, %v2540, %v1864
      %v2621 = vsel %vm2586, %v2542, %v1866
      %v2622 = vsel %vm2586, %v2545, %v1866
      %v2624 = vsel %vm2586, %v2547, %v1868
      %v2625 = vsel %vm2586, %v2550, %v1868
      %v2627 = vsel %vm2586, %v2552, %v1870
      %v2628 = vsel %vm2586, %v2555, %v1870
      %v2630 = vsel %vm2586, %v2557, %v1872
      %v2631 = vsel %vm2586, %v2560, %v1872
      %v2633 = vsel %vm2586, %v2562, %v1874
      %v2634 = vsel %vm2586, %v2565, %v1874
      %v2636 = vsel %vm2586, %v2567, %v1876
      %v2637 = vsel %vm2586, %v2570, %v1876
      %v2639 = vsel %vm2586, %v2572, %v1878
      %v2640 = vsel %vm2586, %v2575, %v1878
      %v2642 = vsel %vm2586, %v2577, %v1880
      %v2643 = vsel %vm2586, %v2580, %v1880
      %v2645 = vsel %vm2586, %v2582, %v1882
      %v2646 = vsel %vm2586, %v2585, %v1882
      %vm2647 = vcmask 130048
      %v2649 = vsel %vm2647, %v1844, %v2205
      %v2651 = vsel %vm2647, %v1844, %v2207
      %v2653 = vsel %vm2647, %v1846, %v2209
      %v2655 = vsel %vm2647, %v1846, %v2211
      %v2657 = vsel %vm2647, %v1848, %v2213
      %v2659 = vsel %vm2647, %v1848, %v2215
      %v2661 = vsel %vm2647, %v1850, %v2217
      %v2663 = vsel %vm2647, %v1850, %v2219
      %v2665 = vsel %vm2647, %v1852, %v2221
      %v2667 = vsel %vm2647, %v1852, %v2223
      %v2669 = vsel %vm2647, %v1854, %v2225
      %v2671 = vsel %vm2647, %v1854, %v2227
      %v2673 = vsel %vm2647, %v1856, %v2229
      %v2675 = vsel %vm2647, %v1856, %v2231
      %v2677 = vsel %vm2647, %v1858, %v2233
      %v2679 = vsel %vm2647, %v1858, %v2235
      %v2681 = vsel %vm2647, %v1860, %v2237
      %v2683 = vsel %vm2647, %v1860, %v2239
      %v2685 = vsel %vm2647, %v1862, %v2241
      %v2687 = vsel %vm2647, %v1862, %v2243
      %v2689 = vsel %vm2647, %v1864, %v2245
      %v2691 = vsel %vm2647, %v1864, %v2247
      %v2693 = vsel %vm2647, %v1866, %v2249
      %v2695 = vsel %vm2647, %v1866, %v2251
      %v2697 = vsel %vm2647, %v1868, %v2253
      %v2699 = vsel %vm2647, %v1868, %v2255
      %v2701 = vsel %vm2647, %v1870, %v2257
      %v2703 = vsel %vm2647, %v1870, %v2259
      %v2705 = vsel %vm2647, %v1872, %v2261
      %v2707 = vsel %vm2647, %v1872, %v2263
      %v2709 = vsel %vm2647, %v1874, %v2265
      %v2711 = vsel %vm2647, %v1874, %v2267
      %v2713 = vsel %vm2647, %v1876, %v2269
      %v2715 = vsel %vm2647, %v1876, %v2271
      %v2717 = vsel %vm2647, %v1878, %v2273
      %v2719 = vsel %vm2647, %v1878, %v2275
      %v2721 = vsel %vm2647, %v1880, %v2277
      %v2723 = vsel %vm2647, %v1880, %v2279
      %v2725 = vsel %vm2647, %v1882, %v2281
      %v2727 = vsel %vm2647, %v1882, %v2283
      %vm2728 = vcmask 523264
      %v2730 = vsel %vm2728, %v2649, %v2406
      %v2732 = vsel %vm2728, %v2651, %v2408
      %v2734 = vsel %vm2728, %v2653, %v2410
      %v2736 = vsel %vm2728, %v2655, %v2412
      %v2738 = vsel %vm2728, %v2657, %v2414
      %v2740 = vsel %vm2728, %v2659, %v2416
      %v2742 = vsel %vm2728, %v2661, %v2418
      %v2744 = vsel %vm2728, %v2663, %v2420
      %v2746 = vsel %vm2728, %v2665, %v2422
      %v2748 = vsel %vm2728, %v2667, %v2424
      %v2750 = vsel %vm2728, %v2669, %v2426
      %v2752 = vsel %vm2728, %v2671, %v2428
      %v2754 = vsel %vm2728, %v2673, %v2430
      %v2756 = vsel %vm2728, %v2675, %v2432
      %v2758 = vsel %vm2728, %v2677, %v2434
      %v2760 = vsel %vm2728, %v2679, %v2436
      %v2762 = vsel %vm2728, %v2681, %v2438
      %v2764 = vsel %vm2728, %v2683, %v2440
      %v2766 = vsel %vm2728, %v2685, %v2442
      %v2768 = vsel %vm2728, %v2687, %v2444
      %v2770 = vsel %vm2728, %v2689, %v2446
      %v2772 = vsel %vm2728, %v2691, %v2448
      %v2774 = vsel %vm2728, %v2693, %v2450
      %v2776 = vsel %vm2728, %v2695, %v2452
      %v2778 = vsel %vm2728, %v2697, %v2454
      %v2780 = vsel %vm2728, %v2699, %v2456
      %v2782 = vsel %vm2728, %v2701, %v2458
      %v2784 = vsel %vm2728, %v2703, %v2460
      %v2786 = vsel %vm2728, %v2705, %v2462
      %v2788 = vsel %vm2728, %v2707, %v2464
      %v2790 = vsel %vm2728, %v2709, %v2466
      %v2792 = vsel %vm2728, %v2711, %v2468
      %v2794 = vsel %vm2728, %v2713, %v2470
      %v2796 = vsel %vm2728, %v2715, %v2472
      %v2798 = vsel %vm2728, %v2717, %v2474
      %v2800 = vsel %vm2728, %v2719, %v2476
      %v2802 = vsel %vm2728, %v2721, %v2478
      %v2804 = vsel %vm2728, %v2723, %v2480
      %v2806 = vsel %vm2728, %v2725, %v2482
      %v2808 = vsel %vm2728, %v2727, %v2484
      %vm2873 = vcmask 1044480
      %v2874 = vrot.slane %v2588, 3
      %v2875 = vrot.slane %v2589, 3
      %v2876 = vsel %vm2873, %v2874, %v2875
      %v2877 = vrot.slane %v2730, 3
      %v2878 = vrot.slane %v2732, 3
      %v2879 = vsel %vm2873, %v2877, %v2878
      %v2880 = vrot.slane %v2591, 3
      %v2881 = vrot.slane %v2592, 3
      %v2882 = vsel %vm2873, %v2880, %v2881
      %v2883 = vrot.slane %v2734, 3
      %v2884 = vrot.slane %v2736, 3
      %v2885 = vsel %vm2873, %v2883, %v2884
      %v2886 = vrot.slane %v2594, 3
      %v2887 = vrot.slane %v2595, 3
      %v2888 = vsel %vm2873, %v2886, %v2887
      %v2889 = vrot.slane %v2738, 3
      %v2890 = vrot.slane %v2740, 3
      %v2891 = vsel %vm2873, %v2889, %v2890
      %v2892 = vrot.slane %v2597, 3
      %v2893 = vrot.slane %v2598, 3
      %v2894 = vsel %vm2873, %v2892, %v2893
      %v2895 = vrot.slane %v2742, 3
      %v2896 = vrot.slane %v2744, 3
      %v2897 = vsel %vm2873, %v2895, %v2896
      %v2898 = vrot.slane %v2600, 3
      %v2899 = vrot.slane %v2601, 3
      %v2900 = vsel %vm2873, %v2898, %v2899
      %v2901 = vrot.slane %v2746, 3
      %v2902 = vrot.slane %v2748, 3
      %v2903 = vsel %vm2873, %v2901, %v2902
      %v2904 = vrot.slane %v2603, 3
      %v2905 = vrot.slane %v2604, 3
      %v2906 = vsel %vm2873, %v2904, %v2905
      %v2907 = vrot.slane %v2750, 3
      %v2908 = vrot.slane %v2752, 3
      %v2909 = vsel %vm2873, %v2907, %v2908
      %v2910 = vrot.slane %v2606, 3
      %v2911 = vrot.slane %v2607, 3
      %v2912 = vsel %vm2873, %v2910, %v2911
      %v2913 = vrot.slane %v2754, 3
      %v2914 = vrot.slane %v2756, 3
      %v2915 = vsel %vm2873, %v2913, %v2914
      %v2916 = vrot.slane %v2609, 3
      %v2917 = vrot.slane %v2610, 3
      %v2918 = vsel %vm2873, %v2916, %v2917
      %v2919 = vrot.slane %v2758, 3
      %v2920 = vrot.slane %v2760, 3
      %v2921 = vsel %vm2873, %v2919, %v2920
      %v2922 = vrot.slane %v2612, 3
      %v2923 = vrot.slane %v2613, 3
      %v2924 = vsel %vm2873, %v2922, %v2923
      %v2925 = vrot.slane %v2762, 3
      %v2926 = vrot.slane %v2764, 3
      %v2927 = vsel %vm2873, %v2925, %v2926
      %v2928 = vrot.slane %v2615, 3
      %v2929 = vrot.slane %v2616, 3
      %v2930 = vsel %vm2873, %v2928, %v2929
      %v2931 = vrot.slane %v2766, 3
      %v2932 = vrot.slane %v2768, 3
      %v2933 = vsel %vm2873, %v2931, %v2932
      %v2934 = vrot.slane %v2618, 3
      %v2935 = vrot.slane %v2619, 3
      %v2936 = vsel %vm2873, %v2934, %v2935
      %v2937 = vrot.slane %v2770, 3
      %v2938 = vrot.slane %v2772, 3
      %v2939 = vsel %vm2873, %v2937, %v2938
      %v2940 = vrot.slane %v2621, 3
      %v2941 = vrot.slane %v2622, 3
      %v2942 = vsel %vm2873, %v2940, %v2941
      %v2943 = vrot.slane %v2774, 3
      %v2944 = vrot.slane %v2776, 3
      %v2945 = vsel %vm2873, %v2943, %v2944
      %v2946 = vrot.slane %v2624, 3
      %v2947 = vrot.slane %v2625, 3
      %v2948 = vsel %vm2873, %v2946, %v2947
      %v2949 = vrot.slane %v2778, 3
      %v2950 = vrot.slane %v2780, 3
      %v2951 = vsel %vm2873, %v2949, %v2950
      %v2952 = vrot.slane %v2627, 3
      %v2953 = vrot.slane %v2628, 3
      %v2954 = vsel %vm2873, %v2952, %v2953
      %v2955 = vrot.slane %v2782, 3
      %v2956 = vrot.slane %v2784, 3
      %v2957 = vsel %vm2873, %v2955, %v2956
      %v2958 = vrot.slane %v2630, 3
      %v2959 = vrot.slane %v2631, 3
      %v2960 = vsel %vm2873, %v2958, %v2959
      %v2961 = vrot.slane %v2786, 3
      %v2962 = vrot.slane %v2788, 3
      %v2963 = vsel %vm2873, %v2961, %v2962
      %v2964 = vrot.slane %v2633, 3
      %v2965 = vrot.slane %v2634, 3
      %v2966 = vsel %vm2873, %v2964, %v2965
      %v2967 = vrot.slane %v2790, 3
      %v2968 = vrot.slane %v2792, 3
      %v2969 = vsel %vm2873, %v2967, %v2968
      %v2986 = vld [vmem:[%s3] sm:$0xf]
      %v2987 = vld [vmem:[%s3 + $0x4] sm:$0xf]
      %v2988 = vld [vmem:[%s3 + $0x8] sm:$0xf]
      %v2989 = vld [vmem:[%s3 + $0xc] sm:$0xf]
      %v2990 = vld [vmem:[%s3 + $0x10] sm:$0xf]
      %v2991 = vld [vmem:[%s3 + $0x14] sm:$0xf]
      %v2992 = vld [vmem:[%s3 + $0x18] sm:$0xf]
      %v2993 = vld [vmem:[%s3 + $0x1c] sm:$0xf]
      %v2994 = vld [vmem:[%s3 + $0x20] sm:$0xf]
      %v2995 = vld [vmem:[%s3 + $0x24] sm:$0xf]
      %v2996 = vld [vmem:[%s3 + $0x28] sm:$0xf]
      %v2997 = vld [vmem:[%s3 + $0x2c] sm:$0xf]
      %v2998 = vld [vmem:[%s3 + $0x30] sm:$0xf]
      %v2999 = vld [vmem:[%s3 + $0x34] sm:$0xf]
      %v3000 = vld [vmem:[%s3 + $0x38] sm:$0xf]
      %v3001 = vld [vmem:[%s3 + $0x3c] sm:$0xf]
      %v3002 = vld [vmem:[%s3 + $0x40] sm:$0xf]
      %v3003 = vld [vmem:[%s3 + $0x44] sm:$0xf]
      %v3004 = vld [vmem:[%s3 + $0x48] sm:$0xf]
      %v3005 = vld [vmem:[%s3 + $0x4c] sm:$0xf]
      %v3006 = vld [vmem:[%s3 + $0x50] sm:$0xf]
      %v3007 = vld [vmem:[%s3 + $0x54] sm:$0xf]
      %v3008 = vld [vmem:[%s3 + $0x58] sm:$0xf]
      %v3009 = vld [vmem:[%s3 + $0x5c] sm:$0xf]
      %v3010 = vld [vmem:[%s3 + $0x60] sm:$0xf]
      %v3011 = vld [vmem:[%s3 + $0x64] sm:$0xf]
      %v3012 = vld [vmem:[%s3 + $0x68] sm:$0xf]
      %v3013 = vld [vmem:[%s3 + $0x6c] sm:$0xf]
      %v3014 = vld [vmem:[%s3 + $0x70] sm:$0xf]
      %v3015 = vld [vmem:[%s3 + $0x74] sm:$0xf]
      %v3020 = vrot.slane %v2636, 3
      %v3021 = vrot.slane %v2637, 3
      %v3022 = vsel %vm2873, %v3020, %v3021
      %v3023 = vrot.slane %v2794, 3
      %v3024 = vrot.slane %v2796, 3
      %v3025 = vsel %vm2873, %v3023, %v3024
      %s3027 = scalar_lea.vmem %s3, 120
      %v3028 = vld [vmem:[%s3027] sm:$0xf]
      %v3029 = vld [vmem:[%s3027 + $0x4] sm:$0xf]
      %v3030 = vld [vmem:[%s3027 + $0x8] sm:$0xf]
      %v3031 = vld [vmem:[%s3027 + $0xc] sm:$0xf]
      %v3032 = vld [vmem:[%s3027 + $0x10] sm:$0xf]
      %v3033 = vld [vmem:[%s3027 + $0x14] sm:$0xf]
      %v3034 = vld [vmem:[%s3027 + $0x18] sm:$0xf]
      %v3035 = vld [vmem:[%s3027 + $0x1c] sm:$0xf]
      %v3036 = vld [vmem:[%s3027 + $0x20] sm:$0xf]
      %v3037 = vld [vmem:[%s3027 + $0x24] sm:$0xf]
      %v3038 = vld [vmem:[%s3027 + $0x28] sm:$0xf]
      %v3039 = vld [vmem:[%s3027 + $0x2c] sm:$0xf]
      %v3040 = vld [vmem:[%s3027 + $0x30] sm:$0xf]
      %v3041 = vld [vmem:[%s3027 + $0x34] sm:$0xf]
      %v3042 = vld [vmem:[%s3027 + $0x38] sm:$0xf]
      %v3043 = vld [vmem:[%s3027 + $0x3c] sm:$0xf]
      %v3044 = vld [vmem:[%s3027 + $0x40] sm:$0xf]
      %v3045 = vld [vmem:[%s3027 + $0x44] sm:$0xf]
      %v3046 = vld [vmem:[%s3027 + $0x48] sm:$0xf]
      %v3047 = vld [vmem:[%s3027 + $0x4c] sm:$0xf]
      %v3048 = vld [vmem:[%s3027 + $0x50] sm:$0xf]
      %v3049 = vld [vmem:[%s3027 + $0x54] sm:$0xf]
      %v3050 = vld [vmem:[%s3027 + $0x58] sm:$0xf]
      %v3051 = vld [vmem:[%s3027 + $0x5c] sm:$0xf]
      %v3052 = vld [vmem:[%s3027 + $0x60] sm:$0xf]
      %v3053 = vld [vmem:[%s3027 + $0x64] sm:$0xf]
      %v3054 = vld [vmem:[%s3027 + $0x68] sm:$0xf]
      %v3055 = vld [vmem:[%s3027 + $0x6c] sm:$0xf]
      %v3056 = vld [vmem:[%s3027 + $0x70] sm:$0xf]
      %v3057 = vld [vmem:[%s3027 + $0x74] sm:$0xf]
      %v3088 = vunpack.c.l.b16 %v3028
      %v3089 = vunpack.c.l.b16 %v3029
      %v3090 = vunpack.c.l.b16 %v3030
      %v3091 = vunpack.c.l.b16 %v3031
      %v3092 = vunpack.c.l.b16 %v3032
      %v3093 = vunpack.c.l.b16 %v3033
      %v3094 = vunpack.c.l.b16 %v3034
      %v3095 = vunpack.c.l.b16 %v3035
      %v3096 = vunpack.c.l.b16 %v3036
      %v3097 = vunpack.c.l.b16 %v3037
      %v3098 = vunpack.c.l.b16 %v3038
      %v3099 = vunpack.c.l.b16 %v3039
      %v3100 = vunpack.c.l.b16 %v3040
      %v3101 = vunpack.c.l.b16 %v3041
      %v3102 = vunpack.c.l.b16 %v3042
      %v3103 = vunpack.c.l.b16 %v3043
      %v3104 = vunpack.c.l.b16 %v3044
      %v3105 = vunpack.c.l.b16 %v3045
      %v3106 = vunpack.c.l.b16 %v3046
      %v3107 = vunpack.c.l.b16 %v3047
      %v3108 = vunpack.c.l.b16 %v3048
      %v3109 = vunpack.c.l.b16 %v3049
      %v3110 = vunpack.c.l.b16 %v3050
      %v3111 = vunpack.c.l.b16 %v3051
      %v3112 = vunpack.c.l.b16 %v3052
      %v3113 = vunpack.c.l.b16 %v3053
      %v3114 = vunpack.c.l.b16 %v3054
      %v3115 = vunpack.c.l.b16 %v3055
      %v3116 = vunpack.c.l.b16 %v3056
      %v3117 = vunpack.c.l.b16 %v3057
      %v3118 = vpack.c.b16 %v3089, %v3088
      %v3119 = vpack.c.b16 %v3091, %v3090
      %v3120 = vpack.c.b16 %v3093, %v3092
      %v3121 = vpack.c.b16 %v3095, %v3094
      %v3122 = vpack.c.b16 %v3097, %v3096
      %v3123 = vpack.c.b16 %v3099, %v3098
      %v3124 = vpack.c.b16 %v3101, %v3100
      %v3125 = vpack.c.b16 %v3103, %v3102
      %v3126 = vpack.c.b16 %v3105, %v3104
      %v3127 = vpack.c.b16 %v3107, %v3106
      %v3128 = vpack.c.b16 %v3109, %v3108
      %v3129 = vpack.c.b16 %v3111, %v3110
      %v3130 = vpack.c.b16 %v3113, %v3112
      %v3131 = vpack.c.b16 %v3115, %v3114
      %v3132 = vpack.c.b16 %v3117, %v3116
      %vm3148 = vcmask 916480
      %v3150 = vsel %vm3148, %v2885, 0
      %v3153 = vsel %vm3148, %v2891, 0
      %v3156 = vsel %vm3148, %v2897, 0
      %v3159 = vsel %vm3148, %v2903, 0
      %v3162 = vsel %vm3148, %v2909, 0
      %v3165 = vsel %vm3148, %v2915, 0
      %v3168 = vsel %vm3148, %v2921, 0
      %v3171 = vsel %vm3148, %v2927, 0
      %v3174 = vsel %vm3148, %v2933, 0
      %v3177 = vsel %vm3148, %v2939, 0
      %v3180 = vsel %vm3148, %v2945, 0
      %v3183 = vsel %vm3148, %v2951, 0
      %v3186 = vsel %vm3148, %v2957, 0
      %v3189 = vsel %vm3148, %v2963, 0
      %v3192 = vsel %vm3148, %v2969, 0
      %v3195 = vsel %vm3148, %v3025, 0
      %3197 = vmatprep.subr.bf16.mxu0 0
      %3198 = vmatpush1.bf16.msra.mxu0 %v3125
      %3199 = vmatprep.subr.bf16.mxu0 0
      %3200 = vmatpush1.bf16.msra.mxu0 %v3124
      %3201 = vmatprep.subr.bf16.mxu0 0
      %3202 = vmatpush1.bf16.msra.mxu0 %v3123
      %3203 = vmatprep.subr.bf16.mxu0 0
      %3204 = vmatpush1.bf16.msra.mxu0 %v3122
      %3205 = vmatprep.subr.bf16.mxu0 0
      %3206 = vmatpush1.bf16.msra.mxu0 %v3121
      %3207 = vmatprep.subr.bf16.mxu0 0
      %3208 = vmatpush1.bf16.msra.mxu0 %v3120
      %3209 = vmatprep.subr.bf16.mxu0 0
      %3210 = vmatpush1.bf16.msra.mxu0 %v3119
      %3211 = vmatprep.subr.bf16.mxu0 0
      %3212 = vmatpush1.bf16.msra.mxu0 %v3118
      %3213 = vmatprep.subr.bf16.mxu0 0
      %3214 = vmatpush2.bf16.msra.mxu0 0
      %3215 = vmatprep.subr.bf16.mxu0 0
      %3216 = vmatpush2.bf16.msra.mxu0 %v3132
      %3217 = vmatprep.subr.bf16.mxu0 0
      %3218 = vmatpush2.bf16.msra.mxu0 %v3131
      %3219 = vmatprep.subr.bf16.mxu0 0
      %3220 = vmatpush2.bf16.msra.mxu0 %v3130
      %3221 = vmatprep.subr.bf16.mxu0 0
      %3222 = vmatpush2.bf16.msra.mxu0 %v3129
      %3223 = vmatprep.subr.bf16.mxu0 0
      %3224 = vmatpush2.bf16.msra.mxu0 %v3128
      %3225 = vmatprep.subr.bf16.mxu0 0
      %3226 = vmatpush2.bf16.msra.mxu0 %v3127
      %3227 = vmatprep.subr.bf16.mxu0 0
      %3228 = vmatpush2.bf16.msra.mxu0 %v3126
      %3229 = vmatprep.mubr.bf16.mxu0 %v3150
      %3230 = vmatmul.mubr.bf16.gmra.mxu0 %v2882
      %v3231 = vpop.f32.mrf.mxu0
      %v3232 = vadd.f32 0.0, %v3231
      %v3233 = vpop.f32.mrf.mxu0
      %v3234 = vpop.f32.mrf.mxu0
      %v3235 = vadd.f32 0.0, %v3234
      %v3236 = vpop.f32.mrf.mxu0
      %3237 = vmatprep.mubr.bf16.mxu0 %v3153
      %3238 = vmatmul.mubr.bf16.gmra.mxu0 %v2888
      %v3239 = vpop.f32.mrf.mxu0
      %v3240 = vadd.f32 0.0, %v3239
      %v3241 = vpop.f32.mrf.mxu0
      %v3242 = vpop.f32.mrf.mxu0
      %v3243 = vadd.f32 0.0, %v3242
      %v3244 = vpop.f32.mrf.mxu0
      %3245 = vmatprep.mubr.bf16.mxu0 %v3156
      %3246 = vmatmul.mubr.bf16.gmra.mxu0 %v2894
      %v3247 = vpop.f32.mrf.mxu0
      %v3248 = vadd.f32 0.0, %v3247
      %v3249 = vpop.f32.mrf.mxu0
      %v3250 = vpop.f32.mrf.mxu0
      %v3251 = vadd.f32 0.0, %v3250
      %v3252 = vpop.f32.mrf.mxu0
      %3253 = vmatprep.mubr.bf16.mxu0 %v3159
      %3254 = vmatmul.mubr.bf16.gmra.mxu0 %v2900
      %v3255 = vpop.f32.mrf.mxu0
      %v3256 = vadd.f32 0.0, %v3255
      %v3257 = vpop.f32.mrf.mxu0
      %v3258 = vpop.f32.mrf.mxu0
      %v3259 = vadd.f32 0.0, %v3258
      %v3260 = vpop.f32.mrf.mxu0
      %3261 = vmatprep.mubr.bf16.mxu0 %v3162
      %3262 = vmatmul.mubr.bf16.gmra.mxu0 %v2906
      %v3263 = vpop.f32.mrf.mxu0
      %v3264 = vadd.f32 0.0, %v3263
      %v3265 = vpop.f32.mrf.mxu0
      %v3266 = vpop.f32.mrf.mxu0
      %v3267 = vadd.f32 0.0, %v3266
      %v3268 = vpop.f32.mrf.mxu0
      %3269 = vmatprep.mubr.bf16.mxu0 %v3165
      %3270 = vmatmul.mubr.bf16.gmra.mxu0 %v2912
      %v3271 = vpop.f32.mrf.mxu0
      %v3272 = vadd.f32 0.0, %v3271
      %v3273 = vpop.f32.mrf.mxu0
      %v3274 = vpop.f32.mrf.mxu0
      %v3275 = vadd.f32 0.0, %v3274
      %v3276 = vpop.f32.mrf.mxu0
      %3277 = vmatprep.mubr.bf16.mxu0 %v3168
      %3278 = vmatmul.mubr.bf16.gmra.mxu0 %v2918
      %v3279 = vpop.f32.mrf.mxu0
      %v3280 = vadd.f32 0.0, %v3279
      %v3281 = vpop.f32.mrf.mxu0
      %v3282 = vpop.f32.mrf.mxu0
      %v3283 = vadd.f32 0.0, %v3282
      %v3284 = vpop.f32.mrf.mxu0
      %3285 = vmatprep.mubr.bf16.mxu0 %v3171
      %3286 = vmatmul.mubr.bf16.gmra.mxu0 %v2924
      %v3287 = vpop.f32.mrf.mxu0
      %v3288 = vadd.f32 0.0, %v3287
      %v3289 = vpop.f32.mrf.mxu0
      %v3290 = vpop.f32.mrf.mxu0
      %v3291 = vadd.f32 0.0, %v3290
      %v3292 = vpop.f32.mrf.mxu0
      %3293 = vmatprep.mubr.bf16.mxu0 %v3174
      %3294 = vmatmul.mubr.bf16.gmra.mxu0 %v2930
      %v3295 = vpop.f32.mrf.mxu0
      %v3296 = vadd.f32 0.0, %v3295
      %v3297 = vpop.f32.mrf.mxu0
      %v3298 = vpop.f32.mrf.mxu0
      %v3299 = vadd.f32 0.0, %v3298
      %v3300 = vpop.f32.mrf.mxu0
      %3301 = vmatprep.mubr.bf16.mxu0 %v3177
      %3302 = vmatmul.mubr.bf16.gmra.mxu0 %v2936
      %v3303 = vpop.f32.mrf.mxu0
      %v3304 = vadd.f32 0.0, %v3303
      %v3305 = vpop.f32.mrf.mxu0
      %v3306 = vpop.f32.mrf.mxu0
      %v3307 = vadd.f32 0.0, %v3306
      %v3308 = vpop.f32.mrf.mxu0
      %3309 = vmatprep.mubr.bf16.mxu0 %v3180
      %3310 = vmatmul.mubr.bf16.gmra.mxu0 %v2942
      %v3311 = vpop.f32.mrf.mxu0
      %v3312 = vadd.f32 0.0, %v3311
      %v3313 = vpop.f32.mrf.mxu0
      %v3314 = vpop.f32.mrf.mxu0
      %v3315 = vadd.f32 0.0, %v3314
      %v3316 = vpop.f32.mrf.mxu0
      %3317 = vmatprep.mubr.bf16.mxu0 %v3183
      %3318 = vmatmul.mubr.bf16.gmra.mxu0 %v2948
      %v3319 = vpop.f32.mrf.mxu0
      %v3320 = vadd.f32 0.0, %v3319
      %v3321 = vpop.f32.mrf.mxu0
      %v3322 = vpop.f32.mrf.mxu0
      %v3323 = vadd.f32 0.0, %v3322
      %v3324 = vpop.f32.mrf.mxu0
      %3325 = vmatprep.mubr.bf16.mxu0 %v3186
      %3326 = vmatmul.mubr.bf16.gmra.mxu0 %v2954
      %v3327 = vpop.f32.mrf.mxu0
      %v3328 = vadd.f32 0.0, %v3327
      %v3329 = vpop.f32.mrf.mxu0
      %v3330 = vpop.f32.mrf.mxu0
      %v3331 = vadd.f32 0.0, %v3330
      %v3332 = vpop.f32.mrf.mxu0
      %3333 = vmatprep.mubr.bf16.mxu0 %v3189
      %3334 = vmatmul.mubr.bf16.gmra.mxu0 %v2960
      %v3335 = vpop.f32.mrf.mxu0
      %v3336 = vadd.f32 0.0, %v3335
      %v3337 = vpop.f32.mrf.mxu0
      %v3338 = vpop.f32.mrf.mxu0
      %v3339 = vadd.f32 0.0, %v3338
      %v3340 = vpop.f32.mrf.mxu0
      %3341 = vmatprep.mubr.bf16.mxu0 %v3192
      %3342 = vmatmul.mubr.bf16.gmra.mxu0 %v2966
      %v3343 = vpop.f32.mrf.mxu0
      %v3344 = vadd.f32 0.0, %v3343
      %v3345 = vpop.f32.mrf.mxu0
      %v3346 = vpop.f32.mrf.mxu0
      %v3347 = vadd.f32 0.0, %v3346
      %v3348 = vpop.f32.mrf.mxu0
      %3349 = vmatprep.mubr.bf16.mxu0 %v3195
      %3350 = vmatmul.mubr.bf16.gmra.mxu0 %v3022
      %v3351 = vpop.f32.mrf.mxu0
      %v3352 = vadd.f32 0.0, %v3351
      %v3353 = vpop.f32.mrf.mxu0
      %v3354 = vpop.f32.mrf.mxu0
      %v3355 = vadd.f32 0.0, %v3354
      %v3356 = vpop.f32.mrf.mxu0
      %3357 = vdwg.mxu0
      %v3388 = vunpack.c.l.b16 %v2986
      %v3389 = vunpack.c.l.b16 %v2987
      %v3390 = vunpack.c.l.b16 %v2988
      %v3391 = vunpack.c.l.b16 %v2989
      %v3392 = vunpack.c.l.b16 %v2990
      %v3393 = vunpack.c.l.b16 %v2991
      %v3394 = vunpack.c.l.b16 %v2992
      %v3395 = vunpack.c.l.b16 %v2993
      %v3396 = vunpack.c.l.b16 %v2994
      %v3397 = vunpack.c.l.b16 %v2995
      %v3398 = vunpack.c.l.b16 %v2996
      %v3399 = vunpack.c.l.b16 %v2997
      %v3400 = vunpack.c.l.b16 %v2998
      %v3401 = vunpack.c.l.b16 %v2999
      %v3402 = vunpack.c.l.b16 %v3000
      %v3403 = vunpack.c.l.b16 %v3001
      %v3404 = vunpack.c.l.b16 %v3002
      %v3405 = vunpack.c.l.b16 %v3003
      %v3406 = vunpack.c.l.b16 %v3004
      %v3407 = vunpack.c.l.b16 %v3005
      %v3408 = vunpack.c.l.b16 %v3006
      %v3409 = vunpack.c.l.b16 %v3007
      %v3410 = vunpack.c.l.b16 %v3008
      %v3411 = vunpack.c.l.b16 %v3009
      %v3412 = vunpack.c.l.b16 %v3010
      %v3413 = vunpack.c.l.b16 %v3011
      %v3414 = vunpack.c.l.b16 %v3012
      %v3415 = vunpack.c.l.b16 %v3013
      %v3416 = vunpack.c.l.b16 %v3014
      %v3417 = vunpack.c.l.b16 %v3015
      %v3418 = vpack.c.b16 %v3389, %v3388
      %v3419 = vpack.c.b16 %v3391, %v3390
      %v3420 = vpack.c.b16 %v3393, %v3392
      %v3421 = vpack.c.b16 %v3395, %v3394
      %v3422 = vpack.c.b16 %v3397, %v3396
      %v3423 = vpack.c.b16 %v3399, %v3398
      %v3424 = vpack.c.b16 %v3401, %v3400
      %v3425 = vpack.c.b16 %v3403, %v3402
      %v3426 = vpack.c.b16 %v3405, %v3404
      %v3427 = vpack.c.b16 %v3407, %v3406
      %v3428 = vpack.c.b16 %v3409, %v3408
      %v3429 = vpack.c.b16 %v3411, %v3410
      %v3430 = vpack.c.b16 %v3413, %v3412
      %v3431 = vpack.c.b16 %v3415, %v3414
      %v3432 = vpack.c.b16 %v3417, %v3416
      %v3449 = vsel %vm3148, %v2879, 0
      %3451 = vmatprep.subr.bf16.mxu0 0
      %3452 = vmatpush1.bf16.msra.mxu0 %v3425
      %3453 = vmatprep.subr.bf16.mxu0 0
      %3454 = vmatpush1.bf16.msra.mxu0 %v3424
      %3455 = vmatprep.subr.bf16.mxu0 0
      %3456 = vmatpush1.bf16.msra.mxu0 %v3423
      %3457 = vmatprep.subr.bf16.mxu0 0
      %3458 = vmatpush1.bf16.msra.mxu0 %v3422
      %3459 = vmatprep.subr.bf16.mxu0 0
      %3460 = vmatpush1.bf16.msra.mxu0 %v3421
      %3461 = vmatprep.subr.bf16.mxu0 0
      %3462 = vmatpush1.bf16.msra.mxu0 %v3420
      %3463 = vmatprep.subr.bf16.mxu0 0
      %3464 = vmatpush1.bf16.msra.mxu0 %v3419
      %3465 = vmatprep.subr.bf16.mxu0 0
      %3466 = vmatpush1.bf16.msra.mxu0 %v3418
      %3467 = vmatprep.subr.bf16.mxu0 0
      %3468 = vmatpush2.bf16.msra.mxu0 0
      %3469 = vmatprep.subr.bf16.mxu0 0
      %3470 = vmatpush2.bf16.msra.mxu0 %v3432
      %3471 = vmatprep.subr.bf16.mxu0 0
      %3472 = vmatpush2.bf16.msra.mxu0 %v3431
      %3473 = vmatprep.subr.bf16.mxu0 0
      %3474 = vmatpush2.bf16.msra.mxu0 %v3430
      %3475 = vmatprep.subr.bf16.mxu0 0
      %3476 = vmatpush2.bf16.msra.mxu0 %v3429
      %3477 = vmatprep.subr.bf16.mxu0 0
      %3478 = vmatpush2.bf16.msra.mxu0 %v3428
      %3479 = vmatprep.subr.bf16.mxu0 0
      %3480 = vmatpush2.bf16.msra.mxu0 %v3427
      %3481 = vmatprep.subr.bf16.mxu0 0
      %3482 = vmatpush2.bf16.msra.mxu0 %v3426
      %3483 = vmatprep.mubr.bf16.mxu0 %v3449
      %3484 = vmatmul.mubr.bf16.gmra.mxu0 %v2876
      %v3485 = vpop.f32.mrf.mxu0
      %v3486 = vadd.f32 %v3232, %v3485
      %v3487 = vpop.f32.mrf.mxu0
      %v3488 = vpop.f32.mrf.mxu0
      %v3489 = vadd.f32 %v3235, %v3488
      %v3490 = vpop.f32.mrf.mxu0
      %3491 = vmatprep.mubr.bf16.mxu0 %v3150
      %3492 = vmatmul.mubr.bf16.gmra.mxu0 %v2882
      %v3493 = vpop.f32.mrf.mxu0
      %v3494 = vadd.f32 %v3240, %v3493
      %v3495 = vpop.f32.mrf.mxu0
      %v3496 = vpop.f32.mrf.mxu0
      %v3497 = vadd.f32 %v3243, %v3496
      %v3498 = vpop.f32.mrf.mxu0
      %3499 = vmatprep.mubr.bf16.mxu0 %v3153
      %3500 = vmatmul.mubr.bf16.gmra.mxu0 %v2888
      %v3501 = vpop.f32.mrf.mxu0
      %v3502 = vadd.f32 %v3248, %v3501
      %v3503 = vpop.f32.mrf.mxu0
      %v3504 = vpop.f32.mrf.mxu0
      %v3505 = vadd.f32 %v3251, %v3504
      %v3506 = vpop.f32.mrf.mxu0
      %3507 = vmatprep.mubr.bf16.mxu0 %v3156
      %3508 = vmatmul.mubr.bf16.gmra.mxu0 %v2894
      %v3509 = vpop.f32.mrf.mxu0
      %v3510 = vadd.f32 %v3256, %v3509
      %v3511 = vpop.f32.mrf.mxu0
      %v3512 = vpop.f32.mrf.mxu0
      %v3513 = vadd.f32 %v3259, %v3512
      %v3514 = vpop.f32.mrf.mxu0
      %3515 = vmatprep.mubr.bf16.mxu0 %v3159
      %3516 = vmatmul.mubr.bf16.gmra.mxu0 %v2900
      %v3517 = vpop.f32.mrf.mxu0
      %v3518 = vadd.f32 %v3264, %v3517
      %v3519 = vpop.f32.mrf.mxu0
      %v3520 = vpop.f32.mrf.mxu0
      %v3521 = vadd.f32 %v3267, %v3520
      %v3522 = vpop.f32.mrf.mxu0
      %3523 = vmatprep.mubr.bf16.mxu0 %v3162
      %3524 = vmatmul.mubr.bf16.gmra.mxu0 %v2906
      %v3525 = vpop.f32.mrf.mxu0
      %v3526 = vadd.f32 %v3272, %v3525
      %v3527 = vpop.f32.mrf.mxu0
      %v3528 = vpop.f32.mrf.mxu0
      %v3529 = vadd.f32 %v3275, %v3528
      %v3530 = vpop.f32.mrf.mxu0
      %3531 = vmatprep.mubr.bf16.mxu0 %v3165
      %3532 = vmatmul.mubr.bf16.gmra.mxu0 %v2912
      %v3533 = vpop.f32.mrf.mxu0
      %v3534 = vadd.f32 %v3280, %v3533
      %v3535 = vpop.f32.mrf.mxu0
      %v3536 = vpop.f32.mrf.mxu0
      %v3537 = vadd.f32 %v3283, %v3536
      %v3538 = vpop.f32.mrf.mxu0
      %3539 = vmatprep.mubr.bf16.mxu0 %v3168
      %3540 = vmatmul.mubr.bf16.gmra.mxu0 %v2918
      %v3541 = vpop.f32.mrf.mxu0
      %v3542 = vadd.f32 %v3288, %v3541
      %v3543 = vpop.f32.mrf.mxu0
      %v3544 = vpop.f32.mrf.mxu0
      %v3545 = vadd.f32 %v3291, %v3544
      %v3546 = vpop.f32.mrf.mxu0
      %3547 = vmatprep.mubr.bf16.mxu0 %v3171
      %3548 = vmatmul.mubr.bf16.gmra.mxu0 %v2924
      %v3549 = vpop.f32.mrf.mxu0
      %v3550 = vadd.f32 %v3296, %v3549
      %v3551 = vpop.f32.mrf.mxu0
      %v3552 = vpop.f32.mrf.mxu0
      %v3553 = vadd.f32 %v3299, %v3552
      %v3554 = vpop.f32.mrf.mxu0
      %3555 = vmatprep.mubr.bf16.mxu0 %v3174
      %3556 = vmatmul.mubr.bf16.gmra.mxu0 %v2930
      %v3557 = vpop.f32.mrf.mxu0
      %v3558 = vadd.f32 %v3304, %v3557
      %v3559 = vpop.f32.mrf.mxu0
      %v3560 = vpop.f32.mrf.mxu0
      %v3561 = vadd.f32 %v3307, %v3560
      %v3562 = vpop.f32.mrf.mxu0
      %3563 = vmatprep.mubr.bf16.mxu0 %v3177
      %3564 = vmatmul.mubr.bf16.gmra.mxu0 %v2936
      %v3565 = vpop.f32.mrf.mxu0
      %v3566 = vadd.f32 %v3312, %v3565
      %v3567 = vpop.f32.mrf.mxu0
      %v3568 = vpop.f32.mrf.mxu0
      %v3569 = vadd.f32 %v3315, %v3568
      %v3570 = vpop.f32.mrf.mxu0
      %3571 = vmatprep.mubr.bf16.mxu0 %v3180
      %3572 = vmatmul.mubr.bf16.gmra.mxu0 %v2942
      %v3573 = vpop.f32.mrf.mxu0
      %v3574 = vadd.f32 %v3320, %v3573
      %v3575 = vpop.f32.mrf.mxu0
      %v3576 = vpop.f32.mrf.mxu0
      %v3577 = vadd.f32 %v3323, %v3576
      %v3578 = vpop.f32.mrf.mxu0
      %3579 = vmatprep.mubr.bf16.mxu0 %v3183
      %3580 = vmatmul.mubr.bf16.gmra.mxu0 %v2948
      %v3581 = vpop.f32.mrf.mxu0
      %v3582 = vadd.f32 %v3328, %v3581
      %v3583 = vpop.f32.mrf.mxu0
      %v3584 = vpop.f32.mrf.mxu0
      %v3585 = vadd.f32 %v3331, %v3584
      %v3586 = vpop.f32.mrf.mxu0
      %3587 = vmatprep.mubr.bf16.mxu0 %v3186
      %3588 = vmatmul.mubr.bf16.gmra.mxu0 %v2954
      %v3589 = vpop.f32.mrf.mxu0
      %v3590 = vadd.f32 %v3336, %v3589
      %v3591 = vpop.f32.mrf.mxu0
      %v3592 = vpop.f32.mrf.mxu0
      %v3593 = vadd.f32 %v3339, %v3592
      %v3594 = vpop.f32.mrf.mxu0
      %3595 = vmatprep.mubr.bf16.mxu0 %v3189
      %3596 = vmatmul.mubr.bf16.gmra.mxu0 %v2960
      %v3597 = vpop.f32.mrf.mxu0
      %v3598 = vadd.f32 %v3344, %v3597
      %v3599 = vpop.f32.mrf.mxu0
      %v3600 = vpop.f32.mrf.mxu0
      %v3601 = vadd.f32 %v3347, %v3600
      %v3602 = vpop.f32.mrf.mxu0
      %3603 = vmatprep.mubr.bf16.mxu0 %v3192
      %3604 = vmatmul.mubr.bf16.gmra.mxu0 %v2966
      %v3605 = vpop.f32.mrf.mxu0
      %v3606 = vadd.f32 %v3352, %v3605
      %v3607 = vpop.f32.mrf.mxu0
      %v3608 = vpop.f32.mrf.mxu0
      %v3609 = vadd.f32 %v3355, %v3608
      %v3610 = vpop.f32.mrf.mxu0
      %3611 = vdwg.mxu0
      %v3616 = vrot.slane %v2639, 3
      %v3617 = vrot.slane %v2640, 3
      %v3618 = vsel %vm2873, %v3616, %v3617
      %v3619 = vrot.slane %v2798, 3
      %v3620 = vrot.slane %v2800, 3
      %v3621 = vsel %vm2873, %v3619, %v3620
      %s3623 = scalar_lea.vmem %s3, 240
      %v3624 = vld [vmem:[%s3623] sm:$0xf]
      %v3625 = vld [vmem:[%s3623 + $0x4] sm:$0xf]
      %v3626 = vld [vmem:[%s3623 + $0x8] sm:$0xf]
      %v3627 = vld [vmem:[%s3623 + $0xc] sm:$0xf]
      %v3628 = vld [vmem:[%s3623 + $0x10] sm:$0xf]
      %v3629 = vld [vmem:[%s3623 + $0x14] sm:$0xf]
      %v3630 = vld [vmem:[%s3623 + $0x18] sm:$0xf]
      %v3631 = vld [vmem:[%s3623 + $0x1c] sm:$0xf]
      %v3632 = vld [vmem:[%s3623 + $0x20] sm:$0xf]
      %v3633 = vld [vmem:[%s3623 + $0x24] sm:$0xf]
      %v3634 = vld [vmem:[%s3623 + $0x28] sm:$0xf]
      %v3635 = vld [vmem:[%s3623 + $0x2c] sm:$0xf]
      %v3636 = vld [vmem:[%s3623 + $0x30] sm:$0xf]
      %v3637 = vld [vmem:[%s3623 + $0x34] sm:$0xf]
      %v3638 = vld [vmem:[%s3623 + $0x38] sm:$0xf]
      %v3639 = vld [vmem:[%s3623 + $0x3c] sm:$0xf]
      %v3640 = vld [vmem:[%s3623 + $0x40] sm:$0xf]
      %v3641 = vld [vmem:[%s3623 + $0x44] sm:$0xf]
      %v3642 = vld [vmem:[%s3623 + $0x48] sm:$0xf]
      %v3643 = vld [vmem:[%s3623 + $0x4c] sm:$0xf]
      %v3644 = vld [vmem:[%s3623 + $0x50] sm:$0xf]
      %v3645 = vld [vmem:[%s3623 + $0x54] sm:$0xf]
      %v3646 = vld [vmem:[%s3623 + $0x58] sm:$0xf]
      %v3647 = vld [vmem:[%s3623 + $0x5c] sm:$0xf]
      %v3648 = vld [vmem:[%s3623 + $0x60] sm:$0xf]
      %v3649 = vld [vmem:[%s3623 + $0x64] sm:$0xf]
      %v3650 = vld [vmem:[%s3623 + $0x68] sm:$0xf]
      %v3651 = vld [vmem:[%s3623 + $0x6c] sm:$0xf]
      %v3652 = vld [vmem:[%s3623 + $0x70] sm:$0xf]
      %v3653 = vld [vmem:[%s3623 + $0x74] sm:$0xf]
      %v3684 = vunpack.c.l.b16 %v3624
      %v3685 = vunpack.c.l.b16 %v3625
      %v3686 = vunpack.c.l.b16 %v3626
      %v3687 = vunpack.c.l.b16 %v3627
      %v3688 = vunpack.c.l.b16 %v3628
      %v3689 = vunpack.c.l.b16 %v3629
      %v3690 = vunpack.c.l.b16 %v3630
      %v3691 = vunpack.c.l.b16 %v3631
      %v3692 = vunpack.c.l.b16 %v3632
      %v3693 = vunpack.c.l.b16 %v3633
      %v3694 = vunpack.c.l.b16 %v3634
      %v3695 = vunpack.c.l.b16 %v3635
      %v3696 = vunpack.c.l.b16 %v3636
      %v3697 = vunpack.c.l.b16 %v3637
      %v3698 = vunpack.c.l.b16 %v3638
      %v3699 = vunpack.c.l.b16 %v3639
      %v3700 = vunpack.c.l.b16 %v3640
      %v3701 = vunpack.c.l.b16 %v3641
      %v3702 = vunpack.c.l.b16 %v3642
      %v3703 = vunpack.c.l.b16 %v3643
      %v3704 = vunpack.c.l.b16 %v3644
      %v3705 = vunpack.c.l.b16 %v3645
      %v3706 = vunpack.c.l.b16 %v3646
      %v3707 = vunpack.c.l.b16 %v3647
      %v3708 = vunpack.c.l.b16 %v3648
      %v3709 = vunpack.c.l.b16 %v3649
      %v3710 = vunpack.c.l.b16 %v3650
      %v3711 = vunpack.c.l.b16 %v3651
      %v3712 = vunpack.c.l.b16 %v3652
      %v3713 = vunpack.c.l.b16 %v3653
      %v3714 = vpack.c.b16 %v3685, %v3684
      %v3715 = vpack.c.b16 %v3687, %v3686
      %v3716 = vpack.c.b16 %v3689, %v3688
      %v3717 = vpack.c.b16 %v3691, %v3690
      %v3718 = vpack.c.b16 %v3693, %v3692
      %v3719 = vpack.c.b16 %v3695, %v3694
      %v3720 = vpack.c.b16 %v3697, %v3696
      %v3721 = vpack.c.b16 %v3699, %v3698
      %v3722 = vpack.c.b16 %v3701, %v3700
      %v3723 = vpack.c.b16 %v3703, %v3702
      %v3724 = vpack.c.b16 %v3705, %v3704
      %v3725 = vpack.c.b16 %v3707, %v3706
      %v3726 = vpack.c.b16 %v3709, %v3708
      %v3727 = vpack.c.b16 %v3711, %v3710
      %v3728 = vpack.c.b16 %v3713, %v3712
      %v3745 = vsel %vm3148, %v3621, 0
      %3747 = vmatprep.subr.bf16.mxu0 0
      %3748 = vmatpush1.bf16.msra.mxu0 %v3721
      %3749 = vmatprep.subr.bf16.mxu0 0
      %3750 = vmatpush1.bf16.msra.mxu0 %v3720
      %3751 = vmatprep.subr.bf16.mxu0 0
      %3752 = vmatpush1.bf16.msra.mxu0 %v3719
      %3753 = vmatprep.subr.bf16.mxu0 0
      %3754 = vmatpush1.bf16.msra.mxu0 %v3718
      %3755 = vmatprep.subr.bf16.mxu0 0
      %3756 = vmatpush1.bf16.msra.mxu0 %v3717
      %3757 = vmatprep.subr.bf16.mxu0 0
      %3758 = vmatpush1.bf16.msra.mxu0 %v3716
      %3759 = vmatprep.subr.bf16.mxu0 0
      %3760 = vmatpush1.bf16.msra.mxu0 %v3715
      %3761 = vmatprep.subr.bf16.mxu0 0
      %3762 = vmatpush1.bf16.msra.mxu0 %v3714
      %3763 = vmatprep.subr.bf16.mxu0 0
      %3764 = vmatpush2.bf16.msra.mxu0 0
      %3765 = vmatprep.subr.bf16.mxu0 0
      %3766 = vmatpush2.bf16.msra.mxu0 %v3728
      %3767 = vmatprep.subr.bf16.mxu0 0
      %3768 = vmatpush2.bf16.msra.mxu0 %v3727
      %3769 = vmatprep.subr.bf16.mxu0 0
      %3770 = vmatpush2.bf16.msra.mxu0 %v3726
      %3771 = vmatprep.subr.bf16.mxu0 0
      %3772 = vmatpush2.bf16.msra.mxu0 %v3725
      %3773 = vmatprep.subr.bf16.mxu0 0
      %3774 = vmatpush2.bf16.msra.mxu0 %v3724
      %3775 = vmatprep.subr.bf16.mxu0 0
      %3776 = vmatpush2.bf16.msra.mxu0 %v3723
      %3777 = vmatprep.subr.bf16.mxu0 0
      %3778 = vmatpush2.bf16.msra.mxu0 %v3722
      %3779 = vmatprep.mubr.bf16.mxu0 %v3153
      %3780 = vmatmul.mubr.bf16.gmra.mxu0 %v2888
      %v3781 = vpop.f32.mrf.mxu0
      %v3782 = vadd.f32 0.0, %v3781
      %v3783 = vpop.f32.mrf.mxu0
      %v3784 = vpop.f32.mrf.mxu0
      %v3785 = vadd.f32 0.0, %v3784
      %v3786 = vpop.f32.mrf.mxu0
      %3787 = vmatprep.mubr.bf16.mxu0 %v3156
      %3788 = vmatmul.mubr.bf16.gmra.mxu0 %v2894
      %v3789 = vpop.f32.mrf.mxu0
      %v3790 = vadd.f32 0.0, %v3789
      %v3791 = vpop.f32.mrf.mxu0
      %v3792 = vpop.f32.mrf.mxu0
      %v3793 = vadd.f32 0.0, %v3792
      %v3794 = vpop.f32.mrf.mxu0
      %3795 = vmatprep.mubr.bf16.mxu0 %v3159
      %3796 = vmatmul.mubr.bf16.gmra.mxu0 %v2900
      %v3797 = vpop.f32.mrf.mxu0
      %v3798 = vadd.f32 0.0, %v3797
      %v3799 = vpop.f32.mrf.mxu0
      %v3800 = vpop.f32.mrf.mxu0
      %v3801 = vadd.f32 0.0, %v3800
      %v3802 = vpop.f32.mrf.mxu0
      %3803 = vmatprep.mubr.bf16.mxu0 %v3162
      %3804 = vmatmul.mubr.bf16.gmra.mxu0 %v2906
      %v3805 = vpop.f32.mrf.mxu0
      %v3806 = vadd.f32 0.0, %v3805
      %v3807 = vpop.f32.mrf.mxu0
      %v3808 = vpop.f32.mrf.mxu0
      %v3809 = vadd.f32 0.0, %v3808
      %v3810 = vpop.f32.mrf.mxu0
      %3811 = vmatprep.mubr.bf16.mxu0 %v3165
      %3812 = vmatmul.mubr.bf16.gmra.mxu0 %v2912
      %v3813 = vpop.f32.mrf.mxu0
      %v3814 = vadd.f32 0.0, %v3813
      %v3815 = vpop.f32.mrf.mxu0
      %v3816 = vpop.f32.mrf.mxu0
      %v3817 = vadd.f32 0.0, %v3816
      %v3818 = vpop.f32.mrf.mxu0
      %3819 = vmatprep.mubr.bf16.mxu0 %v3168
      %3820 = vmatmul.mubr.bf16.gmra.mxu0 %v2918
      %v3821 = vpop.f32.mrf.mxu0
      %v3822 = vadd.f32 0.0, %v3821
      %v3823 = vpop.f32.mrf.mxu0
      %v3824 = vpop.f32.mrf.mxu0
      %v3825 = vadd.f32 0.0, %v3824
      %v3826 = vpop.f32.mrf.mxu0
      %3827 = vmatprep.mubr.bf16.mxu0 %v3171
      %3828 = vmatmul.mubr.bf16.gmra.mxu0 %v2924
      %v3829 = vpop.f32.mrf.mxu0
      %v3830 = vadd.f32 0.0, %v3829
      %v3831 = vpop.f32.mrf.mxu0
      %v3832 = vpop.f32.mrf.mxu0
      %v3833 = vadd.f32 0.0, %v3832
      %v3834 = vpop.f32.mrf.mxu0
      %3835 = vmatprep.mubr.bf16.mxu0 %v3174
      %3836 = vmatmul.mubr.bf16.gmra.mxu0 %v2930
      %v3837 = vpop.f32.mrf.mxu0
      %v3838 = vadd.f32 0.0, %v3837
      %v3839 = vpop.f32.mrf.mxu0
      %v3840 = vpop.f32.mrf.mxu0
      %v3841 = vadd.f32 0.0, %v3840
      %v3842 = vpop.f32.mrf.mxu0
      %3843 = vmatprep.mubr.bf16.mxu0 %v3177
      %3844 = vmatmul.mubr.bf16.gmra.mxu0 %v2936
      %v3845 = vpop.f32.mrf.mxu0
      %v3846 = vadd.f32 0.0, %v3845
      %v3847 = vpop.f32.mrf.mxu0
      %v3848 = vpop.f32.mrf.mxu0
      %v3849 = vadd.f32 0.0, %v3848
      %v3850 = vpop.f32.mrf.mxu0
      %3851 = vmatprep.mubr.bf16.mxu0 %v3180
      %3852 = vmatmul.mubr.bf16.gmra.mxu0 %v2942
      %v3853 = vpop.f32.mrf.mxu0
      %v3854 = vadd.f32 0.0, %v3853
      %v3855 = vpop.f32.mrf.mxu0
      %v3856 = vpop.f32.mrf.mxu0
      %v3857 = vadd.f32 0.0, %v3856
      %v3858 = vpop.f32.mrf.mxu0
      %3859 = vmatprep.mubr.bf16.mxu0 %v3183
      %3860 = vmatmul.mubr.bf16.gmra.mxu0 %v2948
      %v3861 = vpop.f32.mrf.mxu0
      %v3862 = vadd.f32 0.0, %v3861
      %v3863 = vpop.f32.mrf.mxu0
      %v3864 = vpop.f32.mrf.mxu0
      %v3865 = vadd.f32 0.0, %v3864
      %v3866 = vpop.f32.mrf.mxu0
      %3867 = vmatprep.mubr.bf16.mxu0 %v3186
      %3868 = vmatmul.mubr.bf16.gmra.mxu0 %v2954
      %v3869 = vpop.f32.mrf.mxu0
      %v3870 = vadd.f32 0.0, %v3869
      %v3871 = vpop.f32.mrf.mxu0
      %v3872 = vpop.f32.mrf.mxu0
      %v3873 = vadd.f32 0.0, %v3872
      %v3874 = vpop.f32.mrf.mxu0
      %3875 = vmatprep.mubr.bf16.mxu0 %v3189
      %3876 = vmatmul.mubr.bf16.gmra.mxu0 %v2960
      %v3877 = vpop.f32.mrf.mxu0
      %v3878 = vadd.f32 0.0, %v3877
      %v3879 = vpop.f32.mrf.mxu0
      %v3880 = vpop.f32.mrf.mxu0
      %v3881 = vadd.f32 0.0, %v3880
      %v3882 = vpop.f32.mrf.mxu0
      %3883 = vmatprep.mubr.bf16.mxu0 %v3192
      %3884 = vmatmul.mubr.bf16.gmra.mxu0 %v2966
      %v3885 = vpop.f32.mrf.mxu0
      %v3886 = vadd.f32 0.0, %v3885
      %v3887 = vpop.f32.mrf.mxu0
      %v3888 = vpop.f32.mrf.mxu0
      %v3889 = vadd.f32 0.0, %v3888
      %v3890 = vpop.f32.mrf.mxu0
      %3891 = vmatprep.mubr.bf16.mxu0 %v3195
      %3892 = vmatmul.mubr.bf16.gmra.mxu0 %v3022
      %v3893 = vpop.f32.mrf.mxu0
      %v3894 = vadd.f32 0.0, %v3893
      %v3895 = vpop.f32.mrf.mxu0
      %v3896 = vpop.f32.mrf.mxu0
      %v3897 = vadd.f32 0.0, %v3896
      %v3898 = vpop.f32.mrf.mxu0
      %3899 = vmatprep.mubr.bf16.mxu0 %v3745
      %3900 = vmatmul.mubr.bf16.gmra.mxu0 %v3618
      %v3901 = vpop.f32.mrf.mxu0
      %v3902 = vadd.f32 0.0, %v3901
      %v3903 = vpop.f32.mrf.mxu0
      %v3904 = vpop.f32.mrf.mxu0
      %v3905 = vadd.f32 0.0, %v3904
      %v3906 = vpop.f32.mrf.mxu0
      %3907 = vdwg.mxu0
      %v3908 = vadd.f32 %v3486, %v3782
      %v3909 = vadd.f32 %v3489, %v3785
      %v3910 = vadd.f32 %v3494, %v3790
      %v3911 = vadd.f32 %v3497, %v3793
      %v3912 = vadd.f32 %v3502, %v3798
      %v3913 = vadd.f32 %v3505, %v3801
      %v3914 = vadd.f32 %v3510, %v3806
      %v3915 = vadd.f32 %v3513, %v3809
      %v3916 = vadd.f32 %v3518, %v3814
      %v3917 = vadd.f32 %v3521, %v3817
      %v3918 = vadd.f32 %v3526, %v3822
      %v3919 = vadd.f32 %v3529, %v3825
      %v3920 = vadd.f32 %v3534, %v3830
      %v3921 = vadd.f32 %v3537, %v3833
      %v3922 = vadd.f32 %v3542, %v3838
      %v3923 = vadd.f32 %v3545, %v3841
      %v3924 = vadd.f32 %v3550, %v3846
      %v3925 = vadd.f32 %v3553, %v3849
      %v3926 = vadd.f32 %v3558, %v3854
      %v3927 = vadd.f32 %v3561, %v3857
      %v3928 = vadd.f32 %v3566, %v3862
      %v3929 = vadd.f32 %v3569, %v3865
      %v3930 = vadd.f32 %v3574, %v3870
      %v3931 = vadd.f32 %v3577, %v3873
      %v3932 = vadd.f32 %v3582, %v3878
      %v3933 = vadd.f32 %v3585, %v3881
      %v3934 = vadd.f32 %v3590, %v3886
      %v3935 = vadd.f32 %v3593, %v3889
      %v3936 = vadd.f32 %v3598, %v3894
      %v3937 = vadd.f32 %v3601, %v3897
      %v3938 = vadd.f32 %v3606, %v3902
      %v3939 = vadd.f32 %v3609, %v3905
      %v3944 = vrot.slane %v2642, 3
      %v3945 = vrot.slane %v2643, 3
      %v3946 = vsel %vm2873, %v3944, %v3945
      %v3947 = vrot.slane %v2802, 3
      %v3948 = vrot.slane %v2804, 3
      %v3949 = vsel %vm2873, %v3947, %v3948
      %s3951 = scalar_lea.vmem %s3, 360
      %v3952 = vld [vmem:[%s3951] sm:$0xf]
      %v3953 = vld [vmem:[%s3951 + $0x4] sm:$0xf]
      %v3954 = vld [vmem:[%s3951 + $0x8] sm:$0xf]
      %v3955 = vld [vmem:[%s3951 + $0xc] sm:$0xf]
      %v3956 = vld [vmem:[%s3951 + $0x10] sm:$0xf]
      %v3957 = vld [vmem:[%s3951 + $0x14] sm:$0xf]
      %v3958 = vld [vmem:[%s3951 + $0x18] sm:$0xf]
      %v3959 = vld [vmem:[%s3951 + $0x1c] sm:$0xf]
      %v3960 = vld [vmem:[%s3951 + $0x20] sm:$0xf]
      %v3961 = vld [vmem:[%s3951 + $0x24] sm:$0xf]
      %v3962 = vld [vmem:[%s3951 + $0x28] sm:$0xf]
      %v3963 = vld [vmem:[%s3951 + $0x2c] sm:$0xf]
      %v3964 = vld [vmem:[%s3951 + $0x30] sm:$0xf]
      %v3965 = vld [vmem:[%s3951 + $0x34] sm:$0xf]
      %v3966 = vld [vmem:[%s3951 + $0x38] sm:$0xf]
      %v3967 = vld [vmem:[%s3951 + $0x3c] sm:$0xf]
      %v3968 = vld [vmem:[%s3951 + $0x40] sm:$0xf]
      %v3969 = vld [vmem:[%s3951 + $0x44] sm:$0xf]
      %v3970 = vld [vmem:[%s3951 + $0x48] sm:$0xf]
      %v3971 = vld [vmem:[%s3951 + $0x4c] sm:$0xf]
      %v3972 = vld [vmem:[%s3951 + $0x50] sm:$0xf]
      %v3973 = vld [vmem:[%s3951 + $0x54] sm:$0xf]
      %v3974 = vld [vmem:[%s3951 + $0x58] sm:$0xf]
      %v3975 = vld [vmem:[%s3951 + $0x5c] sm:$0xf]
      %v3976 = vld [vmem:[%s3951 + $0x60] sm:$0xf]
      %v3977 = vld [vmem:[%s3951 + $0x64] sm:$0xf]
      %v3978 = vld [vmem:[%s3951 + $0x68] sm:$0xf]
      %v3979 = vld [vmem:[%s3951 + $0x6c] sm:$0xf]
      %v3980 = vld [vmem:[%s3951 + $0x70] sm:$0xf]
      %v3981 = vld [vmem:[%s3951 + $0x74] sm:$0xf]
      %v4012 = vunpack.c.l.b16 %v3952
      %v4013 = vunpack.c.l.b16 %v3953
      %v4014 = vunpack.c.l.b16 %v3954
      %v4015 = vunpack.c.l.b16 %v3955
      %v4016 = vunpack.c.l.b16 %v3956
      %v4017 = vunpack.c.l.b16 %v3957
      %v4018 = vunpack.c.l.b16 %v3958
      %v4019 = vunpack.c.l.b16 %v3959
      %v4020 = vunpack.c.l.b16 %v3960
      %v4021 = vunpack.c.l.b16 %v3961
      %v4022 = vunpack.c.l.b16 %v3962
      %v4023 = vunpack.c.l.b16 %v3963
      %v4024 = vunpack.c.l.b16 %v3964
      %v4025 = vunpack.c.l.b16 %v3965
      %v4026 = vunpack.c.l.b16 %v3966
      %v4027 = vunpack.c.l.b16 %v3967
      %v4028 = vunpack.c.l.b16 %v3968
      %v4029 = vunpack.c.l.b16 %v3969
      %v4030 = vunpack.c.l.b16 %v3970
      %v4031 = vunpack.c.l.b16 %v3971
      %v4032 = vunpack.c.l.b16 %v3972
      %v4033 = vunpack.c.l.b16 %v3973
      %v4034 = vunpack.c.l.b16 %v3974
      %v4035 = vunpack.c.l.b16 %v3975
      %v4036 = vunpack.c.l.b16 %v3976
      %v4037 = vunpack.c.l.b16 %v3977
      %v4038 = vunpack.c.l.b16 %v3978
      %v4039 = vunpack.c.l.b16 %v3979
      %v4040 = vunpack.c.l.b16 %v3980
      %v4041 = vunpack.c.l.b16 %v3981
      %v4042 = vpack.c.b16 %v4013, %v4012
      %v4043 = vpack.c.b16 %v4015, %v4014
      %v4044 = vpack.c.b16 %v4017, %v4016
      %v4045 = vpack.c.b16 %v4019, %v4018
      %v4046 = vpack.c.b16 %v4021, %v4020
      %v4047 = vpack.c.b16 %v4023, %v4022
      %v4048 = vpack.c.b16 %v4025, %v4024
      %v4049 = vpack.c.b16 %v4027, %v4026
      %v4050 = vpack.c.b16 %v4029, %v4028
      %v4051 = vpack.c.b16 %v4031, %v4030
      %v4052 = vpack.c.b16 %v4033, %v4032
      %v4053 = vpack.c.b16 %v4035, %v4034
      %v4054 = vpack.c.b16 %v4037, %v4036
      %v4055 = vpack.c.b16 %v4039, %v4038
      %v4056 = vpack.c.b16 %v4041, %v4040
      %v4073 = vsel %vm3148, %v3949, 0
      %4075 = vmatprep.subr.bf16.mxu0 0
      %4076 = vmatpush1.bf16.msra.mxu0 %v4049
      %4077 = vmatprep.subr.bf16.mxu0 0
      %4078 = vmatpush1.bf16.msra.mxu0 %v4048
      %4079 = vmatprep.subr.bf16.mxu0 0
      %4080 = vmatpush1.bf16.msra.mxu0 %v4047
      %4081 = vmatprep.subr.bf16.mxu0 0
      %4082 = vmatpush1.bf16.msra.mxu0 %v4046
      %4083 = vmatprep.subr.bf16.mxu0 0
      %4084 = vmatpush1.bf16.msra.mxu0 %v4045
      %4085 = vmatprep.subr.bf16.mxu0 0
      %4086 = vmatpush1.bf16.msra.mxu0 %v4044
      %4087 = vmatprep.subr.bf16.mxu0 0
      %4088 = vmatpush1.bf16.msra.mxu0 %v4043
      %4089 = vmatprep.subr.bf16.mxu0 0
      %4090 = vmatpush1.bf16.msra.mxu0 %v4042
      %4091 = vmatprep.subr.bf16.mxu0 0
      %4092 = vmatpush2.bf16.msra.mxu0 0
      %4093 = vmatprep.subr.bf16.mxu0 0
      %4094 = vmatpush2.bf16.msra.mxu0 %v4056
      %4095 = vmatprep.subr.bf16.mxu0 0
      %4096 = vmatpush2.bf16.msra.mxu0 %v4055
      %4097 = vmatprep.subr.bf16.mxu0 0
      %4098 = vmatpush2.bf16.msra.mxu0 %v4054
      %4099 = vmatprep.subr.bf16.mxu0 0
      %4100 = vmatpush2.bf16.msra.mxu0 %v4053
      %4101 = vmatprep.subr.bf16.mxu0 0
      %4102 = vmatpush2.bf16.msra.mxu0 %v4052
      %4103 = vmatprep.subr.bf16.mxu0 0
      %4104 = vmatpush2.bf16.msra.mxu0 %v4051
      %4105 = vmatprep.subr.bf16.mxu0 0
      %4106 = vmatpush2.bf16.msra.mxu0 %v4050
      %4107 = vmatprep.mubr.bf16.mxu0 %v3156
      %4108 = vmatmul.mubr.bf16.gmra.mxu0 %v2894
      %v4109 = vpop.f32.mrf.mxu0
      %v4110 = vadd.f32 0.0, %v4109
      %v4111 = vpop.f32.mrf.mxu0
      %v4112 = vpop.f32.mrf.mxu0
      %v4113 = vadd.f32 0.0, %v4112
      %v4114 = vpop.f32.mrf.mxu0
      %4115 = vmatprep.mubr.bf16.mxu0 %v3159
      %4116 = vmatmul.mubr.bf16.gmra.mxu0 %v2900
      %v4117 = vpop.f32.mrf.mxu0
      %v4118 = vadd.f32 0.0, %v4117
      %v4119 = vpop.f32.mrf.mxu0
      %v4120 = vpop.f32.mrf.mxu0
      %v4121 = vadd.f32 0.0, %v4120
      %v4122 = vpop.f32.mrf.mxu0
      %4123 = vmatprep.mubr.bf16.mxu0 %v3162
      %4124 = vmatmul.mubr.bf16.gmra.mxu0 %v2906
      %v4125 = vpop.f32.mrf.mxu0
      %v4126 = vadd.f32 0.0, %v4125
      %v4127 = vpop.f32.mrf.mxu0
      %v4128 = vpop.f32.mrf.mxu0
      %v4129 = vadd.f32 0.0, %v4128
      %v4130 = vpop.f32.mrf.mxu0
      %4131 = vmatprep.mubr.bf16.mxu0 %v3165
      %4132 = vmatmul.mubr.bf16.gmra.mxu0 %v2912
      %v4133 = vpop.f32.mrf.mxu0
      %v4134 = vadd.f32 0.0, %v4133
      %v4135 = vpop.f32.mrf.mxu0
      %v4136 = vpop.f32.mrf.mxu0
      %v4137 = vadd.f32 0.0, %v4136
      %v4138 = vpop.f32.mrf.mxu0
      %4139 = vmatprep.mubr.bf16.mxu0 %v3168
      %4140 = vmatmul.mubr.bf16.gmra.mxu0 %v2918
      %v4141 = vpop.f32.mrf.mxu0
      %v4142 = vadd.f32 0.0, %v4141
      %v4143 = vpop.f32.mrf.mxu0
      %v4144 = vpop.f32.mrf.mxu0
      %v4145 = vadd.f32 0.0, %v4144
      %v4146 = vpop.f32.mrf.mxu0
      %4147 = vmatprep.mubr.bf16.mxu0 %v3171
      %4148 = vmatmul.mubr.bf16.gmra.mxu0 %v2924
      %v4149 = vpop.f32.mrf.mxu0
      %v4150 = vadd.f32 0.0, %v4149
      %v4151 = vpop.f32.mrf.mxu0
      %v4152 = vpop.f32.mrf.mxu0
      %v4153 = vadd.f32 0.0, %v4152
      %v4154 = vpop.f32.mrf.mxu0
      %4155 = vmatprep.mubr.bf16.mxu0 %v3174
      %4156 = vmatmul.mubr.bf16.gmra.mxu0 %v2930
      %v4157 = vpop.f32.mrf.mxu0
      %v4158 = vadd.f32 0.0, %v4157
      %v4159 = vpop.f32.mrf.mxu0
      %v4160 = vpop.f32.mrf.mxu0
      %v4161 = vadd.f32 0.0, %v4160
      %v4162 = vpop.f32.mrf.mxu0
      %4163 = vmatprep.mubr.bf16.mxu0 %v3177
      %4164 = vmatmul.mubr.bf16.gmra.mxu0 %v2936
      %v4165 = vpop.f32.mrf.mxu0
      %v4166 = vadd.f32 0.0, %v4165
      %v4167 = vpop.f32.mrf.mxu0
      %v4168 = vpop.f32.mrf.mxu0
      %v4169 = vadd.f32 0.0, %v4168
      %v4170 = vpop.f32.mrf.mxu0
      %4171 = vmatprep.mubr.bf16.mxu0 %v3180
      %4172 = vmatmul.mubr.bf16.gmra.mxu0 %v2942
      %v4173 = vpop.f32.mrf.mxu0
      %v4174 = vadd.f32 0.0, %v4173
      %v4175 = vpop.f32.mrf.mxu0
      %v4176 = vpop.f32.mrf.mxu0
      %v4177 = vadd.f32 0.0, %v4176
      %v4178 = vpop.f32.mrf.mxu0
      %4179 = vmatprep.mubr.bf16.mxu0 %v3183
      %4180 = vmatmul.mubr.bf16.gmra.mxu0 %v2948
      %v4181 = vpop.f32.mrf.mxu0
      %v4182 = vadd.f32 0.0, %v4181
      %v4183 = vpop.f32.mrf.mxu0
      %v4184 = vpop.f32.mrf.mxu0
      %v4185 = vadd.f32 0.0, %v4184
      %v4186 = vpop.f32.mrf.mxu0
      %4187 = vmatprep.mubr.bf16.mxu0 %v3186
      %4188 = vmatmul.mubr.bf16.gmra.mxu0 %v2954
      %v4189 = vpop.f32.mrf.mxu0
      %v4190 = vadd.f32 0.0, %v4189
      %v4191 = vpop.f32.mrf.mxu0
      %v4192 = vpop.f32.mrf.mxu0
      %v4193 = vadd.f32 0.0, %v4192
      %v4194 = vpop.f32.mrf.mxu0
      %4195 = vmatprep.mubr.bf16.mxu0 %v3189
      %4196 = vmatmul.mubr.bf16.gmra.mxu0 %v2960
      %v4197 = vpop.f32.mrf.mxu0
      %v4198 = vadd.f32 0.0, %v4197
      %v4199 = vpop.f32.mrf.mxu0
      %v4200 = vpop.f32.mrf.mxu0
      %v4201 = vadd.f32 0.0, %v4200
      %v4202 = vpop.f32.mrf.mxu0
      %4203 = vmatprep.mubr.bf16.mxu0 %v3192
      %4204 = vmatmul.mubr.bf16.gmra.mxu0 %v2966
      %v4205 = vpop.f32.mrf.mxu0
      %v4206 = vadd.f32 0.0, %v4205
      %v4207 = vpop.f32.mrf.mxu0
      %v4208 = vpop.f32.mrf.mxu0
      %v4209 = vadd.f32 0.0, %v4208
      %v4210 = vpop.f32.mrf.mxu0
      %4211 = vmatprep.mubr.bf16.mxu0 %v3195
      %4212 = vmatmul.mubr.bf16.gmra.mxu0 %v3022
      %v4213 = vpop.f32.mrf.mxu0
      %v4214 = vadd.f32 0.0, %v4213
      %v4215 = vpop.f32.mrf.mxu0
      %v4216 = vpop.f32.mrf.mxu0
      %v4217 = vadd.f32 0.0, %v4216
      %v4218 = vpop.f32.mrf.mxu0
      %4219 = vmatprep.mubr.bf16.mxu0 %v3745
      %4220 = vmatmul.mubr.bf16.gmra.mxu0 %v3618
      %v4221 = vpop.f32.mrf.mxu0
      %v4222 = vadd.f32 0.0, %v4221
      %v4223 = vpop.f32.mrf.mxu0
      %v4224 = vpop.f32.mrf.mxu0
      %v4225 = vadd.f32 0.0, %v4224
      %v4226 = vpop.f32.mrf.mxu0
      %4227 = vmatprep.mubr.bf16.mxu0 %v4073
      %4228 = vmatmul.mubr.bf16.gmra.mxu0 %v3946
      %v4229 = vpop.f32.mrf.mxu0
      %v4230 = vadd.f32 0.0, %v4229
      %v4231 = vpop.f32.mrf.mxu0
      %v4232 = vpop.f32.mrf.mxu0
      %v4233 = vadd.f32 0.0, %v4232
      %v4234 = vpop.f32.mrf.mxu0
      %4235 = vdwg.mxu0
      %v4236 = vadd.f32 %v3908, %v4110
      %v4237 = vadd.f32 %v3909, %v4113
      %v4238 = vadd.f32 %v3910, %v4118
      %v4239 = vadd.f32 %v3911, %v4121
      %v4240 = vadd.f32 %v3912, %v4126
      %v4241 = vadd.f32 %v3913, %v4129
      %v4242 = vadd.f32 %v3914, %v4134
      %v4243 = vadd.f32 %v3915, %v4137
      %v4244 = vadd.f32 %v3916, %v4142
      %v4245 = vadd.f32 %v3917, %v4145
      %v4246 = vadd.f32 %v3918, %v4150
      %v4247 = vadd.f32 %v3919, %v4153
      %v4248 = vadd.f32 %v3920, %v4158
      %v4249 = vadd.f32 %v3921, %v4161
      %v4250 = vadd.f32 %v3922, %v4166
      %v4251 = vadd.f32 %v3923, %v4169
      %v4252 = vadd.f32 %v3924, %v4174
      %v4253 = vadd.f32 %v3925, %v4177
      %v4254 = vadd.f32 %v3926, %v4182
      %v4255 = vadd.f32 %v3927, %v4185
      %v4256 = vadd.f32 %v3928, %v4190
      %v4257 = vadd.f32 %v3929, %v4193
      %v4258 = vadd.f32 %v3930, %v4198
      %v4259 = vadd.f32 %v3931, %v4201
      %v4260 = vadd.f32 %v3932, %v4206
      %v4261 = vadd.f32 %v3933, %v4209
      %v4262 = vadd.f32 %v3934, %v4214
      %v4263 = vadd.f32 %v3935, %v4217
      %v4264 = vadd.f32 %v3936, %v4222
      %v4265 = vadd.f32 %v3937, %v4225
      %v4266 = vadd.f32 %v3938, %v4230
      %v4267 = vadd.f32 %v3939, %v4233
      %v4272 = vrot.slane %v2645, 3
      %v4273 = vrot.slane %v2646, 3
      %v4274 = vsel %vm2873, %v4272, %v4273
      %v4275 = vrot.slane %v2806, 3
      %v4276 = vrot.slane %v2808, 3
      %v4277 = vsel %vm2873, %v4275, %v4276
      %s4279 = scalar_lea.vmem %s3, 480
      %v4280 = vld [vmem:[%s4279] sm:$0xf]
      %v4281 = vld [vmem:[%s4279 + $0x4] sm:$0xf]
      %v4282 = vld [vmem:[%s4279 + $0x8] sm:$0xf]
      %v4283 = vld [vmem:[%s4279 + $0xc] sm:$0xf]
      %v4284 = vld [vmem:[%s4279 + $0x10] sm:$0xf]
      %v4285 = vld [vmem:[%s4279 + $0x14] sm:$0xf]
      %v4286 = vld [vmem:[%s4279 + $0x18] sm:$0xf]
      %v4287 = vld [vmem:[%s4279 + $0x1c] sm:$0xf]
      %v4288 = vld [vmem:[%s4279 + $0x20] sm:$0xf]
      %v4289 = vld [vmem:[%s4279 + $0x24] sm:$0xf]
      %v4290 = vld [vmem:[%s4279 + $0x28] sm:$0xf]
      %v4291 = vld [vmem:[%s4279 + $0x2c] sm:$0xf]
      %v4292 = vld [vmem:[%s4279 + $0x30] sm:$0xf]
      %v4293 = vld [vmem:[%s4279 + $0x34] sm:$0xf]
      %v4294 = vld [vmem:[%s4279 + $0x38] sm:$0xf]
      %v4295 = vld [vmem:[%s4279 + $0x3c] sm:$0xf]
      %v4296 = vld [vmem:[%s4279 + $0x40] sm:$0xf]
      %v4297 = vld [vmem:[%s4279 + $0x44] sm:$0xf]
      %v4298 = vld [vmem:[%s4279 + $0x48] sm:$0xf]
      %v4299 = vld [vmem:[%s4279 + $0x4c] sm:$0xf]
      %v4300 = vld [vmem:[%s4279 + $0x50] sm:$0xf]
      %v4301 = vld [vmem:[%s4279 + $0x54] sm:$0xf]
      %v4302 = vld [vmem:[%s4279 + $0x58] sm:$0xf]
      %v4303 = vld [vmem:[%s4279 + $0x5c] sm:$0xf]
      %v4304 = vld [vmem:[%s4279 + $0x60] sm:$0xf]
      %v4305 = vld [vmem:[%s4279 + $0x64] sm:$0xf]
      %v4306 = vld [vmem:[%s4279 + $0x68] sm:$0xf]
      %v4307 = vld [vmem:[%s4279 + $0x6c] sm:$0xf]
      %v4308 = vld [vmem:[%s4279 + $0x70] sm:$0xf]
      %v4309 = vld [vmem:[%s4279 + $0x74] sm:$0xf]
      %v4340 = vunpack.c.l.b16 %v4280
      %v4341 = vunpack.c.l.b16 %v4281
      %v4342 = vunpack.c.l.b16 %v4282
      %v4343 = vunpack.c.l.b16 %v4283
      %v4344 = vunpack.c.l.b16 %v4284
      %v4345 = vunpack.c.l.b16 %v4285
      %v4346 = vunpack.c.l.b16 %v4286
      %v4347 = vunpack.c.l.b16 %v4287
      %v4348 = vunpack.c.l.b16 %v4288
      %v4349 = vunpack.c.l.b16 %v4289
      %v4350 = vunpack.c.l.b16 %v4290
      %v4351 = vunpack.c.l.b16 %v4291
      %v4352 = vunpack.c.l.b16 %v4292
      %v4353 = vunpack.c.l.b16 %v4293
      %v4354 = vunpack.c.l.b16 %v4294
      %v4355 = vunpack.c.l.b16 %v4295
      %v4356 = vunpack.c.l.b16 %v4296
      %v4357 = vunpack.c.l.b16 %v4297
      %v4358 = vunpack.c.l.b16 %v4298
      %v4359 = vunpack.c.l.b16 %v4299
      %v4360 = vunpack.c.l.b16 %v4300
      %v4361 = vunpack.c.l.b16 %v4301
      %v4362 = vunpack.c.l.b16 %v4302
      %v4363 = vunpack.c.l.b16 %v4303
      %v4364 = vunpack.c.l.b16 %v4304
      %v4365 = vunpack.c.l.b16 %v4305
      %v4366 = vunpack.c.l.b16 %v4306
      %v4367 = vunpack.c.l.b16 %v4307
      %v4368 = vunpack.c.l.b16 %v4308
      %v4369 = vunpack.c.l.b16 %v4309
      %v4370 = vpack.c.b16 %v4341, %v4340
      %v4371 = vpack.c.b16 %v4343, %v4342
      %v4372 = vpack.c.b16 %v4345, %v4344
      %v4373 = vpack.c.b16 %v4347, %v4346
      %v4374 = vpack.c.b16 %v4349, %v4348
      %v4375 = vpack.c.b16 %v4351, %v4350
      %v4376 = vpack.c.b16 %v4353, %v4352
      %v4377 = vpack.c.b16 %v4355, %v4354
      %v4378 = vpack.c.b16 %v4357, %v4356
      %v4379 = vpack.c.b16 %v4359, %v4358
      %v4380 = vpack.c.b16 %v4361, %v4360
      %v4381 = vpack.c.b16 %v4363, %v4362
      %v4382 = vpack.c.b16 %v4365, %v4364
      %v4383 = vpack.c.b16 %v4367, %v4366
      %v4384 = vpack.c.b16 %v4369, %v4368
      %v4401 = vsel %vm3148, %v4277, 0
      %4403 = vmatprep.subr.bf16.mxu0 0
      %4404 = vmatpush1.bf16.msra.mxu0 %v4377
      %4405 = vmatprep.subr.bf16.mxu0 0
      %4406 = vmatpush1.bf16.msra.mxu0 %v4376
      %4407 = vmatprep.subr.bf16.mxu0 0
      %4408 = vmatpush1.bf16.msra.mxu0 %v4375
      %4409 = vmatprep.subr.bf16.mxu0 0
      %4410 = vmatpush1.bf16.msra.mxu0 %v4374
      %4411 = vmatprep.subr.bf16.mxu0 0
      %4412 = vmatpush1.bf16.msra.mxu0 %v4373
      %4413 = vmatprep.subr.bf16.mxu0 0
      %4414 = vmatpush1.bf16.msra.mxu0 %v4372
      %4415 = vmatprep.subr.bf16.mxu0 0
      %4416 = vmatpush1.bf16.msra.mxu0 %v4371
      %4417 = vmatprep.subr.bf16.mxu0 0
      %4418 = vmatpush1.bf16.msra.mxu0 %v4370
      %4419 = vmatprep.subr.bf16.mxu0 0
      %4420 = vmatpush2.bf16.msra.mxu0 0
      %4421 = vmatprep.subr.bf16.mxu0 0
      %4422 = vmatpush2.bf16.msra.mxu0 %v4384
      %4423 = vmatprep.subr.bf16.mxu0 0
      %4424 = vmatpush2.bf16.msra.mxu0 %v4383
      %4425 = vmatprep.subr.bf16.mxu0 0
      %4426 = vmatpush2.bf16.msra.mxu0 %v4382
      %4427 = vmatprep.subr.bf16.mxu0 0
      %4428 = vmatpush2.bf16.msra.mxu0 %v4381
      %4429 = vmatprep.subr.bf16.mxu0 0
      %4430 = vmatpush2.bf16.msra.mxu0 %v4380
      %4431 = vmatprep.subr.bf16.mxu0 0
      %4432 = vmatpush2.bf16.msra.mxu0 %v4379
      %4433 = vmatprep.subr.bf16.mxu0 0
      %4434 = vmatpush2.bf16.msra.mxu0 %v4378
      %4435 = vmatprep.mubr.bf16.mxu0 %v3159
      %4436 = vmatmul.mubr.bf16.gmra.mxu0 %v2900
      %v4437 = vpop.f32.mrf.mxu0
      %v4438 = vadd.f32 0.0, %v4437
      %v4439 = vpop.f32.mrf.mxu0
      %v4440 = vpop.f32.mrf.mxu0
      %v4441 = vadd.f32 0.0, %v4440
      %v4442 = vpop.f32.mrf.mxu0
      %4443 = vmatprep.mubr.bf16.mxu0 %v3162
      %4444 = vmatmul.mubr.bf16.gmra.mxu0 %v2906
      %v4445 = vpop.f32.mrf.mxu0
      %v4446 = vadd.f32 0.0, %v4445
      %v4447 = vpop.f32.mrf.mxu0
      %v4448 = vpop.f32.mrf.mxu0
      %v4449 = vadd.f32 0.0, %v4448
      %v4450 = vpop.f32.mrf.mxu0
      %4451 = vmatprep.mubr.bf16.mxu0 %v3165
      %4452 = vmatmul.mubr.bf16.gmra.mxu0 %v2912
      %v4453 = vpop.f32.mrf.mxu0
      %v4454 = vadd.f32 0.0, %v4453
      %v4455 = vpop.f32.mrf.mxu0
      %v4456 = vpop.f32.mrf.mxu0
      %v4457 = vadd.f32 0.0, %v4456
      %v4458 = vpop.f32.mrf.mxu0
      %4459 = vmatprep.mubr.bf16.mxu0 %v3168
      %4460 = vmatmul.mubr.bf16.gmra.mxu0 %v2918
      %v4461 = vpop.f32.mrf.mxu0
      %v4462 = vadd.f32 0.0, %v4461
      %v4463 = vpop.f32.mrf.mxu0
      %v4464 = vpop.f32.mrf.mxu0
      %v4465 = vadd.f32 0.0, %v4464
      %v4466 = vpop.f32.mrf.mxu0
      %4467 = vmatprep.mubr.bf16.mxu0 %v3171
      %4468 = vmatmul.mubr.bf16.gmra.mxu0 %v2924
      %v4469 = vpop.f32.mrf.mxu0
      %v4470 = vadd.f32 0.0, %v4469
      %v4471 = vpop.f32.mrf.mxu0
      %v4472 = vpop.f32.mrf.mxu0
      %v4473 = vadd.f32 0.0, %v4472
      %v4474 = vpop.f32.mrf.mxu0
      %4475 = vmatprep.mubr.bf16.mxu0 %v3174
      %4476 = vmatmul.mubr.bf16.gmra.mxu0 %v2930
      %v4477 = vpop.f32.mrf.mxu0
      %v4478 = vadd.f32 0.0, %v4477
      %v4479 = vpop.f32.mrf.mxu0
      %v4480 = vpop.f32.mrf.mxu0
      %v4481 = vadd.f32 0.0, %v4480
      %v4482 = vpop.f32.mrf.mxu0
      %4483 = vmatprep.mubr.bf16.mxu0 %v3177
      %4484 = vmatmul.mubr.bf16.gmra.mxu0 %v2936
      %v4485 = vpop.f32.mrf.mxu0
      %v4486 = vadd.f32 0.0, %v4485
      %v4487 = vpop.f32.mrf.mxu0
      %v4488 = vpop.f32.mrf.mxu0
      %v4489 = vadd.f32 0.0, %v4488
      %v4490 = vpop.f32.mrf.mxu0
      %4491 = vmatprep.mubr.bf16.mxu0 %v3180
      %4492 = vmatmul.mubr.bf16.gmra.mxu0 %v2942
      %v4493 = vpop.f32.mrf.mxu0
      %v4494 = vadd.f32 0.0, %v4493
      %v4495 = vpop.f32.mrf.mxu0
      %v4496 = vpop.f32.mrf.mxu0
      %v4497 = vadd.f32 0.0, %v4496
      %v4498 = vpop.f32.mrf.mxu0
      %4499 = vmatprep.mubr.bf16.mxu0 %v3183
      %4500 = vmatmul.mubr.bf16.gmra.mxu0 %v2948
      %v4501 = vpop.f32.mrf.mxu0
      %v4502 = vadd.f32 0.0, %v4501
      %v4503 = vpop.f32.mrf.mxu0
      %v4504 = vpop.f32.mrf.mxu0
      %v4505 = vadd.f32 0.0, %v4504
      %v4506 = vpop.f32.mrf.mxu0
      %4507 = vmatprep.mubr.bf16.mxu0 %v3186
      %4508 = vmatmul.mubr.bf16.gmra.mxu0 %v2954
      %v4509 = vpop.f32.mrf.mxu0
      %v4510 = vadd.f32 0.0, %v4509
      %v4511 = vpop.f32.mrf.mxu0
      %v4512 = vpop.f32.mrf.mxu0
      %v4513 = vadd.f32 0.0, %v4512
      %v4514 = vpop.f32.mrf.mxu0
      %4515 = vmatprep.mubr.bf16.mxu0 %v3189
      %4516 = vmatmul.mubr.bf16.gmra.mxu0 %v2960
      %v4517 = vpop.f32.mrf.mxu0
      %v4518 = vadd.f32 0.0, %v4517
      %v4519 = vpop.f32.mrf.mxu0
      %v4520 = vpop.f32.mrf.mxu0
      %v4521 = vadd.f32 0.0, %v4520
      %v4522 = vpop.f32.mrf.mxu0
      %4523 = vmatprep.mubr.bf16.mxu0 %v3192
      %4524 = vmatmul.mubr.bf16.gmra.mxu0 %v2966
      %v4525 = vpop.f32.mrf.mxu0
      %v4526 = vadd.f32 0.0, %v4525
      %v4527 = vpop.f32.mrf.mxu0
      %v4528 = vpop.f32.mrf.mxu0
      %v4529 = vadd.f32 0.0, %v4528
      %v4530 = vpop.f32.mrf.mxu0
      %4531 = vmatprep.mubr.bf16.mxu0 %v3195
      %4532 = vmatmul.mubr.bf16.gmra.mxu0 %v3022
      %v4533 = vpop.f32.mrf.mxu0
      %v4534 = vadd.f32 0.0, %v4533
      %v4535 = vpop.f32.mrf.mxu0
      %v4536 = vpop.f32.mrf.mxu0
      %v4537 = vadd.f32 0.0, %v4536
      %v4538 = vpop.f32.mrf.mxu0
      %4539 = vmatprep.mubr.bf16.mxu0 %v3745
      %4540 = vmatmul.mubr.bf16.gmra.mxu0 %v3618
      %v4541 = vpop.f32.mrf.mxu0
      %v4542 = vadd.f32 0.0, %v4541
      %v4543 = vpop.f32.mrf.mxu0
      %v4544 = vpop.f32.mrf.mxu0
      %v4545 = vadd.f32 0.0, %v4544
      %v4546 = vpop.f32.mrf.mxu0
      %4547 = vmatprep.mubr.bf16.mxu0 %v4073
      %4548 = vmatmul.mubr.bf16.gmra.mxu0 %v3946
      %v4549 = vpop.f32.mrf.mxu0
      %v4550 = vadd.f32 0.0, %v4549
      %v4551 = vpop.f32.mrf.mxu0
      %v4552 = vpop.f32.mrf.mxu0
      %v4553 = vadd.f32 0.0, %v4552
      %v4554 = vpop.f32.mrf.mxu0
      %4555 = vmatprep.mubr.bf16.mxu0 %v4401
      %4556 = vmatmul.mubr.bf16.gmra.mxu0 %v4274
      %v4557 = vpop.f32.mrf.mxu0
      %v4558 = vadd.f32 0.0, %v4557
      %v4559 = vpop.f32.mrf.mxu0
      %v4560 = vpop.f32.mrf.mxu0
      %v4561 = vadd.f32 0.0, %v4560
      %v4562 = vpop.f32.mrf.mxu0
      %4563 = vdwg.mxu0
      %v4564 = vadd.f32 %v4236, %v4438
      %v4565 = vadd.f32 %v4237, %v4441
      %v4566 = vadd.f32 %v4238, %v4446
      %v4567 = vadd.f32 %v4239, %v4449
      %v4568 = vadd.f32 %v4240, %v4454
      %v4569 = vadd.f32 %v4241, %v4457
      %v4570 = vadd.f32 %v4242, %v4462
      %v4571 = vadd.f32 %v4243, %v4465
      %v4572 = vadd.f32 %v4244, %v4470
      %v4573 = vadd.f32 %v4245, %v4473
      %v4574 = vadd.f32 %v4246, %v4478
      %v4575 = vadd.f32 %v4247, %v4481
      %v4576 = vadd.f32 %v4248, %v4486
      %v4577 = vadd.f32 %v4249, %v4489
      %v4578 = vadd.f32 %v4250, %v4494
      %v4579 = vadd.f32 %v4251, %v4497
      %v4580 = vadd.f32 %v4252, %v4502
      %v4581 = vadd.f32 %v4253, %v4505
      %v4582 = vadd.f32 %v4254, %v4510
      %v4583 = vadd.f32 %v4255, %v4513
      %v4584 = vadd.f32 %v4256, %v4518
      %v4585 = vadd.f32 %v4257, %v4521
      %v4586 = vadd.f32 %v4258, %v4526
      %v4587 = vadd.f32 %v4259, %v4529
      %v4588 = vadd.f32 %v4260, %v4534
      %v4589 = vadd.f32 %v4261, %v4537
      %v4590 = vadd.f32 %v4262, %v4542
      %v4591 = vadd.f32 %v4263, %v4545
      %v4592 = vadd.f32 %v4264, %v4550
      %v4593 = vadd.f32 %v4265, %v4553
      %v4594 = vadd.f32 %v4266, %v4558
      %v4595 = vadd.f32 %v4267, %v4561
      %v4596 = vld [vmem:[%s8] sm:$0x1]
      %v4598 = vlaneseq
      %v4599 = vshrl.u32 %v4598, 7
      %v4600 = vsub.s32 0, %v4599
      %v4601 = vrot.slane %v4596, %v4600
      %v4603 = vadd.f32 %v4564, %v4601
      %v4604 = vadd.f32 %v4565, %v4601
      %v4605 = vadd.f32 %v4566, %v4601
      %v4606 = vadd.f32 %v4567, %v4601
      %v4607 = vadd.f32 %v4568, %v4601
      %v4608 = vadd.f32 %v4569, %v4601
      %v4609 = vadd.f32 %v4570, %v4601
      %v4610 = vadd.f32 %v4571, %v4601
      %v4611 = vadd.f32 %v4572, %v4601
      %v4612 = vadd.f32 %v4573, %v4601
      %v4613 = vadd.f32 %v4574, %v4601
      %v4614 = vadd.f32 %v4575, %v4601
      %v4615 = vadd.f32 %v4576, %v4601
      %v4616 = vadd.f32 %v4577, %v4601
      %v4617 = vadd.f32 %v4578, %v4601
      %v4618 = vadd.f32 %v4579, %v4601
      %v4619 = vadd.f32 %v4580, %v4601
      %v4620 = vadd.f32 %v4581, %v4601
      %v4621 = vadd.f32 %v4582, %v4601
      %v4622 = vadd.f32 %v4583, %v4601
      %v4623 = vadd.f32 %v4584, %v4601
      %v4624 = vadd.f32 %v4585, %v4601
      %v4625 = vadd.f32 %v4586, %v4601
      %v4626 = vadd.f32 %v4587, %v4601
      %v4627 = vadd.f32 %v4588, %v4601
      %v4628 = vadd.f32 %v4589, %v4601
      %v4629 = vadd.f32 %v4590, %v4601
      %v4630 = vadd.f32 %v4591, %v4601
      %v4631 = vadd.f32 %v4592, %v4601
      %v4632 = vadd.f32 %v4593, %v4601
      %v4633 = vadd.f32 %v4594, %v4601
      %v4634 = vadd.f32 %v4595, %v4601
      %v4635 = vmax.f32 %v4603, 0.0
      %v4636 = vmax.f32 %v4604, 0.0
      %v4637 = vmax.f32 %v4605, 0.0
      %v4638 = vmax.f32 %v4606, 0.0
      %v4639 = vmax.f32 %v4607, 0.0
      %v4640 = vmax.f32 %v4608, 0.0
      %v4641 = vmax.f32 %v4609, 0.0
      %v4642 = vmax.f32 %v4610, 0.0
      %v4643 = vmax.f32 %v4611, 0.0
      %v4644 = vmax.f32 %v4612, 0.0
      %v4645 = vmax.f32 %v4613, 0.0
      %v4646 = vmax.f32 %v4614, 0.0
      %v4647 = vmax.f32 %v4615, 0.0
      %v4648 = vmax.f32 %v4616, 0.0
      %v4649 = vmax.f32 %v4617, 0.0
      %v4650 = vmax.f32 %v4618, 0.0
      %v4651 = vmax.f32 %v4619, 0.0
      %v4652 = vmax.f32 %v4620, 0.0
      %v4653 = vmax.f32 %v4621, 0.0
      %v4654 = vmax.f32 %v4622, 0.0
      %v4655 = vmax.f32 %v4623, 0.0
      %v4656 = vmax.f32 %v4624, 0.0
      %v4657 = vmax.f32 %v4625, 0.0
      %v4658 = vmax.f32 %v4626, 0.0
      %v4659 = vmax.f32 %v4627, 0.0
      %v4660 = vmax.f32 %v4628, 0.0
      %v4661 = vmax.f32 %v4629, 0.0
      %v4662 = vmax.f32 %v4630, 0.0
      %v4663 = vmax.f32 %v4631, 0.0
      %v4664 = vmax.f32 %v4632, 0.0
      %v4665 = vmax.f32 %v4633, 0.0
      %v4666 = vmax.f32 %v4634, 0.0
      %v4667 = vpack.c.bf16 %v4636, %v4635
      %v4668 = vpack.c.bf16 %v4638, %v4637
      %v4669 = vpack.c.bf16 %v4640, %v4639
      %v4670 = vpack.c.bf16 %v4642, %v4641
      %v4671 = vpack.c.bf16 %v4644, %v4643
      %v4672 = vpack.c.bf16 %v4646, %v4645
      %v4673 = vpack.c.bf16 %v4648, %v4647
      %v4674 = vpack.c.bf16 %v4650, %v4649
      %v4675 = vpack.c.bf16 %v4652, %v4651
      %v4676 = vpack.c.bf16 %v4654, %v4653
      %v4677 = vpack.c.bf16 %v4656, %v4655
      %v4678 = vpack.c.bf16 %v4658, %v4657
      %v4679 = vpack.c.bf16 %v4660, %v4659
      %v4680 = vpack.c.bf16 %v4662, %v4661
      %v4681 = vpack.c.bf16 %v4664, %v4663
      %v4682 = vpack.c.bf16 %v4666, %v4665
      %vm4683 = vcmask 519168
      %4684 = vst.msk [vmem:[#allocation3] sm:$0xf] %vm4683, 0
      %4685 = vst.msk [vmem:[#allocation3 + $0x4] sm:$0xf] %vm4683, 0
      %4686 = vst.msk [vmem:[#allocation3 + $0x8] sm:$0xf] %vm4683, 0
      %4687 = vst.msk [vmem:[#allocation3 + $0xc] sm:$0xf] %vm4683, 0
      %s4688 = scalar_lea.vmem [#allocation3], 272
      %4689 = vst.msk [vmem:[%s4688] sm:$0xf] %vm4683, 0
      %4690 = vst.msk [vmem:[%s4688 + $0x4] sm:$0xf] %vm4683, 0
      %4691 = vst.msk [vmem:[%s4688 + $0x8] sm:$0xf] %vm4683, 0
      %4692 = vst.msk [vmem:[%s4688 + $0xc] sm:$0xf] %vm4683, 0
      %vm4693 = vcmask 519171
      %vm4694 = vsmask.f32 7950
      %vm4695 = vmand %vm4693, %vm4694
      %v4696 = vld [vmem:[#allocation3] sm:$0x8]
      %v4697 = vsel %vm4695, 0, %v4696
      %4698 = vst [vmem:[#allocation3] sm:$0x8] %v4697
      %v4699 = vld [vmem:[#allocation3 + $0x10] sm:$0x8]
      %v4700 = vsel %vm4695, 0, %v4699
      %4701 = vst [vmem:[#allocation3 + $0x10] sm:$0x8] %v4700
      %v4702 = vld [vmem:[#allocation3 + $0x20] sm:$0x8]
      %v4703 = vsel %vm4695, 0, %v4702
      %4704 = vst [vmem:[#allocation3 + $0x20] sm:$0x8] %v4703
      %v4705 = vld [vmem:[#allocation3 + $0x30] sm:$0x8]
      %v4706 = vsel %vm4695, 0, %v4705
      %4707 = vst [vmem:[#allocation3 + $0x30] sm:$0x8] %v4706
      %v4708 = vld [vmem:[#allocation3 + $0x40] sm:$0x8]
      %v4709 = vsel %vm4695, 0, %v4708
      %4710 = vst [vmem:[#allocation3 + $0x40] sm:$0x8] %v4709
      %v4711 = vld [vmem:[#allocation3 + $0x50] sm:$0x8]
      %v4712 = vsel %vm4695, 0, %v4711
      %4713 = vst [vmem:[#allocation3 + $0x50] sm:$0x8] %v4712
      %v4714 = vld [vmem:[#allocation3 + $0x60] sm:$0x8]
      %v4715 = vsel %vm4695, 0, %v4714
      %4716 = vst [vmem:[#allocation3 + $0x60] sm:$0x8] %v4715
      %v4717 = vld [vmem:[#allocation3 + $0x70] sm:$0x8]
      %v4718 = vsel %vm4695, 0, %v4717
      %4719 = vst [vmem:[#allocation3 + $0x70] sm:$0x8] %v4718
      %v4720 = vld [vmem:[#allocation3 + $0x80] sm:$0x8]
      %v4721 = vsel %vm4695, 0, %v4720
      %4722 = vst [vmem:[#allocation3 + $0x80] sm:$0x8] %v4721
      %v4723 = vld [vmem:[#allocation3 + $0x90] sm:$0x8]
      %v4724 = vsel %vm4695, 0, %v4723
      %4725 = vst [vmem:[#allocation3 + $0x90] sm:$0x8] %v4724
      %v4726 = vld [vmem:[#allocation3 + $0xa0] sm:$0x8]
      %v4727 = vsel %vm4695, 0, %v4726
      %4728 = vst [vmem:[#allocation3 + $0xa0] sm:$0x8] %v4727
      %v4729 = vld [vmem:[#allocation3 + $0xb0] sm:$0x8]
      %v4730 = vsel %vm4695, 0, %v4729
      %4731 = vst [vmem:[#allocation3 + $0xb0] sm:$0x8] %v4730
      %v4732 = vld [vmem:[#allocation3 + $0xc0] sm:$0x8]
      %v4733 = vsel %vm4695, 0, %v4732
      %4734 = vst [vmem:[#allocation3 + $0xc0] sm:$0x8] %v4733
      %v4735 = vld [vmem:[#allocation3 + $0xd0] sm:$0x8]
      %v4736 = vsel %vm4695, 0, %v4735
      %4737 = vst [vmem:[#allocation3 + $0xd0] sm:$0x8] %v4736
      %v4738 = vld [vmem:[#allocation3 + $0xe0] sm:$0x8]
      %v4739 = vsel %vm4695, 0, %v4738
      %4740 = vst [vmem:[#allocation3 + $0xe0] sm:$0x8] %v4739
      %v4741 = vld [vmem:[#allocation3 + $0xf0] sm:$0x8]
      %v4742 = vsel %vm4695, 0, %v4741
      %4743 = vst [vmem:[#allocation3 + $0xf0] sm:$0x8] %v4742
      %v4744 = vld [vmem:[#allocation3 + $0x100] sm:$0x8]
      %v4745 = vsel %vm4695, 0, %v4744
      %4746 = vst [vmem:[#allocation3 + $0x100] sm:$0x8] %v4745
      %v4747 = vld [vmem:[#allocation3 + $0x110] sm:$0x8]
      %v4748 = vsel %vm4695, 0, %v4747
      %4749 = vst [vmem:[#allocation3 + $0x110] sm:$0x8] %v4748
      %vm4750 = vcmask 516096
      %vm4751 = vsmask.f32 256
      %vm4752 = vmand %vm4750, %vm4751
      %v4753 = vld [vmem:[#allocation3 + $0xc] sm:$0x1]
      %v4754 = vsel %vm4752, 0, %v4753
      %4755 = vst [vmem:[#allocation3 + $0xc] sm:$0x1] %v4754
      %v4756 = vld [vmem:[#allocation3 + $0x1c] sm:$0x1]
      %v4757 = vsel %vm4752, 0, %v4756
      %4758 = vst [vmem:[#allocation3 + $0x1c] sm:$0x1] %v4757
      %v4759 = vld [vmem:[#allocation3 + $0x2c] sm:$0x1]
      %v4760 = vsel %vm4752, 0, %v4759
      %4761 = vst [vmem:[#allocation3 + $0x2c] sm:$0x1] %v4760
      %v4762 = vld [vmem:[#allocation3 + $0x3c] sm:$0x1]
      %v4763 = vsel %vm4752, 0, %v4762
      %4764 = vst [vmem:[#allocation3 + $0x3c] sm:$0x1] %v4763
      %v4765 = vld [vmem:[#allocation3 + $0x4c] sm:$0x1]
      %v4766 = vsel %vm4752, 0, %v4765
      %4767 = vst [vmem:[#allocation3 + $0x4c] sm:$0x1] %v4766
      %v4768 = vld [vmem:[#allocation3 + $0x5c] sm:$0x1]
      %v4769 = vsel %vm4752, 0, %v4768
      %4770 = vst [vmem:[#allocation3 + $0x5c] sm:$0x1] %v4769
      %v4771 = vld [vmem:[#allocation3 + $0x6c] sm:$0x1]
      %v4772 = vsel %vm4752, 0, %v4771
      %4773 = vst [vmem:[#allocation3 + $0x6c] sm:$0x1] %v4772
      %v4774 = vld [vmem:[#allocation3 + $0x7c] sm:$0x1]
      %v4775 = vsel %vm4752, 0, %v4774
      %4776 = vst [vmem:[#allocation3 + $0x7c] sm:$0x1] %v4775
      %v4777 = vld [vmem:[#allocation3 + $0x8c] sm:$0x1]
      %v4778 = vsel %vm4752, 0, %v4777
      %4779 = vst [vmem:[#allocation3 + $0x8c] sm:$0x1] %v4778
      %v4780 = vld [vmem:[#allocation3 + $0x9c] sm:$0x1]
      %v4781 = vsel %vm4752, 0, %v4780
      %4782 = vst [vmem:[#allocation3 + $0x9c] sm:$0x1] %v4781
      %v4783 = vld [vmem:[#allocation3 + $0xac] sm:$0x1]
      %v4784 = vsel %vm4752, 0, %v4783
      %4785 = vst [vmem:[#allocation3 + $0xac] sm:$0x1] %v4784
      %v4786 = vld [vmem:[#allocation3 + $0xbc] sm:$0x1]
      %v4787 = vsel %vm4752, 0, %v4786
      %4788 = vst [vmem:[#allocation3 + $0xbc] sm:$0x1] %v4787
      %v4789 = vld [vmem:[#allocation3 + $0xcc] sm:$0x1]
      %v4790 = vsel %vm4752, 0, %v4789
      %4791 = vst [vmem:[#allocation3 + $0xcc] sm:$0x1] %v4790
      %v4792 = vld [vmem:[#allocation3 + $0xdc] sm:$0x1]
      %v4793 = vsel %vm4752, 0, %v4792
      %4794 = vst [vmem:[#allocation3 + $0xdc] sm:$0x1] %v4793
      %v4795 = vld [vmem:[#allocation3 + $0xec] sm:$0x1]
      %v4796 = vsel %vm4752, 0, %v4795
      %4797 = vst [vmem:[#allocation3 + $0xec] sm:$0x1] %v4796
      %v4798 = vld [vmem:[#allocation3 + $0xfc] sm:$0x1]
      %v4799 = vsel %vm4752, 0, %v4798
      %4800 = vst [vmem:[#allocation3 + $0xfc] sm:$0x1] %v4799
      %v4801 = vld [vmem:[#allocation3 + $0x10c] sm:$0x1]
      %v4802 = vsel %vm4752, 0, %v4801
      %4803 = vst [vmem:[#allocation3 + $0x10c] sm:$0x1] %v4802
      %v4804 = vld [vmem:[#allocation3 + $0x11c] sm:$0x1]
      %v4805 = vsel %vm4752, 0, %v4804
      %4806 = vst [vmem:[#allocation3 + $0x11c] sm:$0x1] %v4805
      %v4823 = vunpack.c.l.b16 %v797
      %v4824 = vunpack.c.h.b16 %v797
      %v4825 = vunpack.c.l.b16 %v798
      %v4826 = vunpack.c.h.b16 %v798
      %v4827 = vunpack.c.l.b16 %v799
      %v4828 = vunpack.c.h.b16 %v799
      %v4829 = vunpack.c.l.b16 %v800
      %v4830 = vunpack.c.h.b16 %v800
      %v4831 = vunpack.c.l.b16 %v801
      %v4832 = vunpack.c.h.b16 %v801
      %v4833 = vunpack.c.l.b16 %v802
      %v4834 = vunpack.c.h.b16 %v802
      %v4835 = vunpack.c.l.b16 %v803
      %v4836 = vunpack.c.h.b16 %v803
      %v4837 = vunpack.c.l.b16 %v804
      %v4838 = vunpack.c.h.b16 %v804
      %v4839 = vunpack.c.l.b16 %v805
      %v4840 = vunpack.c.h.b16 %v805
      %v4841 = vunpack.c.l.b16 %v806
      %v4842 = vunpack.c.h.b16 %v806
      %v4843 = vunpack.c.l.b16 %v807
      %v4844 = vunpack.c.h.b16 %v807
      %v4845 = vunpack.c.l.b16 %v808
      %v4846 = vunpack.c.h.b16 %v808
      %v4847 = vunpack.c.l.b16 %v809
      %v4848 = vunpack.c.h.b16 %v809
      %v4849 = vunpack.c.l.b16 %v810
      %v4850 = vunpack.c.h.b16 %v810
      %v4851 = vunpack.c.l.b16 %v811
      %v4852 = vunpack.c.h.b16 %v811
      %v4853 = vunpack.c.l.b16 %v812
      %v4854 = vunpack.c.h.b16 %v812
      %v4855 = vpack.c.b16 %v4823, %v889
      %v4856 = vpack.c.b16 %v4824, %v890
      %v4857 = vpack.c.b16 %v4825, %v891
      %v4858 = vpack.c.b16 %v4826, %v892
      %v4859 = vpack.c.b16 %v4827, %v893
      %v4860 = vpack.c.b16 %v4828, %v894
      %v4861 = vpack.c.b16 %v4829, %v895
      %v4862 = vpack.c.b16 %v4830, %v896
      %v4863 = vpack.c.b16 %v4831, %v897
      %v4864 = vpack.c.b16 %v4832, %v898
      %v4865 = vpack.c.b16 %v4833, %v899
      %v4866 = vpack.c.b16 %v4834, %v900
      %v4867 = vpack.c.b16 %v4835, %v901
      %v4868 = vpack.c.b16 %v4836, %v902
      %v4869 = vpack.c.b16 %v4837, %v903
      %v4870 = vpack.c.b16 %v4838, %v904
      %v4871 = vpack.c.b16 %v4839, %v905
      %v4872 = vpack.c.b16 %v4840, %v906
      %v4873 = vpack.c.b16 %v4841, %v907
      %v4874 = vpack.c.b16 %v4842, %v908
      %v4875 = vpack.c.b16 %v4843, %v909
      %v4876 = vpack.c.b16 %v4844, %v910
      %v4877 = vpack.c.b16 %v4845, %v911
      %v4878 = vpack.c.b16 %v4846, %v912
      %v4879 = vpack.c.b16 %v4847, %v913
      %v4880 = vpack.c.b16 %v4848, %v914
      %v4881 = vpack.c.b16 %v4849, %v915
      %v4882 = vpack.c.b16 %v4850, %v916
      %v4883 = vpack.c.b16 %v4851, %v917
      %v4884 = vpack.c.b16 %v4852, %v918
      %v4885 = vpack.c.b16 %v4853, %v919
      %v4886 = vpack.c.b16 %v4854, %v920
      %4887 = vrot.lane.b32.xlu0 %v4855, 16
      %v4888 = vpop.permute.xlu0 %4887
      %4889 = vrot.lane.b32.xlu0 %v4856, 16
      %v4890 = vpop.permute.xlu0 %4889
      %4891 = vrot.lane.b32.xlu0 %v4857, 16
      %v4892 = vpop.permute.xlu0 %4891
      %4893 = vrot.lane.b32.xlu0 %v4858, 16
      %v4894 = vpop.permute.xlu0 %4893
      %4895 = vrot.lane.b32.xlu0 %v4859, 16
      %v4896 = vpop.permute.xlu0 %4895
      %4897 = vrot.lane.b32.xlu0 %v4860, 16
      %v4898 = vpop.permute.xlu0 %4897
      %4899 = vrot.lane.b32.xlu0 %v4861, 16
      %v4900 = vpop.permute.xlu0 %4899
      %4901 = vrot.lane.b32.xlu0 %v4862, 16
      %v4902 = vpop.permute.xlu0 %4901
      %4903 = vrot.lane.b32.xlu0 %v4863, 16
      %v4904 = vpop.permute.xlu0 %4903
      %4905 = vrot.lane.b32.xlu0 %v4864, 16
      %v4906 = vpop.permute.xlu0 %4905
      %4907 = vrot.lane.b32.xlu0 %v4865, 16
      %v4908 = vpop.permute.xlu0 %4907
      %4909 = vrot.lane.b32.xlu0 %v4866, 16
      %v4910 = vpop.permute.xlu0 %4909
      %4911 = vrot.lane.b32.xlu0 %v4867, 16
      %v4912 = vpop.permute.xlu0 %4911
      %4913 = vrot.lane.b32.xlu0 %v4868, 16
      %v4914 = vpop.permute.xlu0 %4913
      %4915 = vrot.lane.b32.xlu0 %v4869, 16
      %v4916 = vpop.permute.xlu0 %4915
      %4917 = vrot.lane.b32.xlu0 %v4870, 16
      %v4918 = vpop.permute.xlu0 %4917
      %4919 = vrot.lane.b32.xlu0 %v4871, 16
      %v4920 = vpop.permute.xlu0 %4919
      %4921 = vrot.lane.b32.xlu0 %v4872, 16
      %v4922 = vpop.permute.xlu0 %4921
      %4923 = vrot.lane.b32.xlu0 %v4873, 16
      %v4924 = vpop.permute.xlu0 %4923
      %4925 = vrot.lane.b32.xlu0 %v4874, 16
      %v4926 = vpop.permute.xlu0 %4925
      %4927 = vrot.lane.b32.xlu0 %v4875, 16
      %v4928 = vpop.permute.xlu0 %4927
      %4929 = vrot.lane.b32.xlu0 %v4876, 16
      %v4930 = vpop.permute.xlu0 %4929
      %4931 = vrot.lane.b32.xlu0 %v4877, 16
      %v4932 = vpop.permute.xlu0 %4931
      %4933 = vrot.lane.b32.xlu0 %v4878, 16
      %v4934 = vpop.permute.xlu0 %4933
      %4935 = vrot.lane.b32.xlu0 %v4879, 16
      %v4936 = vpop.permute.xlu0 %4935
      %4937 = vrot.lane.b32.xlu0 %v4880, 16
      %v4938 = vpop.permute.xlu0 %4937
      %4939 = vrot.lane.b32.xlu0 %v4881, 16
      %v4940 = vpop.permute.xlu0 %4939
      %4941 = vrot.lane.b32.xlu0 %v4882, 16
      %v4942 = vpop.permute.xlu0 %4941
      %4943 = vrot.lane.b32.xlu0 %v4883, 16
      %v4944 = vpop.permute.xlu0 %4943
      %4945 = vrot.lane.b32.xlu0 %v4884, 16
      %v4946 = vpop.permute.xlu0 %4945
      %4947 = vrot.lane.b32.xlu0 %v4885, 16
      %v4948 = vpop.permute.xlu0 %4947
      %4949 = vrot.lane.b32.xlu0 %v4886, 16
      %v4950 = vpop.permute.xlu0 %4949
      %v4951 = vrot.slane %v4888, 4
      %v4952 = vrot.slane %v4890, 4
      %v4953 = vrot.slane %v4892, 4
      %v4954 = vrot.slane %v4894, 4
      %v4955 = vrot.slane %v4896, 4
      %v4956 = vrot.slane %v4898, 4
      %v4957 = vrot.slane %v4900, 4
      %v4958 = vrot.slane %v4902, 4
      %v4959 = vrot.slane %v4904, 4
      %v4960 = vrot.slane %v4906, 4
      %v4961 = vrot.slane %v4908, 4
      %v4962 = vrot.slane %v4910, 4
      %v4963 = vrot.slane %v4912, 4
      %v4964 = vrot.slane %v4914, 4
      %v4965 = vrot.slane %v4916, 4
      %v4966 = vrot.slane %v4918, 4
      %v4967 = vrot.slane %v4920, 4
      %v4968 = vrot.slane %v4922, 4
      %v4969 = vrot.slane %v4924, 4
      %v4970 = vrot.slane %v4926, 4
      %v4971 = vrot.slane %v4928, 4
      %v4972 = vrot.slane %v4930, 4
      %v4973 = vrot.slane %v4932, 4
      %v4974 = vrot.slane %v4934, 4
      %v4975 = vrot.slane %v4936, 4
      %v4976 = vrot.slane %v4938, 4
      %v4977 = vrot.slane %v4940, 4
      %v4978 = vrot.slane %v4942, 4
      %v4979 = vrot.slane %v4944, 4
      %v4980 = vrot.slane %v4946, 4
      %v4981 = vrot.slane %v4948, 4
      %v4982 = vrot.slane %v4950, 4
      %vm4983 = vcmask 130048
      %v4984 = vsel %vm4983, %v4888, %v4951
      %v4985 = vsel %vm4983, %v4890, %v4952
      %v4986 = vsel %vm4983, %v4892, %v4953
      %v4987 = vsel %vm4983, %v4894, %v4954
      %v4988 = vsel %vm4983, %v4896, %v4955
      %v4989 = vsel %vm4983, %v4898, %v4956
      %v4990 = vsel %vm4983, %v4900, %v4957
      %v4991 = vsel %vm4983, %v4902, %v4958
      %v4992 = vsel %vm4983, %v4904, %v4959
      %v4993 = vsel %vm4983, %v4906, %v4960
      %v4994 = vsel %vm4983, %v4908, %v4961
      %v4995 = vsel %vm4983, %v4910, %v4962
      %v4996 = vsel %vm4983, %v4912, %v4963
      %v4997 = vsel %vm4983, %v4914, %v4964
      %v4998 = vsel %vm4983, %v4916, %v4965
      %v4999 = vsel %vm4983, %v4918, %v4966
      %v5000 = vsel %vm4983, %v4920, %v4967
      %v5001 = vsel %vm4983, %v4922, %v4968
      %v5002 = vsel %vm4983, %v4924, %v4969
      %v5003 = vsel %vm4983, %v4926, %v4970
      %v5004 = vsel %vm4983, %v4928, %v4971
      %v5005 = vsel %vm4983, %v4930, %v4972
      %v5006 = vsel %vm4983, %v4932, %v4973
      %v5007 = vsel %vm4983, %v4934, %v4974
      %v5008 = vsel %vm4983, %v4936, %v4975
      %v5009 = vsel %vm4983, %v4938, %v4976
      %v5010 = vsel %vm4983, %v4940, %v4977
      %v5011 = vsel %vm4983, %v4942, %v4978
      %v5012 = vsel %vm4983, %v4944, %v4979
      %v5013 = vsel %vm4983, %v4946, %v4980
      %v5014 = vsel %vm4983, %v4948, %v4981
      %v5015 = vsel %vm4983, %v4950, %v4982
      %s5048 = scalar_lea.vmem [#allocation3], 16
      %5049 = vst.msk [vmem:[%s5048 + $0x4] sm:$0xf] %vm4683, %v4984
      %5050 = vst.msk [vmem:[%s5048 + $0x8] sm:$0xf] %vm4683, %v4985
      %5051 = vst.msk [vmem:[%s5048 + $0x14] sm:$0xf] %vm4683, %v4986
      %5052 = vst.msk [vmem:[%s5048 + $0x18] sm:$0xf] %vm4683, %v4987
      %5053 = vst.msk [vmem:[%s5048 + $0x24] sm:$0xf] %vm4683, %v4988
      %5054 = vst.msk [vmem:[%s5048 + $0x28] sm:$0xf] %vm4683, %v4989
      %5055 = vst.msk [vmem:[%s5048 + $0x34] sm:$0xf] %vm4683, %v4990
      %5056 = vst.msk [vmem:[%s5048 + $0x38] sm:$0xf] %vm4683, %v4991
      %5057 = vst.msk [vmem:[%s5048 + $0x44] sm:$0xf] %vm4683, %v4992
      %5058 = vst.msk [vmem:[%s5048 + $0x48] sm:$0xf] %vm4683, %v4993
      %5059 = vst.msk [vmem:[%s5048 + $0x54] sm:$0xf] %vm4683, %v4994
      %5060 = vst.msk [vmem:[%s5048 + $0x58] sm:$0xf] %vm4683, %v4995
      %5061 = vst.msk [vmem:[%s5048 + $0x64] sm:$0xf] %vm4683, %v4996
      %5062 = vst.msk [vmem:[%s5048 + $0x68] sm:$0xf] %vm4683, %v4997
      %5063 = vst.msk [vmem:[%s5048 + $0x74] sm:$0xf] %vm4683, %v4998
      %5064 = vst.msk [vmem:[%s5048 + $0x78] sm:$0xf] %vm4683, %v4999
      %5065 = vst.msk [vmem:[%s5048 + $0x84] sm:$0xf] %vm4683, %v5000
      %5066 = vst.msk [vmem:[%s5048 + $0x88] sm:$0xf] %vm4683, %v5001
      %5067 = vst.msk [vmem:[%s5048 + $0x94] sm:$0xf] %vm4683, %v5002
      %5068 = vst.msk [vmem:[%s5048 + $0x98] sm:$0xf] %vm4683, %v5003
      %5069 = vst.msk [vmem:[%s5048 + $0xa4] sm:$0xf] %vm4683, %v5004
      %5070 = vst.msk [vmem:[%s5048 + $0xa8] sm:$0xf] %vm4683, %v5005
      %5071 = vst.msk [vmem:[%s5048 + $0xb4] sm:$0xf] %vm4683, %v5006
      %5072 = vst.msk [vmem:[%s5048 + $0xb8] sm:$0xf] %vm4683, %v5007
      %5073 = vst.msk [vmem:[%s5048 + $0xc4] sm:$0xf] %vm4683, %v5008
      %5074 = vst.msk [vmem:[%s5048 + $0xc8] sm:$0xf] %vm4683, %v5009
      %5075 = vst.msk [vmem:[%s5048 + $0xd4] sm:$0xf] %vm4683, %v5010
      %5076 = vst.msk [vmem:[%s5048 + $0xd8] sm:$0xf] %vm4683, %v5011
      %5077 = vst.msk [vmem:[%s5048 + $0xe4] sm:$0xf] %vm4683, %v5012
      %5078 = vst.msk [vmem:[%s5048 + $0xe8] sm:$0xf] %vm4683, %v5013
      %5079 = vst.msk [vmem:[%s5048 + $0xf4] sm:$0xf] %vm4683, %v5014
      %5080 = vst.msk [vmem:[%s5048 + $0xf8] sm:$0xf] %vm4683, %v5015
      %v5081 = vld [vmem:[#allocation3] sm:$0x8]
      %v5082 = vld [vmem:[#allocation3 + $0x4] sm:$0xf]
      %v5083 = vld [vmem:[#allocation3 + $0x8] sm:$0xf]
      %v5084 = vld [vmem:[#allocation3 + $0x10] sm:$0x8]
      %v5085 = vld [vmem:[#allocation3 + $0x14] sm:$0xf]
      %v5086 = vld [vmem:[#allocation3 + $0x18] sm:$0xf]
      %v5087 = vld [vmem:[#allocation3 + $0x20] sm:$0x8]
      %v5088 = vld [vmem:[#allocation3 + $0x24] sm:$0xf]
      %v5089 = vld [vmem:[#allocation3 + $0x28] sm:$0xf]
      %v5090 = vld [vmem:[#allocation3 + $0x30] sm:$0x8]
      %v5091 = vld [vmem:[#allocation3 + $0x34] sm:$0xf]
      %v5092 = vld [vmem:[#allocation3 + $0x38] sm:$0xf]
      %v5093 = vld [vmem:[#allocation3 + $0x40] sm:$0x8]
      %v5094 = vld [vmem:[#allocation3 + $0x44] sm:$0xf]
      %v5095 = vld [vmem:[#allocation3 + $0x48] sm:$0xf]
      %v5096 = vld [vmem:[#allocation3 + $0x50] sm:$0x8]
      %v5097 = vld [vmem:[#allocation3 + $0x54] sm:$0xf]
      %v5098 = vld [vmem:[#allocation3 + $0x58] sm:$0xf]
      %v5099 = vld [vmem:[#allocation3 + $0x60] sm:$0x8]
      %v5100 = vld [vmem:[#allocation3 + $0x64] sm:$0xf]
      %v5101 = vld [vmem:[#allocation3 + $0x68] sm:$0xf]
      %v5102 = vld [vmem:[#allocation3 + $0x70] sm:$0x8]
      %v5103 = vld [vmem:[#allocation3 + $0x74] sm:$0xf]
      %v5104 = vld [vmem:[#allocation3 + $0x78] sm:$0xf]
      %v5105 = vld [vmem:[#allocation3 + $0x80] sm:$0x8]
      %v5106 = vld [vmem:[#allocation3 + $0x84] sm:$0xf]
      %v5107 = vld [vmem:[#allocation3 + $0x88] sm:$0xf]
      %v5108 = vld [vmem:[#allocation3 + $0x90] sm:$0x8]
      %v5109 = vld [vmem:[#allocation3 + $0x94] sm:$0xf]
      %v5110 = vld [vmem:[#allocation3 + $0x98] sm:$0xf]
      %v5111 = vld [vmem:[#allocation3 + $0xa0] sm:$0x8]
      %v5112 = vld [vmem:[#allocation3 + $0xa4] sm:$0xf]
      %v5113 = vld [vmem:[#allocation3 + $0xa8] sm:$0xf]
      %v5114 = vld [vmem:[#allocation3 + $0xb0] sm:$0x8]
      %v5115 = vld [vmem:[#allocation3 + $0xb4] sm:$0xf]
      %v5116 = vld [vmem:[#allocation3 + $0xb8] sm:$0xf]
      %v5117 = vld [vmem:[#allocation3 + $0xc0] sm:$0x8]
      %v5118 = vld [vmem:[#allocation3 + $0xc4] sm:$0xf]
      %v5119 = vld [vmem:[#allocation3 + $0xc8] sm:$0xf]
      %v5120 = vld [vmem:[#allocation3 + $0xd0] sm:$0x8]
      %v5121 = vld [vmem:[#allocation3 + $0xd4] sm:$0xf]
      %v5122 = vld [vmem:[#allocation3 + $0xd8] sm:$0xf]
      %v5123 = vld [vmem:[#allocation3 + $0xe0] sm:$0x8]
      %v5124 = vld [vmem:[#allocation3 + $0xe4] sm:$0xf]
      %v5125 = vld [vmem:[#allocation3 + $0xe8] sm:$0xf]
      %v5126 = vld [vmem:[#allocation3 + $0xf0] sm:$0x8]
      %v5127 = vld [vmem:[#allocation3 + $0xf4] sm:$0xf]
      %v5128 = vld [vmem:[#allocation3 + $0xf8] sm:$0xf]
      %v5129 = vld [vmem:[#allocation3 + $0x100] sm:$0x8]
      %v5130 = vld [vmem:[#allocation3 + $0x104] sm:$0xf]
      %v5131 = vld [vmem:[#allocation3 + $0x108] sm:$0xf]
      %v5132 = vld [vmem:[#allocation3 + $0x110] sm:$0x8]
      %v5133 = vld [vmem:[#allocation3 + $0x114] sm:$0xf]
      %v5134 = vld [vmem:[#allocation3 + $0x118] sm:$0xf]
      %v5135 = vld [vmem:[#allocation3 + $0xc] sm:$0x1]
      %v5136 = vld [vmem:[#allocation3 + $0x1c] sm:$0x1]
      %v5137 = vld [vmem:[#allocation3 + $0x2c] sm:$0x1]
      %v5138 = vld [vmem:[#allocation3 + $0x3c] sm:$0x1]
      %v5139 = vld [vmem:[#allocation3 + $0x4c] sm:$0x1]
      %v5140 = vld [vmem:[#allocation3 + $0x5c] sm:$0x1]
      %v5141 = vld [vmem:[#allocation3 + $0x6c] sm:$0x1]
      %v5142 = vld [vmem:[#allocation3 + $0x7c] sm:$0x1]
      %v5143 = vld [vmem:[#allocation3 + $0x8c] sm:$0x1]
      %v5144 = vld [vmem:[#allocation3 + $0x9c] sm:$0x1]
      %v5145 = vld [vmem:[#allocation3 + $0xac] sm:$0x1]
      %v5146 = vld [vmem:[#allocation3 + $0xbc] sm:$0x1]
      %v5147 = vld [vmem:[#allocation3 + $0xcc] sm:$0x1]
      %v5148 = vld [vmem:[#allocation3 + $0xdc] sm:$0x1]
      %v5149 = vld [vmem:[#allocation3 + $0xec] sm:$0x1]
      %v5150 = vld [vmem:[#allocation3 + $0xfc] sm:$0x1]
      %v5151 = vld [vmem:[#allocation3 + $0x10c] sm:$0x1]
      %v5152 = vld [vmem:[#allocation3 + $0x11c] sm:$0x1]
      %v5207 = vunpack.c.l.b16 %v5081
      %v5208 = vunpack.c.l.b16 %v5082
      %v5209 = vunpack.c.l.b16 %v5083
      %v5210 = vunpack.c.l.b16 %v5084
      %v5211 = vunpack.c.l.b16 %v5085
      %v5212 = vunpack.c.l.b16 %v5086
      %v5213 = vunpack.c.l.b16 %v5087
      %v5214 = vunpack.c.l.b16 %v5088
      %v5215 = vunpack.c.l.b16 %v5089
      %v5216 = vunpack.c.l.b16 %v5090
      %v5217 = vunpack.c.l.b16 %v5091
      %v5218 = vunpack.c.l.b16 %v5092
      %v5219 = vunpack.c.l.b16 %v5093
      %v5220 = vunpack.c.l.b16 %v5094
      %v5221 = vunpack.c.l.b16 %v5095
      %v5222 = vunpack.c.l.b16 %v5096
      %v5223 = vunpack.c.l.b16 %v5097
      %v5224 = vunpack.c.l.b16 %v5098
      %v5225 = vunpack.c.l.b16 %v5099
      %v5226 = vunpack.c.l.b16 %v5100
      %v5227 = vunpack.c.l.b16 %v5101
      %v5228 = vunpack.c.l.b16 %v5102
      %v5229 = vunpack.c.l.b16 %v5103
      %v5230 = vunpack.c.l.b16 %v5104
      %v5231 = vunpack.c.l.b16 %v5105
      %v5232 = vunpack.c.l.b16 %v5106
      %v5233 = vunpack.c.l.b16 %v5107
      %v5234 = vunpack.c.l.b16 %v5108
      %v5235 = vunpack.c.l.b16 %v5109
      %v5236 = vunpack.c.l.b16 %v5110
      %v5237 = vunpack.c.l.b16 %v5111
      %v5238 = vunpack.c.l.b16 %v5112
      %v5239 = vunpack.c.l.b16 %v5113
      %v5240 = vunpack.c.l.b16 %v5114
      %v5241 = vunpack.c.l.b16 %v5115
      %v5242 = vunpack.c.l.b16 %v5116
      %v5243 = vunpack.c.l.b16 %v5117
      %v5244 = vunpack.c.l.b16 %v5118
      %v5245 = vunpack.c.l.b16 %v5119
      %v5246 = vunpack.c.l.b16 %v5120
      %v5247 = vunpack.c.l.b16 %v5121
      %v5248 = vunpack.c.l.b16 %v5122
      %v5249 = vunpack.c.l.b16 %v5123
      %v5250 = vunpack.c.l.b16 %v5124
      %v5251 = vunpack.c.l.b16 %v5125
      %v5252 = vunpack.c.l.b16 %v5126
      %v5253 = vunpack.c.l.b16 %v5127
      %v5254 = vunpack.c.l.b16 %v5128
      %v5255 = vunpack.c.l.b16 %v5129
      %v5256 = vunpack.c.l.b16 %v5130
      %v5257 = vunpack.c.l.b16 %v5131
      %v5258 = vunpack.c.l.b16 %v5132
      %v5259 = vunpack.c.l.b16 %v5133
      %v5260 = vunpack.c.l.b16 %v5134
      %v5261 = vpack.c.b16 %v5208, %v5207
      %v5262 = vpack.c.b16 %v5209, %v5209
      %v5263 = vpack.c.b16 %v5211, %v5210
      %v5264 = vpack.c.b16 %v5212, %v5212
      %v5265 = vpack.c.b16 %v5214, %v5213
      %v5266 = vpack.c.b16 %v5215, %v5215
      %v5267 = vpack.c.b16 %v5217, %v5216
      %v5268 = vpack.c.b16 %v5218, %v5218
      %v5269 = vpack.c.b16 %v5220, %v5219
      %v5270 = vpack.c.b16 %v5221, %v5221
      %v5271 = vpack.c.b16 %v5223, %v5222
      %v5272 = vpack.c.b16 %v5224, %v5224
      %v5273 = vpack.c.b16 %v5226, %v5225
      %v5274 = vpack.c.b16 %v5227, %v5227
      %v5275 = vpack.c.b16 %v5229, %v5228
      %v5276 = vpack.c.b16 %v5230, %v5230
      %v5277 = vpack.c.b16 %v5232, %v5231
      %v5278 = vpack.c.b16 %v5233, %v5233
      %v5279 = vpack.c.b16 %v5235, %v5234
      %v5280 = vpack.c.b16 %v5236, %v5236
      %v5281 = vpack.c.b16 %v5238, %v5237
      %v5282 = vpack.c.b16 %v5239, %v5239
      %v5283 = vpack.c.b16 %v5241, %v5240
      %v5284 = vpack.c.b16 %v5242, %v5242
      %v5285 = vpack.c.b16 %v5244, %v5243
      %v5286 = vpack.c.b16 %v5245, %v5245
      %v5287 = vpack.c.b16 %v5247, %v5246
      %v5288 = vpack.c.b16 %v5248, %v5248
      %v5289 = vpack.c.b16 %v5250, %v5249
      %v5290 = vpack.c.b16 %v5251, %v5251
      %v5291 = vpack.c.b16 %v5253, %v5252
      %v5292 = vpack.c.b16 %v5254, %v5254
      %v5293 = vpack.c.b16 %v5256, %v5255
      %v5294 = vpack.c.b16 %v5257, %v5257
      %v5295 = vpack.c.b16 %v5259, %v5258
      %v5296 = vpack.c.b16 %v5260, %v5260
      %v5297 = vpack.c.b16 %v5209, %v5208
      %v5298 = vpack.c.b16 %v5212, %v5211
      %v5299 = vpack.c.b16 %v5215, %v5214
      %v5300 = vpack.c.b16 %v5218, %v5217
      %v5301 = vpack.c.b16 %v5221, %v5220
      %v5302 = vpack.c.b16 %v5224, %v5223
      %v5303 = vpack.c.b16 %v5227, %v5226
      %v5304 = vpack.c.b16 %v5230, %v5229
      %v5305 = vpack.c.b16 %v5233, %v5232
      %v5306 = vpack.c.b16 %v5236, %v5235
      %v5307 = vpack.c.b16 %v5239, %v5238
      %v5308 = vpack.c.b16 %v5242, %v5241
      %v5309 = vpack.c.b16 %v5245, %v5244
      %v5310 = vpack.c.b16 %v5248, %v5247
      %v5311 = vpack.c.b16 %v5251, %v5250
      %v5312 = vpack.c.b16 %v5254, %v5253
      %v5313 = vpack.c.b16 %v5257, %v5256
      %v5314 = vpack.c.b16 %v5260, %v5259
      %v5316 = vshrl.u32 %v5297, 16
      %v5318 = vrot.slane %v5316, 4
      %v5319 = vshll.u32 %v5297, 16
      %v5321 = vrot.slane %v5319, 5
      %v5322 = vor.u32 %v5318, %v5321
      %v5324 = vshrl.u32 %v5298, 16
      %v5326 = vrot.slane %v5324, 4
      %v5327 = vshll.u32 %v5298, 16
      %v5329 = vrot.slane %v5327, 5
      %v5330 = vor.u32 %v5326, %v5329
      %v5332 = vshrl.u32 %v5299, 16
      %v5334 = vrot.slane %v5332, 4
      %v5335 = vshll.u32 %v5299, 16
      %v5337 = vrot.slane %v5335, 5
      %v5338 = vor.u32 %v5334, %v5337
      %v5340 = vshrl.u32 %v5300, 16
      %v5342 = vrot.slane %v5340, 4
      %v5343 = vshll.u32 %v5300, 16
      %v5345 = vrot.slane %v5343, 5
      %v5346 = vor.u32 %v5342, %v5345
      %v5348 = vshrl.u32 %v5301, 16
      %v5350 = vrot.slane %v5348, 4
      %v5351 = vshll.u32 %v5301, 16
      %v5353 = vrot.slane %v5351, 5
      %v5354 = vor.u32 %v5350, %v5353
      %v5356 = vshrl.u32 %v5302, 16
      %v5358 = vrot.slane %v5356, 4
      %v5359 = vshll.u32 %v5302, 16
      %v5361 = vrot.slane %v5359, 5
      %v5362 = vor.u32 %v5358, %v5361
      %v5364 = vshrl.u32 %v5303, 16
      %v5366 = vrot.slane %v5364, 4
      %v5367 = vshll.u32 %v5303, 16
      %v5369 = vrot.slane %v5367, 5
      %v5370 = vor.u32 %v5366, %v5369
      %v5372 = vshrl.u32 %v5304, 16
      %v5374 = vrot.slane %v5372, 4
      %v5375 = vshll.u32 %v5304, 16
      %v5377 = vrot.slane %v5375, 5
      %v5378 = vor.u32 %v5374, %v5377
      %v5380 = vshrl.u32 %v5305, 16
      %v5382 = vrot.slane %v5380, 4
      %v5383 = vshll.u32 %v5305, 16
      %v5385 = vrot.slane %v5383, 5
      %v5386 = vor.u32 %v5382, %v5385
      %v5388 = vshrl.u32 %v5306, 16
      %v5390 = vrot.slane %v5388, 4
      %v5391 = vshll.u32 %v5306, 16
      %v5393 = vrot.slane %v5391, 5
      %v5394 = vor.u32 %v5390, %v5393
      %v5396 = vshrl.u32 %v5307, 16
      %v5398 = vrot.slane %v5396, 4
      %v5399 = vshll.u32 %v5307, 16
      %v5401 = vrot.slane %v5399, 5
      %v5402 = vor.u32 %v5398, %v5401
      %v5404 = vshrl.u32 %v5308, 16
      %v5406 = vrot.slane %v5404, 4
      %v5407 = vshll.u32 %v5308, 16
      %v5409 = vrot.slane %v5407, 5
      %v5410 = vor.u32 %v5406, %v5409
      %v5412 = vshrl.u32 %v5309, 16
      %v5414 = vrot.slane %v5412, 4
      %v5415 = vshll.u32 %v5309, 16
      %v5417 = vrot.slane %v5415, 5
      %v5418 = vor.u32 %v5414, %v5417
      %v5420 = vshrl.u32 %v5310, 16
      %v5422 = vrot.slane %v5420, 4
      %v5423 = vshll.u32 %v5310, 16
      %v5425 = vrot.slane %v5423, 5
      %v5426 = vor.u32 %v5422, %v5425
      %v5428 = vshrl.u32 %v5311, 16
      %v5430 = vrot.slane %v5428, 4
      %v5431 = vshll.u32 %v5311, 16
      %v5433 = vrot.slane %v5431, 5
      %v5434 = vor.u32 %v5430, %v5433
      %v5436 = vshrl.u32 %v5312, 16
      %v5438 = vrot.slane %v5436, 4
      %v5439 = vshll.u32 %v5312, 16
      %v5441 = vrot.slane %v5439, 5
      %v5442 = vor.u32 %v5438, %v5441
      %v5444 = vshrl.u32 %v5313, 16
      %v5446 = vrot.slane %v5444, 4
      %v5447 = vshll.u32 %v5313, 16
      %v5449 = vrot.slane %v5447, 5
      %v5450 = vor.u32 %v5446, %v5449
      %v5452 = vshrl.u32 %v5314, 16
      %v5454 = vrot.slane %v5452, 4
      %v5455 = vshll.u32 %v5314, 16
      %v5457 = vrot.slane %v5455, 5
      %v5458 = vor.u32 %v5454, %v5457
      %5459 = vrot.lane.b32.xlu0 %v5322, 64
      %v5460 = vpop.permute.xlu0 %5459
      %5461 = vrot.lane.b32.xlu0 %v5330, 64
      %v5462 = vpop.permute.xlu0 %5461
      %5463 = vrot.lane.b32.xlu0 %v5338, 64
      %v5464 = vpop.permute.xlu0 %5463
      %5465 = vrot.lane.b32.xlu0 %v5346, 64
      %v5466 = vpop.permute.xlu0 %5465
      %5467 = vrot.lane.b32.xlu0 %v5354, 64
      %v5468 = vpop.permute.xlu0 %5467
      %5469 = vrot.lane.b32.xlu0 %v5362, 64
      %v5470 = vpop.permute.xlu0 %5469
      %5471 = vrot.lane.b32.xlu0 %v5370, 64
      %v5472 = vpop.permute.xlu0 %5471
      %5473 = vrot.lane.b32.xlu0 %v5378, 64
      %v5474 = vpop.permute.xlu0 %5473
      %5475 = vrot.lane.b32.xlu0 %v5386, 64
      %v5476 = vpop.permute.xlu0 %5475
      %5477 = vrot.lane.b32.xlu0 %v5394, 64
      %v5478 = vpop.permute.xlu0 %5477
      %5479 = vrot.lane.b32.xlu0 %v5402, 64
      %v5480 = vpop.permute.xlu0 %5479
      %5481 = vrot.lane.b32.xlu0 %v5410, 64
      %v5482 = vpop.permute.xlu0 %5481
      %5483 = vrot.lane.b32.xlu0 %v5418, 64
      %v5484 = vpop.permute.xlu0 %5483
      %5485 = vrot.lane.b32.xlu0 %v5426, 64
      %v5486 = vpop.permute.xlu0 %5485
      %5487 = vrot.lane.b32.xlu0 %v5434, 64
      %v5488 = vpop.permute.xlu0 %5487
      %5489 = vrot.lane.b32.xlu0 %v5442, 64
      %v5490 = vpop.permute.xlu0 %5489
      %5491 = vrot.lane.b32.xlu0 %v5450, 64
      %v5492 = vpop.permute.xlu0 %5491
      %5493 = vrot.lane.b32.xlu0 %v5458, 64
      %v5494 = vpop.permute.xlu0 %5493
      %v5513 = vunpack.c.l.b16 %v5135
      %v5514 = vunpack.c.l.b16 %v5136
      %v5515 = vunpack.c.l.b16 %v5137
      %v5516 = vunpack.c.l.b16 %v5138
      %v5517 = vunpack.c.l.b16 %v5139
      %v5518 = vunpack.c.l.b16 %v5140
      %v5519 = vunpack.c.l.b16 %v5141
      %v5520 = vunpack.c.l.b16 %v5142
      %v5521 = vunpack.c.l.b16 %v5143
      %v5522 = vunpack.c.l.b16 %v5144
      %v5523 = vunpack.c.l.b16 %v5145
      %v5524 = vunpack.c.l.b16 %v5146
      %v5525 = vunpack.c.l.b16 %v5147
      %v5526 = vunpack.c.l.b16 %v5148
      %v5527 = vunpack.c.l.b16 %v5149
      %v5528 = vunpack.c.l.b16 %v5150
      %v5529 = vunpack.c.l.b16 %v5151
      %v5530 = vunpack.c.l.b16 %v5152
      %v5531 = vpack.c.b16 %v5513, %v5513
      %v5532 = vpack.c.b16 %v5514, %v5514
      %v5533 = vpack.c.b16 %v5515, %v5515
      %v5534 = vpack.c.b16 %v5516, %v5516
      %v5535 = vpack.c.b16 %v5517, %v5517
      %v5536 = vpack.c.b16 %v5518, %v5518
      %v5537 = vpack.c.b16 %v5519, %v5519
      %v5538 = vpack.c.b16 %v5520, %v5520
      %v5539 = vpack.c.b16 %v5521, %v5521
      %v5540 = vpack.c.b16 %v5522, %v5522
      %v5541 = vpack.c.b16 %v5523, %v5523
      %v5542 = vpack.c.b16 %v5524, %v5524
      %v5543 = vpack.c.b16 %v5525, %v5525
      %v5544 = vpack.c.b16 %v5526, %v5526
      %v5545 = vpack.c.b16 %v5527, %v5527
      %v5546 = vpack.c.b16 %v5528, %v5528
      %v5547 = vpack.c.b16 %v5529, %v5529
      %v5548 = vpack.c.b16 %v5530, %v5530
      %vm5549 = vcmask 1042432
      %v5550 = vrot.slane %v5297, 5
      %v5551 = vrot.slane %v5531, 5
      %v5552 = vsel %vm5549, %v5550, %v5551
      %v5553 = vrot.slane %v5298, 5
      %v5554 = vrot.slane %v5532, 5
      %v5555 = vsel %vm5549, %v5553, %v5554
      %v5556 = vrot.slane %v5299, 5
      %v5557 = vrot.slane %v5533, 5
      %v5558 = vsel %vm5549, %v5556, %v5557
      %v5559 = vrot.slane %v5300, 5
      %v5560 = vrot.slane %v5534, 5
      %v5561 = vsel %vm5549, %v5559, %v5560
      %v5562 = vrot.slane %v5301, 5
      %v5563 = vrot.slane %v5535, 5
      %v5564 = vsel %vm5549, %v5562, %v5563
      %v5565 = vrot.slane %v5302, 5
      %v5566 = vrot.slane %v5536, 5
      %v5567 = vsel %vm5549, %v5565, %v5566
      %v5568 = vrot.slane %v5303, 5
      %v5569 = vrot.slane %v5537, 5
      %v5570 = vsel %vm5549, %v5568, %v5569
      %v5571 = vrot.slane %v5304, 5
      %v5572 = vrot.slane %v5538, 5
      %v5573 = vsel %vm5549, %v5571, %v5572
      %v5574 = vrot.slane %v5305, 5
      %v5575 = vrot.slane %v5539, 5
      %v5576 = vsel %vm5549, %v5574, %v5575
      %v5577 = vrot.slane %v5306, 5
      %v5578 = vrot.slane %v5540, 5
      %v5579 = vsel %vm5549, %v5577, %v5578
      %v5580 = vrot.slane %v5307, 5
      %v5581 = vrot.slane %v5541, 5
      %v5582 = vsel %vm5549, %v5580, %v5581
      %v5583 = vrot.slane %v5308, 5
      %v5584 = vrot.slane %v5542, 5
      %v5585 = vsel %vm5549, %v5583, %v5584
      %v5586 = vrot.slane %v5309, 5
      %v5587 = vrot.slane %v5543, 5
      %v5588 = vsel %vm5549, %v5586, %v5587
      %v5589 = vrot.slane %v5310, 5
      %v5590 = vrot.slane %v5544, 5
      %v5591 = vsel %vm5549, %v5589, %v5590
      %v5592 = vrot.slane %v5311, 5
      %v5593 = vrot.slane %v5545, 5
      %v5594 = vsel %vm5549, %v5592, %v5593
      %v5595 = vrot.slane %v5312, 5
      %v5596 = vrot.slane %v5546, 5
      %v5597 = vsel %vm5549, %v5595, %v5596
      %v5598 = vrot.slane %v5313, 5
      %v5599 = vrot.slane %v5547, 5
      %v5600 = vsel %vm5549, %v5598, %v5599
      %v5601 = vrot.slane %v5314, 5
      %v5602 = vrot.slane %v5548, 5
      %v5603 = vsel %vm5549, %v5601, %v5602
      %v5606 = vsel %vm2728, %v5261, %v5460
      %v5608 = vsel %vm2728, %v5262, %v5460
      %v5611 = vsel %vm2728, %v5263, %v5462
      %v5613 = vsel %vm2728, %v5264, %v5462
      %v5616 = vsel %vm2728, %v5265, %v5464
      %v5618 = vsel %vm2728, %v5266, %v5464
      %v5621 = vsel %vm2728, %v5267, %v5466
      %v5623 = vsel %vm2728, %v5268, %v5466
      %v5626 = vsel %vm2728, %v5269, %v5468
      %v5628 = vsel %vm2728, %v5270, %v5468
      %v5631 = vsel %vm2728, %v5271, %v5470
      %v5633 = vsel %vm2728, %v5272, %v5470
      %v5636 = vsel %vm2728, %v5273, %v5472
      %v5638 = vsel %vm2728, %v5274, %v5472
      %v5641 = vsel %vm2728, %v5275, %v5474
      %v5643 = vsel %vm2728, %v5276, %v5474
      %v5646 = vsel %vm2728, %v5277, %v5476
      %v5648 = vsel %vm2728, %v5278, %v5476
      %v5651 = vsel %vm2728, %v5279, %v5478
      %v5653 = vsel %vm2728, %v5280, %v5478
      %v5656 = vsel %vm2728, %v5281, %v5480
      %v5658 = vsel %vm2728, %v5282, %v5480
      %v5661 = vsel %vm2728, %v5283, %v5482
      %v5663 = vsel %vm2728, %v5284, %v5482
      %v5666 = vsel %vm2728, %v5285, %v5484
      %v5668 = vsel %vm2728, %v5286, %v5484
      %v5671 = vsel %vm2728, %v5287, %v5486
      %v5673 = vsel %vm2728, %v5288, %v5486
      %v5676 = vsel %vm2728, %v5289, %v5488
      %v5678 = vsel %vm2728, %v5290, %v5488
      %v5681 = vsel %vm2728, %v5291, %v5490
      %v5683 = vsel %vm2728, %v5292, %v5490
      %v5686 = vsel %vm2728, %v5293, %v5492
      %v5688 = vsel %vm2728, %v5294, %v5492
      %v5691 = vsel %vm2728, %v5295, %v5494
      %v5693 = vsel %vm2728, %v5296, %v5494
      %vm5694 = vsmask.f32 4352
      %v5695 = vshrl.u32 %v5606, 16
      %v5697 = vrot.slane %v5695, 3
      %v5698 = vshll.u32 %v5606, 16
      %v5700 = vrot.slane %v5698, 4
      %v5701 = vor.u32 %v5697, %v5700
      %v5702 = vshrl.u32 %v5608, 16
      %v5704 = vrot.slane %v5702, 3
      %v5705 = vshll.u32 %v5608, 16
      %v5707 = vrot.slane %v5705, 4
      %v5708 = vor.u32 %v5704, %v5707
      %v5709 = vsel %vm5694, %v5701, %v5708
      %v5711 = vshrl.u32 %v5550, 16
      %v5713 = vrot.slane %v5711, 3
      %v5714 = vshll.u32 %v5550, 16
      %v5716 = vrot.slane %v5714, 4
      %v5717 = vor.u32 %v5713, %v5716
      %v5719 = vshrl.u32 %v5552, 16
      %v5721 = vrot.slane %v5719, 3
      %v5722 = vshll.u32 %v5552, 16
      %v5724 = vrot.slane %v5722, 4
      %v5725 = vor.u32 %v5721, %v5724
      %v5726 = vsel %vm5694, %v5717, %v5725
      %v5727 = vshrl.u32 %v5611, 16
      %v5729 = vrot.slane %v5727, 3
      %v5730 = vshll.u32 %v5611, 16
      %v5732 = vrot.slane %v5730, 4
      %v5733 = vor.u32 %v5729, %v5732
      %v5734 = vshrl.u32 %v5613, 16
      %v5736 = vrot.slane %v5734, 3
      %v5737 = vshll.u32 %v5613, 16
      %v5739 = vrot.slane %v5737, 4
      %v5740 = vor.u32 %v5736, %v5739
      %v5741 = vsel %vm5694, %v5733, %v5740
      %v5743 = vshrl.u32 %v5553, 16
      %v5745 = vrot.slane %v5743, 3
      %v5746 = vshll.u32 %v5553, 16
      %v5748 = vrot.slane %v5746, 4
      %v5749 = vor.u32 %v5745, %v5748
      %v5751 = vshrl.u32 %v5555, 16
      %v5753 = vrot.slane %v5751, 3
      %v5754 = vshll.u32 %v5555, 16
      %v5756 = vrot.slane %v5754, 4
      %v5757 = vor.u32 %v5753, %v5756
      %v5758 = vsel %vm5694, %v5749, %v5757
      %v5759 = vshrl.u32 %v5616, 16
      %v5761 = vrot.slane %v5759, 3
      %v5762 = vshll.u32 %v5616, 16
      %v5764 = vrot.slane %v5762, 4
      %v5765 = vor.u32 %v5761, %v5764
      %v5766 = vshrl.u32 %v5618, 16
      %v5768 = vrot.slane %v5766, 3
      %v5769 = vshll.u32 %v5618, 16
      %v5771 = vrot.slane %v5769, 4
      %v5772 = vor.u32 %v5768, %v5771
      %v5773 = vsel %vm5694, %v5765, %v5772
      %v5775 = vshrl.u32 %v5556, 16
      %v5777 = vrot.slane %v5775, 3
      %v5778 = vshll.u32 %v5556, 16
      %v5780 = vrot.slane %v5778, 4
      %v5781 = vor.u32 %v5777, %v5780
      %v5783 = vshrl.u32 %v5558, 16
      %v5785 = vrot.slane %v5783, 3
      %v5786 = vshll.u32 %v5558, 16
      %v5788 = vrot.slane %v5786, 4
      %v5789 = vor.u32 %v5785, %v5788
      %v5790 = vsel %vm5694, %v5781, %v5789
      %v5791 = vshrl.u32 %v5621, 16
      %v5793 = vrot.slane %v5791, 3
      %v5794 = vshll.u32 %v5621, 16
      %v5796 = vrot.slane %v5794, 4
      %v5797 = vor.u32 %v5793, %v5796
      %v5798 = vshrl.u32 %v5623, 16
      %v5800 = vrot.slane %v5798, 3
      %v5801 = vshll.u32 %v5623, 16
      %v5803 = vrot.slane %v5801, 4
      %v5804 = vor.u32 %v5800, %v5803
      %v5805 = vsel %vm5694, %v5797, %v5804
      %v5807 = vshrl.u32 %v5559, 16
      %v5809 = vrot.slane %v5807, 3
      %v5810 = vshll.u32 %v5559, 16
      %v5812 = vrot.slane %v5810, 4
      %v5813 = vor.u32 %v5809, %v5812
      %v5815 = vshrl.u32 %v5561, 16
      %v5817 = vrot.slane %v5815, 3
      %v5818 = vshll.u32 %v5561, 16
      %v5820 = vrot.slane %v5818, 4
      %v5821 = vor.u32 %v5817, %v5820
      %v5822 = vsel %vm5694, %v5813, %v5821
      %v5823 = vshrl.u32 %v5626, 16
      %v5825 = vrot.slane %v5823, 3
      %v5826 = vshll.u32 %v5626, 16
      %v5828 = vrot.slane %v5826, 4
      %v5829 = vor.u32 %v5825, %v5828
      %v5830 = vshrl.u32 %v5628, 16
      %v5832 = vrot.slane %v5830, 3
      %v5833 = vshll.u32 %v5628, 16
      %v5835 = vrot.slane %v5833, 4
      %v5836 = vor.u32 %v5832, %v5835
      %v5837 = vsel %vm5694, %v5829, %v5836
      %v5839 = vshrl.u32 %v5562, 16
      %v5841 = vrot.slane %v5839, 3
      %v5842 = vshll.u32 %v5562, 16
      %v5844 = vrot.slane %v5842, 4
      %v5845 = vor.u32 %v5841, %v5844
      %v5847 = vshrl.u32 %v5564, 16
      %v5849 = vrot.slane %v5847, 3
      %v5850 = vshll.u32 %v5564, 16
      %v5852 = vrot.slane %v5850, 4
      %v5853 = vor.u32 %v5849, %v5852
      %v5854 = vsel %vm5694, %v5845, %v5853
      %v5855 = vshrl.u32 %v5631, 16
      %v5857 = vrot.slane %v5855, 3
      %v5858 = vshll.u32 %v5631, 16
      %v5860 = vrot.slane %v5858, 4
      %v5861 = vor.u32 %v5857, %v5860
      %v5862 = vshrl.u32 %v5633, 16
      %v5864 = vrot.slane %v5862, 3
      %v5865 = vshll.u32 %v5633, 16
      %v5867 = vrot.slane %v5865, 4
      %v5868 = vor.u32 %v5864, %v5867
      %v5869 = vsel %vm5694, %v5861, %v5868
      %v5871 = vshrl.u32 %v5565, 16
      %v5873 = vrot.slane %v5871, 3
      %v5874 = vshll.u32 %v5565, 16
      %v5876 = vrot.slane %v5874, 4
      %v5877 = vor.u32 %v5873, %v5876
      %v5879 = vshrl.u32 %v5567, 16
      %v5881 = vrot.slane %v5879, 3
      %v5882 = vshll.u32 %v5567, 16
      %v5884 = vrot.slane %v5882, 4
      %v5885 = vor.u32 %v5881, %v5884
      %v5886 = vsel %vm5694, %v5877, %v5885
      %v5887 = vshrl.u32 %v5636, 16
      %v5889 = vrot.slane %v5887, 3
      %v5890 = vshll.u32 %v5636, 16
      %v5892 = vrot.slane %v5890, 4
      %v5893 = vor.u32 %v5889, %v5892
      %v5894 = vshrl.u32 %v5638, 16
      %v5896 = vrot.slane %v5894, 3
      %v5897 = vshll.u32 %v5638, 16
      %v5899 = vrot.slane %v5897, 4
      %v5900 = vor.u32 %v5896, %v5899
      %v5901 = vsel %vm5694, %v5893, %v5900
      %v5903 = vshrl.u32 %v5568, 16
      %v5905 = vrot.slane %v5903, 3
      %v5906 = vshll.u32 %v5568, 16
      %v5908 = vrot.slane %v5906, 4
      %v5909 = vor.u32 %v5905, %v5908
      %v5911 = vshrl.u32 %v5570, 16
      %v5913 = vrot.slane %v5911, 3
      %v5914 = vshll.u32 %v5570, 16
      %v5916 = vrot.slane %v5914, 4
      %v5917 = vor.u32 %v5913, %v5916
      %v5918 = vsel %vm5694, %v5909, %v5917
      %v5919 = vshrl.u32 %v5641, 16
      %v5921 = vrot.slane %v5919, 3
      %v5922 = vshll.u32 %v5641, 16
      %v5924 = vrot.slane %v5922, 4
      %v5925 = vor.u32 %v5921, %v5924
      %v5926 = vshrl.u32 %v5643, 16
      %v5928 = vrot.slane %v5926, 3
      %v5929 = vshll.u32 %v5643, 16
      %v5931 = vrot.slane %v5929, 4
      %v5932 = vor.u32 %v5928, %v5931
      %v5933 = vsel %vm5694, %v5925, %v5932
      %v5935 = vshrl.u32 %v5571, 16
      %v5937 = vrot.slane %v5935, 3
      %v5938 = vshll.u32 %v5571, 16
      %v5940 = vrot.slane %v5938, 4
      %v5941 = vor.u32 %v5937, %v5940
      %v5943 = vshrl.u32 %v5573, 16
      %v5945 = vrot.slane %v5943, 3
      %v5946 = vshll.u32 %v5573, 16
      %v5948 = vrot.slane %v5946, 4
      %v5949 = vor.u32 %v5945, %v5948
      %v5950 = vsel %vm5694, %v5941, %v5949
      %v5951 = vshrl.u32 %v5646, 16
      %v5953 = vrot.slane %v5951, 3
      %v5954 = vshll.u32 %v5646, 16
      %v5956 = vrot.slane %v5954, 4
      %v5957 = vor.u32 %v5953, %v5956
      %v5958 = vshrl.u32 %v5648, 16
      %v5960 = vrot.slane %v5958, 3
      %v5961 = vshll.u32 %v5648, 16
      %v5963 = vrot.slane %v5961, 4
      %v5964 = vor.u32 %v5960, %v5963
      %v5965 = vsel %vm5694, %v5957, %v5964
      %v5967 = vshrl.u32 %v5574, 16
      %v5969 = vrot.slane %v5967, 3
      %v5970 = vshll.u32 %v5574, 16
      %v5972 = vrot.slane %v5970, 4
      %v5973 = vor.u32 %v5969, %v5972
      %v5975 = vshrl.u32 %v5576, 16
      %v5977 = vrot.slane %v5975, 3
      %v5978 = vshll.u32 %v5576, 16
      %v5980 = vrot.slane %v5978, 4
      %v5981 = vor.u32 %v5977, %v5980
      %v5982 = vsel %vm5694, %v5973, %v5981
      %v5983 = vshrl.u32 %v5651, 16
      %v5985 = vrot.slane %v5983, 3
      %v5986 = vshll.u32 %v5651, 16
      %v5988 = vrot.slane %v5986, 4
      %v5989 = vor.u32 %v5985, %v5988
      %v5990 = vshrl.u32 %v5653, 16
      %v5992 = vrot.slane %v5990, 3
      %v5993 = vshll.u32 %v5653, 16
      %v5995 = vrot.slane %v5993, 4
      %v5996 = vor.u32 %v5992, %v5995
      %v5997 = vsel %vm5694, %v5989, %v5996
      %v5999 = vshrl.u32 %v5577, 16
      %v6001 = vrot.slane %v5999, 3
      %v6002 = vshll.u32 %v5577, 16
      %v6004 = vrot.slane %v6002, 4
      %v6005 = vor.u32 %v6001, %v6004
      %v6007 = vshrl.u32 %v5579, 16
      %v6009 = vrot.slane %v6007, 3
      %v6010 = vshll.u32 %v5579, 16
      %v6012 = vrot.slane %v6010, 4
      %v6013 = vor.u32 %v6009, %v6012
      %v6014 = vsel %vm5694, %v6005, %v6013
      %v6015 = vshrl.u32 %v5656, 16
      %v6017 = vrot.slane %v6015, 3
      %v6018 = vshll.u32 %v5656, 16
      %v6020 = vrot.slane %v6018, 4
      %v6021 = vor.u32 %v6017, %v6020
      %v6022 = vshrl.u32 %v5658, 16
      %v6024 = vrot.slane %v6022, 3
      %v6025 = vshll.u32 %v5658, 16
      %v6027 = vrot.slane %v6025, 4
      %v6028 = vor.u32 %v6024, %v6027
      %v6029 = vsel %vm5694, %v6021, %v6028
      %v6031 = vshrl.u32 %v5580, 16
      %v6033 = vrot.slane %v6031, 3
      %v6034 = vshll.u32 %v5580, 16
      %v6036 = vrot.slane %v6034, 4
      %v6037 = vor.u32 %v6033, %v6036
      %v6039 = vshrl.u32 %v5582, 16
      %v6041 = vrot.slane %v6039, 3
      %v6042 = vshll.u32 %v5582, 16
      %v6044 = vrot.slane %v6042, 4
      %v6045 = vor.u32 %v6041, %v6044
      %v6046 = vsel %vm5694, %v6037, %v6045
      %v6047 = vshrl.u32 %v5661, 16
      %v6049 = vrot.slane %v6047, 3
      %v6050 = vshll.u32 %v5661, 16
      %v6052 = vrot.slane %v6050, 4
      %v6053 = vor.u32 %v6049, %v6052
      %v6054 = vshrl.u32 %v5663, 16
      %v6056 = vrot.slane %v6054, 3
      %v6057 = vshll.u32 %v5663, 16
      %v6059 = vrot.slane %v6057, 4
      %v6060 = vor.u32 %v6056, %v6059
      %v6061 = vsel %vm5694, %v6053, %v6060
      %v6063 = vshrl.u32 %v5583, 16
      %v6065 = vrot.slane %v6063, 3
      %v6066 = vshll.u32 %v5583, 16
      %v6068 = vrot.slane %v6066, 4
      %v6069 = vor.u32 %v6065, %v6068
      %v6071 = vshrl.u32 %v5585, 16
      %v6073 = vrot.slane %v6071, 3
      %v6074 = vshll.u32 %v5585, 16
      %v6076 = vrot.slane %v6074, 4
      %v6077 = vor.u32 %v6073, %v6076
      %v6078 = vsel %vm5694, %v6069, %v6077
      %v6079 = vshrl.u32 %v5666, 16
      %v6081 = vrot.slane %v6079, 3
      %v6082 = vshll.u32 %v5666, 16
      %v6084 = vrot.slane %v6082, 4
      %v6085 = vor.u32 %v6081, %v6084
      %v6086 = vshrl.u32 %v5668, 16
      %v6088 = vrot.slane %v6086, 3
      %v6089 = vshll.u32 %v5668, 16
      %v6091 = vrot.slane %v6089, 4
      %v6092 = vor.u32 %v6088, %v6091
      %v6093 = vsel %vm5694, %v6085, %v6092
      %v6095 = vshrl.u32 %v5586, 16
      %v6097 = vrot.slane %v6095, 3
      %v6098 = vshll.u32 %v5586, 16
      %v6100 = vrot.slane %v6098, 4
      %v6101 = vor.u32 %v6097, %v6100
      %v6103 = vshrl.u32 %v5588, 16
      %v6105 = vrot.slane %v6103, 3
      %v6106 = vshll.u32 %v5588, 16
      %v6108 = vrot.slane %v6106, 4
      %v6109 = vor.u32 %v6105, %v6108
      %v6110 = vsel %vm5694, %v6101, %v6109
      %v6111 = vshrl.u32 %v5671, 16
      %v6113 = vrot.slane %v6111, 3
      %v6114 = vshll.u32 %v5671, 16
      %v6116 = vrot.slane %v6114, 4
      %v6117 = vor.u32 %v6113, %v6116
      %v6118 = vshrl.u32 %v5673, 16
      %v6120 = vrot.slane %v6118, 3
      %v6121 = vshll.u32 %v5673, 16
      %v6123 = vrot.slane %v6121, 4
      %v6124 = vor.u32 %v6120, %v6123
      %v6125 = vsel %vm5694, %v6117, %v6124
      %v6127 = vshrl.u32 %v5589, 16
      %v6129 = vrot.slane %v6127, 3
      %v6130 = vshll.u32 %v5589, 16
      %v6132 = vrot.slane %v6130, 4
      %v6133 = vor.u32 %v6129, %v6132
      %v6135 = vshrl.u32 %v5591, 16
      %v6137 = vrot.slane %v6135, 3
      %v6138 = vshll.u32 %v5591, 16
      %v6140 = vrot.slane %v6138, 4
      %v6141 = vor.u32 %v6137, %v6140
      %v6142 = vsel %vm5694, %v6133, %v6141
      %v6143 = vshrl.u32 %v5676, 16
      %v6145 = vrot.slane %v6143, 3
      %v6146 = vshll.u32 %v5676, 16
      %v6148 = vrot.slane %v6146, 4
      %v6149 = vor.u32 %v6145, %v6148
      %v6150 = vshrl.u32 %v5678, 16
      %v6152 = vrot.slane %v6150, 3
      %v6153 = vshll.u32 %v5678, 16
      %v6155 = vrot.slane %v6153, 4
      %v6156 = vor.u32 %v6152, %v6155
      %v6157 = vsel %vm5694, %v6149, %v6156
      %v6159 = vshrl.u32 %v5592, 16
      %v6161 = vrot.slane %v6159, 3
      %v6162 = vshll.u32 %v5592, 16
      %v6164 = vrot.slane %v6162, 4
      %v6165 = vor.u32 %v6161, %v6164
      %v6167 = vshrl.u32 %v5594, 16
      %v6169 = vrot.slane %v6167, 3
      %v6170 = vshll.u32 %v5594, 16
      %v6172 = vrot.slane %v6170, 4
      %v6173 = vor.u32 %v6169, %v6172
      %v6174 = vsel %vm5694, %v6165, %v6173
      %v6175 = vshrl.u32 %v5681, 16
      %v6177 = vrot.slane %v6175, 3
      %v6178 = vshll.u32 %v5681, 16
      %v6180 = vrot.slane %v6178, 4
      %v6181 = vor.u32 %v6177, %v6180
      %v6182 = vshrl.u32 %v5683, 16
      %v6184 = vrot.slane %v6182, 3
      %v6185 = vshll.u32 %v5683, 16
      %v6187 = vrot.slane %v6185, 4
      %v6188 = vor.u32 %v6184, %v6187
      %v6189 = vsel %vm5694, %v6181, %v6188
      %v6191 = vshrl.u32 %v5595, 16
      %v6193 = vrot.slane %v6191, 3
      %v6194 = vshll.u32 %v5595, 16
      %v6196 = vrot.slane %v6194, 4
      %v6197 = vor.u32 %v6193, %v6196
      %v6199 = vshrl.u32 %v5597, 16
      %v6201 = vrot.slane %v6199, 3
      %v6202 = vshll.u32 %v5597, 16
      %v6204 = vrot.slane %v6202, 4
      %v6205 = vor.u32 %v6201, %v6204
      %v6206 = vsel %vm5694, %v6197, %v6205
      %v6223 = vld [vmem:[%s4] sm:$0xf]
      %v6224 = vld [vmem:[%s4 + $0x4] sm:$0xf]
      %v6225 = vld [vmem:[%s4 + $0x8] sm:$0xf]
      %v6226 = vld [vmem:[%s4 + $0xc] sm:$0xf]
      %v6227 = vld [vmem:[%s4 + $0x10] sm:$0xf]
      %v6228 = vld [vmem:[%s4 + $0x14] sm:$0xf]
      %v6229 = vld [vmem:[%s4 + $0x18] sm:$0xf]
      %v6230 = vld [vmem:[%s4 + $0x1c] sm:$0xf]
      %v6231 = vld [vmem:[%s4 + $0x20] sm:$0xf]
      %v6232 = vld [vmem:[%s4 + $0x24] sm:$0xf]
      %v6233 = vld [vmem:[%s4 + $0x28] sm:$0xf]
      %v6234 = vld [vmem:[%s4 + $0x2c] sm:$0xf]
      %v6235 = vld [vmem:[%s4 + $0x30] sm:$0xf]
      %v6236 = vld [vmem:[%s4 + $0x34] sm:$0xf]
      %v6237 = vld [vmem:[%s4 + $0x38] sm:$0xf]
      %v6238 = vld [vmem:[%s4 + $0x3c] sm:$0xf]
      %v6239 = vld [vmem:[%s4 + $0x40] sm:$0xf]
      %v6240 = vld [vmem:[%s4 + $0x44] sm:$0xf]
      %v6241 = vld [vmem:[%s4 + $0x48] sm:$0xf]
      %v6242 = vld [vmem:[%s4 + $0x4c] sm:$0xf]
      %v6243 = vld [vmem:[%s4 + $0x50] sm:$0xf]
      %v6244 = vld [vmem:[%s4 + $0x54] sm:$0xf]
      %v6245 = vld [vmem:[%s4 + $0x58] sm:$0xf]
      %v6246 = vld [vmem:[%s4 + $0x5c] sm:$0xf]
      %v6247 = vshrl.u32 %v5686, 16
      %v6249 = vrot.slane %v6247, 3
      %v6250 = vshll.u32 %v5686, 16
      %v6252 = vrot.slane %v6250, 4
      %v6253 = vor.u32 %v6249, %v6252
      %v6254 = vshrl.u32 %v5688, 16
      %v6256 = vrot.slane %v6254, 3
      %v6257 = vshll.u32 %v5688, 16
      %v6259 = vrot.slane %v6257, 4
      %v6260 = vor.u32 %v6256, %v6259
      %v6261 = vsel %vm5694, %v6253, %v6260
      %v6263 = vshrl.u32 %v5598, 16
      %v6265 = vrot.slane %v6263, 3
      %v6266 = vshll.u32 %v5598, 16
      %v6268 = vrot.slane %v6266, 4
      %v6269 = vor.u32 %v6265, %v6268
      %v6271 = vshrl.u32 %v5600, 16
      %v6273 = vrot.slane %v6271, 3
      %v6274 = vshll.u32 %v5600, 16
      %v6276 = vrot.slane %v6274, 4
      %v6277 = vor.u32 %v6273, %v6276
      %v6278 = vsel %vm5694, %v6269, %v6277
      %s6280 = scalar_lea.vmem %s4, 96
      %v6281 = vld [vmem:[%s6280] sm:$0xf]
      %v6282 = vld [vmem:[%s6280 + $0x4] sm:$0xf]
      %v6283 = vld [vmem:[%s6280 + $0x8] sm:$0xf]
      %v6284 = vld [vmem:[%s6280 + $0xc] sm:$0xf]
      %v6285 = vld [vmem:[%s6280 + $0x10] sm:$0xf]
      %v6286 = vld [vmem:[%s6280 + $0x14] sm:$0xf]
      %v6287 = vld [vmem:[%s6280 + $0x18] sm:$0xf]
      %v6288 = vld [vmem:[%s6280 + $0x1c] sm:$0xf]
      %v6289 = vld [vmem:[%s6280 + $0x20] sm:$0xf]
      %v6290 = vld [vmem:[%s6280 + $0x24] sm:$0xf]
      %v6291 = vld [vmem:[%s6280 + $0x28] sm:$0xf]
      %v6292 = vld [vmem:[%s6280 + $0x2c] sm:$0xf]
      %v6293 = vld [vmem:[%s6280 + $0x30] sm:$0xf]
      %v6294 = vld [vmem:[%s6280 + $0x34] sm:$0xf]
      %v6295 = vld [vmem:[%s6280 + $0x38] sm:$0xf]
      %v6296 = vld [vmem:[%s6280 + $0x3c] sm:$0xf]
      %v6297 = vld [vmem:[%s6280 + $0x40] sm:$0xf]
      %v6298 = vld [vmem:[%s6280 + $0x44] sm:$0xf]
      %v6299 = vld [vmem:[%s6280 + $0x48] sm:$0xf]
      %v6300 = vld [vmem:[%s6280 + $0x4c] sm:$0xf]
      %v6301 = vld [vmem:[%s6280 + $0x50] sm:$0xf]
      %v6302 = vld [vmem:[%s6280 + $0x54] sm:$0xf]
      %v6303 = vld [vmem:[%s6280 + $0x58] sm:$0xf]
      %v6304 = vld [vmem:[%s6280 + $0x5c] sm:$0xf]
      %v6329 = vunpack.c.l.b16 %v6281
      %v6330 = vunpack.c.l.b16 %v6282
      %v6331 = vunpack.c.l.b16 %v6283
      %v6332 = vunpack.c.l.b16 %v6284
      %v6333 = vunpack.c.l.b16 %v6285
      %v6334 = vunpack.c.l.b16 %v6286
      %v6335 = vunpack.c.l.b16 %v6287
      %v6336 = vunpack.c.l.b16 %v6288
      %v6337 = vunpack.c.l.b16 %v6289
      %v6338 = vunpack.c.l.b16 %v6290
      %v6339 = vunpack.c.l.b16 %v6291
      %v6340 = vunpack.c.l.b16 %v6292
      %v6341 = vunpack.c.l.b16 %v6293
      %v6342 = vunpack.c.l.b16 %v6294
      %v6343 = vunpack.c.l.b16 %v6295
      %v6344 = vunpack.c.l.b16 %v6296
      %v6345 = vunpack.c.l.b16 %v6297
      %v6346 = vunpack.c.l.b16 %v6298
      %v6347 = vunpack.c.l.b16 %v6299
      %v6348 = vunpack.c.l.b16 %v6300
      %v6349 = vunpack.c.l.b16 %v6301
      %v6350 = vunpack.c.l.b16 %v6302
      %v6351 = vunpack.c.l.b16 %v6303
      %v6352 = vunpack.c.l.b16 %v6304
      %v6353 = vpack.c.b16 %v6330, %v6329
      %v6354 = vpack.c.b16 %v6332, %v6331
      %v6355 = vpack.c.b16 %v6334, %v6333
      %v6356 = vpack.c.b16 %v6336, %v6335
      %v6357 = vpack.c.b16 %v6338, %v6337
      %v6358 = vpack.c.b16 %v6340, %v6339
      %v6359 = vpack.c.b16 %v6342, %v6341
      %v6360 = vpack.c.b16 %v6344, %v6343
      %v6361 = vpack.c.b16 %v6346, %v6345
      %v6362 = vpack.c.b16 %v6348, %v6347
      %v6363 = vpack.c.b16 %v6350, %v6349
      %v6364 = vpack.c.b16 %v6352, %v6351
      %v6378 = vsel %vm2728, %v5758, 0
      %v6381 = vsel %vm2728, %v5790, 0
      %v6384 = vsel %vm2728, %v5822, 0
      %v6387 = vsel %vm2728, %v5854, 0
      %v6390 = vsel %vm2728, %v5886, 0
      %v6393 = vsel %vm2728, %v5918, 0
      %v6396 = vsel %vm2728, %v5950, 0
      %v6399 = vsel %vm2728, %v5982, 0
      %v6402 = vsel %vm2728, %v6014, 0
      %v6405 = vsel %vm2728, %v6046, 0
      %v6408 = vsel %vm2728, %v6078, 0
      %v6411 = vsel %vm2728, %v6110, 0
      %v6414 = vsel %vm2728, %v6142, 0
      %v6417 = vsel %vm2728, %v6174, 0
      %v6420 = vsel %vm2728, %v6206, 0
      %v6423 = vsel %vm2728, %v6278, 0
      %6425 = vmatprep.subr.bf16.mxu0 0
      %6426 = vmatpush1.bf16.msra.mxu0 %v6360
      %6427 = vmatprep.subr.bf16.mxu0 0
      %6428 = vmatpush1.bf16.msra.mxu0 %v6359
      %6429 = vmatprep.subr.bf16.mxu0 0
      %6430 = vmatpush1.bf16.msra.mxu0 %v6358
      %6431 = vmatprep.subr.bf16.mxu0 0
      %6432 = vmatpush1.bf16.msra.mxu0 %v6357
      %6433 = vmatprep.subr.bf16.mxu0 0
      %6434 = vmatpush1.bf16.msra.mxu0 %v6356
      %6435 = vmatprep.subr.bf16.mxu0 0
      %6436 = vmatpush1.bf16.msra.mxu0 %v6355
      %6437 = vmatprep.subr.bf16.mxu0 0
      %6438 = vmatpush1.bf16.msra.mxu0 %v6354
      %6439 = vmatprep.subr.bf16.mxu0 0
      %6440 = vmatpush1.bf16.msra.mxu0 %v6353
      %6441 = vmatprep.subr.bf16.mxu0 0
      %6442 = vmatpush2.bf16.msra.mxu0 0
      %6443 = vmatprep.subr.bf16.mxu0 0
      %6444 = vmatpush2.bf16.msra.mxu0 0
      %6445 = vmatprep.subr.bf16.mxu0 0
      %6446 = vmatpush2.bf16.msra.mxu0 0
      %6447 = vmatprep.subr.bf16.mxu0 0
      %6448 = vmatpush2.bf16.msra.mxu0 0
      %6449 = vmatprep.subr.bf16.mxu0 0
      %6450 = vmatpush2.bf16.msra.mxu0 %v6364
      %6451 = vmatprep.subr.bf16.mxu0 0
      %6452 = vmatpush2.bf16.msra.mxu0 %v6363
      %6453 = vmatprep.subr.bf16.mxu0 0
      %6454 = vmatpush2.bf16.msra.mxu0 %v6362
      %6455 = vmatprep.subr.bf16.mxu0 0
      %6456 = vmatpush2.bf16.msra.mxu0 %v6361
      %6457 = vmatprep.mubr.bf16.mxu0 %v6378
      %6458 = vmatmul.mubr.bf16.gmra.mxu0 %v5741
      %v6459 = vpop.f32.mrf.mxu0
      %v6460 = vadd.f32 0.0, %v6459
      %v6461 = vpop.f32.mrf.mxu0
      %v6462 = vpop.f32.mrf.mxu0
      %v6463 = vadd.f32 0.0, %v6462
      %v6464 = vpop.f32.mrf.mxu0
      %6465 = vmatprep.mubr.bf16.mxu0 %v6381
      %6466 = vmatmul.mubr.bf16.gmra.mxu0 %v5773
      %v6467 = vpop.f32.mrf.mxu0
      %v6468 = vadd.f32 0.0, %v6467
      %v6469 = vpop.f32.mrf.mxu0
      %v6470 = vpop.f32.mrf.mxu0
      %v6471 = vadd.f32 0.0, %v6470
      %v6472 = vpop.f32.mrf.mxu0
      %6473 = vmatprep.mubr.bf16.mxu0 %v6384
      %6474 = vmatmul.mubr.bf16.gmra.mxu0 %v5805
      %v6475 = vpop.f32.mrf.mxu0
      %v6476 = vadd.f32 0.0, %v6475
      %v6477 = vpop.f32.mrf.mxu0
      %v6478 = vpop.f32.mrf.mxu0
      %v6479 = vadd.f32 0.0, %v6478
      %v6480 = vpop.f32.mrf.mxu0
      %6481 = vmatprep.mubr.bf16.mxu0 %v6387
      %6482 = vmatmul.mubr.bf16.gmra.mxu0 %v5837
      %v6483 = vpop.f32.mrf.mxu0
      %v6484 = vadd.f32 0.0, %v6483
      %v6485 = vpop.f32.mrf.mxu0
      %v6486 = vpop.f32.mrf.mxu0
      %v6487 = vadd.f32 0.0, %v6486
      %v6488 = vpop.f32.mrf.mxu0
      %6489 = vmatprep.mubr.bf16.mxu0 %v6390
      %6490 = vmatmul.mubr.bf16.gmra.mxu0 %v5869
      %v6491 = vpop.f32.mrf.mxu0
      %v6492 = vadd.f32 0.0, %v6491
      %v6493 = vpop.f32.mrf.mxu0
      %v6494 = vpop.f32.mrf.mxu0
      %v6495 = vadd.f32 0.0, %v6494
      %v6496 = vpop.f32.mrf.mxu0
      %6497 = vmatprep.mubr.bf16.mxu0 %v6393
      %6498 = vmatmul.mubr.bf16.gmra.mxu0 %v5901
      %v6499 = vpop.f32.mrf.mxu0
      %v6500 = vadd.f32 0.0, %v6499
      %v6501 = vpop.f32.mrf.mxu0
      %v6502 = vpop.f32.mrf.mxu0
      %v6503 = vadd.f32 0.0, %v6502
      %v6504 = vpop.f32.mrf.mxu0
      %6505 = vmatprep.mubr.bf16.mxu0 %v6396
      %6506 = vmatmul.mubr.bf16.gmra.mxu0 %v5933
      %v6507 = vpop.f32.mrf.mxu0
      %v6508 = vadd.f32 0.0, %v6507
      %v6509 = vpop.f32.mrf.mxu0
      %v6510 = vpop.f32.mrf.mxu0
      %v6511 = vadd.f32 0.0, %v6510
      %v6512 = vpop.f32.mrf.mxu0
      %6513 = vmatprep.mubr.bf16.mxu0 %v6399
      %6514 = vmatmul.mubr.bf16.gmra.mxu0 %v5965
      %v6515 = vpop.f32.mrf.mxu0
      %v6516 = vadd.f32 0.0, %v6515
      %v6517 = vpop.f32.mrf.mxu0
      %v6518 = vpop.f32.mrf.mxu0
      %v6519 = vadd.f32 0.0, %v6518
      %v6520 = vpop.f32.mrf.mxu0
      %6521 = vmatprep.mubr.bf16.mxu0 %v6402
      %6522 = vmatmul.mubr.bf16.gmra.mxu0 %v5997
      %v6523 = vpop.f32.mrf.mxu0
      %v6524 = vadd.f32 0.0, %v6523
      %v6525 = vpop.f32.mrf.mxu0
      %v6526 = vpop.f32.mrf.mxu0
      %v6527 = vadd.f32 0.0, %v6526
      %v6528 = vpop.f32.mrf.mxu0
      %6529 = vmatprep.mubr.bf16.mxu0 %v6405
      %6530 = vmatmul.mubr.bf16.gmra.mxu0 %v6029
      %v6531 = vpop.f32.mrf.mxu0
      %v6532 = vadd.f32 0.0, %v6531
      %v6533 = vpop.f32.mrf.mxu0
      %v6534 = vpop.f32.mrf.mxu0
      %v6535 = vadd.f32 0.0, %v6534
      %v6536 = vpop.f32.mrf.mxu0
      %6537 = vmatprep.mubr.bf16.mxu0 %v6408
      %6538 = vmatmul.mubr.bf16.gmra.mxu0 %v6061
      %v6539 = vpop.f32.mrf.mxu0
      %v6540 = vadd.f32 0.0, %v6539
      %v6541 = vpop.f32.mrf.mxu0
      %v6542 = vpop.f32.mrf.mxu0
      %v6543 = vadd.f32 0.0, %v6542
      %v6544 = vpop.f32.mrf.mxu0
      %6545 = vmatprep.mubr.bf16.mxu0 %v6411
      %6546 = vmatmul.mubr.bf16.gmra.mxu0 %v6093
      %v6547 = vpop.f32.mrf.mxu0
      %v6548 = vadd.f32 0.0, %v6547
      %v6549 = vpop.f32.mrf.mxu0
      %v6550 = vpop.f32.mrf.mxu0
      %v6551 = vadd.f32 0.0, %v6550
      %v6552 = vpop.f32.mrf.mxu0
      %6553 = vmatprep.mubr.bf16.mxu0 %v6414
      %6554 = vmatmul.mubr.bf16.gmra.mxu0 %v6125
      %v6555 = vpop.f32.mrf.mxu0
      %v6556 = vadd.f32 0.0, %v6555
      %v6557 = vpop.f32.mrf.mxu0
      %v6558 = vpop.f32.mrf.mxu0
      %v6559 = vadd.f32 0.0, %v6558
      %v6560 = vpop.f32.mrf.mxu0
      %6561 = vmatprep.mubr.bf16.mxu0 %v6417
      %6562 = vmatmul.mubr.bf16.gmra.mxu0 %v6157
      %v6563 = vpop.f32.mrf.mxu0
      %v6564 = vadd.f32 0.0, %v6563
      %v6565 = vpop.f32.mrf.mxu0
      %v6566 = vpop.f32.mrf.mxu0
      %v6567 = vadd.f32 0.0, %v6566
      %v6568 = vpop.f32.mrf.mxu0
      %6569 = vmatprep.mubr.bf16.mxu0 %v6420
      %6570 = vmatmul.mubr.bf16.gmra.mxu0 %v6189
      %v6571 = vpop.f32.mrf.mxu0
      %v6572 = vadd.f32 0.0, %v6571
      %v6573 = vpop.f32.mrf.mxu0
      %v6574 = vpop.f32.mrf.mxu0
      %v6575 = vadd.f32 0.0, %v6574
      %v6576 = vpop.f32.mrf.mxu0
      %6577 = vmatprep.mubr.bf16.mxu0 %v6423
      %6578 = vmatmul.mubr.bf16.gmra.mxu0 %v6261
      %v6579 = vpop.f32.mrf.mxu0
      %v6580 = vadd.f32 0.0, %v6579
      %v6581 = vpop.f32.mrf.mxu0
      %v6582 = vpop.f32.mrf.mxu0
      %v6583 = vadd.f32 0.0, %v6582
      %v6584 = vpop.f32.mrf.mxu0
      %6585 = vdwg.mxu0
      %v6610 = vunpack.c.l.b16 %v6223
      %v6611 = vunpack.c.l.b16 %v6224
      %v6612 = vunpack.c.l.b16 %v6225
      %v6613 = vunpack.c.l.b16 %v6226
      %v6614 = vunpack.c.l.b16 %v6227
      %v6615 = vunpack.c.l.b16 %v6228
      %v6616 = vunpack.c.l.b16 %v6229
      %v6617 = vunpack.c.l.b16 %v6230
      %v6618 = vunpack.c.l.b16 %v6231
      %v6619 = vunpack.c.l.b16 %v6232
      %v6620 = vunpack.c.l.b16 %v6233
      %v6621 = vunpack.c.l.b16 %v6234
      %v6622 = vunpack.c.l.b16 %v6235
      %v6623 = vunpack.c.l.b16 %v6236
      %v6624 = vunpack.c.l.b16 %v6237
      %v6625 = vunpack.c.l.b16 %v6238
      %v6626 = vunpack.c.l.b16 %v6239
      %v6627 = vunpack.c.l.b16 %v6240
      %v6628 = vunpack.c.l.b16 %v6241
      %v6629 = vunpack.c.l.b16 %v6242
      %v6630 = vunpack.c.l.b16 %v6243
      %v6631 = vunpack.c.l.b16 %v6244
      %v6632 = vunpack.c.l.b16 %v6245
      %v6633 = vunpack.c.l.b16 %v6246
      %v6634 = vpack.c.b16 %v6611, %v6610
      %v6635 = vpack.c.b16 %v6613, %v6612
      %v6636 = vpack.c.b16 %v6615, %v6614
      %v6637 = vpack.c.b16 %v6617, %v6616
      %v6638 = vpack.c.b16 %v6619, %v6618
      %v6639 = vpack.c.b16 %v6621, %v6620
      %v6640 = vpack.c.b16 %v6623, %v6622
      %v6641 = vpack.c.b16 %v6625, %v6624
      %v6642 = vpack.c.b16 %v6627, %v6626
      %v6643 = vpack.c.b16 %v6629, %v6628
      %v6644 = vpack.c.b16 %v6631, %v6630
      %v6645 = vpack.c.b16 %v6633, %v6632
      %v6659 = vsel %vm2728, %v5726, 0
      %6661 = vmatprep.subr.bf16.mxu0 0
      %6662 = vmatpush1.bf16.msra.mxu0 %v6641
      %6663 = vmatprep.subr.bf16.mxu0 0
      %6664 = vmatpush1.bf16.msra.mxu0 %v6640
      %6665 = vmatprep.subr.bf16.mxu0 0
      %6666 = vmatpush1.bf16.msra.mxu0 %v6639
      %6667 = vmatprep.subr.bf16.mxu0 0
      %6668 = vmatpush1.bf16.msra.mxu0 %v6638
      %6669 = vmatprep.subr.bf16.mxu0 0
      %6670 = vmatpush1.bf16.msra.mxu0 %v6637
      %6671 = vmatprep.subr.bf16.mxu0 0
      %6672 = vmatpush1.bf16.msra.mxu0 %v6636
      %6673 = vmatprep.subr.bf16.mxu0 0
      %6674 = vmatpush1.bf16.msra.mxu0 %v6635
      %6675 = vmatprep.subr.bf16.mxu0 0
      %6676 = vmatpush1.bf16.msra.mxu0 %v6634
      %6677 = vmatprep.subr.bf16.mxu0 0
      %6678 = vmatpush2.bf16.msra.mxu0 0
      %6679 = vmatprep.subr.bf16.mxu0 0
      %6680 = vmatpush2.bf16.msra.mxu0 0
      %6681 = vmatprep.subr.bf16.mxu0 0
      %6682 = vmatpush2.bf16.msra.mxu0 0
      %6683 = vmatprep.subr.bf16.mxu0 0
      %6684 = vmatpush2.bf16.msra.mxu0 0
      %6685 = vmatprep.subr.bf16.mxu0 0
      %6686 = vmatpush2.bf16.msra.mxu0 %v6645
      %6687 = vmatprep.subr.bf16.mxu0 0
      %6688 = vmatpush2.bf16.msra.mxu0 %v6644
      %6689 = vmatprep.subr.bf16.mxu0 0
      %6690 = vmatpush2.bf16.msra.mxu0 %v6643
      %6691 = vmatprep.subr.bf16.mxu0 0
      %6692 = vmatpush2.bf16.msra.mxu0 %v6642
      %6693 = vmatprep.mubr.bf16.mxu0 %v6659
      %6694 = vmatmul.mubr.bf16.gmra.mxu0 %v5709
      %v6695 = vpop.f32.mrf.mxu0
      %v6696 = vadd.f32 %v6460, %v6695
      %v6697 = vpop.f32.mrf.mxu0
      %v6698 = vpop.f32.mrf.mxu0
      %v6699 = vadd.f32 %v6463, %v6698
      %v6700 = vpop.f32.mrf.mxu0
      %6701 = vmatprep.mubr.bf16.mxu0 %v6378
      %6702 = vmatmul.mubr.bf16.gmra.mxu0 %v5741
      %v6703 = vpop.f32.mrf.mxu0
      %v6704 = vadd.f32 %v6468, %v6703
      %v6705 = vpop.f32.mrf.mxu0
      %v6706 = vpop.f32.mrf.mxu0
      %v6707 = vadd.f32 %v6471, %v6706
      %v6708 = vpop.f32.mrf.mxu0
      %6709 = vmatprep.mubr.bf16.mxu0 %v6381
      %6710 = vmatmul.mubr.bf16.gmra.mxu0 %v5773
      %v6711 = vpop.f32.mrf.mxu0
      %v6712 = vadd.f32 %v6476, %v6711
      %v6713 = vpop.f32.mrf.mxu0
      %v6714 = vpop.f32.mrf.mxu0
      %v6715 = vadd.f32 %v6479, %v6714
      %v6716 = vpop.f32.mrf.mxu0
      %6717 = vmatprep.mubr.bf16.mxu0 %v6384
      %6718 = vmatmul.mubr.bf16.gmra.mxu0 %v5805
      %v6719 = vpop.f32.mrf.mxu0
      %v6720 = vadd.f32 %v6484, %v6719
      %v6721 = vpop.f32.mrf.mxu0
      %v6722 = vpop.f32.mrf.mxu0
      %v6723 = vadd.f32 %v6487, %v6722
      %v6724 = vpop.f32.mrf.mxu0
      %6725 = vmatprep.mubr.bf16.mxu0 %v6387
      %6726 = vmatmul.mubr.bf16.gmra.mxu0 %v5837
      %v6727 = vpop.f32.mrf.mxu0
      %v6728 = vadd.f32 %v6492, %v6727
      %v6729 = vpop.f32.mrf.mxu0
      %v6730 = vpop.f32.mrf.mxu0
      %v6731 = vadd.f32 %v6495, %v6730
      %v6732 = vpop.f32.mrf.mxu0
      %6733 = vmatprep.mubr.bf16.mxu0 %v6390
      %6734 = vmatmul.mubr.bf16.gmra.mxu0 %v5869
      %v6735 = vpop.f32.mrf.mxu0
      %v6736 = vadd.f32 %v6500, %v6735
      %v6737 = vpop.f32.mrf.mxu0
      %v6738 = vpop.f32.mrf.mxu0
      %v6739 = vadd.f32 %v6503, %v6738
      %v6740 = vpop.f32.mrf.mxu0
      %6741 = vmatprep.mubr.bf16.mxu0 %v6393
      %6742 = vmatmul.mubr.bf16.gmra.mxu0 %v5901
      %v6743 = vpop.f32.mrf.mxu0
      %v6744 = vadd.f32 %v6508, %v6743
      %v6745 = vpop.f32.mrf.mxu0
      %v6746 = vpop.f32.mrf.mxu0
      %v6747 = vadd.f32 %v6511, %v6746
      %v6748 = vpop.f32.mrf.mxu0
      %6749 = vmatprep.mubr.bf16.mxu0 %v6396
      %6750 = vmatmul.mubr.bf16.gmra.mxu0 %v5933
      %v6751 = vpop.f32.mrf.mxu0
      %v6752 = vadd.f32 %v6516, %v6751
      %v6753 = vpop.f32.mrf.mxu0
      %v6754 = vpop.f32.mrf.mxu0
      %v6755 = vadd.f32 %v6519, %v6754
      %v6756 = vpop.f32.mrf.mxu0
      %6757 = vmatprep.mubr.bf16.mxu0 %v6399
      %6758 = vmatmul.mubr.bf16.gmra.mxu0 %v5965
      %v6759 = vpop.f32.mrf.mxu0
      %v6760 = vadd.f32 %v6524, %v6759
      %v6761 = vpop.f32.mrf.mxu0
      %v6762 = vpop.f32.mrf.mxu0
      %v6763 = vadd.f32 %v6527, %v6762
      %v6764 = vpop.f32.mrf.mxu0
      %6765 = vmatprep.mubr.bf16.mxu0 %v6402
      %6766 = vmatmul.mubr.bf16.gmra.mxu0 %v5997
      %v6767 = vpop.f32.mrf.mxu0
      %v6768 = vadd.f32 %v6532, %v6767
      %v6769 = vpop.f32.mrf.mxu0
      %v6770 = vpop.f32.mrf.mxu0
      %v6771 = vadd.f32 %v6535, %v6770
      %v6772 = vpop.f32.mrf.mxu0
      %6773 = vmatprep.mubr.bf16.mxu0 %v6405
      %6774 = vmatmul.mubr.bf16.gmra.mxu0 %v6029
      %v6775 = vpop.f32.mrf.mxu0
      %v6776 = vadd.f32 %v6540, %v6775
      %v6777 = vpop.f32.mrf.mxu0
      %v6778 = vpop.f32.mrf.mxu0
      %v6779 = vadd.f32 %v6543, %v6778
      %v6780 = vpop.f32.mrf.mxu0
      %6781 = vmatprep.mubr.bf16.mxu0 %v6408
      %6782 = vmatmul.mubr.bf16.gmra.mxu0 %v6061
      %v6783 = vpop.f32.mrf.mxu0
      %v6784 = vadd.f32 %v6548, %v6783
      %v6785 = vpop.f32.mrf.mxu0
      %v6786 = vpop.f32.mrf.mxu0
      %v6787 = vadd.f32 %v6551, %v6786
      %v6788 = vpop.f32.mrf.mxu0
      %6789 = vmatprep.mubr.bf16.mxu0 %v6411
      %6790 = vmatmul.mubr.bf16.gmra.mxu0 %v6093
      %v6791 = vpop.f32.mrf.mxu0
      %v6792 = vadd.f32 %v6556, %v6791
      %v6793 = vpop.f32.mrf.mxu0
      %v6794 = vpop.f32.mrf.mxu0
      %v6795 = vadd.f32 %v6559, %v6794
      %v6796 = vpop.f32.mrf.mxu0
      %6797 = vmatprep.mubr.bf16.mxu0 %v6414
      %6798 = vmatmul.mubr.bf16.gmra.mxu0 %v6125
      %v6799 = vpop.f32.mrf.mxu0
      %v6800 = vadd.f32 %v6564, %v6799
      %v6801 = vpop.f32.mrf.mxu0
      %v6802 = vpop.f32.mrf.mxu0
      %v6803 = vadd.f32 %v6567, %v6802
      %v6804 = vpop.f32.mrf.mxu0
      %6805 = vmatprep.mubr.bf16.mxu0 %v6417
      %6806 = vmatmul.mubr.bf16.gmra.mxu0 %v6157
      %v6807 = vpop.f32.mrf.mxu0
      %v6808 = vadd.f32 %v6572, %v6807
      %v6809 = vpop.f32.mrf.mxu0
      %v6810 = vpop.f32.mrf.mxu0
      %v6811 = vadd.f32 %v6575, %v6810
      %v6812 = vpop.f32.mrf.mxu0
      %6813 = vmatprep.mubr.bf16.mxu0 %v6420
      %6814 = vmatmul.mubr.bf16.gmra.mxu0 %v6189
      %v6815 = vpop.f32.mrf.mxu0
      %v6816 = vadd.f32 %v6580, %v6815
      %v6817 = vpop.f32.mrf.mxu0
      %v6818 = vpop.f32.mrf.mxu0
      %v6819 = vadd.f32 %v6583, %v6818
      %v6820 = vpop.f32.mrf.mxu0
      %6821 = vdwg.mxu0
      %v6822 = vshrl.u32 %v5691, 16
      %v6824 = vrot.slane %v6822, 3
      %v6825 = vshll.u32 %v5691, 16
      %v6827 = vrot.slane %v6825, 4
      %v6828 = vor.u32 %v6824, %v6827
      %v6829 = vshrl.u32 %v5693, 16
      %v6831 = vrot.slane %v6829, 3
      %v6832 = vshll.u32 %v5693, 16
      %v6834 = vrot.slane %v6832, 4
      %v6835 = vor.u32 %v6831, %v6834
      %v6836 = vsel %vm5694, %v6828, %v6835
      %v6838 = vshrl.u32 %v5601, 16
      %v6840 = vrot.slane %v6838, 3
      %v6841 = vshll.u32 %v5601, 16
      %v6843 = vrot.slane %v6841, 4
      %v6844 = vor.u32 %v6840, %v6843
      %v6846 = vshrl.u32 %v5603, 16
      %v6848 = vrot.slane %v6846, 3
      %v6849 = vshll.u32 %v5603, 16
      %v6851 = vrot.slane %v6849, 4
      %v6852 = vor.u32 %v6848, %v6851
      %v6853 = vsel %vm5694, %v6844, %v6852
      %s6855 = scalar_lea.vmem %s4, 192
      %v6856 = vld [vmem:[%s6855] sm:$0xf]
      %v6857 = vld [vmem:[%s6855 + $0x4] sm:$0xf]
      %v6858 = vld [vmem:[%s6855 + $0x8] sm:$0xf]
      %v6859 = vld [vmem:[%s6855 + $0xc] sm:$0xf]
      %v6860 = vld [vmem:[%s6855 + $0x10] sm:$0xf]
      %v6861 = vld [vmem:[%s6855 + $0x14] sm:$0xf]
      %v6862 = vld [vmem:[%s6855 + $0x18] sm:$0xf]
      %v6863 = vld [vmem:[%s6855 + $0x1c] sm:$0xf]
      %v6864 = vld [vmem:[%s6855 + $0x20] sm:$0xf]
      %v6865 = vld [vmem:[%s6855 + $0x24] sm:$0xf]
      %v6866 = vld [vmem:[%s6855 + $0x28] sm:$0xf]
      %v6867 = vld [vmem:[%s6855 + $0x2c] sm:$0xf]
      %v6868 = vld [vmem:[%s6855 + $0x30] sm:$0xf]
      %v6869 = vld [vmem:[%s6855 + $0x34] sm:$0xf]
      %v6870 = vld [vmem:[%s6855 + $0x38] sm:$0xf]
      %v6871 = vld [vmem:[%s6855 + $0x3c] sm:$0xf]
      %v6872 = vld [vmem:[%s6855 + $0x40] sm:$0xf]
      %v6873 = vld [vmem:[%s6855 + $0x44] sm:$0xf]
      %v6874 = vld [vmem:[%s6855 + $0x48] sm:$0xf]
      %v6875 = vld [vmem:[%s6855 + $0x4c] sm:$0xf]
      %v6876 = vld [vmem:[%s6855 + $0x50] sm:$0xf]
      %v6877 = vld [vmem:[%s6855 + $0x54] sm:$0xf]
      %v6878 = vld [vmem:[%s6855 + $0x58] sm:$0xf]
      %v6879 = vld [vmem:[%s6855 + $0x5c] sm:$0xf]
      %v6904 = vunpack.c.l.b16 %v6856
      %v6905 = vunpack.c.l.b16 %v6857
      %v6906 = vunpack.c.l.b16 %v6858
      %v6907 = vunpack.c.l.b16 %v6859
      %v6908 = vunpack.c.l.b16 %v6860
      %v6909 = vunpack.c.l.b16 %v6861
      %v6910 = vunpack.c.l.b16 %v6862
      %v6911 = vunpack.c.l.b16 %v6863
      %v6912 = vunpack.c.l.b16 %v6864
      %v6913 = vunpack.c.l.b16 %v6865
      %v6914 = vunpack.c.l.b16 %v6866
      %v6915 = vunpack.c.l.b16 %v6867
      %v6916 = vunpack.c.l.b16 %v6868
      %v6917 = vunpack.c.l.b16 %v6869
      %v6918 = vunpack.c.l.b16 %v6870
      %v6919 = vunpack.c.l.b16 %v6871
      %v6920 = vunpack.c.l.b16 %v6872
      %v6921 = vunpack.c.l.b16 %v6873
      %v6922 = vunpack.c.l.b16 %v6874
      %v6923 = vunpack.c.l.b16 %v6875
      %v6924 = vunpack.c.l.b16 %v6876
      %v6925 = vunpack.c.l.b16 %v6877
      %v6926 = vunpack.c.l.b16 %v6878
      %v6927 = vunpack.c.l.b16 %v6879
      %v6928 = vpack.c.b16 %v6905, %v6904
      %v6929 = vpack.c.b16 %v6907, %v6906
      %v6930 = vpack.c.b16 %v6909, %v6908
      %v6931 = vpack.c.b16 %v6911, %v6910
      %v6932 = vpack.c.b16 %v6913, %v6912
      %v6933 = vpack.c.b16 %v6915, %v6914
      %v6934 = vpack.c.b16 %v6917, %v6916
      %v6935 = vpack.c.b16 %v6919, %v6918
      %v6936 = vpack.c.b16 %v6921, %v6920
      %v6937 = vpack.c.b16 %v6923, %v6922
      %v6938 = vpack.c.b16 %v6925, %v6924
      %v6939 = vpack.c.b16 %v6927, %v6926
      %v6953 = vsel %vm2728, %v6853, 0
      %6955 = vmatprep.subr.bf16.mxu0 0
      %6956 = vmatpush1.bf16.msra.mxu0 %v6935
      %6957 = vmatprep.subr.bf16.mxu0 0
      %6958 = vmatpush1.bf16.msra.mxu0 %v6934
      %6959 = vmatprep.subr.bf16.mxu0 0
      %6960 = vmatpush1.bf16.msra.mxu0 %v6933
      %6961 = vmatprep.subr.bf16.mxu0 0
      %6962 = vmatpush1.bf16.msra.mxu0 %v6932
      %6963 = vmatprep.subr.bf16.mxu0 0
      %6964 = vmatpush1.bf16.msra.mxu0 %v6931
      %6965 = vmatprep.subr.bf16.mxu0 0
      %6966 = vmatpush1.bf16.msra.mxu0 %v6930
      %6967 = vmatprep.subr.bf16.mxu0 0
      %6968 = vmatpush1.bf16.msra.mxu0 %v6929
      %6969 = vmatprep.subr.bf16.mxu0 0
      %6970 = vmatpush1.bf16.msra.mxu0 %v6928
      %6971 = vmatprep.subr.bf16.mxu0 0
      %6972 = vmatpush2.bf16.msra.mxu0 0
      %6973 = vmatprep.subr.bf16.mxu0 0
      %6974 = vmatpush2.bf16.msra.mxu0 0
      %6975 = vmatprep.subr.bf16.mxu0 0
      %6976 = vmatpush2.bf16.msra.mxu0 0
      %6977 = vmatprep.subr.bf16.mxu0 0
      %6978 = vmatpush2.bf16.msra.mxu0 0
      %6979 = vmatprep.subr.bf16.mxu0 0
      %6980 = vmatpush2.bf16.msra.mxu0 %v6939
      %6981 = vmatprep.subr.bf16.mxu0 0
      %6982 = vmatpush2.bf16.msra.mxu0 %v6938
      %6983 = vmatprep.subr.bf16.mxu0 0
      %6984 = vmatpush2.bf16.msra.mxu0 %v6937
      %6985 = vmatprep.subr.bf16.mxu0 0
      %6986 = vmatpush2.bf16.msra.mxu0 %v6936
      %6987 = vmatprep.mubr.bf16.mxu0 %v6381
      %6988 = vmatmul.mubr.bf16.gmra.mxu0 %v5773
      %v6989 = vpop.f32.mrf.mxu0
      %v6990 = vadd.f32 0.0, %v6989
      %v6991 = vpop.f32.mrf.mxu0
      %v6992 = vpop.f32.mrf.mxu0
      %v6993 = vadd.f32 0.0, %v6992
      %v6994 = vpop.f32.mrf.mxu0
      %6995 = vmatprep.mubr.bf16.mxu0 %v6384
      %6996 = vmatmul.mubr.bf16.gmra.mxu0 %v5805
      %v6997 = vpop.f32.mrf.mxu0
      %v6998 = vadd.f32 0.0, %v6997
      %v6999 = vpop.f32.mrf.mxu0
      %v7000 = vpop.f32.mrf.mxu0
      %v7001 = vadd.f32 0.0, %v7000
      %v7002 = vpop.f32.mrf.mxu0
      %7003 = vmatprep.mubr.bf16.mxu0 %v6387
      %7004 = vmatmul.mubr.bf16.gmra.mxu0 %v5837
      %v7005 = vpop.f32.mrf.mxu0
      %v7006 = vadd.f32 0.0, %v7005
      %v7007 = vpop.f32.mrf.mxu0
      %v7008 = vpop.f32.mrf.mxu0
      %v7009 = vadd.f32 0.0, %v7008
      %v7010 = vpop.f32.mrf.mxu0
      %7011 = vmatprep.mubr.bf16.mxu0 %v6390
      %7012 = vmatmul.mubr.bf16.gmra.mxu0 %v5869
      %v7013 = vpop.f32.mrf.mxu0
      %v7014 = vadd.f32 0.0, %v7013
      %v7015 = vpop.f32.mrf.mxu0
      %v7016 = vpop.f32.mrf.mxu0
      %v7017 = vadd.f32 0.0, %v7016
      %v7018 = vpop.f32.mrf.mxu0
      %7019 = vmatprep.mubr.bf16.mxu0 %v6393
      %7020 = vmatmul.mubr.bf16.gmra.mxu0 %v5901
      %v7021 = vpop.f32.mrf.mxu0
      %v7022 = vadd.f32 0.0, %v7021
      %v7023 = vpop.f32.mrf.mxu0
      %v7024 = vpop.f32.mrf.mxu0
      %v7025 = vadd.f32 0.0, %v7024
      %v7026 = vpop.f32.mrf.mxu0
      %7027 = vmatprep.mubr.bf16.mxu0 %v6396
      %7028 = vmatmul.mubr.bf16.gmra.mxu0 %v5933
      %v7029 = vpop.f32.mrf.mxu0
      %v7030 = vadd.f32 0.0, %v7029
      %v7031 = vpop.f32.mrf.mxu0
      %v7032 = vpop.f32.mrf.mxu0
      %v7033 = vadd.f32 0.0, %v7032
      %v7034 = vpop.f32.mrf.mxu0
      %7035 = vmatprep.mubr.bf16.mxu0 %v6399
      %7036 = vmatmul.mubr.bf16.gmra.mxu0 %v5965
      %v7037 = vpop.f32.mrf.mxu0
      %v7038 = vadd.f32 0.0, %v7037
      %v7039 = vpop.f32.mrf.mxu0
      %v7040 = vpop.f32.mrf.mxu0
      %v7041 = vadd.f32 0.0, %v7040
      %v7042 = vpop.f32.mrf.mxu0
      %7043 = vmatprep.mubr.bf16.mxu0 %v6402
      %7044 = vmatmul.mubr.bf16.gmra.mxu0 %v5997
      %v7045 = vpop.f32.mrf.mxu0
      %v7046 = vadd.f32 0.0, %v7045
      %v7047 = vpop.f32.mrf.mxu0
      %v7048 = vpop.f32.mrf.mxu0
      %v7049 = vadd.f32 0.0, %v7048
      %v7050 = vpop.f32.mrf.mxu0
      %7051 = vmatprep.mubr.bf16.mxu0 %v6405
      %7052 = vmatmul.mubr.bf16.gmra.mxu0 %v6029
      %v7053 = vpop.f32.mrf.mxu0
      %v7054 = vadd.f32 0.0, %v7053
      %v7055 = vpop.f32.mrf.mxu0
      %v7056 = vpop.f32.mrf.mxu0
      %v7057 = vadd.f32 0.0, %v7056
      %v7058 = vpop.f32.mrf.mxu0
      %7059 = vmatprep.mubr.bf16.mxu0 %v6408
      %7060 = vmatmul.mubr.bf16.gmra.mxu0 %v6061
      %v7061 = vpop.f32.mrf.mxu0
      %v7062 = vadd.f32 0.0, %v7061
      %v7063 = vpop.f32.mrf.mxu0
      %v7064 = vpop.f32.mrf.mxu0
      %v7065 = vadd.f32 0.0, %v7064
      %v7066 = vpop.f32.mrf.mxu0
      %7067 = vmatprep.mubr.bf16.mxu0 %v6411
      %7068 = vmatmul.mubr.bf16.gmra.mxu0 %v6093
      %v7069 = vpop.f32.mrf.mxu0
      %v7070 = vadd.f32 0.0, %v7069
      %v7071 = vpop.f32.mrf.mxu0
      %v7072 = vpop.f32.mrf.mxu0
      %v7073 = vadd.f32 0.0, %v7072
      %v7074 = vpop.f32.mrf.mxu0
      %7075 = vmatprep.mubr.bf16.mxu0 %v6414
      %7076 = vmatmul.mubr.bf16.gmra.mxu0 %v6125
      %v7077 = vpop.f32.mrf.mxu0
      %v7078 = vadd.f32 0.0, %v7077
      %v7079 = vpop.f32.mrf.mxu0
      %v7080 = vpop.f32.mrf.mxu0
      %v7081 = vadd.f32 0.0, %v7080
      %v7082 = vpop.f32.mrf.mxu0
      %7083 = vmatprep.mubr.bf16.mxu0 %v6417
      %7084 = vmatmul.mubr.bf16.gmra.mxu0 %v6157
      %v7085 = vpop.f32.mrf.mxu0
      %v7086 = vadd.f32 0.0, %v7085
      %v7087 = vpop.f32.mrf.mxu0
      %v7088 = vpop.f32.mrf.mxu0
      %v7089 = vadd.f32 0.0, %v7088
      %v7090 = vpop.f32.mrf.mxu0
      %7091 = vmatprep.mubr.bf16.mxu0 %v6420
      %7092 = vmatmul.mubr.bf16.gmra.mxu0 %v6189
      %v7093 = vpop.f32.mrf.mxu0
      %v7094 = vadd.f32 0.0, %v7093
      %v7095 = vpop.f32.mrf.mxu0
      %v7096 = vpop.f32.mrf.mxu0
      %v7097 = vadd.f32 0.0, %v7096
      %v7098 = vpop.f32.mrf.mxu0
      %7099 = vmatprep.mubr.bf16.mxu0 %v6423
      %7100 = vmatmul.mubr.bf16.gmra.mxu0 %v6261
      %v7101 = vpop.f32.mrf.mxu0
      %v7102 = vadd.f32 0.0, %v7101
      %v7103 = vpop.f32.mrf.mxu0
      %v7104 = vpop.f32.mrf.mxu0
      %v7105 = vadd.f32 0.0, %v7104
      %v7106 = vpop.f32.mrf.mxu0
      %7107 = vmatprep.mubr.bf16.mxu0 %v6953
      %7108 = vmatmul.mubr.bf16.gmra.mxu0 %v6836
      %v7109 = vpop.f32.mrf.mxu0
      %v7110 = vadd.f32 0.0, %v7109
      %v7111 = vpop.f32.mrf.mxu0
      %v7112 = vpop.f32.mrf.mxu0
      %v7113 = vadd.f32 0.0, %v7112
      %v7114 = vpop.f32.mrf.mxu0
      %7115 = vdwg.mxu0
      %v7116 = vadd.f32 %v6696, %v6990
      %v7117 = vadd.f32 %v6699, %v6993
      %v7118 = vadd.f32 %v6704, %v6998
      %v7119 = vadd.f32 %v6707, %v7001
      %v7120 = vadd.f32 %v6712, %v7006
      %v7121 = vadd.f32 %v6715, %v7009
      %v7122 = vadd.f32 %v6720, %v7014
      %v7123 = vadd.f32 %v6723, %v7017
      %v7124 = vadd.f32 %v6728, %v7022
      %v7125 = vadd.f32 %v6731, %v7025
      %v7126 = vadd.f32 %v6736, %v7030
      %v7127 = vadd.f32 %v6739, %v7033
      %v7128 = vadd.f32 %v6744, %v7038
      %v7129 = vadd.f32 %v6747, %v7041
      %v7130 = vadd.f32 %v6752, %v7046
      %v7131 = vadd.f32 %v6755, %v7049
      %v7132 = vadd.f32 %v6760, %v7054
      %v7133 = vadd.f32 %v6763, %v7057
      %v7134 = vadd.f32 %v6768, %v7062
      %v7135 = vadd.f32 %v6771, %v7065
      %v7136 = vadd.f32 %v6776, %v7070
      %v7137 = vadd.f32 %v6779, %v7073
      %v7138 = vadd.f32 %v6784, %v7078
      %v7139 = vadd.f32 %v6787, %v7081
      %v7140 = vadd.f32 %v6792, %v7086
      %v7141 = vadd.f32 %v6795, %v7089
      %v7142 = vadd.f32 %v6800, %v7094
      %v7143 = vadd.f32 %v6803, %v7097
      %v7144 = vadd.f32 %v6808, %v7102
      %v7145 = vadd.f32 %v6811, %v7105
      %v7146 = vadd.f32 %v6816, %v7110
      %v7147 = vadd.f32 %v6819, %v7113
      %v7148 = vld [vmem:[%s7] sm:$0x1]
      %v7150 = vlaneseq
      %v7151 = vshrl.u32 %v7150, 7
      %v7152 = vsub.s32 0, %v7151
      %v7153 = vrot.slane %v7148, %v7152
      %v7155 = vadd.f32 %v7116, %v7153
      %v7156 = vadd.f32 %v7117, %v7153
      %v7157 = vadd.f32 %v7118, %v7153
      %v7158 = vadd.f32 %v7119, %v7153
      %v7159 = vadd.f32 %v7120, %v7153
      %v7160 = vadd.f32 %v7121, %v7153
      %v7161 = vadd.f32 %v7122, %v7153
      %v7162 = vadd.f32 %v7123, %v7153
      %v7163 = vadd.f32 %v7124, %v7153
      %v7164 = vadd.f32 %v7125, %v7153
      %v7165 = vadd.f32 %v7126, %v7153
      %v7166 = vadd.f32 %v7127, %v7153
      %v7167 = vadd.f32 %v7128, %v7153
      %v7168 = vadd.f32 %v7129, %v7153
      %v7169 = vadd.f32 %v7130, %v7153
      %v7170 = vadd.f32 %v7131, %v7153
      %v7171 = vadd.f32 %v7132, %v7153
      %v7172 = vadd.f32 %v7133, %v7153
      %v7173 = vadd.f32 %v7134, %v7153
      %v7174 = vadd.f32 %v7135, %v7153
      %v7175 = vadd.f32 %v7136, %v7153
      %v7176 = vadd.f32 %v7137, %v7153
      %v7177 = vadd.f32 %v7138, %v7153
      %v7178 = vadd.f32 %v7139, %v7153
      %v7179 = vadd.f32 %v7140, %v7153
      %v7180 = vadd.f32 %v7141, %v7153
      %v7181 = vadd.f32 %v7142, %v7153
      %v7182 = vadd.f32 %v7143, %v7153
      %v7183 = vadd.f32 %v7144, %v7153
      %v7184 = vadd.f32 %v7145, %v7153
      %v7185 = vadd.f32 %v7146, %v7153
      %v7186 = vadd.f32 %v7147, %v7153
      %v7187 = vmax.f32 %v7155, 0.0
      %v7188 = vmax.f32 %v7156, 0.0
      %v7189 = vmax.f32 %v7157, 0.0
      %v7190 = vmax.f32 %v7158, 0.0
      %v7191 = vmax.f32 %v7159, 0.0
      %v7192 = vmax.f32 %v7160, 0.0
      %v7193 = vmax.f32 %v7161, 0.0
      %v7194 = vmax.f32 %v7162, 0.0
      %v7195 = vmax.f32 %v7163, 0.0
      %v7196 = vmax.f32 %v7164, 0.0
      %v7197 = vmax.f32 %v7165, 0.0
      %v7198 = vmax.f32 %v7166, 0.0
      %v7199 = vmax.f32 %v7167, 0.0
      %v7200 = vmax.f32 %v7168, 0.0
      %v7201 = vmax.f32 %v7169, 0.0
      %v7202 = vmax.f32 %v7170, 0.0
      %v7203 = vmax.f32 %v7171, 0.0
      %v7204 = vmax.f32 %v7172, 0.0
      %v7205 = vmax.f32 %v7173, 0.0
      %v7206 = vmax.f32 %v7174, 0.0
      %v7207 = vmax.f32 %v7175, 0.0
      %v7208 = vmax.f32 %v7176, 0.0
      %v7209 = vmax.f32 %v7177, 0.0
      %v7210 = vmax.f32 %v7178, 0.0
      %v7211 = vmax.f32 %v7179, 0.0
      %v7212 = vmax.f32 %v7180, 0.0
      %v7213 = vmax.f32 %v7181, 0.0
      %v7214 = vmax.f32 %v7182, 0.0
      %v7215 = vmax.f32 %v7183, 0.0
      %v7216 = vmax.f32 %v7184, 0.0
      %v7217 = vmax.f32 %v7185, 0.0
      %v7218 = vmax.f32 %v7186, 0.0
      %v7219 = vpack.c.bf16 %v7188, %v7187
      %v7220 = vpack.c.bf16 %v7190, %v7189
      %v7221 = vpack.c.bf16 %v7192, %v7191
      %v7222 = vpack.c.bf16 %v7194, %v7193
      %v7223 = vpack.c.bf16 %v7196, %v7195
      %v7224 = vpack.c.bf16 %v7198, %v7197
      %v7225 = vpack.c.bf16 %v7200, %v7199
      %v7226 = vpack.c.bf16 %v7202, %v7201
      %v7227 = vpack.c.bf16 %v7204, %v7203
      %v7228 = vpack.c.bf16 %v7206, %v7205
      %v7229 = vpack.c.bf16 %v7208, %v7207
      %v7230 = vpack.c.bf16 %v7210, %v7209
      %v7231 = vpack.c.bf16 %v7212, %v7211
      %v7232 = vpack.c.bf16 %v7214, %v7213
      %v7233 = vpack.c.bf16 %v7216, %v7215
      %v7234 = vpack.c.bf16 %v7218, %v7217
      %vm7235 = vcmask 781312
      %7236 = vst.msk [vmem:[#allocation4] sm:$0xf] %vm7235, 0
      %7237 = vst.msk [vmem:[#allocation4 + $0x4] sm:$0xf] %vm7235, 0
      %7238 = vst.msk [vmem:[#allocation4 + $0x8] sm:$0xf] %vm7235, 0
      %7239 = vst.msk [vmem:[#allocation4 + $0xc] sm:$0xf] %vm7235, 0
      %s7240 = scalar_lea.vmem [#allocation4], 272
      %7241 = vst.msk [vmem:[%s7240] sm:$0xf] %vm7235, 0
      %7242 = vst.msk [vmem:[%s7240 + $0x4] sm:$0xf] %vm7235, 0
      %7243 = vst.msk [vmem:[%s7240 + $0x8] sm:$0xf] %vm7235, 0
      %7244 = vst.msk [vmem:[%s7240 + $0xc] sm:$0xf] %vm7235, 0
      %vm7245 = vcmask 781315
      %vm7246 = vmand %vm7245, %vm4694
      %v7247 = vld [vmem:[#allocation4] sm:$0x8]
      %v7248 = vsel %vm7246, 0, %v7247
      %7249 = vst [vmem:[#allocation4] sm:$0x8] %v7248
      %v7250 = vld [vmem:[#allocation4 + $0x10] sm:$0x8]
      %v7251 = vsel %vm7246, 0, %v7250
      %7252 = vst [vmem:[#allocation4 + $0x10] sm:$0x8] %v7251
      %v7253 = vld [vmem:[#allocation4 + $0x20] sm:$0x8]
      %v7254 = vsel %vm7246, 0, %v7253
      %7255 = vst [vmem:[#allocation4 + $0x20] sm:$0x8] %v7254
      %v7256 = vld [vmem:[#allocation4 + $0x30] sm:$0x8]
      %v7257 = vsel %vm7246, 0, %v7256
      %7258 = vst [vmem:[#allocation4 + $0x30] sm:$0x8] %v7257
      %v7259 = vld [vmem:[#allocation4 + $0x40] sm:$0x8]
      %v7260 = vsel %vm7246, 0, %v7259
      %7261 = vst [vmem:[#allocation4 + $0x40] sm:$0x8] %v7260
      %v7262 = vld [vmem:[#allocation4 + $0x50] sm:$0x8]
      %v7263 = vsel %vm7246, 0, %v7262
      %7264 = vst [vmem:[#allocation4 + $0x50] sm:$0x8] %v7263
      %v7265 = vld [vmem:[#allocation4 + $0x60] sm:$0x8]
      %v7266 = vsel %vm7246, 0, %v7265
      %7267 = vst [vmem:[#allocation4 + $0x60] sm:$0x8] %v7266
      %v7268 = vld [vmem:[#allocation4 + $0x70] sm:$0x8]
      %v7269 = vsel %vm7246, 0, %v7268
      %7270 = vst [vmem:[#allocation4 + $0x70] sm:$0x8] %v7269
      %v7271 = vld [vmem:[#allocation4 + $0x80] sm:$0x8]
      %v7272 = vsel %vm7246, 0, %v7271
      %7273 = vst [vmem:[#allocation4 + $0x80] sm:$0x8] %v7272
      %v7274 = vld [vmem:[#allocation4 + $0x90] sm:$0x8]
      %v7275 = vsel %vm7246, 0, %v7274
      %7276 = vst [vmem:[#allocation4 + $0x90] sm:$0x8] %v7275
      %v7277 = vld [vmem:[#allocation4 + $0xa0] sm:$0x8]
      %v7278 = vsel %vm7246, 0, %v7277
      %7279 = vst [vmem:[#allocation4 + $0xa0] sm:$0x8] %v7278
      %v7280 = vld [vmem:[#allocation4 + $0xb0] sm:$0x8]
      %v7281 = vsel %vm7246, 0, %v7280
      %7282 = vst [vmem:[#allocation4 + $0xb0] sm:$0x8] %v7281
      %v7283 = vld [vmem:[#allocation4 + $0xc0] sm:$0x8]
      %v7284 = vsel %vm7246, 0, %v7283
      %7285 = vst [vmem:[#allocation4 + $0xc0] sm:$0x8] %v7284
      %v7286 = vld [vmem:[#allocation4 + $0xd0] sm:$0x8]
      %v7287 = vsel %vm7246, 0, %v7286
      %7288 = vst [vmem:[#allocation4 + $0xd0] sm:$0x8] %v7287
      %v7289 = vld [vmem:[#allocation4 + $0xe0] sm:$0x8]
      %v7290 = vsel %vm7246, 0, %v7289
      %7291 = vst [vmem:[#allocation4 + $0xe0] sm:$0x8] %v7290
      %v7292 = vld [vmem:[#allocation4 + $0xf0] sm:$0x8]
      %v7293 = vsel %vm7246, 0, %v7292
      %7294 = vst [vmem:[#allocation4 + $0xf0] sm:$0x8] %v7293
      %v7295 = vld [vmem:[#allocation4 + $0x100] sm:$0x8]
      %v7296 = vsel %vm7246, 0, %v7295
      %7297 = vst [vmem:[#allocation4 + $0x100] sm:$0x8] %v7296
      %v7298 = vld [vmem:[#allocation4 + $0x110] sm:$0x8]
      %v7299 = vsel %vm7246, 0, %v7298
      %7300 = vst [vmem:[#allocation4 + $0x110] sm:$0x8] %v7299
      %vm7301 = vcmask 778240
      %vm7302 = vmand %vm7301, %vm4751
      %v7303 = vld [vmem:[#allocation4 + $0xc] sm:$0x1]
      %v7304 = vsel %vm7302, 0, %v7303
      %7305 = vst [vmem:[#allocation4 + $0xc] sm:$0x1] %v7304
      %v7306 = vld [vmem:[#allocation4 + $0x1c] sm:$0x1]
      %v7307 = vsel %vm7302, 0, %v7306
      %7308 = vst [vmem:[#allocation4 + $0x1c] sm:$0x1] %v7307
      %v7309 = vld [vmem:[#allocation4 + $0x2c] sm:$0x1]
      %v7310 = vsel %vm7302, 0, %v7309
      %7311 = vst [vmem:[#allocation4 + $0x2c] sm:$0x1] %v7310
      %v7312 = vld [vmem:[#allocation4 + $0x3c] sm:$0x1]
      %v7313 = vsel %vm7302, 0, %v7312
      %7314 = vst [vmem:[#allocation4 + $0x3c] sm:$0x1] %v7313
      %v7315 = vld [vmem:[#allocation4 + $0x4c] sm:$0x1]
      %v7316 = vsel %vm7302, 0, %v7315
      %7317 = vst [vmem:[#allocation4 + $0x4c] sm:$0x1] %v7316
      %v7318 = vld [vmem:[#allocation4 + $0x5c] sm:$0x1]
      %v7319 = vsel %vm7302, 0, %v7318
      %7320 = vst [vmem:[#allocation4 + $0x5c] sm:$0x1] %v7319
      %v7321 = vld [vmem:[#allocation4 + $0x6c] sm:$0x1]
      %v7322 = vsel %vm7302, 0, %v7321
      %7323 = vst [vmem:[#allocation4 + $0x6c] sm:$0x1] %v7322
      %v7324 = vld [vmem:[#allocation4 + $0x7c] sm:$0x1]
      %v7325 = vsel %vm7302, 0, %v7324
      %7326 = vst [vmem:[#allocation4 + $0x7c] sm:$0x1] %v7325
      %v7327 = vld [vmem:[#allocation4 + $0x8c] sm:$0x1]
      %v7328 = vsel %vm7302, 0, %v7327
      %7329 = vst [vmem:[#allocation4 + $0x8c] sm:$0x1] %v7328
      %v7330 = vld [vmem:[#allocation4 + $0x9c] sm:$0x1]
      %v7331 = vsel %vm7302, 0, %v7330
      %7332 = vst [vmem:[#allocation4 + $0x9c] sm:$0x1] %v7331
      %v7333 = vld [vmem:[#allocation4 + $0xac] sm:$0x1]
      %v7334 = vsel %vm7302, 0, %v7333
      %7335 = vst [vmem:[#allocation4 + $0xac] sm:$0x1] %v7334
      %v7336 = vld [vmem:[#allocation4 + $0xbc] sm:$0x1]
      %v7337 = vsel %vm7302, 0, %v7336
      %7338 = vst [vmem:[#allocation4 + $0xbc] sm:$0x1] %v7337
      %v7339 = vld [vmem:[#allocation4 + $0xcc] sm:$0x1]
      %v7340 = vsel %vm7302, 0, %v7339
      %7341 = vst [vmem:[#allocation4 + $0xcc] sm:$0x1] %v7340
      %v7342 = vld [vmem:[#allocation4 + $0xdc] sm:$0x1]
      %v7343 = vsel %vm7302, 0, %v7342
      %7344 = vst [vmem:[#allocation4 + $0xdc] sm:$0x1] %v7343
      %v7345 = vld [vmem:[#allocation4 + $0xec] sm:$0x1]
      %v7346 = vsel %vm7302, 0, %v7345
      %7347 = vst [vmem:[#allocation4 + $0xec] sm:$0x1] %v7346
      %v7348 = vld [vmem:[#allocation4 + $0xfc] sm:$0x1]
      %v7349 = vsel %vm7302, 0, %v7348
      %7350 = vst [vmem:[#allocation4 + $0xfc] sm:$0x1] %v7349
      %v7351 = vld [vmem:[#allocation4 + $0x10c] sm:$0x1]
      %v7352 = vsel %vm7302, 0, %v7351
      %7353 = vst [vmem:[#allocation4 + $0x10c] sm:$0x1] %v7352
      %v7354 = vld [vmem:[#allocation4 + $0x11c] sm:$0x1]
      %v7355 = vsel %vm7302, 0, %v7354
      %7356 = vst [vmem:[#allocation4 + $0x11c] sm:$0x1] %v7355
      %v7373 = vunpack.c.l.b16 %v7219
      %v7374 = vunpack.c.h.b16 %v7219
      %v7375 = vunpack.c.l.b16 %v7220
      %v7376 = vunpack.c.h.b16 %v7220
      %v7377 = vunpack.c.l.b16 %v7221
      %v7378 = vunpack.c.h.b16 %v7221
      %v7379 = vunpack.c.l.b16 %v7222
      %v7380 = vunpack.c.h.b16 %v7222
      %v7381 = vunpack.c.l.b16 %v7223
      %v7382 = vunpack.c.h.b16 %v7223
      %v7383 = vunpack.c.l.b16 %v7224
      %v7384 = vunpack.c.h.b16 %v7224
      %v7385 = vunpack.c.l.b16 %v7225
      %v7386 = vunpack.c.h.b16 %v7225
      %v7387 = vunpack.c.l.b16 %v7226
      %v7388 = vunpack.c.h.b16 %v7226
      %v7389 = vunpack.c.l.b16 %v7227
      %v7390 = vunpack.c.h.b16 %v7227
      %v7391 = vunpack.c.l.b16 %v7228
      %v7392 = vunpack.c.h.b16 %v7228
      %v7393 = vunpack.c.l.b16 %v7229
      %v7394 = vunpack.c.h.b16 %v7229
      %v7395 = vunpack.c.l.b16 %v7230
      %v7396 = vunpack.c.h.b16 %v7230
      %v7397 = vunpack.c.l.b16 %v7231
      %v7398 = vunpack.c.h.b16 %v7231
      %v7399 = vunpack.c.l.b16 %v7232
      %v7400 = vunpack.c.h.b16 %v7232
      %v7401 = vunpack.c.l.b16 %v7233
      %v7402 = vunpack.c.h.b16 %v7233
      %v7403 = vunpack.c.l.b16 %v7234
      %v7404 = vunpack.c.h.b16 %v7234
      %v7405 = vpack.c.b16 %v7373, %v7373
      %v7406 = vpack.c.b16 %v7374, %v7374
      %v7407 = vpack.c.b16 %v7375, %v7375
      %v7408 = vpack.c.b16 %v7376, %v7376
      %v7409 = vpack.c.b16 %v7377, %v7377
      %v7410 = vpack.c.b16 %v7378, %v7378
      %v7411 = vpack.c.b16 %v7379, %v7379
      %v7412 = vpack.c.b16 %v7380, %v7380
      %v7413 = vpack.c.b16 %v7381, %v7381
      %v7414 = vpack.c.b16 %v7382, %v7382
      %v7415 = vpack.c.b16 %v7383, %v7383
      %v7416 = vpack.c.b16 %v7384, %v7384
      %v7417 = vpack.c.b16 %v7385, %v7385
      %v7418 = vpack.c.b16 %v7386, %v7386
      %v7419 = vpack.c.b16 %v7387, %v7387
      %v7420 = vpack.c.b16 %v7388, %v7388
      %v7421 = vpack.c.b16 %v7389, %v7389
      %v7422 = vpack.c.b16 %v7390, %v7390
      %v7423 = vpack.c.b16 %v7391, %v7391
      %v7424 = vpack.c.b16 %v7392, %v7392
      %v7425 = vpack.c.b16 %v7393, %v7393
      %v7426 = vpack.c.b16 %v7394, %v7394
      %v7427 = vpack.c.b16 %v7395, %v7395
      %v7428 = vpack.c.b16 %v7396, %v7396
      %v7429 = vpack.c.b16 %v7397, %v7397
      %v7430 = vpack.c.b16 %v7398, %v7398
      %v7431 = vpack.c.b16 %v7399, %v7399
      %v7432 = vpack.c.b16 %v7400, %v7400
      %v7433 = vpack.c.b16 %v7401, %v7401
      %v7434 = vpack.c.b16 %v7402, %v7402
      %v7435 = vpack.c.b16 %v7403, %v7403
      %v7436 = vpack.c.b16 %v7404, %v7404
      %s7469 = scalar_lea.vmem [#allocation4], 16
      %7470 = vst.msk [vmem:[%s7469 + $0x4] sm:$0xf] %vm7235, %v7405
      %7471 = vst.msk [vmem:[%s7469 + $0x8] sm:$0xf] %vm7235, %v7406
      %7472 = vst.msk [vmem:[%s7469 + $0x14] sm:$0xf] %vm7235, %v7407
      %7473 = vst.msk [vmem:[%s7469 + $0x18] sm:$0xf] %vm7235, %v7408
      %7474 = vst.msk [vmem:[%s7469 + $0x24] sm:$0xf] %vm7235, %v7409
      %7475 = vst.msk [vmem:[%s7469 + $0x28] sm:$0xf] %vm7235, %v7410
      %7476 = vst.msk [vmem:[%s7469 + $0x34] sm:$0xf] %vm7235, %v7411
      %7477 = vst.msk [vmem:[%s7469 + $0x38] sm:$0xf] %vm7235, %v7412
      %7478 = vst.msk [vmem:[%s7469 + $0x44] sm:$0xf] %vm7235, %v7413
      %7479 = vst.msk [vmem:[%s7469 + $0x48] sm:$0xf] %vm7235, %v7414
      %7480 = vst.msk [vmem:[%s7469 + $0x54] sm:$0xf] %vm7235, %v7415
      %7481 = vst.msk [vmem:[%s7469 + $0x58] sm:$0xf] %vm7235, %v7416
      %7482 = vst.msk [vmem:[%s7469 + $0x64] sm:$0xf] %vm7235, %v7417
      %7483 = vst.msk [vmem:[%s7469 + $0x68] sm:$0xf] %vm7235, %v7418
      %7484 = vst.msk [vmem:[%s7469 + $0x74] sm:$0xf] %vm7235, %v7419
      %7485 = vst.msk [vmem:[%s7469 + $0x78] sm:$0xf] %vm7235, %v7420
      %7486 = vst.msk [vmem:[%s7469 + $0x84] sm:$0xf] %vm7235, %v7421
      %7487 = vst.msk [vmem:[%s7469 + $0x88] sm:$0xf] %vm7235, %v7422
      %7488 = vst.msk [vmem:[%s7469 + $0x94] sm:$0xf] %vm7235, %v7423
      %7489 = vst.msk [vmem:[%s7469 + $0x98] sm:$0xf] %vm7235, %v7424
      %7490 = vst.msk [vmem:[%s7469 + $0xa4] sm:$0xf] %vm7235, %v7425
      %7491 = vst.msk [vmem:[%s7469 + $0xa8] sm:$0xf] %vm7235, %v7426
      %7492 = vst.msk [vmem:[%s7469 + $0xb4] sm:$0xf] %vm7235, %v7427
      %7493 = vst.msk [vmem:[%s7469 + $0xb8] sm:$0xf] %vm7235, %v7428
      %7494 = vst.msk [vmem:[%s7469 + $0xc4] sm:$0xf] %vm7235, %v7429
      %7495 = vst.msk [vmem:[%s7469 + $0xc8] sm:$0xf] %vm7235, %v7430
      %7496 = vst.msk [vmem:[%s7469 + $0xd4] sm:$0xf] %vm7235, %v7431
      %7497 = vst.msk [vmem:[%s7469 + $0xd8] sm:$0xf] %vm7235, %v7432
      %7498 = vst.msk [vmem:[%s7469 + $0xe4] sm:$0xf] %vm7235, %v7433
      %7499 = vst.msk [vmem:[%s7469 + $0xe8] sm:$0xf] %vm7235, %v7434
      %7500 = vst.msk [vmem:[%s7469 + $0xf4] sm:$0xf] %vm7235, %v7435
      %7501 = vst.msk [vmem:[%s7469 + $0xf8] sm:$0xf] %vm7235, %v7436
      %v7502 = vld [vmem:[#allocation4] sm:$0x8]
      %v7503 = vld [vmem:[#allocation4 + $0x4] sm:$0xf]
      %v7504 = vld [vmem:[#allocation4 + $0x8] sm:$0xf]
      %v7505 = vld [vmem:[#allocation4 + $0x10] sm:$0x8]
      %v7506 = vld [vmem:[#allocation4 + $0x14] sm:$0xf]
      %v7507 = vld [vmem:[#allocation4 + $0x18] sm:$0xf]
      %v7508 = vld [vmem:[#allocation4 + $0x20] sm:$0x8]
      %v7509 = vld [vmem:[#allocation4 + $0x24] sm:$0xf]
      %v7510 = vld [vmem:[#allocation4 + $0x28] sm:$0xf]
      %v7511 = vld [vmem:[#allocation4 + $0x30] sm:$0x8]
      %v7512 = vld [vmem:[#allocation4 + $0x34] sm:$0xf]
      %v7513 = vld [vmem:[#allocation4 + $0x38] sm:$0xf]
      %v7514 = vld [vmem:[#allocation4 + $0x40] sm:$0x8]
      %v7515 = vld [vmem:[#allocation4 + $0x44] sm:$0xf]
      %v7516 = vld [vmem:[#allocation4 + $0x48] sm:$0xf]
      %v7517 = vld [vmem:[#allocation4 + $0x50] sm:$0x8]
      %v7518 = vld [vmem:[#allocation4 + $0x54] sm:$0xf]
      %v7519 = vld [vmem:[#allocation4 + $0x58] sm:$0xf]
      %v7520 = vld [vmem:[#allocation4 + $0x60] sm:$0x8]
      %v7521 = vld [vmem:[#allocation4 + $0x64] sm:$0xf]
      %v7522 = vld [vmem:[#allocation4 + $0x68] sm:$0xf]
      %v7523 = vld [vmem:[#allocation4 + $0x70] sm:$0x8]
      %v7524 = vld [vmem:[#allocation4 + $0x74] sm:$0xf]
      %v7525 = vld [vmem:[#allocation4 + $0x78] sm:$0xf]
      %v7526 = vld [vmem:[#allocation4 + $0x80] sm:$0x8]
      %v7527 = vld [vmem:[#allocation4 + $0x84] sm:$0xf]
      %v7528 = vld [vmem:[#allocation4 + $0x88] sm:$0xf]
      %v7529 = vld [vmem:[#allocation4 + $0x90] sm:$0x8]
      %v7530 = vld [vmem:[#allocation4 + $0x94] sm:$0xf]
      %v7531 = vld [vmem:[#allocation4 + $0x98] sm:$0xf]
      %v7532 = vld [vmem:[#allocation4 + $0xa0] sm:$0x8]
      %v7533 = vld [vmem:[#allocation4 + $0xa4] sm:$0xf]
      %v7534 = vld [vmem:[#allocation4 + $0xa8] sm:$0xf]
      %v7535 = vld [vmem:[#allocation4 + $0xb0] sm:$0x8]
      %v7536 = vld [vmem:[#allocation4 + $0xb4] sm:$0xf]
      %v7537 = vld [vmem:[#allocation4 + $0xb8] sm:$0xf]
      %v7538 = vld [vmem:[#allocation4 + $0xc0] sm:$0x8]
      %v7539 = vld [vmem:[#allocation4 + $0xc4] sm:$0xf]
      %v7540 = vld [vmem:[#allocation4 + $0xc8] sm:$0xf]
      %v7541 = vld [vmem:[#allocation4 + $0xd0] sm:$0x8]
      %v7542 = vld [vmem:[#allocation4 + $0xd4] sm:$0xf]
      %v7543 = vld [vmem:[#allocation4 + $0xd8] sm:$0xf]
      %v7544 = vld [vmem:[#allocation4 + $0xe0] sm:$0x8]
      %v7545 = vld [vmem:[#allocation4 + $0xe4] sm:$0xf]
      %v7546 = vld [vmem:[#allocation4 + $0xe8] sm:$0xf]
      %v7547 = vld [vmem:[#allocation4 + $0xf0] sm:$0x8]
      %v7548 = vld [vmem:[#allocation4 + $0xf4] sm:$0xf]
      %v7549 = vld [vmem:[#allocation4 + $0xf8] sm:$0xf]
      %v7550 = vld [vmem:[#allocation4 + $0x100] sm:$0x8]
      %v7551 = vld [vmem:[#allocation4 + $0x104] sm:$0xf]
      %v7552 = vld [vmem:[#allocation4 + $0x108] sm:$0xf]
      %v7553 = vld [vmem:[#allocation4 + $0x110] sm:$0x8]
      %v7554 = vld [vmem:[#allocation4 + $0x114] sm:$0xf]
      %v7555 = vld [vmem:[#allocation4 + $0x118] sm:$0xf]
      %v7556 = vld [vmem:[#allocation4 + $0xc] sm:$0x1]
      %v7557 = vld [vmem:[#allocation4 + $0x1c] sm:$0x1]
      %v7558 = vld [vmem:[#allocation4 + $0x2c] sm:$0x1]
      %v7559 = vld [vmem:[#allocation4 + $0x3c] sm:$0x1]
      %v7560 = vld [vmem:[#allocation4 + $0x4c] sm:$0x1]
      %v7561 = vld [vmem:[#allocation4 + $0x5c] sm:$0x1]
      %v7562 = vld [vmem:[#allocation4 + $0x6c] sm:$0x1]
      %v7563 = vld [vmem:[#allocation4 + $0x7c] sm:$0x1]
      %v7564 = vld [vmem:[#allocation4 + $0x8c] sm:$0x1]
      %v7565 = vld [vmem:[#allocation4 + $0x9c] sm:$0x1]
      %v7566 = vld [vmem:[#allocation4 + $0xac] sm:$0x1]
      %v7567 = vld [vmem:[#allocation4 + $0xbc] sm:$0x1]
      %v7568 = vld [vmem:[#allocation4 + $0xcc] sm:$0x1]
      %v7569 = vld [vmem:[#allocation4 + $0xdc] sm:$0x1]
      %v7570 = vld [vmem:[#allocation4 + $0xec] sm:$0x1]
      %v7571 = vld [vmem:[#allocation4 + $0xfc] sm:$0x1]
      %v7572 = vld [vmem:[#allocation4 + $0x10c] sm:$0x1]
      %v7573 = vld [vmem:[#allocation4 + $0x11c] sm:$0x1]
      %v7628 = vunpack.c.l.b16 %v7502
      %v7629 = vunpack.c.l.b16 %v7503
      %v7630 = vunpack.c.l.b16 %v7504
      %v7631 = vunpack.c.l.b16 %v7505
      %v7632 = vunpack.c.l.b16 %v7506
      %v7633 = vunpack.c.l.b16 %v7507
      %v7634 = vunpack.c.l.b16 %v7508
      %v7635 = vunpack.c.l.b16 %v7509
      %v7636 = vunpack.c.l.b16 %v7510
      %v7637 = vunpack.c.l.b16 %v7511
      %v7638 = vunpack.c.l.b16 %v7512
      %v7639 = vunpack.c.l.b16 %v7513
      %v7640 = vunpack.c.l.b16 %v7514
      %v7641 = vunpack.c.l.b16 %v7515
      %v7642 = vunpack.c.l.b16 %v7516
      %v7643 = vunpack.c.l.b16 %v7517
      %v7644 = vunpack.c.l.b16 %v7518
      %v7645 = vunpack.c.l.b16 %v7519
      %v7646 = vunpack.c.l.b16 %v7520
      %v7647 = vunpack.c.l.b16 %v7521
      %v7648 = vunpack.c.l.b16 %v7522
      %v7649 = vunpack.c.l.b16 %v7523
      %v7650 = vunpack.c.l.b16 %v7524
      %v7651 = vunpack.c.l.b16 %v7525
      %v7652 = vunpack.c.l.b16 %v7526
      %v7653 = vunpack.c.l.b16 %v7527
      %v7654 = vunpack.c.l.b16 %v7528
      %v7655 = vunpack.c.l.b16 %v7529
      %v7656 = vunpack.c.l.b16 %v7530
      %v7657 = vunpack.c.l.b16 %v7531
      %v7658 = vunpack.c.l.b16 %v7532
      %v7659 = vunpack.c.l.b16 %v7533
      %v7660 = vunpack.c.l.b16 %v7534
      %v7661 = vunpack.c.l.b16 %v7535
      %v7662 = vunpack.c.l.b16 %v7536
      %v7663 = vunpack.c.l.b16 %v7537
      %v7664 = vunpack.c.l.b16 %v7538
      %v7665 = vunpack.c.l.b16 %v7539
      %v7666 = vunpack.c.l.b16 %v7540
      %v7667 = vunpack.c.l.b16 %v7541
      %v7668 = vunpack.c.l.b16 %v7542
      %v7669 = vunpack.c.l.b16 %v7543
      %v7670 = vunpack.c.l.b16 %v7544
      %v7671 = vunpack.c.l.b16 %v7545
      %v7672 = vunpack.c.l.b16 %v7546
      %v7673 = vunpack.c.l.b16 %v7547
      %v7674 = vunpack.c.l.b16 %v7548
      %v7675 = vunpack.c.l.b16 %v7549
      %v7676 = vunpack.c.l.b16 %v7550
      %v7677 = vunpack.c.l.b16 %v7551
      %v7678 = vunpack.c.l.b16 %v7552
      %v7679 = vunpack.c.l.b16 %v7553
      %v7680 = vunpack.c.l.b16 %v7554
      %v7681 = vunpack.c.l.b16 %v7555
      %v7682 = vpack.c.b16 %v7629, %v7628
      %v7683 = vpack.c.b16 %v7630, %v7630
      %v7684 = vpack.c.b16 %v7632, %v7631
      %v7685 = vpack.c.b16 %v7633, %v7633
      %v7686 = vpack.c.b16 %v7635, %v7634
      %v7687 = vpack.c.b16 %v7636, %v7636
      %v7688 = vpack.c.b16 %v7638, %v7637
      %v7689 = vpack.c.b16 %v7639, %v7639
      %v7690 = vpack.c.b16 %v7641, %v7640
      %v7691 = vpack.c.b16 %v7642, %v7642
      %v7692 = vpack.c.b16 %v7644, %v7643
      %v7693 = vpack.c.b16 %v7645, %v7645
      %v7694 = vpack.c.b16 %v7647, %v7646
      %v7695 = vpack.c.b16 %v7648, %v7648
      %v7696 = vpack.c.b16 %v7650, %v7649
      %v7697 = vpack.c.b16 %v7651, %v7651
      %v7698 = vpack.c.b16 %v7653, %v7652
      %v7699 = vpack.c.b16 %v7654, %v7654
      %v7700 = vpack.c.b16 %v7656, %v7655
      %v7701 = vpack.c.b16 %v7657, %v7657
      %v7702 = vpack.c.b16 %v7659, %v7658
      %v7703 = vpack.c.b16 %v7660, %v7660
      %v7704 = vpack.c.b16 %v7662, %v7661
      %v7705 = vpack.c.b16 %v7663, %v7663
      %v7706 = vpack.c.b16 %v7665, %v7664
      %v7707 = vpack.c.b16 %v7666, %v7666
      %v7708 = vpack.c.b16 %v7668, %v7667
      %v7709 = vpack.c.b16 %v7669, %v7669
      %v7710 = vpack.c.b16 %v7671, %v7670
      %v7711 = vpack.c.b16 %v7672, %v7672
      %v7712 = vpack.c.b16 %v7674, %v7673
      %v7713 = vpack.c.b16 %v7675, %v7675
      %v7714 = vpack.c.b16 %v7677, %v7676
      %v7715 = vpack.c.b16 %v7678, %v7678
      %v7716 = vpack.c.b16 %v7680, %v7679
      %v7717 = vpack.c.b16 %v7681, %v7681
      %v7718 = vpack.c.b16 %v7630, %v7629
      %v7719 = vpack.c.b16 %v7633, %v7632
      %v7720 = vpack.c.b16 %v7636, %v7635
      %v7721 = vpack.c.b16 %v7639, %v7638
      %v7722 = vpack.c.b16 %v7642, %v7641
      %v7723 = vpack.c.b16 %v7645, %v7644
      %v7724 = vpack.c.b16 %v7648, %v7647
      %v7725 = vpack.c.b16 %v7651, %v7650
      %v7726 = vpack.c.b16 %v7654, %v7653
      %v7727 = vpack.c.b16 %v7657, %v7656
      %v7728 = vpack.c.b16 %v7660, %v7659
      %v7729 = vpack.c.b16 %v7663, %v7662
      %v7730 = vpack.c.b16 %v7666, %v7665
      %v7731 = vpack.c.b16 %v7669, %v7668
      %v7732 = vpack.c.b16 %v7672, %v7671
      %v7733 = vpack.c.b16 %v7675, %v7674
      %v7734 = vpack.c.b16 %v7678, %v7677
      %v7735 = vpack.c.b16 %v7681, %v7680
      %v7737 = vshrl.u32 %v7718, 16
      %v7739 = vrot.slane %v7737, 4
      %v7740 = vshll.u32 %v7718, 16
      %v7742 = vrot.slane %v7740, 5
      %v7743 = vor.u32 %v7739, %v7742
      %v7745 = vshrl.u32 %v7719, 16
      %v7747 = vrot.slane %v7745, 4
      %v7748 = vshll.u32 %v7719, 16
      %v7750 = vrot.slane %v7748, 5
      %v7751 = vor.u32 %v7747, %v7750
      %v7753 = vshrl.u32 %v7720, 16
      %v7755 = vrot.slane %v7753, 4
      %v7756 = vshll.u32 %v7720, 16
      %v7758 = vrot.slane %v7756, 5
      %v7759 = vor.u32 %v7755, %v7758
      %v7761 = vshrl.u32 %v7721, 16
      %v7763 = vrot.slane %v7761, 4
      %v7764 = vshll.u32 %v7721, 16
      %v7766 = vrot.slane %v7764, 5
      %v7767 = vor.u32 %v7763, %v7766
      %v7769 = vshrl.u32 %v7722, 16
      %v7771 = vrot.slane %v7769, 4
      %v7772 = vshll.u32 %v7722, 16
      %v7774 = vrot.slane %v7772, 5
      %v7775 = vor.u32 %v7771, %v7774
      %v7777 = vshrl.u32 %v7723, 16
      %v7779 = vrot.slane %v7777, 4
      %v7780 = vshll.u32 %v7723, 16
      %v7782 = vrot.slane %v7780, 5
      %v7783 = vor.u32 %v7779, %v7782
      %v7785 = vshrl.u32 %v7724, 16
      %v7787 = vrot.slane %v7785, 4
      %v7788 = vshll.u32 %v7724, 16
      %v7790 = vrot.slane %v7788, 5
      %v7791 = vor.u32 %v7787, %v7790
      %v7793 = vshrl.u32 %v7725, 16
      %v7795 = vrot.slane %v7793, 4
      %v7796 = vshll.u32 %v7725, 16
      %v7798 = vrot.slane %v7796, 5
      %v7799 = vor.u32 %v7795, %v7798
      %v7801 = vshrl.u32 %v7726, 16
      %v7803 = vrot.slane %v7801, 4
      %v7804 = vshll.u32 %v7726, 16
      %v7806 = vrot.slane %v7804, 5
      %v7807 = vor.u32 %v7803, %v7806
      %v7809 = vshrl.u32 %v7727, 16
      %v7811 = vrot.slane %v7809, 4
      %v7812 = vshll.u32 %v7727, 16
      %v7814 = vrot.slane %v7812, 5
      %v7815 = vor.u32 %v7811, %v7814
      %v7817 = vshrl.u32 %v7728, 16
      %v7819 = vrot.slane %v7817, 4
      %v7820 = vshll.u32 %v7728, 16
      %v7822 = vrot.slane %v7820, 5
      %v7823 = vor.u32 %v7819, %v7822
      %v7825 = vshrl.u32 %v7729, 16
      %v7827 = vrot.slane %v7825, 4
      %v7828 = vshll.u32 %v7729, 16
      %v7830 = vrot.slane %v7828, 5
      %v7831 = vor.u32 %v7827, %v7830
      %v7833 = vshrl.u32 %v7730, 16
      %v7835 = vrot.slane %v7833, 4
      %v7836 = vshll.u32 %v7730, 16
      %v7838 = vrot.slane %v7836, 5
      %v7839 = vor.u32 %v7835, %v7838
      %v7841 = vshrl.u32 %v7731, 16
      %v7843 = vrot.slane %v7841, 4
      %v7844 = vshll.u32 %v7731, 16
      %v7846 = vrot.slane %v7844, 5
      %v7847 = vor.u32 %v7843, %v7846
      %v7849 = vshrl.u32 %v7732, 16
      %v7851 = vrot.slane %v7849, 4
      %v7852 = vshll.u32 %v7732, 16
      %v7854 = vrot.slane %v7852, 5
      %v7855 = vor.u32 %v7851, %v7854
      %v7857 = vshrl.u32 %v7733, 16
      %v7859 = vrot.slane %v7857, 4
      %v7860 = vshll.u32 %v7733, 16
      %v7862 = vrot.slane %v7860, 5
      %v7863 = vor.u32 %v7859, %v7862
      %v7865 = vshrl.u32 %v7734, 16
      %v7867 = vrot.slane %v7865, 4
      %v7868 = vshll.u32 %v7734, 16
      %v7870 = vrot.slane %v7868, 5
      %v7871 = vor.u32 %v7867, %v7870
      %v7873 = vshrl.u32 %v7735, 16
      %v7875 = vrot.slane %v7873, 4
      %v7876 = vshll.u32 %v7735, 16
      %v7878 = vrot.slane %v7876, 5
      %v7879 = vor.u32 %v7875, %v7878
      %7880 = vrot.lane.b32.xlu0 %v7743, 96
      %v7881 = vpop.permute.xlu0 %7880
      %7882 = vrot.lane.b32.xlu0 %v7751, 96
      %v7883 = vpop.permute.xlu0 %7882
      %7884 = vrot.lane.b32.xlu0 %v7759, 96
      %v7885 = vpop.permute.xlu0 %7884
      %7886 = vrot.lane.b32.xlu0 %v7767, 96
      %v7887 = vpop.permute.xlu0 %7886
      %7888 = vrot.lane.b32.xlu0 %v7775, 96
      %v7889 = vpop.permute.xlu0 %7888
      %7890 = vrot.lane.b32.xlu0 %v7783, 96
      %v7891 = vpop.permute.xlu0 %7890
      %7892 = vrot.lane.b32.xlu0 %v7791, 96
      %v7893 = vpop.permute.xlu0 %7892
      %7894 = vrot.lane.b32.xlu0 %v7799, 96
      %v7895 = vpop.permute.xlu0 %7894
      %7896 = vrot.lane.b32.xlu0 %v7807, 96
      %v7897 = vpop.permute.xlu0 %7896
      %7898 = vrot.lane.b32.xlu0 %v7815, 96
      %v7899 = vpop.permute.xlu0 %7898
      %7900 = vrot.lane.b32.xlu0 %v7823, 96
      %v7901 = vpop.permute.xlu0 %7900
      %7902 = vrot.lane.b32.xlu0 %v7831, 96
      %v7903 = vpop.permute.xlu0 %7902
      %7904 = vrot.lane.b32.xlu0 %v7839, 96
      %v7905 = vpop.permute.xlu0 %7904
      %7906 = vrot.lane.b32.xlu0 %v7847, 96
      %v7907 = vpop.permute.xlu0 %7906
      %7908 = vrot.lane.b32.xlu0 %v7855, 96
      %v7909 = vpop.permute.xlu0 %7908
      %7910 = vrot.lane.b32.xlu0 %v7863, 96
      %v7911 = vpop.permute.xlu0 %7910
      %7912 = vrot.lane.b32.xlu0 %v7871, 96
      %v7913 = vpop.permute.xlu0 %7912
      %7914 = vrot.lane.b32.xlu0 %v7879, 96
      %v7915 = vpop.permute.xlu0 %7914
      %v7934 = vunpack.c.l.b16 %v7556
      %v7935 = vunpack.c.l.b16 %v7557
      %v7936 = vunpack.c.l.b16 %v7558
      %v7937 = vunpack.c.l.b16 %v7559
      %v7938 = vunpack.c.l.b16 %v7560
      %v7939 = vunpack.c.l.b16 %v7561
      %v7940 = vunpack.c.l.b16 %v7562
      %v7941 = vunpack.c.l.b16 %v7563
      %v7942 = vunpack.c.l.b16 %v7564
      %v7943 = vunpack.c.l.b16 %v7565
      %v7944 = vunpack.c.l.b16 %v7566
      %v7945 = vunpack.c.l.b16 %v7567
      %v7946 = vunpack.c.l.b16 %v7568
      %v7947 = vunpack.c.l.b16 %v7569
      %v7948 = vunpack.c.l.b16 %v7570
      %v7949 = vunpack.c.l.b16 %v7571
      %v7950 = vunpack.c.l.b16 %v7572
      %v7951 = vunpack.c.l.b16 %v7573
      %v7952 = vpack.c.b16 %v7934, %v7934
      %v7953 = vpack.c.b16 %v7935, %v7935
      %v7954 = vpack.c.b16 %v7936, %v7936
      %v7955 = vpack.c.b16 %v7937, %v7937
      %v7956 = vpack.c.b16 %v7938, %v7938
      %v7957 = vpack.c.b16 %v7939, %v7939
      %v7958 = vpack.c.b16 %v7940, %v7940
      %v7959 = vpack.c.b16 %v7941, %v7941
      %v7960 = vpack.c.b16 %v7942, %v7942
      %v7961 = vpack.c.b16 %v7943, %v7943
      %v7962 = vpack.c.b16 %v7944, %v7944
      %v7963 = vpack.c.b16 %v7945, %v7945
      %v7964 = vpack.c.b16 %v7946, %v7946
      %v7965 = vpack.c.b16 %v7947, %v7947
      %v7966 = vpack.c.b16 %v7948, %v7948
      %v7967 = vpack.c.b16 %v7949, %v7949
      %v7968 = vpack.c.b16 %v7950, %v7950
      %v7969 = vpack.c.b16 %v7951, %v7951
      %v7970 = vrot.slane %v7718, 5
      %v7971 = vrot.slane %v7952, 5
      %v7972 = vsel %vm5549, %v7970, %v7971
      %v7973 = vrot.slane %v7719, 5
      %v7974 = vrot.slane %v7953, 5
      %v7975 = vsel %vm5549, %v7973, %v7974
      %v7976 = vrot.slane %v7720, 5
      %v7977 = vrot.slane %v7954, 5
      %v7978 = vsel %vm5549, %v7976, %v7977
      %v7979 = vrot.slane %v7721, 5
      %v7980 = vrot.slane %v7955, 5
      %v7981 = vsel %vm5549, %v7979, %v7980
      %v7982 = vrot.slane %v7722, 5
      %v7983 = vrot.slane %v7956, 5
      %v7984 = vsel %vm5549, %v7982, %v7983
      %v7985 = vrot.slane %v7723, 5
      %v7986 = vrot.slane %v7957, 5
      %v7987 = vsel %vm5549, %v7985, %v7986
      %v7988 = vrot.slane %v7724, 5
      %v7989 = vrot.slane %v7958, 5
      %v7990 = vsel %vm5549, %v7988, %v7989
      %v7991 = vrot.slane %v7725, 5
      %v7992 = vrot.slane %v7959, 5
      %v7993 = vsel %vm5549, %v7991, %v7992
      %v7994 = vrot.slane %v7726, 5
      %v7995 = vrot.slane %v7960, 5
      %v7996 = vsel %vm5549, %v7994, %v7995
      %v7997 = vrot.slane %v7727, 5
      %v7998 = vrot.slane %v7961, 5
      %v7999 = vsel %vm5549, %v7997, %v7998
      %v8000 = vrot.slane %v7728, 5
      %v8001 = vrot.slane %v7962, 5
      %v8002 = vsel %vm5549, %v8000, %v8001
      %v8003 = vrot.slane %v7729, 5
      %v8004 = vrot.slane %v7963, 5
      %v8005 = vsel %vm5549, %v8003, %v8004
      %v8006 = vrot.slane %v7730, 5
      %v8007 = vrot.slane %v7964, 5
      %v8008 = vsel %vm5549, %v8006, %v8007
      %v8009 = vrot.slane %v7731, 5
      %v8010 = vrot.slane %v7965, 5
      %v8011 = vsel %vm5549, %v8009, %v8010
      %v8012 = vrot.slane %v7732, 5
      %v8013 = vrot.slane %v7966, 5
      %v8014 = vsel %vm5549, %v8012, %v8013
      %v8015 = vrot.slane %v7733, 5
      %v8016 = vrot.slane %v7967, 5
      %v8017 = vsel %vm5549, %v8015, %v8016
      %v8018 = vrot.slane %v7734, 5
      %v8019 = vrot.slane %v7968, 5
      %v8020 = vsel %vm5549, %v8018, %v8019
      %v8021 = vrot.slane %v7735, 5
      %v8022 = vrot.slane %v7969, 5
      %v8023 = vsel %vm5549, %v8021, %v8022
      %8024 = vrot.lane.b32.xlu0 %v7970, 64
      %v8025 = vpop.permute.xlu0 %8024
      %8026 = vrot.lane.b32.xlu0 %v7972, 64
      %v8027 = vpop.permute.xlu0 %8026
      %8028 = vrot.lane.b32.xlu0 %v7973, 64
      %v8029 = vpop.permute.xlu0 %8028
      %8030 = vrot.lane.b32.xlu0 %v7975, 64
      %v8031 = vpop.permute.xlu0 %8030
      %8032 = vrot.lane.b32.xlu0 %v7976, 64
      %v8033 = vpop.permute.xlu0 %8032
      %8034 = vrot.lane.b32.xlu0 %v7978, 64
      %v8035 = vpop.permute.xlu0 %8034
      %8036 = vrot.lane.b32.xlu0 %v7979, 64
      %v8037 = vpop.permute.xlu0 %8036
      %8038 = vrot.lane.b32.xlu0 %v7981, 64
      %v8039 = vpop.permute.xlu0 %8038
      %8040 = vrot.lane.b32.xlu0 %v7982, 64
      %v8041 = vpop.permute.xlu0 %8040
      %8042 = vrot.lane.b32.xlu0 %v7984, 64
      %v8043 = vpop.permute.xlu0 %8042
      %8044 = vrot.lane.b32.xlu0 %v7985, 64
      %v8045 = vpop.permute.xlu0 %8044
      %8046 = vrot.lane.b32.xlu0 %v7987, 64
      %v8047 = vpop.permute.xlu0 %8046
      %8048 = vrot.lane.b32.xlu0 %v7988, 64
      %v8049 = vpop.permute.xlu0 %8048
      %8050 = vrot.lane.b32.xlu0 %v7990, 64
      %v8051 = vpop.permute.xlu0 %8050
      %8052 = vrot.lane.b32.xlu0 %v7991, 64
      %v8053 = vpop.permute.xlu0 %8052
      %8054 = vrot.lane.b32.xlu0 %v7993, 64
      %v8055 = vpop.permute.xlu0 %8054
      %8056 = vrot.lane.b32.xlu0 %v7994, 64
      %v8057 = vpop.permute.xlu0 %8056
      %8058 = vrot.lane.b32.xlu0 %v7996, 64
      %v8059 = vpop.permute.xlu0 %8058
      %8060 = vrot.lane.b32.xlu0 %v7997, 64
      %v8061 = vpop.permute.xlu0 %8060
      %8062 = vrot.lane.b32.xlu0 %v7999, 64
      %v8063 = vpop.permute.xlu0 %8062
      %8064 = vrot.lane.b32.xlu0 %v8000, 64
      %v8065 = vpop.permute.xlu0 %8064
      %8066 = vrot.lane.b32.xlu0 %v8002, 64
      %v8067 = vpop.permute.xlu0 %8066
      %8068 = vrot.lane.b32.xlu0 %v8003, 64
      %v8069 = vpop.permute.xlu0 %8068
      %8070 = vrot.lane.b32.xlu0 %v8005, 64
      %v8071 = vpop.permute.xlu0 %8070
      %8072 = vrot.lane.b32.xlu0 %v8006, 64
      %v8073 = vpop.permute.xlu0 %8072
      %8074 = vrot.lane.b32.xlu0 %v8008, 64
      %v8075 = vpop.permute.xlu0 %8074
      %8076 = vrot.lane.b32.xlu0 %v8009, 64
      %v8077 = vpop.permute.xlu0 %8076
      %8078 = vrot.lane.b32.xlu0 %v8011, 64
      %v8079 = vpop.permute.xlu0 %8078
      %8080 = vrot.lane.b32.xlu0 %v8012, 64
      %v8081 = vpop.permute.xlu0 %8080
      %8082 = vrot.lane.b32.xlu0 %v8014, 64
      %v8083 = vpop.permute.xlu0 %8082
      %8084 = vrot.lane.b32.xlu0 %v8015, 64
      %v8085 = vpop.permute.xlu0 %8084
      %8086 = vrot.lane.b32.xlu0 %v8017, 64
      %v8087 = vpop.permute.xlu0 %8086
      %8088 = vrot.lane.b32.xlu0 %v8018, 64
      %v8089 = vpop.permute.xlu0 %8088
      %8090 = vrot.lane.b32.xlu0 %v8020, 64
      %v8091 = vpop.permute.xlu0 %8090
      %8092 = vrot.lane.b32.xlu0 %v8021, 64
      %v8093 = vpop.permute.xlu0 %8092
      %8094 = vrot.lane.b32.xlu0 %v8023, 64
      %v8095 = vpop.permute.xlu0 %8094
      %v8098 = vsel %vm2586, %v7682, %v7881
      %v8100 = vsel %vm2586, %v7683, %v7881
      %v8103 = vsel %vm2586, %v7684, %v7883
      %v8105 = vsel %vm2586, %v7685, %v7883
      %v8108 = vsel %vm2586, %v7686, %v7885
      %v8110 = vsel %vm2586, %v7687, %v7885
      %v8113 = vsel %vm2586, %v7688, %v7887
      %v8115 = vsel %vm2586, %v7689, %v7887
      %v8118 = vsel %vm2586, %v7690, %v7889
      %v8120 = vsel %vm2586, %v7691, %v7889
      %v8123 = vsel %vm2586, %v7692, %v7891
      %v8125 = vsel %vm2586, %v7693, %v7891
      %v8128 = vsel %vm2586, %v7694, %v7893
      %v8130 = vsel %vm2586, %v7695, %v7893
      %v8133 = vsel %vm2586, %v7696, %v7895
      %v8135 = vsel %vm2586, %v7697, %v7895
      %v8138 = vsel %vm2586, %v7698, %v7897
      %v8140 = vsel %vm2586, %v7699, %v7897
      %v8143 = vsel %vm2586, %v7700, %v7899
      %v8145 = vsel %vm2586, %v7701, %v7899
      %v8148 = vsel %vm2586, %v7702, %v7901
      %v8150 = vsel %vm2586, %v7703, %v7901
      %v8153 = vsel %vm2586, %v7704, %v7903
      %v8155 = vsel %vm2586, %v7705, %v7903
      %v8158 = vsel %vm2586, %v7706, %v7905
      %v8160 = vsel %vm2586, %v7707, %v7905
      %v8163 = vsel %vm2586, %v7708, %v7907
      %v8165 = vsel %vm2586, %v7709, %v7907
      %v8168 = vsel %vm2586, %v7710, %v7909
      %v8170 = vsel %vm2586, %v7711, %v7909
      %v8173 = vsel %vm2586, %v7712, %v7911
      %v8175 = vsel %vm2586, %v7713, %v7911
      %v8178 = vsel %vm2586, %v7714, %v7913
      %v8180 = vsel %vm2586, %v7715, %v7913
      %v8183 = vsel %vm2586, %v7716, %v7915
      %v8185 = vsel %vm2586, %v7717, %v7915
      %v8187 = vsel %vm2728, %v7881, %v8025
      %v8189 = vsel %vm2728, %v7881, %v8027
      %v8191 = vsel %vm2728, %v7883, %v8029
      %v8193 = vsel %vm2728, %v7883, %v8031
      %v8195 = vsel %vm2728, %v7885, %v8033
      %v8197 = vsel %vm2728, %v7885, %v8035
      %v8199 = vsel %vm2728, %v7887, %v8037
      %v8201 = vsel %vm2728, %v7887, %v8039
      %v8203 = vsel %vm2728, %v7889, %v8041
      %v8205 = vsel %vm2728, %v7889, %v8043
      %v8207 = vsel %vm2728, %v7891, %v8045
      %v8209 = vsel %vm2728, %v7891, %v8047
      %v8211 = vsel %vm2728, %v7893, %v8049
      %v8213 = vsel %vm2728, %v7893, %v8051
      %v8215 = vsel %vm2728, %v7895, %v8053
      %v8217 = vsel %vm2728, %v7895, %v8055
      %v8219 = vsel %vm2728, %v7897, %v8057
      %v8221 = vsel %vm2728, %v7897, %v8059
      %v8223 = vsel %vm2728, %v7899, %v8061
      %v8225 = vsel %vm2728, %v7899, %v8063
      %v8227 = vsel %vm2728, %v7901, %v8065
      %v8229 = vsel %vm2728, %v7901, %v8067
      %v8231 = vsel %vm2728, %v7903, %v8069
      %v8233 = vsel %vm2728, %v7903, %v8071
      %v8235 = vsel %vm2728, %v7905, %v8073
      %v8237 = vsel %vm2728, %v7905, %v8075
      %v8239 = vsel %vm2728, %v7907, %v8077
      %v8241 = vsel %vm2728, %v7907, %v8079
      %v8243 = vsel %vm2728, %v7909, %v8081
      %v8245 = vsel %vm2728, %v7909, %v8083
      %v8247 = vsel %vm2728, %v7911, %v8085
      %v8249 = vsel %vm2728, %v7911, %v8087
      %v8251 = vsel %vm2728, %v7913, %v8089
      %v8253 = vsel %vm2728, %v7913, %v8091
      %v8255 = vsel %vm2728, %v7915, %v8093
      %v8257 = vsel %vm2728, %v7915, %v8095
      %v8258 = vshrl.u32 %v8098, 16
      %v8260 = vrot.slane %v8258, 3
      %v8261 = vshll.u32 %v8098, 16
      %v8263 = vrot.slane %v8261, 4
      %v8264 = vor.u32 %v8260, %v8263
      %v8265 = vshrl.u32 %v8100, 16
      %v8267 = vrot.slane %v8265, 3
      %v8268 = vshll.u32 %v8100, 16
      %v8270 = vrot.slane %v8268, 4
      %v8271 = vor.u32 %v8267, %v8270
      %v8272 = vsel %vm5694, %v8264, %v8271
      %v8273 = vshrl.u32 %v8187, 16
      %v8275 = vrot.slane %v8273, 3
      %v8276 = vshll.u32 %v8187, 16
      %v8278 = vrot.slane %v8276, 4
      %v8279 = vor.u32 %v8275, %v8278
      %v8280 = vshrl.u32 %v8189, 16
      %v8282 = vrot.slane %v8280, 3
      %v8283 = vshll.u32 %v8189, 16
      %v8285 = vrot.slane %v8283, 4
      %v8286 = vor.u32 %v8282, %v8285
      %v8287 = vsel %vm5694, %v8279, %v8286
      %v8288 = vshrl.u32 %v8025, 16
      %v8290 = vrot.slane %v8288, 3
      %v8291 = vshll.u32 %v8025, 16
      %v8293 = vrot.slane %v8291, 4
      %v8294 = vor.u32 %v8290, %v8293
      %v8295 = vshrl.u32 %v8027, 16
      %v8297 = vrot.slane %v8295, 3
      %v8298 = vshll.u32 %v8027, 16
      %v8300 = vrot.slane %v8298, 4
      %v8301 = vor.u32 %v8297, %v8300
      %v8302 = vsel %vm5694, %v8294, %v8301
      %v8303 = vshrl.u32 %v8103, 16
      %v8305 = vrot.slane %v8303, 3
      %v8306 = vshll.u32 %v8103, 16
      %v8308 = vrot.slane %v8306, 4
      %v8309 = vor.u32 %v8305, %v8308
      %v8310 = vshrl.u32 %v8105, 16
      %v8312 = vrot.slane %v8310, 3
      %v8313 = vshll.u32 %v8105, 16
      %v8315 = vrot.slane %v8313, 4
      %v8316 = vor.u32 %v8312, %v8315
      %v8317 = vsel %vm5694, %v8309, %v8316
      %v8318 = vshrl.u32 %v8191, 16
      %v8320 = vrot.slane %v8318, 3
      %v8321 = vshll.u32 %v8191, 16
      %v8323 = vrot.slane %v8321, 4
      %v8324 = vor.u32 %v8320, %v8323
      %v8325 = vshrl.u32 %v8193, 16
      %v8327 = vrot.slane %v8325, 3
      %v8328 = vshll.u32 %v8193, 16
      %v8330 = vrot.slane %v8328, 4
      %v8331 = vor.u32 %v8327, %v8330
      %v8332 = vsel %vm5694, %v8324, %v8331
      %v8333 = vshrl.u32 %v8029, 16
      %v8335 = vrot.slane %v8333, 3
      %v8336 = vshll.u32 %v8029, 16
      %v8338 = vrot.slane %v8336, 4
      %v8339 = vor.u32 %v8335, %v8338
      %v8340 = vshrl.u32 %v8031, 16
      %v8342 = vrot.slane %v8340, 3
      %v8343 = vshll.u32 %v8031, 16
      %v8345 = vrot.slane %v8343, 4
      %v8346 = vor.u32 %v8342, %v8345
      %v8347 = vsel %vm5694, %v8339, %v8346
      %v8348 = vshrl.u32 %v8108, 16
      %v8350 = vrot.slane %v8348, 3
      %v8351 = vshll.u32 %v8108, 16
      %v8353 = vrot.slane %v8351, 4
      %v8354 = vor.u32 %v8350, %v8353
      %v8355 = vshrl.u32 %v8110, 16
      %v8357 = vrot.slane %v8355, 3
      %v8358 = vshll.u32 %v8110, 16
      %v8360 = vrot.slane %v8358, 4
      %v8361 = vor.u32 %v8357, %v8360
      %v8362 = vsel %vm5694, %v8354, %v8361
      %v8363 = vshrl.u32 %v8195, 16
      %v8365 = vrot.slane %v8363, 3
      %v8366 = vshll.u32 %v8195, 16
      %v8368 = vrot.slane %v8366, 4
      %v8369 = vor.u32 %v8365, %v8368
      %v8370 = vshrl.u32 %v8197, 16
      %v8372 = vrot.slane %v8370, 3
      %v8373 = vshll.u32 %v8197, 16
      %v8375 = vrot.slane %v8373, 4
      %v8376 = vor.u32 %v8372, %v8375
      %v8377 = vsel %vm5694, %v8369, %v8376
      %v8378 = vshrl.u32 %v8033, 16
      %v8380 = vrot.slane %v8378, 3
      %v8381 = vshll.u32 %v8033, 16
      %v8383 = vrot.slane %v8381, 4
      %v8384 = vor.u32 %v8380, %v8383
      %v8385 = vshrl.u32 %v8035, 16
      %v8387 = vrot.slane %v8385, 3
      %v8388 = vshll.u32 %v8035, 16
      %v8390 = vrot.slane %v8388, 4
      %v8391 = vor.u32 %v8387, %v8390
      %v8392 = vsel %vm5694, %v8384, %v8391
      %v8393 = vshrl.u32 %v8113, 16
      %v8395 = vrot.slane %v8393, 3
      %v8396 = vshll.u32 %v8113, 16
      %v8398 = vrot.slane %v8396, 4
      %v8399 = vor.u32 %v8395, %v8398
      %v8400 = vshrl.u32 %v8115, 16
      %v8402 = vrot.slane %v8400, 3
      %v8403 = vshll.u32 %v8115, 16
      %v8405 = vrot.slane %v8403, 4
      %v8406 = vor.u32 %v8402, %v8405
      %v8407 = vsel %vm5694, %v8399, %v8406
      %v8408 = vshrl.u32 %v8199, 16
      %v8410 = vrot.slane %v8408, 3
      %v8411 = vshll.u32 %v8199, 16
      %v8413 = vrot.slane %v8411, 4
      %v8414 = vor.u32 %v8410, %v8413
      %v8415 = vshrl.u32 %v8201, 16
      %v8417 = vrot.slane %v8415, 3
      %v8418 = vshll.u32 %v8201, 16
      %v8420 = vrot.slane %v8418, 4
      %v8421 = vor.u32 %v8417, %v8420
      %v8422 = vsel %vm5694, %v8414, %v8421
      %v8423 = vshrl.u32 %v8037, 16
      %v8425 = vrot.slane %v8423, 3
      %v8426 = vshll.u32 %v8037, 16
      %v8428 = vrot.slane %v8426, 4
      %v8429 = vor.u32 %v8425, %v8428
      %v8430 = vshrl.u32 %v8039, 16
      %v8432 = vrot.slane %v8430, 3
      %v8433 = vshll.u32 %v8039, 16
      %v8435 = vrot.slane %v8433, 4
      %v8436 = vor.u32 %v8432, %v8435
      %v8437 = vsel %vm5694, %v8429, %v8436
      %v8438 = vshrl.u32 %v8118, 16
      %v8440 = vrot.slane %v8438, 3
      %v8441 = vshll.u32 %v8118, 16
      %v8443 = vrot.slane %v8441, 4
      %v8444 = vor.u32 %v8440, %v8443
      %v8445 = vshrl.u32 %v8120, 16
      %v8447 = vrot.slane %v8445, 3
      %v8448 = vshll.u32 %v8120, 16
      %v8450 = vrot.slane %v8448, 4
      %v8451 = vor.u32 %v8447, %v8450
      %v8452 = vsel %vm5694, %v8444, %v8451
      %v8453 = vshrl.u32 %v8203, 16
      %v8455 = vrot.slane %v8453, 3
      %v8456 = vshll.u32 %v8203, 16
      %v8458 = vrot.slane %v8456, 4
      %v8459 = vor.u32 %v8455, %v8458
      %v8460 = vshrl.u32 %v8205, 16
      %v8462 = vrot.slane %v8460, 3
      %v8463 = vshll.u32 %v8205, 16
      %v8465 = vrot.slane %v8463, 4
      %v8466 = vor.u32 %v8462, %v8465
      %v8467 = vsel %vm5694, %v8459, %v8466
      %v8468 = vshrl.u32 %v8041, 16
      %v8470 = vrot.slane %v8468, 3
      %v8471 = vshll.u32 %v8041, 16
      %v8473 = vrot.slane %v8471, 4
      %v8474 = vor.u32 %v8470, %v8473
      %v8475 = vshrl.u32 %v8043, 16
      %v8477 = vrot.slane %v8475, 3
      %v8478 = vshll.u32 %v8043, 16
      %v8480 = vrot.slane %v8478, 4
      %v8481 = vor.u32 %v8477, %v8480
      %v8482 = vsel %vm5694, %v8474, %v8481
      %v8483 = vshrl.u32 %v8123, 16
      %v8485 = vrot.slane %v8483, 3
      %v8486 = vshll.u32 %v8123, 16
      %v8488 = vrot.slane %v8486, 4
      %v8489 = vor.u32 %v8485, %v8488
      %v8490 = vshrl.u32 %v8125, 16
      %v8492 = vrot.slane %v8490, 3
      %v8493 = vshll.u32 %v8125, 16
      %v8495 = vrot.slane %v8493, 4
      %v8496 = vor.u32 %v8492, %v8495
      %v8497 = vsel %vm5694, %v8489, %v8496
      %v8498 = vshrl.u32 %v8207, 16
      %v8500 = vrot.slane %v8498, 3
      %v8501 = vshll.u32 %v8207, 16
      %v8503 = vrot.slane %v8501, 4
      %v8504 = vor.u32 %v8500, %v8503
      %v8505 = vshrl.u32 %v8209, 16
      %v8507 = vrot.slane %v8505, 3
      %v8508 = vshll.u32 %v8209, 16
      %v8510 = vrot.slane %v8508, 4
      %v8511 = vor.u32 %v8507, %v8510
      %v8512 = vsel %vm5694, %v8504, %v8511
      %v8513 = vshrl.u32 %v8045, 16
      %v8515 = vrot.slane %v8513, 3
      %v8516 = vshll.u32 %v8045, 16
      %v8518 = vrot.slane %v8516, 4
      %v8519 = vor.u32 %v8515, %v8518
      %v8520 = vshrl.u32 %v8047, 16
      %v8522 = vrot.slane %v8520, 3
      %v8523 = vshll.u32 %v8047, 16
      %v8525 = vrot.slane %v8523, 4
      %v8526 = vor.u32 %v8522, %v8525
      %v8527 = vsel %vm5694, %v8519, %v8526
      %v8528 = vshrl.u32 %v8128, 16
      %v8530 = vrot.slane %v8528, 3
      %v8531 = vshll.u32 %v8128, 16
      %v8533 = vrot.slane %v8531, 4
      %v8534 = vor.u32 %v8530, %v8533
      %v8535 = vshrl.u32 %v8130, 16
      %v8537 = vrot.slane %v8535, 3
      %v8538 = vshll.u32 %v8130, 16
      %v8540 = vrot.slane %v8538, 4
      %v8541 = vor.u32 %v8537, %v8540
      %v8542 = vsel %vm5694, %v8534, %v8541
      %v8543 = vshrl.u32 %v8211, 16
      %v8545 = vrot.slane %v8543, 3
      %v8546 = vshll.u32 %v8211, 16
      %v8548 = vrot.slane %v8546, 4
      %v8549 = vor.u32 %v8545, %v8548
      %v8550 = vshrl.u32 %v8213, 16
      %v8552 = vrot.slane %v8550, 3
      %v8553 = vshll.u32 %v8213, 16
      %v8555 = vrot.slane %v8553, 4
      %v8556 = vor.u32 %v8552, %v8555
      %v8557 = vsel %vm5694, %v8549, %v8556
      %v8558 = vshrl.u32 %v8049, 16
      %v8560 = vrot.slane %v8558, 3
      %v8561 = vshll.u32 %v8049, 16
      %v8563 = vrot.slane %v8561, 4
      %v8564 = vor.u32 %v8560, %v8563
      %v8565 = vshrl.u32 %v8051, 16
      %v8567 = vrot.slane %v8565, 3
      %v8568 = vshll.u32 %v8051, 16
      %v8570 = vrot.slane %v8568, 4
      %v8571 = vor.u32 %v8567, %v8570
      %v8572 = vsel %vm5694, %v8564, %v8571
      %v8573 = vshrl.u32 %v8133, 16
      %v8575 = vrot.slane %v8573, 3
      %v8576 = vshll.u32 %v8133, 16
      %v8578 = vrot.slane %v8576, 4
      %v8579 = vor.u32 %v8575, %v8578
      %v8580 = vshrl.u32 %v8135, 16
      %v8582 = vrot.slane %v8580, 3
      %v8583 = vshll.u32 %v8135, 16
      %v8585 = vrot.slane %v8583, 4
      %v8586 = vor.u32 %v8582, %v8585
      %v8587 = vsel %vm5694, %v8579, %v8586
      %v8588 = vshrl.u32 %v8215, 16
      %v8590 = vrot.slane %v8588, 3
      %v8591 = vshll.u32 %v8215, 16
      %v8593 = vrot.slane %v8591, 4
      %v8594 = vor.u32 %v8590, %v8593
      %v8595 = vshrl.u32 %v8217, 16
      %v8597 = vrot.slane %v8595, 3
      %v8598 = vshll.u32 %v8217, 16
      %v8600 = vrot.slane %v8598, 4
      %v8601 = vor.u32 %v8597, %v8600
      %v8602 = vsel %vm5694, %v8594, %v8601
      %v8603 = vshrl.u32 %v8053, 16
      %v8605 = vrot.slane %v8603, 3
      %v8606 = vshll.u32 %v8053, 16
      %v8608 = vrot.slane %v8606, 4
      %v8609 = vor.u32 %v8605, %v8608
      %v8610 = vshrl.u32 %v8055, 16
      %v8612 = vrot.slane %v8610, 3
      %v8613 = vshll.u32 %v8055, 16
      %v8615 = vrot.slane %v8613, 4
      %v8616 = vor.u32 %v8612, %v8615
      %v8617 = vsel %vm5694, %v8609, %v8616
      %v8618 = vshrl.u32 %v8138, 16
      %v8620 = vrot.slane %v8618, 3
      %v8621 = vshll.u32 %v8138, 16
      %v8623 = vrot.slane %v8621, 4
      %v8624 = vor.u32 %v8620, %v8623
      %v8625 = vshrl.u32 %v8140, 16
      %v8627 = vrot.slane %v8625, 3
      %v8628 = vshll.u32 %v8140, 16
      %v8630 = vrot.slane %v8628, 4
      %v8631 = vor.u32 %v8627, %v8630
      %v8632 = vsel %vm5694, %v8624, %v8631
      %v8633 = vshrl.u32 %v8219, 16
      %v8635 = vrot.slane %v8633, 3
      %v8636 = vshll.u32 %v8219, 16
      %v8638 = vrot.slane %v8636, 4
      %v8639 = vor.u32 %v8635, %v8638
      %v8640 = vshrl.u32 %v8221, 16
      %v8642 = vrot.slane %v8640, 3
      %v8643 = vshll.u32 %v8221, 16
      %v8645 = vrot.slane %v8643, 4
      %v8646 = vor.u32 %v8642, %v8645
      %v8647 = vsel %vm5694, %v8639, %v8646
      %v8648 = vshrl.u32 %v8057, 16
      %v8650 = vrot.slane %v8648, 3
      %v8651 = vshll.u32 %v8057, 16
      %v8653 = vrot.slane %v8651, 4
      %v8654 = vor.u32 %v8650, %v8653
      %v8655 = vshrl.u32 %v8059, 16
      %v8657 = vrot.slane %v8655, 3
      %v8658 = vshll.u32 %v8059, 16
      %v8660 = vrot.slane %v8658, 4
      %v8661 = vor.u32 %v8657, %v8660
      %v8662 = vsel %vm5694, %v8654, %v8661
      %v8663 = vshrl.u32 %v8143, 16
      %v8665 = vrot.slane %v8663, 3
      %v8666 = vshll.u32 %v8143, 16
      %v8668 = vrot.slane %v8666, 4
      %v8669 = vor.u32 %v8665, %v8668
      %v8670 = vshrl.u32 %v8145, 16
      %v8672 = vrot.slane %v8670, 3
      %v8673 = vshll.u32 %v8145, 16
      %v8675 = vrot.slane %v8673, 4
      %v8676 = vor.u32 %v8672, %v8675
      %v8677 = vsel %vm5694, %v8669, %v8676
      %v8678 = vshrl.u32 %v8223, 16
      %v8680 = vrot.slane %v8678, 3
      %v8681 = vshll.u32 %v8223, 16
      %v8683 = vrot.slane %v8681, 4
      %v8684 = vor.u32 %v8680, %v8683
      %v8685 = vshrl.u32 %v8225, 16
      %v8687 = vrot.slane %v8685, 3
      %v8688 = vshll.u32 %v8225, 16
      %v8690 = vrot.slane %v8688, 4
      %v8691 = vor.u32 %v8687, %v8690
      %v8692 = vsel %vm5694, %v8684, %v8691
      %v8693 = vshrl.u32 %v8061, 16
      %v8695 = vrot.slane %v8693, 3
      %v8696 = vshll.u32 %v8061, 16
      %v8698 = vrot.slane %v8696, 4
      %v8699 = vor.u32 %v8695, %v8698
      %v8700 = vshrl.u32 %v8063, 16
      %v8702 = vrot.slane %v8700, 3
      %v8703 = vshll.u32 %v8063, 16
      %v8705 = vrot.slane %v8703, 4
      %v8706 = vor.u32 %v8702, %v8705
      %v8707 = vsel %vm5694, %v8699, %v8706
      %v8708 = vshrl.u32 %v8148, 16
      %v8710 = vrot.slane %v8708, 3
      %v8711 = vshll.u32 %v8148, 16
      %v8713 = vrot.slane %v8711, 4
      %v8714 = vor.u32 %v8710, %v8713
      %v8715 = vshrl.u32 %v8150, 16
      %v8717 = vrot.slane %v8715, 3
      %v8718 = vshll.u32 %v8150, 16
      %v8720 = vrot.slane %v8718, 4
      %v8721 = vor.u32 %v8717, %v8720
      %v8722 = vsel %vm5694, %v8714, %v8721
      %v8723 = vshrl.u32 %v8227, 16
      %v8725 = vrot.slane %v8723, 3
      %v8726 = vshll.u32 %v8227, 16
      %v8728 = vrot.slane %v8726, 4
      %v8729 = vor.u32 %v8725, %v8728
      %v8730 = vshrl.u32 %v8229, 16
      %v8732 = vrot.slane %v8730, 3
      %v8733 = vshll.u32 %v8229, 16
      %v8735 = vrot.slane %v8733, 4
      %v8736 = vor.u32 %v8732, %v8735
      %v8737 = vsel %vm5694, %v8729, %v8736
      %v8738 = vshrl.u32 %v8065, 16
      %v8740 = vrot.slane %v8738, 3
      %v8741 = vshll.u32 %v8065, 16
      %v8743 = vrot.slane %v8741, 4
      %v8744 = vor.u32 %v8740, %v8743
      %v8745 = vshrl.u32 %v8067, 16
      %v8747 = vrot.slane %v8745, 3
      %v8748 = vshll.u32 %v8067, 16
      %v8750 = vrot.slane %v8748, 4
      %v8751 = vor.u32 %v8747, %v8750
      %v8752 = vsel %vm5694, %v8744, %v8751
      %v8753 = vshrl.u32 %v8153, 16
      %v8755 = vrot.slane %v8753, 3
      %v8756 = vshll.u32 %v8153, 16
      %v8758 = vrot.slane %v8756, 4
      %v8759 = vor.u32 %v8755, %v8758
      %v8760 = vshrl.u32 %v8155, 16
      %v8762 = vrot.slane %v8760, 3
      %v8763 = vshll.u32 %v8155, 16
      %v8765 = vrot.slane %v8763, 4
      %v8766 = vor.u32 %v8762, %v8765
      %v8767 = vsel %vm5694, %v8759, %v8766
      %v8768 = vshrl.u32 %v8231, 16
      %v8770 = vrot.slane %v8768, 3
      %v8771 = vshll.u32 %v8231, 16
      %v8773 = vrot.slane %v8771, 4
      %v8774 = vor.u32 %v8770, %v8773
      %v8775 = vshrl.u32 %v8233, 16
      %v8777 = vrot.slane %v8775, 3
      %v8778 = vshll.u32 %v8233, 16
      %v8780 = vrot.slane %v8778, 4
      %v8781 = vor.u32 %v8777, %v8780
      %v8782 = vsel %vm5694, %v8774, %v8781
      %v8783 = vshrl.u32 %v8069, 16
      %v8785 = vrot.slane %v8783, 3
      %v8786 = vshll.u32 %v8069, 16
      %v8788 = vrot.slane %v8786, 4
      %v8789 = vor.u32 %v8785, %v8788
      %v8790 = vshrl.u32 %v8071, 16
      %v8792 = vrot.slane %v8790, 3
      %v8793 = vshll.u32 %v8071, 16
      %v8795 = vrot.slane %v8793, 4
      %v8796 = vor.u32 %v8792, %v8795
      %v8797 = vsel %vm5694, %v8789, %v8796
      %v8798 = vshrl.u32 %v8158, 16
      %v8800 = vrot.slane %v8798, 3
      %v8801 = vshll.u32 %v8158, 16
      %v8803 = vrot.slane %v8801, 4
      %v8804 = vor.u32 %v8800, %v8803
      %v8805 = vshrl.u32 %v8160, 16
      %v8807 = vrot.slane %v8805, 3
      %v8808 = vshll.u32 %v8160, 16
      %v8810 = vrot.slane %v8808, 4
      %v8811 = vor.u32 %v8807, %v8810
      %v8812 = vsel %vm5694, %v8804, %v8811
      %v8813 = vshrl.u32 %v8235, 16
      %v8815 = vrot.slane %v8813, 3
      %v8816 = vshll.u32 %v8235, 16
      %v8818 = vrot.slane %v8816, 4
      %v8819 = vor.u32 %v8815, %v8818
      %v8820 = vshrl.u32 %v8237, 16
      %v8822 = vrot.slane %v8820, 3
      %v8823 = vshll.u32 %v8237, 16
      %v8825 = vrot.slane %v8823, 4
      %v8826 = vor.u32 %v8822, %v8825
      %v8827 = vsel %vm5694, %v8819, %v8826
      %v8828 = vshrl.u32 %v8073, 16
      %v8830 = vrot.slane %v8828, 3
      %v8831 = vshll.u32 %v8073, 16
      %v8833 = vrot.slane %v8831, 4
      %v8834 = vor.u32 %v8830, %v8833
      %v8835 = vshrl.u32 %v8075, 16
      %v8837 = vrot.slane %v8835, 3
      %v8838 = vshll.u32 %v8075, 16
      %v8840 = vrot.slane %v8838, 4
      %v8841 = vor.u32 %v8837, %v8840
      %v8842 = vsel %vm5694, %v8834, %v8841
      %v8843 = vshrl.u32 %v8163, 16
      %v8845 = vrot.slane %v8843, 3
      %v8846 = vshll.u32 %v8163, 16
      %v8848 = vrot.slane %v8846, 4
      %v8849 = vor.u32 %v8845, %v8848
      %v8850 = vshrl.u32 %v8165, 16
      %v8852 = vrot.slane %v8850, 3
      %v8853 = vshll.u32 %v8165, 16
      %v8855 = vrot.slane %v8853, 4
      %v8856 = vor.u32 %v8852, %v8855
      %v8857 = vsel %vm5694, %v8849, %v8856
      %v8858 = vshrl.u32 %v8239, 16
      %v8860 = vrot.slane %v8858, 3
      %v8861 = vshll.u32 %v8239, 16
      %v8863 = vrot.slane %v8861, 4
      %v8864 = vor.u32 %v8860, %v8863
      %v8865 = vshrl.u32 %v8241, 16
      %v8867 = vrot.slane %v8865, 3
      %v8868 = vshll.u32 %v8241, 16
      %v8870 = vrot.slane %v8868, 4
      %v8871 = vor.u32 %v8867, %v8870
      %v8872 = vsel %vm5694, %v8864, %v8871
      %v8873 = vshrl.u32 %v8077, 16
      %v8875 = vrot.slane %v8873, 3
      %v8876 = vshll.u32 %v8077, 16
      %v8878 = vrot.slane %v8876, 4
      %v8879 = vor.u32 %v8875, %v8878
      %v8880 = vshrl.u32 %v8079, 16
      %v8882 = vrot.slane %v8880, 3
      %v8883 = vshll.u32 %v8079, 16
      %v8885 = vrot.slane %v8883, 4
      %v8886 = vor.u32 %v8882, %v8885
      %v8887 = vsel %vm5694, %v8879, %v8886
      %v8888 = vshrl.u32 %v8168, 16
      %v8890 = vrot.slane %v8888, 3
      %v8891 = vshll.u32 %v8168, 16
      %v8893 = vrot.slane %v8891, 4
      %v8894 = vor.u32 %v8890, %v8893
      %v8895 = vshrl.u32 %v8170, 16
      %v8897 = vrot.slane %v8895, 3
      %v8898 = vshll.u32 %v8170, 16
      %v8900 = vrot.slane %v8898, 4
      %v8901 = vor.u32 %v8897, %v8900
      %v8902 = vsel %vm5694, %v8894, %v8901
      %v8903 = vshrl.u32 %v8243, 16
      %v8905 = vrot.slane %v8903, 3
      %v8906 = vshll.u32 %v8243, 16
      %v8908 = vrot.slane %v8906, 4
      %v8909 = vor.u32 %v8905, %v8908
      %v8910 = vshrl.u32 %v8245, 16
      %v8912 = vrot.slane %v8910, 3
      %v8913 = vshll.u32 %v8245, 16
      %v8915 = vrot.slane %v8913, 4
      %v8916 = vor.u32 %v8912, %v8915
      %v8917 = vsel %vm5694, %v8909, %v8916
      %v8918 = vshrl.u32 %v8081, 16
      %v8920 = vrot.slane %v8918, 3
      %v8921 = vshll.u32 %v8081, 16
      %v8923 = vrot.slane %v8921, 4
      %v8924 = vor.u32 %v8920, %v8923
      %v8925 = vshrl.u32 %v8083, 16
      %v8927 = vrot.slane %v8925, 3
      %v8928 = vshll.u32 %v8083, 16
      %v8930 = vrot.slane %v8928, 4
      %v8931 = vor.u32 %v8927, %v8930
      %v8932 = vsel %vm5694, %v8924, %v8931
      %v8933 = vshrl.u32 %v8173, 16
      %v8935 = vrot.slane %v8933, 3
      %v8936 = vshll.u32 %v8173, 16
      %v8938 = vrot.slane %v8936, 4
      %v8939 = vor.u32 %v8935, %v8938
      %v8940 = vshrl.u32 %v8175, 16
      %v8942 = vrot.slane %v8940, 3
      %v8943 = vshll.u32 %v8175, 16
      %v8945 = vrot.slane %v8943, 4
      %v8946 = vor.u32 %v8942, %v8945
      %v8947 = vsel %vm5694, %v8939, %v8946
      %v8948 = vshrl.u32 %v8247, 16
      %v8950 = vrot.slane %v8948, 3
      %v8951 = vshll.u32 %v8247, 16
      %v8953 = vrot.slane %v8951, 4
      %v8954 = vor.u32 %v8950, %v8953
      %v8955 = vshrl.u32 %v8249, 16
      %v8957 = vrot.slane %v8955, 3
      %v8958 = vshll.u32 %v8249, 16
      %v8960 = vrot.slane %v8958, 4
      %v8961 = vor.u32 %v8957, %v8960
      %v8962 = vsel %vm5694, %v8954, %v8961
      %v8963 = vshrl.u32 %v8085, 16
      %v8965 = vrot.slane %v8963, 3
      %v8966 = vshll.u32 %v8085, 16
      %v8968 = vrot.slane %v8966, 4
      %v8969 = vor.u32 %v8965, %v8968
      %v8970 = vshrl.u32 %v8087, 16
      %v8972 = vrot.slane %v8970, 3
      %v8973 = vshll.u32 %v8087, 16
      %v8975 = vrot.slane %v8973, 4
      %v8976 = vor.u32 %v8972, %v8975
      %v8977 = vsel %vm5694, %v8969, %v8976
      %v9010 = vld [vmem:[%s5] sm:$0xf]
      %v9011 = vld [vmem:[%s5 + $0x4] sm:$0xf]
      %v9012 = vld [vmem:[%s5 + $0x8] sm:$0xf]
      %v9013 = vld [vmem:[%s5 + $0xc] sm:$0xf]
      %v9014 = vld [vmem:[%s5 + $0x10] sm:$0xf]
      %v9015 = vld [vmem:[%s5 + $0x14] sm:$0xf]
      %v9016 = vld [vmem:[%s5 + $0x18] sm:$0xf]
      %v9017 = vld [vmem:[%s5 + $0x1c] sm:$0xf]
      %v9018 = vld [vmem:[%s5 + $0x20] sm:$0xf]
      %v9019 = vld [vmem:[%s5 + $0x24] sm:$0xf]
      %v9020 = vld [vmem:[%s5 + $0x28] sm:$0xf]
      %v9021 = vld [vmem:[%s5 + $0x2c] sm:$0xf]
      %v9022 = vld [vmem:[%s5 + $0x30] sm:$0xf]
      %v9023 = vld [vmem:[%s5 + $0x34] sm:$0xf]
      %v9024 = vld [vmem:[%s5 + $0x38] sm:$0xf]
      %v9025 = vld [vmem:[%s5 + $0x3c] sm:$0xf]
      %v9026 = vld [vmem:[%s5 + $0x40] sm:$0xf]
      %v9027 = vld [vmem:[%s5 + $0x44] sm:$0xf]
      %v9028 = vld [vmem:[%s5 + $0x48] sm:$0xf]
      %v9029 = vld [vmem:[%s5 + $0x4c] sm:$0xf]
      %v9030 = vld [vmem:[%s5 + $0x50] sm:$0xf]
      %v9031 = vld [vmem:[%s5 + $0x54] sm:$0xf]
      %v9032 = vld [vmem:[%s5 + $0x58] sm:$0xf]
      %v9033 = vld [vmem:[%s5 + $0x5c] sm:$0xf]
      %v9034 = vld [vmem:[%s5 + $0x60] sm:$0xf]
      %v9035 = vld [vmem:[%s5 + $0x64] sm:$0xf]
      %v9036 = vld [vmem:[%s5 + $0x68] sm:$0xf]
      %v9037 = vld [vmem:[%s5 + $0x6c] sm:$0xf]
      %v9038 = vld [vmem:[%s5 + $0x70] sm:$0xf]
      %v9039 = vld [vmem:[%s5 + $0x74] sm:$0xf]
      %v9040 = vld [vmem:[%s5 + $0x78] sm:$0xf]
      %v9041 = vld [vmem:[%s5 + $0x7c] sm:$0xf]
      %v9042 = vld [vmem:[%s5 + $0x80] sm:$0xf]
      %v9043 = vld [vmem:[%s5 + $0x84] sm:$0xf]
      %v9044 = vld [vmem:[%s5 + $0x88] sm:$0xf]
      %v9045 = vld [vmem:[%s5 + $0x8c] sm:$0xf]
      %v9046 = vshrl.u32 %v8178, 16
      %v9048 = vrot.slane %v9046, 3
      %v9049 = vshll.u32 %v8178, 16
      %v9051 = vrot.slane %v9049, 4
      %v9052 = vor.u32 %v9048, %v9051
      %v9053 = vshrl.u32 %v8180, 16
      %v9055 = vrot.slane %v9053, 3
      %v9056 = vshll.u32 %v8180, 16
      %v9058 = vrot.slane %v9056, 4
      %v9059 = vor.u32 %v9055, %v9058
      %v9060 = vsel %vm5694, %v9052, %v9059
      %v9061 = vshrl.u32 %v8251, 16
      %v9063 = vrot.slane %v9061, 3
      %v9064 = vshll.u32 %v8251, 16
      %v9066 = vrot.slane %v9064, 4
      %v9067 = vor.u32 %v9063, %v9066
      %v9068 = vshrl.u32 %v8253, 16
      %v9070 = vrot.slane %v9068, 3
      %v9071 = vshll.u32 %v8253, 16
      %v9073 = vrot.slane %v9071, 4
      %v9074 = vor.u32 %v9070, %v9073
      %v9075 = vsel %vm5694, %v9067, %v9074
      %v9076 = vshrl.u32 %v8089, 16
      %v9078 = vrot.slane %v9076, 3
      %v9079 = vshll.u32 %v8089, 16
      %v9081 = vrot.slane %v9079, 4
      %v9082 = vor.u32 %v9078, %v9081
      %v9083 = vshrl.u32 %v8091, 16
      %v9085 = vrot.slane %v9083, 3
      %v9086 = vshll.u32 %v8091, 16
      %v9088 = vrot.slane %v9086, 4
      %v9089 = vor.u32 %v9085, %v9088
      %v9090 = vsel %vm5694, %v9082, %v9089
      %s9093 = scalar_lea.vmem %s5, 144
      %v9094 = vld [vmem:[%s9093] sm:$0xf]
      %v9095 = vld [vmem:[%s9093 + $0x4] sm:$0xf]
      %v9096 = vld [vmem:[%s9093 + $0x8] sm:$0xf]
      %v9097 = vld [vmem:[%s9093 + $0xc] sm:$0xf]
      %v9098 = vld [vmem:[%s9093 + $0x10] sm:$0xf]
      %v9099 = vld [vmem:[%s9093 + $0x14] sm:$0xf]
      %v9100 = vld [vmem:[%s9093 + $0x18] sm:$0xf]
      %v9101 = vld [vmem:[%s9093 + $0x1c] sm:$0xf]
      %v9102 = vld [vmem:[%s9093 + $0x20] sm:$0xf]
      %v9103 = vld [vmem:[%s9093 + $0x24] sm:$0xf]
      %v9104 = vld [vmem:[%s9093 + $0x28] sm:$0xf]
      %v9105 = vld [vmem:[%s9093 + $0x2c] sm:$0xf]
      %v9106 = vld [vmem:[%s9093 + $0x30] sm:$0xf]
      %v9107 = vld [vmem:[%s9093 + $0x34] sm:$0xf]
      %v9108 = vld [vmem:[%s9093 + $0x38] sm:$0xf]
      %v9109 = vld [vmem:[%s9093 + $0x3c] sm:$0xf]
      %v9110 = vld [vmem:[%s9093 + $0x40] sm:$0xf]
      %v9111 = vld [vmem:[%s9093 + $0x44] sm:$0xf]
      %v9112 = vld [vmem:[%s9093 + $0x48] sm:$0xf]
      %v9113 = vld [vmem:[%s9093 + $0x4c] sm:$0xf]
      %v9114 = vld [vmem:[%s9093 + $0x50] sm:$0xf]
      %v9115 = vld [vmem:[%s9093 + $0x54] sm:$0xf]
      %v9116 = vld [vmem:[%s9093 + $0x58] sm:$0xf]
      %v9117 = vld [vmem:[%s9093 + $0x5c] sm:$0xf]
      %v9118 = vld [vmem:[%s9093 + $0x60] sm:$0xf]
      %v9119 = vld [vmem:[%s9093 + $0x64] sm:$0xf]
      %v9120 = vld [vmem:[%s9093 + $0x68] sm:$0xf]
      %v9121 = vld [vmem:[%s9093 + $0x6c] sm:$0xf]
      %v9122 = vld [vmem:[%s9093 + $0x70] sm:$0xf]
      %v9123 = vld [vmem:[%s9093 + $0x74] sm:$0xf]
      %v9124 = vld [vmem:[%s9093 + $0x78] sm:$0xf]
      %v9125 = vld [vmem:[%s9093 + $0x7c] sm:$0xf]
      %v9126 = vld [vmem:[%s9093 + $0x80] sm:$0xf]
      %v9127 = vld [vmem:[%s9093 + $0x84] sm:$0xf]
      %v9128 = vld [vmem:[%s9093 + $0x88] sm:$0xf]
      %v9129 = vld [vmem:[%s9093 + $0x8c] sm:$0xf]
      %v9166 = vunpack.c.l.b16 %v9094
      %v9167 = vunpack.c.l.b16 %v9095
      %v9168 = vunpack.c.l.b16 %v9096
      %v9169 = vunpack.c.l.b16 %v9097
      %v9170 = vunpack.c.l.b16 %v9098
      %v9171 = vunpack.c.l.b16 %v9099
      %v9172 = vunpack.c.l.b16 %v9100
      %v9173 = vunpack.c.l.b16 %v9101
      %v9174 = vunpack.c.l.b16 %v9102
      %v9175 = vunpack.c.l.b16 %v9103
      %v9176 = vunpack.c.l.b16 %v9104
      %v9177 = vunpack.c.l.b16 %v9105
      %v9178 = vunpack.c.l.b16 %v9106
      %v9179 = vunpack.c.l.b16 %v9107
      %v9180 = vunpack.c.l.b16 %v9108
      %v9181 = vunpack.c.l.b16 %v9109
      %v9182 = vunpack.c.l.b16 %v9110
      %v9183 = vunpack.c.l.b16 %v9111
      %v9184 = vunpack.c.l.b16 %v9112
      %v9185 = vunpack.c.l.b16 %v9113
      %v9186 = vunpack.c.l.b16 %v9114
      %v9187 = vunpack.c.l.b16 %v9115
      %v9188 = vunpack.c.l.b16 %v9116
      %v9189 = vunpack.c.l.b16 %v9117
      %v9190 = vunpack.c.l.b16 %v9118
      %v9191 = vunpack.c.l.b16 %v9119
      %v9192 = vunpack.c.l.b16 %v9120
      %v9193 = vunpack.c.l.b16 %v9121
      %v9194 = vunpack.c.l.b16 %v9122
      %v9195 = vunpack.c.l.b16 %v9123
      %v9196 = vunpack.c.l.b16 %v9124
      %v9197 = vunpack.c.l.b16 %v9125
      %v9198 = vunpack.c.l.b16 %v9126
      %v9199 = vunpack.c.l.b16 %v9127
      %v9200 = vunpack.c.l.b16 %v9128
      %v9201 = vunpack.c.l.b16 %v9129
      %v9202 = vpack.c.b16 %v9167, %v9166
      %v9203 = vpack.c.b16 %v9169, %v9168
      %v9204 = vpack.c.b16 %v9171, %v9170
      %v9205 = vpack.c.b16 %v9173, %v9172
      %v9206 = vpack.c.b16 %v9175, %v9174
      %v9207 = vpack.c.b16 %v9177, %v9176
      %v9208 = vpack.c.b16 %v9179, %v9178
      %v9209 = vpack.c.b16 %v9181, %v9180
      %v9210 = vpack.c.b16 %v9183, %v9182
      %v9211 = vpack.c.b16 %v9185, %v9184
      %v9212 = vpack.c.b16 %v9187, %v9186
      %v9213 = vpack.c.b16 %v9189, %v9188
      %v9214 = vpack.c.b16 %v9191, %v9190
      %v9215 = vpack.c.b16 %v9193, %v9192
      %v9216 = vpack.c.b16 %v9195, %v9194
      %v9217 = vpack.c.b16 %v9197, %v9196
      %v9218 = vpack.c.b16 %v9199, %v9198
      %v9219 = vpack.c.b16 %v9201, %v9200
      %vm9238 = vcmask 261120
      %v9240 = vsel %vm9238, %v8347, 0
      %v9243 = vsel %vm9238, %v8392, 0
      %v9246 = vsel %vm9238, %v8437, 0
      %v9249 = vsel %vm9238, %v8482, 0
      %v9252 = vsel %vm9238, %v8527, 0
      %v9255 = vsel %vm9238, %v8572, 0
      %v9258 = vsel %vm9238, %v8617, 0
      %v9261 = vsel %vm9238, %v8662, 0
      %v9264 = vsel %vm9238, %v8707, 0
      %v9267 = vsel %vm9238, %v8752, 0
      %v9270 = vsel %vm9238, %v8797, 0
      %v9273 = vsel %vm9238, %v8842, 0
      %v9276 = vsel %vm9238, %v8887, 0
      %v9279 = vsel %vm9238, %v8932, 0
      %v9282 = vsel %vm9238, %v8977, 0
      %v9285 = vsel %vm9238, %v9090, 0
      %9287 = vmatprep.subr.bf16.mxu0 0
      %9288 = vmatpush1.bf16.msra.mxu0 %v9209
      %9289 = vmatprep.subr.bf16.mxu0 0
      %9290 = vmatpush1.bf16.msra.mxu0 %v9208
      %9291 = vmatprep.subr.bf16.mxu0 0
      %9292 = vmatpush1.bf16.msra.mxu0 %v9207
      %9293 = vmatprep.subr.bf16.mxu0 0
      %9294 = vmatpush1.bf16.msra.mxu0 %v9206
      %9295 = vmatprep.subr.bf16.mxu0 0
      %9296 = vmatpush1.bf16.msra.mxu0 %v9205
      %9297 = vmatprep.subr.bf16.mxu0 0
      %9298 = vmatpush1.bf16.msra.mxu0 %v9204
      %9299 = vmatprep.subr.bf16.mxu0 0
      %9300 = vmatpush1.bf16.msra.mxu0 %v9203
      %9301 = vmatprep.subr.bf16.mxu0 0
      %9302 = vmatpush1.bf16.msra.mxu0 %v9202
      %9303 = vmatprep.subr.bf16.mxu0 0
      %9304 = vmatpush2.bf16.msra.mxu0 %v9217
      %9305 = vmatprep.subr.bf16.mxu0 0
      %9306 = vmatpush2.bf16.msra.mxu0 %v9216
      %9307 = vmatprep.subr.bf16.mxu0 0
      %9308 = vmatpush2.bf16.msra.mxu0 %v9215
      %9309 = vmatprep.subr.bf16.mxu0 0
      %9310 = vmatpush2.bf16.msra.mxu0 %v9214
      %9311 = vmatprep.subr.bf16.mxu0 0
      %9312 = vmatpush2.bf16.msra.mxu0 %v9213
      %9313 = vmatprep.subr.bf16.mxu0 0
      %9314 = vmatpush2.bf16.msra.mxu0 %v9212
      %9315 = vmatprep.subr.bf16.mxu0 0
      %9316 = vmatpush2.bf16.msra.mxu0 %v9211
      %9317 = vmatprep.subr.bf16.mxu0 0
      %9318 = vmatpush2.bf16.msra.mxu0 %v9210
      %9319 = vmatprep.mubr.bf16.mxu0 %v8332
      %9320 = vmatmul.mubr.bf16.gmra.mxu0 %v8317
      %v9321 = vpop.f32.mrf.mxu0
      %v9322 = vadd.f32 0.0, %v9321
      %v9323 = vpop.f32.mrf.mxu0
      %v9324 = vpop.f32.mrf.mxu0
      %v9325 = vadd.f32 0.0, %v9324
      %v9326 = vpop.f32.mrf.mxu0
      %9327 = vmatprep.mubr.bf16.mxu0 %v8377
      %9328 = vmatmul.mubr.bf16.gmra.mxu0 %v8362
      %v9329 = vpop.f32.mrf.mxu0
      %v9330 = vadd.f32 0.0, %v9329
      %v9331 = vpop.f32.mrf.mxu0
      %v9332 = vpop.f32.mrf.mxu0
      %v9333 = vadd.f32 0.0, %v9332
      %v9334 = vpop.f32.mrf.mxu0
      %9335 = vmatprep.mubr.bf16.mxu0 %v8422
      %9336 = vmatmul.mubr.bf16.gmra.mxu0 %v8407
      %v9337 = vpop.f32.mrf.mxu0
      %v9338 = vadd.f32 0.0, %v9337
      %v9339 = vpop.f32.mrf.mxu0
      %v9340 = vpop.f32.mrf.mxu0
      %v9341 = vadd.f32 0.0, %v9340
      %v9342 = vpop.f32.mrf.mxu0
      %9343 = vmatprep.mubr.bf16.mxu0 %v8467
      %9344 = vmatmul.mubr.bf16.gmra.mxu0 %v8452
      %v9345 = vpop.f32.mrf.mxu0
      %v9346 = vadd.f32 0.0, %v9345
      %v9347 = vpop.f32.mrf.mxu0
      %v9348 = vpop.f32.mrf.mxu0
      %v9349 = vadd.f32 0.0, %v9348
      %v9350 = vpop.f32.mrf.mxu0
      %9351 = vmatprep.mubr.bf16.mxu0 %v8512
      %9352 = vmatmul.mubr.bf16.gmra.mxu0 %v8497
      %v9353 = vpop.f32.mrf.mxu0
      %v9354 = vadd.f32 0.0, %v9353
      %v9355 = vpop.f32.mrf.mxu0
      %v9356 = vpop.f32.mrf.mxu0
      %v9357 = vadd.f32 0.0, %v9356
      %v9358 = vpop.f32.mrf.mxu0
      %9359 = vmatprep.mubr.bf16.mxu0 %v8557
      %9360 = vmatmul.mubr.bf16.gmra.mxu0 %v8542
      %v9361 = vpop.f32.mrf.mxu0
      %v9362 = vadd.f32 0.0, %v9361
      %v9363 = vpop.f32.mrf.mxu0
      %v9364 = vpop.f32.mrf.mxu0
      %v9365 = vadd.f32 0.0, %v9364
      %v9366 = vpop.f32.mrf.mxu0
      %9367 = vmatprep.mubr.bf16.mxu0 %v8602
      %9368 = vmatmul.mubr.bf16.gmra.mxu0 %v8587
      %v9369 = vpop.f32.mrf.mxu0
      %v9370 = vadd.f32 0.0, %v9369
      %v9371 = vpop.f32.mrf.mxu0
      %v9372 = vpop.f32.mrf.mxu0
      %v9373 = vadd.f32 0.0, %v9372
      %v9374 = vpop.f32.mrf.mxu0
      %9375 = vmatprep.mubr.bf16.mxu0 %v8647
      %9376 = vmatmul.mubr.bf16.gmra.mxu0 %v8632
      %v9377 = vpop.f32.mrf.mxu0
      %v9378 = vadd.f32 0.0, %v9377
      %v9379 = vpop.f32.mrf.mxu0
      %v9380 = vpop.f32.mrf.mxu0
      %v9381 = vadd.f32 0.0, %v9380
      %v9382 = vpop.f32.mrf.mxu0
      %9383 = vmatprep.mubr.bf16.mxu0 %v8692
      %9384 = vmatmul.mubr.bf16.gmra.mxu0 %v8677
      %v9385 = vpop.f32.mrf.mxu0
      %v9386 = vadd.f32 0.0, %v9385
      %v9387 = vpop.f32.mrf.mxu0
      %v9388 = vpop.f32.mrf.mxu0
      %v9389 = vadd.f32 0.0, %v9388
      %v9390 = vpop.f32.mrf.mxu0
      %9391 = vmatprep.mubr.bf16.mxu0 %v8737
      %9392 = vmatmul.mubr.bf16.gmra.mxu0 %v8722
      %v9393 = vpop.f32.mrf.mxu0
      %v9394 = vadd.f32 0.0, %v9393
      %v9395 = vpop.f32.mrf.mxu0
      %v9396 = vpop.f32.mrf.mxu0
      %v9397 = vadd.f32 0.0, %v9396
      %v9398 = vpop.f32.mrf.mxu0
      %9399 = vmatprep.mubr.bf16.mxu0 %v8782
      %9400 = vmatmul.mubr.bf16.gmra.mxu0 %v8767
      %v9401 = vpop.f32.mrf.mxu0
      %v9402 = vadd.f32 0.0, %v9401
      %v9403 = vpop.f32.mrf.mxu0
      %v9404 = vpop.f32.mrf.mxu0
      %v9405 = vadd.f32 0.0, %v9404
      %v9406 = vpop.f32.mrf.mxu0
      %9407 = vmatprep.mubr.bf16.mxu0 %v8827
      %9408 = vmatmul.mubr.bf16.gmra.mxu0 %v8812
      %v9409 = vpop.f32.mrf.mxu0
      %v9410 = vadd.f32 0.0, %v9409
      %v9411 = vpop.f32.mrf.mxu0
      %v9412 = vpop.f32.mrf.mxu0
      %v9413 = vadd.f32 0.0, %v9412
      %v9414 = vpop.f32.mrf.mxu0
      %9415 = vmatprep.mubr.bf16.mxu0 %v8872
      %9416 = vmatmul.mubr.bf16.gmra.mxu0 %v8857
      %v9417 = vpop.f32.mrf.mxu0
      %v9418 = vadd.f32 0.0, %v9417
      %v9419 = vpop.f32.mrf.mxu0
      %v9420 = vpop.f32.mrf.mxu0
      %v9421 = vadd.f32 0.0, %v9420
      %v9422 = vpop.f32.mrf.mxu0
      %9423 = vmatprep.mubr.bf16.mxu0 %v8917
      %9424 = vmatmul.mubr.bf16.gmra.mxu0 %v8902
      %v9425 = vpop.f32.mrf.mxu0
      %v9426 = vadd.f32 0.0, %v9425
      %v9427 = vpop.f32.mrf.mxu0
      %v9428 = vpop.f32.mrf.mxu0
      %v9429 = vadd.f32 0.0, %v9428
      %v9430 = vpop.f32.mrf.mxu0
      %9431 = vmatprep.mubr.bf16.mxu0 %v8962
      %9432 = vmatmul.mubr.bf16.gmra.mxu0 %v8947
      %v9433 = vpop.f32.mrf.mxu0
      %v9434 = vadd.f32 0.0, %v9433
      %v9435 = vpop.f32.mrf.mxu0
      %v9436 = vpop.f32.mrf.mxu0
      %v9437 = vadd.f32 0.0, %v9436
      %v9438 = vpop.f32.mrf.mxu0
      %9439 = vmatprep.mubr.bf16.mxu0 %v9075
      %9440 = vmatmul.mubr.bf16.gmra.mxu0 %v9060
      %v9441 = vpop.f32.mrf.mxu0
      %v9442 = vadd.f32 0.0, %v9441
      %v9443 = vpop.f32.mrf.mxu0
      %v9444 = vpop.f32.mrf.mxu0
      %v9445 = vadd.f32 0.0, %v9444
      %v9446 = vpop.f32.mrf.mxu0
      %9447 = vdwg.mxu0
      %9448 = vmatprep.subr.bf16.mxu0 0
      %9449 = vmatpush1.bf16.msra.mxu0 0
      %9450 = vmatprep.subr.bf16.mxu0 0
      %9451 = vmatpush1.bf16.msra.mxu0 0
      %9452 = vmatprep.subr.bf16.mxu0 0
      %9453 = vmatpush1.bf16.msra.mxu0 0
      %9454 = vmatprep.subr.bf16.mxu0 0
      %9455 = vmatpush1.bf16.msra.mxu0 0
      %9456 = vmatprep.subr.bf16.mxu0 0
      %9457 = vmatpush1.bf16.msra.mxu0 0
      %9458 = vmatprep.subr.bf16.mxu0 0
      %9459 = vmatpush1.bf16.msra.mxu0 0
      %9460 = vmatprep.subr.bf16.mxu0 0
      %9461 = vmatpush1.bf16.msra.mxu0 %v9219
      %9462 = vmatprep.subr.bf16.mxu0 0
      %9463 = vmatpush1.bf16.msra.mxu0 %v9218
      %9464 = vmatprep.subr.bf16.mxu0 0
      %9465 = vmatpush2.bf16.msra.mxu0 0
      %9466 = vmatprep.subr.bf16.mxu0 0
      %9467 = vmatpush2.bf16.msra.mxu0 0
      %9468 = vmatprep.subr.bf16.mxu0 0
      %9469 = vmatpush2.bf16.msra.mxu0 0
      %9470 = vmatprep.subr.bf16.mxu0 0
      %9471 = vmatpush2.bf16.msra.mxu0 0
      %9472 = vmatprep.subr.bf16.mxu0 0
      %9473 = vmatpush2.bf16.msra.mxu0 0
      %9474 = vmatprep.subr.bf16.mxu0 0
      %9475 = vmatpush2.bf16.msra.mxu0 0
      %9476 = vmatprep.subr.bf16.mxu0 0
      %9477 = vmatpush2.bf16.msra.mxu0 0
      %9478 = vmatprep.subr.bf16.mxu0 0
      %9479 = vmatpush2.bf16.msra.mxu0 0
      %9480 = vmatprep.mubr.bf16.mxu0 0
      %9481 = vmatmul.mubr.bf16.gmra.mxu0 %v9240
      %v9482 = vpop.f32.mrf.mxu0
      %v9483 = vadd.f32 %v9322, %v9482
      %v9484 = vpop.f32.mrf.mxu0
      %v9485 = vpop.f32.mrf.mxu0
      %v9486 = vadd.f32 %v9325, %v9485
      %v9487 = vpop.f32.mrf.mxu0
      %9488 = vmatprep.mubr.bf16.mxu0 0
      %9489 = vmatmul.mubr.bf16.gmra.mxu0 %v9243
      %v9490 = vpop.f32.mrf.mxu0
      %v9491 = vadd.f32 %v9330, %v9490
      %v9492 = vpop.f32.mrf.mxu0
      %v9493 = vpop.f32.mrf.mxu0
      %v9494 = vadd.f32 %v9333, %v9493
      %v9495 = vpop.f32.mrf.mxu0
      %9496 = vmatprep.mubr.bf16.mxu0 0
      %9497 = vmatmul.mubr.bf16.gmra.mxu0 %v9246
      %v9498 = vpop.f32.mrf.mxu0
      %v9499 = vadd.f32 %v9338, %v9498
      %v9500 = vpop.f32.mrf.mxu0
      %v9501 = vpop.f32.mrf.mxu0
      %v9502 = vadd.f32 %v9341, %v9501
      %v9503 = vpop.f32.mrf.mxu0
      %9504 = vmatprep.mubr.bf16.mxu0 0
      %9505 = vmatmul.mubr.bf16.gmra.mxu0 %v9249
      %v9506 = vpop.f32.mrf.mxu0
      %v9507 = vadd.f32 %v9346, %v9506
      %v9508 = vpop.f32.mrf.mxu0
      %v9509 = vpop.f32.mrf.mxu0
      %v9510 = vadd.f32 %v9349, %v9509
      %v9511 = vpop.f32.mrf.mxu0
      %9512 = vmatprep.mubr.bf16.mxu0 0
      %9513 = vmatmul.mubr.bf16.gmra.mxu0 %v9252
      %v9514 = vpop.f32.mrf.mxu0
      %v9515 = vadd.f32 %v9354, %v9514
      %v9516 = vpop.f32.mrf.mxu0
      %v9517 = vpop.f32.mrf.mxu0
      %v9518 = vadd.f32 %v9357, %v9517
      %v9519 = vpop.f32.mrf.mxu0
      %9520 = vmatprep.mubr.bf16.mxu0 0
      %9521 = vmatmul.mubr.bf16.gmra.mxu0 %v9255
      %v9522 = vpop.f32.mrf.mxu0
      %v9523 = vadd.f32 %v9362, %v9522
      %v9524 = vpop.f32.mrf.mxu0
      %v9525 = vpop.f32.mrf.mxu0
      %v9526 = vadd.f32 %v9365, %v9525
      %v9527 = vpop.f32.mrf.mxu0
      %9528 = vmatprep.mubr.bf16.mxu0 0
      %9529 = vmatmul.mubr.bf16.gmra.mxu0 %v9258
      %v9530 = vpop.f32.mrf.mxu0
      %v9531 = vadd.f32 %v9370, %v9530
      %v9532 = vpop.f32.mrf.mxu0
      %v9533 = vpop.f32.mrf.mxu0
      %v9534 = vadd.f32 %v9373, %v9533
      %v9535 = vpop.f32.mrf.mxu0
      %9536 = vmatprep.mubr.bf16.mxu0 0
      %9537 = vmatmul.mubr.bf16.gmra.mxu0 %v9261
      %v9538 = vpop.f32.mrf.mxu0
      %v9539 = vadd.f32 %v9378, %v9538
      %v9540 = vpop.f32.mrf.mxu0
      %v9541 = vpop.f32.mrf.mxu0
      %v9542 = vadd.f32 %v9381, %v9541
      %v9543 = vpop.f32.mrf.mxu0
      %9544 = vmatprep.mubr.bf16.mxu0 0
      %9545 = vmatmul.mubr.bf16.gmra.mxu0 %v9264
      %v9546 = vpop.f32.mrf.mxu0
      %v9547 = vadd.f32 %v9386, %v9546
      %v9548 = vpop.f32.mrf.mxu0
      %v9549 = vpop.f32.mrf.mxu0
      %v9550 = vadd.f32 %v9389, %v9549
      %v9551 = vpop.f32.mrf.mxu0
      %9552 = vmatprep.mubr.bf16.mxu0 0
      %9553 = vmatmul.mubr.bf16.gmra.mxu0 %v9267
      %v9554 = vpop.f32.mrf.mxu0
      %v9555 = vadd.f32 %v9394, %v9554
      %v9556 = vpop.f32.mrf.mxu0
      %v9557 = vpop.f32.mrf.mxu0
      %v9558 = vadd.f32 %v9397, %v9557
      %v9559 = vpop.f32.mrf.mxu0
      %9560 = vmatprep.mubr.bf16.mxu0 0
      %9561 = vmatmul.mubr.bf16.gmra.mxu0 %v9270
      %v9562 = vpop.f32.mrf.mxu0
      %v9563 = vadd.f32 %v9402, %v9562
      %v9564 = vpop.f32.mrf.mxu0
      %v9565 = vpop.f32.mrf.mxu0
      %v9566 = vadd.f32 %v9405, %v9565
      %v9567 = vpop.f32.mrf.mxu0
      %9568 = vmatprep.mubr.bf16.mxu0 0
      %9569 = vmatmul.mubr.bf16.gmra.mxu0 %v9273
      %v9570 = vpop.f32.mrf.mxu0
      %v9571 = vadd.f32 %v9410, %v9570
      %v9572 = vpop.f32.mrf.mxu0
      %v9573 = vpop.f32.mrf.mxu0
      %v9574 = vadd.f32 %v9413, %v9573
      %v9575 = vpop.f32.mrf.mxu0
      %9576 = vmatprep.mubr.bf16.mxu0 0
      %9577 = vmatmul.mubr.bf16.gmra.mxu0 %v9276
      %v9578 = vpop.f32.mrf.mxu0
      %v9579 = vadd.f32 %v9418, %v9578
      %v9580 = vpop.f32.mrf.mxu0
      %v9581 = vpop.f32.mrf.mxu0
      %v9582 = vadd.f32 %v9421, %v9581
      %v9583 = vpop.f32.mrf.mxu0
      %9584 = vmatprep.mubr.bf16.mxu0 0
      %9585 = vmatmul.mubr.bf16.gmra.mxu0 %v9279
      %v9586 = vpop.f32.mrf.mxu0
      %v9587 = vadd.f32 %v9426, %v9586
      %v9588 = vpop.f32.mrf.mxu0
      %v9589 = vpop.f32.mrf.mxu0
      %v9590 = vadd.f32 %v9429, %v9589
      %v9591 = vpop.f32.mrf.mxu0
      %9592 = vmatprep.mubr.bf16.mxu0 0
      %9593 = vmatmul.mubr.bf16.gmra.mxu0 %v9282
      %v9594 = vpop.f32.mrf.mxu0
      %v9595 = vadd.f32 %v9434, %v9594
      %v9596 = vpop.f32.mrf.mxu0
      %v9597 = vpop.f32.mrf.mxu0
      %v9598 = vadd.f32 %v9437, %v9597
      %v9599 = vpop.f32.mrf.mxu0
      %9600 = vmatprep.mubr.bf16.mxu0 0
      %9601 = vmatmul.mubr.bf16.gmra.mxu0 %v9285
      %v9602 = vpop.f32.mrf.mxu0
      %v9603 = vadd.f32 %v9442, %v9602
      %v9604 = vpop.f32.mrf.mxu0
      %v9605 = vpop.f32.mrf.mxu0
      %v9606 = vadd.f32 %v9445, %v9605
      %v9607 = vpop.f32.mrf.mxu0
      %9608 = vdwg.mxu0
      %v9645 = vunpack.c.l.b16 %v9010
      %v9646 = vunpack.c.l.b16 %v9011
      %v9647 = vunpack.c.l.b16 %v9012
      %v9648 = vunpack.c.l.b16 %v9013
      %v9649 = vunpack.c.l.b16 %v9014
      %v9650 = vunpack.c.l.b16 %v9015
      %v9651 = vunpack.c.l.b16 %v9016
      %v9652 = vunpack.c.l.b16 %v9017
      %v9653 = vunpack.c.l.b16 %v9018
      %v9654 = vunpack.c.l.b16 %v9019
      %v9655 = vunpack.c.l.b16 %v9020
      %v9656 = vunpack.c.l.b16 %v9021
      %v9657 = vunpack.c.l.b16 %v9022
      %v9658 = vunpack.c.l.b16 %v9023
      %v9659 = vunpack.c.l.b16 %v9024
      %v9660 = vunpack.c.l.b16 %v9025
      %v9661 = vunpack.c.l.b16 %v9026
      %v9662 = vunpack.c.l.b16 %v9027
      %v9663 = vunpack.c.l.b16 %v9028
      %v9664 = vunpack.c.l.b16 %v9029
      %v9665 = vunpack.c.l.b16 %v9030
      %v9666 = vunpack.c.l.b16 %v9031
      %v9667 = vunpack.c.l.b16 %v9032
      %v9668 = vunpack.c.l.b16 %v9033
      %v9669 = vunpack.c.l.b16 %v9034
      %v9670 = vunpack.c.l.b16 %v9035
      %v9671 = vunpack.c.l.b16 %v9036
      %v9672 = vunpack.c.l.b16 %v9037
      %v9673 = vunpack.c.l.b16 %v9038
      %v9674 = vunpack.c.l.b16 %v9039
      %v9675 = vunpack.c.l.b16 %v9040
      %v9676 = vunpack.c.l.b16 %v9041
      %v9677 = vunpack.c.l.b16 %v9042
      %v9678 = vunpack.c.l.b16 %v9043
      %v9679 = vunpack.c.l.b16 %v9044
      %v9680 = vunpack.c.l.b16 %v9045
      %v9681 = vpack.c.b16 %v9646, %v9645
      %v9682 = vpack.c.b16 %v9648, %v9647
      %v9683 = vpack.c.b16 %v9650, %v9649
      %v9684 = vpack.c.b16 %v9652, %v9651
      %v9685 = vpack.c.b16 %v9654, %v9653
      %v9686 = vpack.c.b16 %v9656, %v9655
      %v9687 = vpack.c.b16 %v9658, %v9657
      %v9688 = vpack.c.b16 %v9660, %v9659
      %v9689 = vpack.c.b16 %v9662, %v9661
      %v9690 = vpack.c.b16 %v9664, %v9663
      %v9691 = vpack.c.b16 %v9666, %v9665
      %v9692 = vpack.c.b16 %v9668, %v9667
      %v9693 = vpack.c.b16 %v9670, %v9669
      %v9694 = vpack.c.b16 %v9672, %v9671
      %v9695 = vpack.c.b16 %v9674, %v9673
      %v9696 = vpack.c.b16 %v9676, %v9675
      %v9697 = vpack.c.b16 %v9678, %v9677
      %v9698 = vpack.c.b16 %v9680, %v9679
      %v9718 = vsel %vm9238, %v8302, 0
      %9720 = vmatprep.subr.bf16.mxu0 0
      %9721 = vmatpush1.bf16.msra.mxu0 %v9688
      %9722 = vmatprep.subr.bf16.mxu0 0
      %9723 = vmatpush1.bf16.msra.mxu0 %v9687
      %9724 = vmatprep.subr.bf16.mxu0 0
      %9725 = vmatpush1.bf16.msra.mxu0 %v9686
      %9726 = vmatprep.subr.bf16.mxu0 0
      %9727 = vmatpush1.bf16.msra.mxu0 %v9685
      %9728 = vmatprep.subr.bf16.mxu0 0
      %9729 = vmatpush1.bf16.msra.mxu0 %v9684
      %9730 = vmatprep.subr.bf16.mxu0 0
      %9731 = vmatpush1.bf16.msra.mxu0 %v9683
      %9732 = vmatprep.subr.bf16.mxu0 0
      %9733 = vmatpush1.bf16.msra.mxu0 %v9682
      %9734 = vmatprep.subr.bf16.mxu0 0
      %9735 = vmatpush1.bf16.msra.mxu0 %v9681
      %9736 = vmatprep.subr.bf16.mxu0 0
      %9737 = vmatpush2.bf16.msra.mxu0 %v9696
      %9738 = vmatprep.subr.bf16.mxu0 0
      %9739 = vmatpush2.bf16.msra.mxu0 %v9695
      %9740 = vmatprep.subr.bf16.mxu0 0
      %9741 = vmatpush2.bf16.msra.mxu0 %v9694
      %9742 = vmatprep.subr.bf16.mxu0 0
      %9743 = vmatpush2.bf16.msra.mxu0 %v9693
      %9744 = vmatprep.subr.bf16.mxu0 0
      %9745 = vmatpush2.bf16.msra.mxu0 %v9692
      %9746 = vmatprep.subr.bf16.mxu0 0
      %9747 = vmatpush2.bf16.msra.mxu0 %v9691
      %9748 = vmatprep.subr.bf16.mxu0 0
      %9749 = vmatpush2.bf16.msra.mxu0 %v9690
      %9750 = vmatprep.subr.bf16.mxu0 0
      %9751 = vmatpush2.bf16.msra.mxu0 %v9689
      %9752 = vmatprep.mubr.bf16.mxu0 %v8287
      %9753 = vmatmul.mubr.bf16.gmra.mxu0 %v8272
      %v9754 = vpop.f32.mrf.mxu0
      %v9755 = vadd.f32 %v9483, %v9754
      %v9756 = vpop.f32.mrf.mxu0
      %v9757 = vpop.f32.mrf.mxu0
      %v9758 = vadd.f32 %v9486, %v9757
      %v9759 = vpop.f32.mrf.mxu0
      %9760 = vmatprep.mubr.bf16.mxu0 %v8332
      %9761 = vmatmul.mubr.bf16.gmra.mxu0 %v8317
      %v9762 = vpop.f32.mrf.mxu0
      %v9763 = vadd.f32 %v9491, %v9762
      %v9764 = vpop.f32.mrf.mxu0
      %v9765 = vpop.f32.mrf.mxu0
      %v9766 = vadd.f32 %v9494, %v9765
      %v9767 = vpop.f32.mrf.mxu0
      %9768 = vmatprep.mubr.bf16.mxu0 %v8377
      %9769 = vmatmul.mubr.bf16.gmra.mxu0 %v8362
      %v9770 = vpop.f32.mrf.mxu0
      %v9771 = vadd.f32 %v9499, %v9770
      %v9772 = vpop.f32.mrf.mxu0
      %v9773 = vpop.f32.mrf.mxu0
      %v9774 = vadd.f32 %v9502, %v9773
      %v9775 = vpop.f32.mrf.mxu0
      %9776 = vmatprep.mubr.bf16.mxu0 %v8422
      %9777 = vmatmul.mubr.bf16.gmra.mxu0 %v8407
      %v9778 = vpop.f32.mrf.mxu0
      %v9779 = vadd.f32 %v9507, %v9778
      %v9780 = vpop.f32.mrf.mxu0
      %v9781 = vpop.f32.mrf.mxu0
      %v9782 = vadd.f32 %v9510, %v9781
      %v9783 = vpop.f32.mrf.mxu0
      %9784 = vmatprep.mubr.bf16.mxu0 %v8467
      %9785 = vmatmul.mubr.bf16.gmra.mxu0 %v8452
      %v9786 = vpop.f32.mrf.mxu0
      %v9787 = vadd.f32 %v9515, %v9786
      %v9788 = vpop.f32.mrf.mxu0
      %v9789 = vpop.f32.mrf.mxu0
      %v9790 = vadd.f32 %v9518, %v9789
      %v9791 = vpop.f32.mrf.mxu0
      %9792 = vmatprep.mubr.bf16.mxu0 %v8512
      %9793 = vmatmul.mubr.bf16.gmra.mxu0 %v8497
      %v9794 = vpop.f32.mrf.mxu0
      %v9795 = vadd.f32 %v9523, %v9794
      %v9796 = vpop.f32.mrf.mxu0
      %v9797 = vpop.f32.mrf.mxu0
      %v9798 = vadd.f32 %v9526, %v9797
      %v9799 = vpop.f32.mrf.mxu0
      %9800 = vmatprep.mubr.bf16.mxu0 %v8557
      %9801 = vmatmul.mubr.bf16.gmra.mxu0 %v8542
      %v9802 = vpop.f32.mrf.mxu0
      %v9803 = vadd.f32 %v9531, %v9802
      %v9804 = vpop.f32.mrf.mxu0
      %v9805 = vpop.f32.mrf.mxu0
      %v9806 = vadd.f32 %v9534, %v9805
      %v9807 = vpop.f32.mrf.mxu0
      %9808 = vmatprep.mubr.bf16.mxu0 %v8602
      %9809 = vmatmul.mubr.bf16.gmra.mxu0 %v8587
      %v9810 = vpop.f32.mrf.mxu0
      %v9811 = vadd.f32 %v9539, %v9810
      %v9812 = vpop.f32.mrf.mxu0
      %v9813 = vpop.f32.mrf.mxu0
      %v9814 = vadd.f32 %v9542, %v9813
      %v9815 = vpop.f32.mrf.mxu0
      %9816 = vmatprep.mubr.bf16.mxu0 %v8647
      %9817 = vmatmul.mubr.bf16.gmra.mxu0 %v8632
      %v9818 = vpop.f32.mrf.mxu0
      %v9819 = vadd.f32 %v9547, %v9818
      %v9820 = vpop.f32.mrf.mxu0
      %v9821 = vpop.f32.mrf.mxu0
      %v9822 = vadd.f32 %v9550, %v9821
      %v9823 = vpop.f32.mrf.mxu0
      %9824 = vmatprep.mubr.bf16.mxu0 %v8692
      %9825 = vmatmul.mubr.bf16.gmra.mxu0 %v8677
      %v9826 = vpop.f32.mrf.mxu0
      %v9827 = vadd.f32 %v9555, %v9826
      %v9828 = vpop.f32.mrf.mxu0
      %v9829 = vpop.f32.mrf.mxu0
      %v9830 = vadd.f32 %v9558, %v9829
      %v9831 = vpop.f32.mrf.mxu0
      %9832 = vmatprep.mubr.bf16.mxu0 %v8737
      %9833 = vmatmul.mubr.bf16.gmra.mxu0 %v8722
      %v9834 = vpop.f32.mrf.mxu0
      %v9835 = vadd.f32 %v9563, %v9834
      %v9836 = vpop.f32.mrf.mxu0
      %v9837 = vpop.f32.mrf.mxu0
      %v9838 = vadd.f32 %v9566, %v9837
      %v9839 = vpop.f32.mrf.mxu0
      %9840 = vmatprep.mubr.bf16.mxu0 %v8782
      %9841 = vmatmul.mubr.bf16.gmra.mxu0 %v8767
      %v9842 = vpop.f32.mrf.mxu0
      %v9843 = vadd.f32 %v9571, %v9842
      %v9844 = vpop.f32.mrf.mxu0
      %v9845 = vpop.f32.mrf.mxu0
      %v9846 = vadd.f32 %v9574, %v9845
      %v9847 = vpop.f32.mrf.mxu0
      %9848 = vmatprep.mubr.bf16.mxu0 %v8827
      %9849 = vmatmul.mubr.bf16.gmra.mxu0 %v8812
      %v9850 = vpop.f32.mrf.mxu0
      %v9851 = vadd.f32 %v9579, %v9850
      %v9852 = vpop.f32.mrf.mxu0
      %v9853 = vpop.f32.mrf.mxu0
      %v9854 = vadd.f32 %v9582, %v9853
      %v9855 = vpop.f32.mrf.mxu0
      %9856 = vmatprep.mubr.bf16.mxu0 %v8872
      %9857 = vmatmul.mubr.bf16.gmra.mxu0 %v8857
      %v9858 = vpop.f32.mrf.mxu0
      %v9859 = vadd.f32 %v9587, %v9858
      %v9860 = vpop.f32.mrf.mxu0
      %v9861 = vpop.f32.mrf.mxu0
      %v9862 = vadd.f32 %v9590, %v9861
      %v9863 = vpop.f32.mrf.mxu0
      %9864 = vmatprep.mubr.bf16.mxu0 %v8917
      %9865 = vmatmul.mubr.bf16.gmra.mxu0 %v8902
      %v9866 = vpop.f32.mrf.mxu0
      %v9867 = vadd.f32 %v9595, %v9866
      %v9868 = vpop.f32.mrf.mxu0
      %v9869 = vpop.f32.mrf.mxu0
      %v9870 = vadd.f32 %v9598, %v9869
      %v9871 = vpop.f32.mrf.mxu0
      %9872 = vmatprep.mubr.bf16.mxu0 %v8962
      %9873 = vmatmul.mubr.bf16.gmra.mxu0 %v8947
      %v9874 = vpop.f32.mrf.mxu0
      %v9875 = vadd.f32 %v9603, %v9874
      %v9876 = vpop.f32.mrf.mxu0
      %v9877 = vpop.f32.mrf.mxu0
      %v9878 = vadd.f32 %v9606, %v9877
      %v9879 = vpop.f32.mrf.mxu0
      %9880 = vdwg.mxu0
      %9881 = vmatprep.subr.bf16.mxu0 0
      %9882 = vmatpush1.bf16.msra.mxu0 0
      %9883 = vmatprep.subr.bf16.mxu0 0
      %9884 = vmatpush1.bf16.msra.mxu0 0
      %9885 = vmatprep.subr.bf16.mxu0 0
      %9886 = vmatpush1.bf16.msra.mxu0 0
      %9887 = vmatprep.subr.bf16.mxu0 0
      %9888 = vmatpush1.bf16.msra.mxu0 0
      %9889 = vmatprep.subr.bf16.mxu0 0
      %9890 = vmatpush1.bf16.msra.mxu0 0
      %9891 = vmatprep.subr.bf16.mxu0 0
      %9892 = vmatpush1.bf16.msra.mxu0 0
      %9893 = vmatprep.subr.bf16.mxu0 0
      %9894 = vmatpush1.bf16.msra.mxu0 %v9698
      %9895 = vmatprep.subr.bf16.mxu0 0
      %9896 = vmatpush1.bf16.msra.mxu0 %v9697
      %9897 = vmatprep.subr.bf16.mxu0 0
      %9898 = vmatpush2.bf16.msra.mxu0 0
      %9899 = vmatprep.subr.bf16.mxu0 0
      %9900 = vmatpush2.bf16.msra.mxu0 0
      %9901 = vmatprep.subr.bf16.mxu0 0
      %9902 = vmatpush2.bf16.msra.mxu0 0
      %9903 = vmatprep.subr.bf16.mxu0 0
      %9904 = vmatpush2.bf16.msra.mxu0 0
      %9905 = vmatprep.subr.bf16.mxu0 0
      %9906 = vmatpush2.bf16.msra.mxu0 0
      %9907 = vmatprep.subr.bf16.mxu0 0
      %9908 = vmatpush2.bf16.msra.mxu0 0
      %9909 = vmatprep.subr.bf16.mxu0 0
      %9910 = vmatpush2.bf16.msra.mxu0 0
      %9911 = vmatprep.subr.bf16.mxu0 0
      %9912 = vmatpush2.bf16.msra.mxu0 0
      %9913 = vmatprep.mubr.bf16.mxu0 0
      %9914 = vmatmul.mubr.bf16.gmra.mxu0 %v9718
      %v9915 = vpop.f32.mrf.mxu0
      %v9916 = vadd.f32 %v9755, %v9915
      %v9917 = vpop.f32.mrf.mxu0
      %v9918 = vpop.f32.mrf.mxu0
      %v9919 = vadd.f32 %v9758, %v9918
      %v9920 = vpop.f32.mrf.mxu0
      %9921 = vmatprep.mubr.bf16.mxu0 0
      %9922 = vmatmul.mubr.bf16.gmra.mxu0 %v9240
      %v9923 = vpop.f32.mrf.mxu0
      %v9924 = vadd.f32 %v9763, %v9923
      %v9925 = vpop.f32.mrf.mxu0
      %v9926 = vpop.f32.mrf.mxu0
      %v9927 = vadd.f32 %v9766, %v9926
      %v9928 = vpop.f32.mrf.mxu0
      %9929 = vmatprep.mubr.bf16.mxu0 0
      %9930 = vmatmul.mubr.bf16.gmra.mxu0 %v9243
      %v9931 = vpop.f32.mrf.mxu0
      %v9932 = vadd.f32 %v9771, %v9931
      %v9933 = vpop.f32.mrf.mxu0
      %v9934 = vpop.f32.mrf.mxu0
      %v9935 = vadd.f32 %v9774, %v9934
      %v9936 = vpop.f32.mrf.mxu0
      %9937 = vmatprep.mubr.bf16.mxu0 0
      %9938 = vmatmul.mubr.bf16.gmra.mxu0 %v9246
      %v9939 = vpop.f32.mrf.mxu0
      %v9940 = vadd.f32 %v9779, %v9939
      %v9941 = vpop.f32.mrf.mxu0
      %v9942 = vpop.f32.mrf.mxu0
      %v9943 = vadd.f32 %v9782, %v9942
      %v9944 = vpop.f32.mrf.mxu0
      %9945 = vmatprep.mubr.bf16.mxu0 0
      %9946 = vmatmul.mubr.bf16.gmra.mxu0 %v9249
      %v9947 = vpop.f32.mrf.mxu0
      %v9948 = vadd.f32 %v9787, %v9947
      %v9949 = vpop.f32.mrf.mxu0
      %v9950 = vpop.f32.mrf.mxu0
      %v9951 = vadd.f32 %v9790, %v9950
      %v9952 = vpop.f32.mrf.mxu0
      %9953 = vmatprep.mubr.bf16.mxu0 0
      %9954 = vmatmul.mubr.bf16.gmra.mxu0 %v9252
      %v9955 = vpop.f32.mrf.mxu0
      %v9956 = vadd.f32 %v9795, %v9955
      %v9957 = vpop.f32.mrf.mxu0
      %v9958 = vpop.f32.mrf.mxu0
      %v9959 = vadd.f32 %v9798, %v9958
      %v9960 = vpop.f32.mrf.mxu0
      %9961 = vmatprep.mubr.bf16.mxu0 0
      %9962 = vmatmul.mubr.bf16.gmra.mxu0 %v9255
      %v9963 = vpop.f32.mrf.mxu0
      %v9964 = vadd.f32 %v9803, %v9963
      %v9965 = vpop.f32.mrf.mxu0
      %v9966 = vpop.f32.mrf.mxu0
      %v9967 = vadd.f32 %v9806, %v9966
      %v9968 = vpop.f32.mrf.mxu0
      %9969 = vmatprep.mubr.bf16.mxu0 0
      %9970 = vmatmul.mubr.bf16.gmra.mxu0 %v9258
      %v9971 = vpop.f32.mrf.mxu0
      %v9972 = vadd.f32 %v9811, %v9971
      %v9973 = vpop.f32.mrf.mxu0
      %v9974 = vpop.f32.mrf.mxu0
      %v9975 = vadd.f32 %v9814, %v9974
      %v9976 = vpop.f32.mrf.mxu0
      %9977 = vmatprep.mubr.bf16.mxu0 0
      %9978 = vmatmul.mubr.bf16.gmra.mxu0 %v9261
      %v9979 = vpop.f32.mrf.mxu0
      %v9980 = vadd.f32 %v9819, %v9979
      %v9981 = vpop.f32.mrf.mxu0
      %v9982 = vpop.f32.mrf.mxu0
      %v9983 = vadd.f32 %v9822, %v9982
      %v9984 = vpop.f32.mrf.mxu0
      %9985 = vmatprep.mubr.bf16.mxu0 0
      %9986 = vmatmul.mubr.bf16.gmra.mxu0 %v9264
      %v9987 = vpop.f32.mrf.mxu0
      %v9988 = vadd.f32 %v9827, %v9987
      %v9989 = vpop.f32.mrf.mxu0
      %v9990 = vpop.f32.mrf.mxu0
      %v9991 = vadd.f32 %v9830, %v9990
      %v9992 = vpop.f32.mrf.mxu0
      %9993 = vmatprep.mubr.bf16.mxu0 0
      %9994 = vmatmul.mubr.bf16.gmra.mxu0 %v9267
      %v9995 = vpop.f32.mrf.mxu0
      %v9996 = vadd.f32 %v9835, %v9995
      %v9997 = vpop.f32.mrf.mxu0
      %v9998 = vpop.f32.mrf.mxu0
      %v9999 = vadd.f32 %v9838, %v9998
      %v10000 = vpop.f32.mrf.mxu0
      %10001 = vmatprep.mubr.bf16.mxu0 0
      %10002 = vmatmul.mubr.bf16.gmra.mxu0 %v9270
      %v10003 = vpop.f32.mrf.mxu0
      %v10004 = vadd.f32 %v9843, %v10003
      %v10005 = vpop.f32.mrf.mxu0
      %v10006 = vpop.f32.mrf.mxu0
      %v10007 = vadd.f32 %v9846, %v10006
      %v10008 = vpop.f32.mrf.mxu0
      %10009 = vmatprep.mubr.bf16.mxu0 0
      %10010 = vmatmul.mubr.bf16.gmra.mxu0 %v9273
      %v10011 = vpop.f32.mrf.mxu0
      %v10012 = vadd.f32 %v9851, %v10011
      %v10013 = vpop.f32.mrf.mxu0
      %v10014 = vpop.f32.mrf.mxu0
      %v10015 = vadd.f32 %v9854, %v10014
      %v10016 = vpop.f32.mrf.mxu0
      %10017 = vmatprep.mubr.bf16.mxu0 0
      %10018 = vmatmul.mubr.bf16.gmra.mxu0 %v9276
      %v10019 = vpop.f32.mrf.mxu0
      %v10020 = vadd.f32 %v9859, %v10019
      %v10021 = vpop.f32.mrf.mxu0
      %v10022 = vpop.f32.mrf.mxu0
      %v10023 = vadd.f32 %v9862, %v10022
      %v10024 = vpop.f32.mrf.mxu0
      %10025 = vmatprep.mubr.bf16.mxu0 0
      %10026 = vmatmul.mubr.bf16.gmra.mxu0 %v9279
      %v10027 = vpop.f32.mrf.mxu0
      %v10028 = vadd.f32 %v9867, %v10027
      %v10029 = vpop.f32.mrf.mxu0
      %v10030 = vpop.f32.mrf.mxu0
      %v10031 = vadd.f32 %v9870, %v10030
      %v10032 = vpop.f32.mrf.mxu0
      %10033 = vmatprep.mubr.bf16.mxu0 0
      %10034 = vmatmul.mubr.bf16.gmra.mxu0 %v9282
      %v10035 = vpop.f32.mrf.mxu0
      %v10036 = vadd.f32 %v9875, %v10035
      %v10037 = vpop.f32.mrf.mxu0
      %v10038 = vpop.f32.mrf.mxu0
      %v10039 = vadd.f32 %v9878, %v10038
      %v10040 = vpop.f32.mrf.mxu0
      %10041 = vdwg.mxu0
      %v10042 = vshrl.u32 %v8183, 16
      %v10044 = vrot.slane %v10042, 3
      %v10045 = vshll.u32 %v8183, 16
      %v10047 = vrot.slane %v10045, 4
      %v10048 = vor.u32 %v10044, %v10047
      %v10049 = vshrl.u32 %v8185, 16
      %v10051 = vrot.slane %v10049, 3
      %v10052 = vshll.u32 %v8185, 16
      %v10054 = vrot.slane %v10052, 4
      %v10055 = vor.u32 %v10051, %v10054
      %v10056 = vsel %vm5694, %v10048, %v10055
      %v10057 = vshrl.u32 %v8255, 16
      %v10059 = vrot.slane %v10057, 3
      %v10060 = vshll.u32 %v8255, 16
      %v10062 = vrot.slane %v10060, 4
      %v10063 = vor.u32 %v10059, %v10062
      %v10064 = vshrl.u32 %v8257, 16
      %v10066 = vrot.slane %v10064, 3
      %v10067 = vshll.u32 %v8257, 16
      %v10069 = vrot.slane %v10067, 4
      %v10070 = vor.u32 %v10066, %v10069
      %v10071 = vsel %vm5694, %v10063, %v10070
      %v10072 = vshrl.u32 %v8093, 16
      %v10074 = vrot.slane %v10072, 3
      %v10075 = vshll.u32 %v8093, 16
      %v10077 = vrot.slane %v10075, 4
      %v10078 = vor.u32 %v10074, %v10077
      %v10079 = vshrl.u32 %v8095, 16
      %v10081 = vrot.slane %v10079, 3
      %v10082 = vshll.u32 %v8095, 16
      %v10084 = vrot.slane %v10082, 4
      %v10085 = vor.u32 %v10081, %v10084
      %v10086 = vsel %vm5694, %v10078, %v10085
      %s10089 = scalar_lea.vmem %s5, 288
      %v10090 = vld [vmem:[%s10089] sm:$0xf]
      %v10091 = vld [vmem:[%s10089 + $0x4] sm:$0xf]
      %v10092 = vld [vmem:[%s10089 + $0x8] sm:$0xf]
      %v10093 = vld [vmem:[%s10089 + $0xc] sm:$0xf]
      %v10094 = vld [vmem:[%s10089 + $0x10] sm:$0xf]
      %v10095 = vld [vmem:[%s10089 + $0x14] sm:$0xf]
      %v10096 = vld [vmem:[%s10089 + $0x18] sm:$0xf]
      %v10097 = vld [vmem:[%s10089 + $0x1c] sm:$0xf]
      %v10098 = vld [vmem:[%s10089 + $0x20] sm:$0xf]
      %v10099 = vld [vmem:[%s10089 + $0x24] sm:$0xf]
      %v10100 = vld [vmem:[%s10089 + $0x28] sm:$0xf]
      %v10101 = vld [vmem:[%s10089 + $0x2c] sm:$0xf]
      %v10102 = vld [vmem:[%s10089 + $0x30] sm:$0xf]
      %v10103 = vld [vmem:[%s10089 + $0x34] sm:$0xf]
      %v10104 = vld [vmem:[%s10089 + $0x38] sm:$0xf]
      %v10105 = vld [vmem:[%s10089 + $0x3c] sm:$0xf]
      %v10106 = vld [vmem:[%s10089 + $0x40] sm:$0xf]
      %v10107 = vld [vmem:[%s10089 + $0x44] sm:$0xf]
      %v10108 = vld [vmem:[%s10089 + $0x48] sm:$0xf]
      %v10109 = vld [vmem:[%s10089 + $0x4c] sm:$0xf]
      %v10110 = vld [vmem:[%s10089 + $0x50] sm:$0xf]
      %v10111 = vld [vmem:[%s10089 + $0x54] sm:$0xf]
      %v10112 = vld [vmem:[%s10089 + $0x58] sm:$0xf]
      %v10113 = vld [vmem:[%s10089 + $0x5c] sm:$0xf]
      %v10114 = vld [vmem:[%s10089 + $0x60] sm:$0xf]
      %v10115 = vld [vmem:[%s10089 + $0x64] sm:$0xf]
      %v10116 = vld [vmem:[%s10089 + $0x68] sm:$0xf]
      %v10117 = vld [vmem:[%s10089 + $0x6c] sm:$0xf]
      %v10118 = vld [vmem:[%s10089 + $0x70] sm:$0xf]
      %v10119 = vld [vmem:[%s10089 + $0x74] sm:$0xf]
      %v10120 = vld [vmem:[%s10089 + $0x78] sm:$0xf]
      %v10121 = vld [vmem:[%s10089 + $0x7c] sm:$0xf]
      %v10122 = vld [vmem:[%s10089 + $0x80] sm:$0xf]
      %v10123 = vld [vmem:[%s10089 + $0x84] sm:$0xf]
      %v10124 = vld [vmem:[%s10089 + $0x88] sm:$0xf]
      %v10125 = vld [vmem:[%s10089 + $0x8c] sm:$0xf]
      %v10162 = vunpack.c.l.b16 %v10090
      %v10163 = vunpack.c.l.b16 %v10091
      %v10164 = vunpack.c.l.b16 %v10092
      %v10165 = vunpack.c.l.b16 %v10093
      %v10166 = vunpack.c.l.b16 %v10094
      %v10167 = vunpack.c.l.b16 %v10095
      %v10168 = vunpack.c.l.b16 %v10096
      %v10169 = vunpack.c.l.b16 %v10097
      %v10170 = vunpack.c.l.b16 %v10098
      %v10171 = vunpack.c.l.b16 %v10099
      %v10172 = vunpack.c.l.b16 %v10100
      %v10173 = vunpack.c.l.b16 %v10101
      %v10174 = vunpack.c.l.b16 %v10102
      %v10175 = vunpack.c.l.b16 %v10103
      %v10176 = vunpack.c.l.b16 %v10104
      %v10177 = vunpack.c.l.b16 %v10105
      %v10178 = vunpack.c.l.b16 %v10106
      %v10179 = vunpack.c.l.b16 %v10107
      %v10180 = vunpack.c.l.b16 %v10108
      %v10181 = vunpack.c.l.b16 %v10109
      %v10182 = vunpack.c.l.b16 %v10110
      %v10183 = vunpack.c.l.b16 %v10111
      %v10184 = vunpack.c.l.b16 %v10112
      %v10185 = vunpack.c.l.b16 %v10113
      %v10186 = vunpack.c.l.b16 %v10114
      %v10187 = vunpack.c.l.b16 %v10115
      %v10188 = vunpack.c.l.b16 %v10116
      %v10189 = vunpack.c.l.b16 %v10117
      %v10190 = vunpack.c.l.b16 %v10118
      %v10191 = vunpack.c.l.b16 %v10119
      %v10192 = vunpack.c.l.b16 %v10120
      %v10193 = vunpack.c.l.b16 %v10121
      %v10194 = vunpack.c.l.b16 %v10122
      %v10195 = vunpack.c.l.b16 %v10123
      %v10196 = vunpack.c.l.b16 %v10124
      %v10197 = vunpack.c.l.b16 %v10125
      %v10198 = vpack.c.b16 %v10163, %v10162
      %v10199 = vpack.c.b16 %v10165, %v10164
      %v10200 = vpack.c.b16 %v10167, %v10166
      %v10201 = vpack.c.b16 %v10169, %v10168
      %v10202 = vpack.c.b16 %v10171, %v10170
      %v10203 = vpack.c.b16 %v10173, %v10172
      %v10204 = vpack.c.b16 %v10175, %v10174
      %v10205 = vpack.c.b16 %v10177, %v10176
      %v10206 = vpack.c.b16 %v10179, %v10178
      %v10207 = vpack.c.b16 %v10181, %v10180
      %v10208 = vpack.c.b16 %v10183, %v10182
      %v10209 = vpack.c.b16 %v10185, %v10184
      %v10210 = vpack.c.b16 %v10187, %v10186
      %v10211 = vpack.c.b16 %v10189, %v10188
      %v10212 = vpack.c.b16 %v10191, %v10190
      %v10213 = vpack.c.b16 %v10193, %v10192
      %v10214 = vpack.c.b16 %v10195, %v10194
      %v10215 = vpack.c.b16 %v10197, %v10196
      %v10235 = vsel %vm9238, %v10086, 0
      %10237 = vmatprep.subr.bf16.mxu0 0
      %10238 = vmatpush1.bf16.msra.mxu0 %v10205
      %10239 = vmatprep.subr.bf16.mxu0 0
      %10240 = vmatpush1.bf16.msra.mxu0 %v10204
      %10241 = vmatprep.subr.bf16.mxu0 0
      %10242 = vmatpush1.bf16.msra.mxu0 %v10203
      %10243 = vmatprep.subr.bf16.mxu0 0
      %10244 = vmatpush1.bf16.msra.mxu0 %v10202
      %10245 = vmatprep.subr.bf16.mxu0 0
      %10246 = vmatpush1.bf16.msra.mxu0 %v10201
      %10247 = vmatprep.subr.bf16.mxu0 0
      %10248 = vmatpush1.bf16.msra.mxu0 %v10200
      %10249 = vmatprep.subr.bf16.mxu0 0
      %10250 = vmatpush1.bf16.msra.mxu0 %v10199
      %10251 = vmatprep.subr.bf16.mxu0 0
      %10252 = vmatpush1.bf16.msra.mxu0 %v10198
      %10253 = vmatprep.subr.bf16.mxu0 0
      %10254 = vmatpush2.bf16.msra.mxu0 %v10213
      %10255 = vmatprep.subr.bf16.mxu0 0
      %10256 = vmatpush2.bf16.msra.mxu0 %v10212
      %10257 = vmatprep.subr.bf16.mxu0 0
      %10258 = vmatpush2.bf16.msra.mxu0 %v10211
      %10259 = vmatprep.subr.bf16.mxu0 0
      %10260 = vmatpush2.bf16.msra.mxu0 %v10210
      %10261 = vmatprep.subr.bf16.mxu0 0
      %10262 = vmatpush2.bf16.msra.mxu0 %v10209
      %10263 = vmatprep.subr.bf16.mxu0 0
      %10264 = vmatpush2.bf16.msra.mxu0 %v10208
      %10265 = vmatprep.subr.bf16.mxu0 0
      %10266 = vmatpush2.bf16.msra.mxu0 %v10207
      %10267 = vmatprep.subr.bf16.mxu0 0
      %10268 = vmatpush2.bf16.msra.mxu0 %v10206
      %10269 = vmatprep.mubr.bf16.mxu0 %v8377
      %10270 = vmatmul.mubr.bf16.gmra.mxu0 %v8362
      %v10271 = vpop.f32.mrf.mxu0
      %v10272 = vadd.f32 0.0, %v10271
      %v10273 = vpop.f32.mrf.mxu0
      %v10274 = vpop.f32.mrf.mxu0
      %v10275 = vadd.f32 0.0, %v10274
      %v10276 = vpop.f32.mrf.mxu0
      %10277 = vmatprep.mubr.bf16.mxu0 %v8422
      %10278 = vmatmul.mubr.bf16.gmra.mxu0 %v8407
      %v10279 = vpop.f32.mrf.mxu0
      %v10280 = vadd.f32 0.0, %v10279
      %v10281 = vpop.f32.mrf.mxu0
      %v10282 = vpop.f32.mrf.mxu0
      %v10283 = vadd.f32 0.0, %v10282
      %v10284 = vpop.f32.mrf.mxu0
      %10285 = vmatprep.mubr.bf16.mxu0 %v8467
      %10286 = vmatmul.mubr.bf16.gmra.mxu0 %v8452
      %v10287 = vpop.f32.mrf.mxu0
      %v10288 = vadd.f32 0.0, %v10287
      %v10289 = vpop.f32.mrf.mxu0
      %v10290 = vpop.f32.mrf.mxu0
      %v10291 = vadd.f32 0.0, %v10290
      %v10292 = vpop.f32.mrf.mxu0
      %10293 = vmatprep.mubr.bf16.mxu0 %v8512
      %10294 = vmatmul.mubr.bf16.gmra.mxu0 %v8497
      %v10295 = vpop.f32.mrf.mxu0
      %v10296 = vadd.f32 0.0, %v10295
      %v10297 = vpop.f32.mrf.mxu0
      %v10298 = vpop.f32.mrf.mxu0
      %v10299 = vadd.f32 0.0, %v10298
      %v10300 = vpop.f32.mrf.mxu0
      %10301 = vmatprep.mubr.bf16.mxu0 %v8557
      %10302 = vmatmul.mubr.bf16.gmra.mxu0 %v8542
      %v10303 = vpop.f32.mrf.mxu0
      %v10304 = vadd.f32 0.0, %v10303
      %v10305 = vpop.f32.mrf.mxu0
      %v10306 = vpop.f32.mrf.mxu0
      %v10307 = vadd.f32 0.0, %v10306
      %v10308 = vpop.f32.mrf.mxu0
      %10309 = vmatprep.mubr.bf16.mxu0 %v8602
      %10310 = vmatmul.mubr.bf16.gmra.mxu0 %v8587
      %v10311 = vpop.f32.mrf.mxu0
      %v10312 = vadd.f32 0.0, %v10311
      %v10313 = vpop.f32.mrf.mxu0
      %v10314 = vpop.f32.mrf.mxu0
      %v10315 = vadd.f32 0.0, %v10314
      %v10316 = vpop.f32.mrf.mxu0
      %10317 = vmatprep.mubr.bf16.mxu0 %v8647
      %10318 = vmatmul.mubr.bf16.gmra.mxu0 %v8632
      %v10319 = vpop.f32.mrf.mxu0
      %v10320 = vadd.f32 0.0, %v10319
      %v10321 = vpop.f32.mrf.mxu0
      %v10322 = vpop.f32.mrf.mxu0
      %v10323 = vadd.f32 0.0, %v10322
      %v10324 = vpop.f32.mrf.mxu0
      %10325 = vmatprep.mubr.bf16.mxu0 %v8692
      %10326 = vmatmul.mubr.bf16.gmra.mxu0 %v8677
      %v10327 = vpop.f32.mrf.mxu0
      %v10328 = vadd.f32 0.0, %v10327
      %v10329 = vpop.f32.mrf.mxu0
      %v10330 = vpop.f32.mrf.mxu0
      %v10331 = vadd.f32 0.0, %v10330
      %v10332 = vpop.f32.mrf.mxu0
      %10333 = vmatprep.mubr.bf16.mxu0 %v8737
      %10334 = vmatmul.mubr.bf16.gmra.mxu0 %v8722
      %v10335 = vpop.f32.mrf.mxu0
      %v10336 = vadd.f32 0.0, %v10335
      %v10337 = vpop.f32.mrf.mxu0
      %v10338 = vpop.f32.mrf.mxu0
      %v10339 = vadd.f32 0.0, %v10338
      %v10340 = vpop.f32.mrf.mxu0
      %10341 = vmatprep.mubr.bf16.mxu0 %v8782
      %10342 = vmatmul.mubr.bf16.gmra.mxu0 %v8767
      %v10343 = vpop.f32.mrf.mxu0
      %v10344 = vadd.f32 0.0, %v10343
      %v10345 = vpop.f32.mrf.mxu0
      %v10346 = vpop.f32.mrf.mxu0
      %v10347 = vadd.f32 0.0, %v10346
      %v10348 = vpop.f32.mrf.mxu0
      %10349 = vmatprep.mubr.bf16.mxu0 %v8827
      %10350 = vmatmul.mubr.bf16.gmra.mxu0 %v8812
      %v10351 = vpop.f32.mrf.mxu0
      %v10352 = vadd.f32 0.0, %v10351
      %v10353 = vpop.f32.mrf.mxu0
      %v10354 = vpop.f32.mrf.mxu0
      %v10355 = vadd.f32 0.0, %v10354
      %v10356 = vpop.f32.mrf.mxu0
      %10357 = vmatprep.mubr.bf16.mxu0 %v8872
      %10358 = vmatmul.mubr.bf16.gmra.mxu0 %v8857
      %v10359 = vpop.f32.mrf.mxu0
      %v10360 = vadd.f32 0.0, %v10359
      %v10361 = vpop.f32.mrf.mxu0
      %v10362 = vpop.f32.mrf.mxu0
      %v10363 = vadd.f32 0.0, %v10362
      %v10364 = vpop.f32.mrf.mxu0
      %10365 = vmatprep.mubr.bf16.mxu0 %v8917
      %10366 = vmatmul.mubr.bf16.gmra.mxu0 %v8902
      %v10367 = vpop.f32.mrf.mxu0
      %v10368 = vadd.f32 0.0, %v10367
      %v10369 = vpop.f32.mrf.mxu0
      %v10370 = vpop.f32.mrf.mxu0
      %v10371 = vadd.f32 0.0, %v10370
      %v10372 = vpop.f32.mrf.mxu0
      %10373 = vmatprep.mubr.bf16.mxu0 %v8962
      %10374 = vmatmul.mubr.bf16.gmra.mxu0 %v8947
      %v10375 = vpop.f32.mrf.mxu0
      %v10376 = vadd.f32 0.0, %v10375
      %v10377 = vpop.f32.mrf.mxu0
      %v10378 = vpop.f32.mrf.mxu0
      %v10379 = vadd.f32 0.0, %v10378
      %v10380 = vpop.f32.mrf.mxu0
      %10381 = vmatprep.mubr.bf16.mxu0 %v9075
      %10382 = vmatmul.mubr.bf16.gmra.mxu0 %v9060
      %v10383 = vpop.f32.mrf.mxu0
      %v10384 = vadd.f32 0.0, %v10383
      %v10385 = vpop.f32.mrf.mxu0
      %v10386 = vpop.f32.mrf.mxu0
      %v10387 = vadd.f32 0.0, %v10386
      %v10388 = vpop.f32.mrf.mxu0
      %10389 = vmatprep.mubr.bf16.mxu0 %v10071
      %10390 = vmatmul.mubr.bf16.gmra.mxu0 %v10056
      %v10391 = vpop.f32.mrf.mxu0
      %v10392 = vadd.f32 0.0, %v10391
      %v10393 = vpop.f32.mrf.mxu0
      %v10394 = vpop.f32.mrf.mxu0
      %v10395 = vadd.f32 0.0, %v10394
      %v10396 = vpop.f32.mrf.mxu0
      %10397 = vdwg.mxu0
      %10398 = vmatprep.subr.bf16.mxu0 0
      %10399 = vmatpush1.bf16.msra.mxu0 0
      %10400 = vmatprep.subr.bf16.mxu0 0
      %10401 = vmatpush1.bf16.msra.mxu0 0
      %10402 = vmatprep.subr.bf16.mxu0 0
      %10403 = vmatpush1.bf16.msra.mxu0 0
      %10404 = vmatprep.subr.bf16.mxu0 0
      %10405 = vmatpush1.bf16.msra.mxu0 0
      %10406 = vmatprep.subr.bf16.mxu0 0
      %10407 = vmatpush1.bf16.msra.mxu0 0
      %10408 = vmatprep.subr.bf16.mxu0 0
      %10409 = vmatpush1.bf16.msra.mxu0 0
      %10410 = vmatprep.subr.bf16.mxu0 0
      %10411 = vmatpush1.bf16.msra.mxu0 %v10215
      %10412 = vmatprep.subr.bf16.mxu0 0
      %10413 = vmatpush1.bf16.msra.mxu0 %v10214
      %10414 = vmatprep.subr.bf16.mxu0 0
      %10415 = vmatpush2.bf16.msra.mxu0 0
      %10416 = vmatprep.subr.bf16.mxu0 0
      %10417 = vmatpush2.bf16.msra.mxu0 0
      %10418 = vmatprep.subr.bf16.mxu0 0
      %10419 = vmatpush2.bf16.msra.mxu0 0
      %10420 = vmatprep.subr.bf16.mxu0 0
      %10421 = vmatpush2.bf16.msra.mxu0 0
      %10422 = vmatprep.subr.bf16.mxu0 0
      %10423 = vmatpush2.bf16.msra.mxu0 0
      %10424 = vmatprep.subr.bf16.mxu0 0
      %10425 = vmatpush2.bf16.msra.mxu0 0
      %10426 = vmatprep.subr.bf16.mxu0 0
      %10427 = vmatpush2.bf16.msra.mxu0 0
      %10428 = vmatprep.subr.bf16.mxu0 0
      %10429 = vmatpush2.bf16.msra.mxu0 0
      %10430 = vmatprep.mubr.bf16.mxu0 0
      %10431 = vmatmul.mubr.bf16.gmra.mxu0 %v9243
      %v10432 = vpop.f32.mrf.mxu0
      %v10433 = vadd.f32 %v10272, %v10432
      %v10434 = vpop.f32.mrf.mxu0
      %v10435 = vpop.f32.mrf.mxu0
      %v10436 = vadd.f32 %v10275, %v10435
      %v10437 = vpop.f32.mrf.mxu0
      %10438 = vmatprep.mubr.bf16.mxu0 0
      %10439 = vmatmul.mubr.bf16.gmra.mxu0 %v9246
      %v10440 = vpop.f32.mrf.mxu0
      %v10441 = vadd.f32 %v10280, %v10440
      %v10442 = vpop.f32.mrf.mxu0
      %v10443 = vpop.f32.mrf.mxu0
      %v10444 = vadd.f32 %v10283, %v10443
      %v10445 = vpop.f32.mrf.mxu0
      %10446 = vmatprep.mubr.bf16.mxu0 0
      %10447 = vmatmul.mubr.bf16.gmra.mxu0 %v9249
      %v10448 = vpop.f32.mrf.mxu0
      %v10449 = vadd.f32 %v10288, %v10448
      %v10450 = vpop.f32.mrf.mxu0
      %v10451 = vpop.f32.mrf.mxu0
      %v10452 = vadd.f32 %v10291, %v10451
      %v10453 = vpop.f32.mrf.mxu0
      %10454 = vmatprep.mubr.bf16.mxu0 0
      %10455 = vmatmul.mubr.bf16.gmra.mxu0 %v9252
      %v10456 = vpop.f32.mrf.mxu0
      %v10457 = vadd.f32 %v10296, %v10456
      %v10458 = vpop.f32.mrf.mxu0
      %v10459 = vpop.f32.mrf.mxu0
      %v10460 = vadd.f32 %v10299, %v10459
      %v10461 = vpop.f32.mrf.mxu0
      %10462 = vmatprep.mubr.bf16.mxu0 0
      %10463 = vmatmul.mubr.bf16.gmra.mxu0 %v9255
      %v10464 = vpop.f32.mrf.mxu0
      %v10465 = vadd.f32 %v10304, %v10464
      %v10466 = vpop.f32.mrf.mxu0
      %v10467 = vpop.f32.mrf.mxu0
      %v10468 = vadd.f32 %v10307, %v10467
      %v10469 = vpop.f32.mrf.mxu0
      %10470 = vmatprep.mubr.bf16.mxu0 0
      %10471 = vmatmul.mubr.bf16.gmra.mxu0 %v9258
      %v10472 = vpop.f32.mrf.mxu0
      %v10473 = vadd.f32 %v10312, %v10472
      %v10474 = vpop.f32.mrf.mxu0
      %v10475 = vpop.f32.mrf.mxu0
      %v10476 = vadd.f32 %v10315, %v10475
      %v10477 = vpop.f32.mrf.mxu0
      %10478 = vmatprep.mubr.bf16.mxu0 0
      %10479 = vmatmul.mubr.bf16.gmra.mxu0 %v9261
      %v10480 = vpop.f32.mrf.mxu0
      %v10481 = vadd.f32 %v10320, %v10480
      %v10482 = vpop.f32.mrf.mxu0
      %v10483 = vpop.f32.mrf.mxu0
      %v10484 = vadd.f32 %v10323, %v10483
      %v10485 = vpop.f32.mrf.mxu0
      %10486 = vmatprep.mubr.bf16.mxu0 0
      %10487 = vmatmul.mubr.bf16.gmra.mxu0 %v9264
      %v10488 = vpop.f32.mrf.mxu0
      %v10489 = vadd.f32 %v10328, %v10488
      %v10490 = vpop.f32.mrf.mxu0
      %v10491 = vpop.f32.mrf.mxu0
      %v10492 = vadd.f32 %v10331, %v10491
      %v10493 = vpop.f32.mrf.mxu0
      %10494 = vmatprep.mubr.bf16.mxu0 0
      %10495 = vmatmul.mubr.bf16.gmra.mxu0 %v9267
      %v10496 = vpop.f32.mrf.mxu0
      %v10497 = vadd.f32 %v10336, %v10496
      %v10498 = vpop.f32.mrf.mxu0
      %v10499 = vpop.f32.mrf.mxu0
      %v10500 = vadd.f32 %v10339, %v10499
      %v10501 = vpop.f32.mrf.mxu0
      %10502 = vmatprep.mubr.bf16.mxu0 0
      %10503 = vmatmul.mubr.bf16.gmra.mxu0 %v9270
      %v10504 = vpop.f32.mrf.mxu0
      %v10505 = vadd.f32 %v10344, %v10504
      %v10506 = vpop.f32.mrf.mxu0
      %v10507 = vpop.f32.mrf.mxu0
      %v10508 = vadd.f32 %v10347, %v10507
      %v10509 = vpop.f32.mrf.mxu0
      %10510 = vmatprep.mubr.bf16.mxu0 0
      %10511 = vmatmul.mubr.bf16.gmra.mxu0 %v9273
      %v10512 = vpop.f32.mrf.mxu0
      %v10513 = vadd.f32 %v10352, %v10512
      %v10514 = vpop.f32.mrf.mxu0
      %v10515 = vpop.f32.mrf.mxu0
      %v10516 = vadd.f32 %v10355, %v10515
      %v10517 = vpop.f32.mrf.mxu0
      %10518 = vmatprep.mubr.bf16.mxu0 0
      %10519 = vmatmul.mubr.bf16.gmra.mxu0 %v9276
      %v10520 = vpop.f32.mrf.mxu0
      %v10521 = vadd.f32 %v10360, %v10520
      %v10522 = vpop.f32.mrf.mxu0
      %v10523 = vpop.f32.mrf.mxu0
      %v10524 = vadd.f32 %v10363, %v10523
      %v10525 = vpop.f32.mrf.mxu0
      %10526 = vmatprep.mubr.bf16.mxu0 0
      %10527 = vmatmul.mubr.bf16.gmra.mxu0 %v9279
      %v10528 = vpop.f32.mrf.mxu0
      %v10529 = vadd.f32 %v10368, %v10528
      %v10530 = vpop.f32.mrf.mxu0
      %v10531 = vpop.f32.mrf.mxu0
      %v10532 = vadd.f32 %v10371, %v10531
      %v10533 = vpop.f32.mrf.mxu0
      %10534 = vmatprep.mubr.bf16.mxu0 0
      %10535 = vmatmul.mubr.bf16.gmra.mxu0 %v9282
      %v10536 = vpop.f32.mrf.mxu0
      %v10537 = vadd.f32 %v10376, %v10536
      %v10538 = vpop.f32.mrf.mxu0
      %v10539 = vpop.f32.mrf.mxu0
      %v10540 = vadd.f32 %v10379, %v10539
      %v10541 = vpop.f32.mrf.mxu0
      %10542 = vmatprep.mubr.bf16.mxu0 0
      %10543 = vmatmul.mubr.bf16.gmra.mxu0 %v9285
      %v10544 = vpop.f32.mrf.mxu0
      %v10545 = vadd.f32 %v10384, %v10544
      %v10546 = vpop.f32.mrf.mxu0
      %v10547 = vpop.f32.mrf.mxu0
      %v10548 = vadd.f32 %v10387, %v10547
      %v10549 = vpop.f32.mrf.mxu0
      %10550 = vmatprep.mubr.bf16.mxu0 0
      %10551 = vmatmul.mubr.bf16.gmra.mxu0 %v10235
      %v10552 = vpop.f32.mrf.mxu0
      %v10553 = vadd.f32 %v10392, %v10552
      %v10554 = vpop.f32.mrf.mxu0
      %v10555 = vpop.f32.mrf.mxu0
      %v10556 = vadd.f32 %v10395, %v10555
      %v10557 = vpop.f32.mrf.mxu0
      %10558 = vdwg.mxu0
      %v10559 = vadd.f32 %v9916, %v10433
      %v10560 = vadd.f32 %v9919, %v10436
      %v10561 = vadd.f32 %v9924, %v10441
      %v10562 = vadd.f32 %v9927, %v10444
      %v10563 = vadd.f32 %v9932, %v10449
      %v10564 = vadd.f32 %v9935, %v10452
      %v10565 = vadd.f32 %v9940, %v10457
      %v10566 = vadd.f32 %v9943, %v10460
      %v10567 = vadd.f32 %v9948, %v10465
      %v10568 = vadd.f32 %v9951, %v10468
      %v10569 = vadd.f32 %v9956, %v10473
      %v10570 = vadd.f32 %v9959, %v10476
      %v10571 = vadd.f32 %v9964, %v10481
      %v10572 = vadd.f32 %v9967, %v10484
      %v10573 = vadd.f32 %v9972, %v10489
      %v10574 = vadd.f32 %v9975, %v10492
      %v10575 = vadd.f32 %v9980, %v10497
      %v10576 = vadd.f32 %v9983, %v10500
      %v10577 = vadd.f32 %v9988, %v10505
      %v10578 = vadd.f32 %v9991, %v10508
      %v10579 = vadd.f32 %v9996, %v10513
      %v10580 = vadd.f32 %v9999, %v10516
      %v10581 = vadd.f32 %v10004, %v10521
      %v10582 = vadd.f32 %v10007, %v10524
      %v10583 = vadd.f32 %v10012, %v10529
      %v10584 = vadd.f32 %v10015, %v10532
      %v10585 = vadd.f32 %v10020, %v10537
      %v10586 = vadd.f32 %v10023, %v10540
      %v10587 = vadd.f32 %v10028, %v10545
      %v10588 = vadd.f32 %v10031, %v10548
      %v10589 = vadd.f32 %v10036, %v10553
      %v10590 = vadd.f32 %v10039, %v10556
      %v10591 = vld [vmem:[%s8] sm:$0x3]
      %v10593 = vlaneseq
      %v10594 = vshrl.u32 %v10593, 7
      %v10595 = vsub.s32 0, %v10594
      %v10596 = vrot.slane %v10591, %v10595
      %v10597 = vlaneseq
      %v10598 = vshrl.u32 %v10597, 7
      %v10599 = vsub.s32 1, %v10598
      %v10600 = vrot.slane %v10591, %v10599
      %10601 = vrot.lane.b32.xlu0 %v10596, 64
      %v10602 = vpop.permute.xlu0 %10601
      %10603 = vrot.lane.b32.xlu0 %v10600, 64
      %v10604 = vpop.permute.xlu0 %10603
      %v10605 = vsel %vm2728, %v10602, %v10604
      %v10607 = vadd.f32 %v10559, %v10605
      %v10608 = vadd.f32 %v10560, %v10605
      %v10609 = vadd.f32 %v10561, %v10605
      %v10610 = vadd.f32 %v10562, %v10605
      %v10611 = vadd.f32 %v10563, %v10605
      %v10612 = vadd.f32 %v10564, %v10605
      %v10613 = vadd.f32 %v10565, %v10605
      %v10614 = vadd.f32 %v10566, %v10605
      %v10615 = vadd.f32 %v10567, %v10605
      %v10616 = vadd.f32 %v10568, %v10605
      %v10617 = vadd.f32 %v10569, %v10605
      %v10618 = vadd.f32 %v10570, %v10605
      %v10619 = vadd.f32 %v10571, %v10605
      %v10620 = vadd.f32 %v10572, %v10605
      %v10621 = vadd.f32 %v10573, %v10605
      %v10622 = vadd.f32 %v10574, %v10605
      %v10623 = vadd.f32 %v10575, %v10605
      %v10624 = vadd.f32 %v10576, %v10605
      %v10625 = vadd.f32 %v10577, %v10605
      %v10626 = vadd.f32 %v10578, %v10605
      %v10627 = vadd.f32 %v10579, %v10605
      %v10628 = vadd.f32 %v10580, %v10605
      %v10629 = vadd.f32 %v10581, %v10605
      %v10630 = vadd.f32 %v10582, %v10605
      %v10631 = vadd.f32 %v10583, %v10605
      %v10632 = vadd.f32 %v10584, %v10605
      %v10633 = vadd.f32 %v10585, %v10605
      %v10634 = vadd.f32 %v10586, %v10605
      %v10635 = vadd.f32 %v10587, %v10605
      %v10636 = vadd.f32 %v10588, %v10605
      %v10637 = vadd.f32 %v10589, %v10605
      %v10638 = vadd.f32 %v10590, %v10605
      %v10639 = vmax.f32 %v10607, 0.0
      %v10640 = vmax.f32 %v10608, 0.0
      %v10641 = vmax.f32 %v10609, 0.0
      %v10642 = vmax.f32 %v10610, 0.0
      %v10643 = vmax.f32 %v10611, 0.0
      %v10644 = vmax.f32 %v10612, 0.0
      %v10645 = vmax.f32 %v10613, 0.0
      %v10646 = vmax.f32 %v10614, 0.0
      %v10647 = vmax.f32 %v10615, 0.0
      %v10648 = vmax.f32 %v10616, 0.0
      %v10649 = vmax.f32 %v10617, 0.0
      %v10650 = vmax.f32 %v10618, 0.0
      %v10651 = vmax.f32 %v10619, 0.0
      %v10652 = vmax.f32 %v10620, 0.0
      %v10653 = vmax.f32 %v10621, 0.0
      %v10654 = vmax.f32 %v10622, 0.0
      %v10655 = vmax.f32 %v10623, 0.0
      %v10656 = vmax.f32 %v10624, 0.0
      %v10657 = vmax.f32 %v10625, 0.0
      %v10658 = vmax.f32 %v10626, 0.0
      %v10659 = vmax.f32 %v10627, 0.0
      %v10660 = vmax.f32 %v10628, 0.0
      %v10661 = vmax.f32 %v10629, 0.0
      %v10662 = vmax.f32 %v10630, 0.0
      %v10663 = vmax.f32 %v10631, 0.0
      %v10664 = vmax.f32 %v10632, 0.0
      %v10665 = vmax.f32 %v10633, 0.0
      %v10666 = vmax.f32 %v10634, 0.0
      %v10667 = vmax.f32 %v10635, 0.0
      %v10668 = vmax.f32 %v10636, 0.0
      %v10669 = vmax.f32 %v10637, 0.0
      %v10670 = vmax.f32 %v10638, 0.0
      %v10671 = vpack.c.bf16 %v10640, %v10639
      %v10672 = vpack.c.bf16 %v10642, %v10641
      %v10673 = vpack.c.bf16 %v10644, %v10643
      %v10674 = vpack.c.bf16 %v10646, %v10645
      %v10675 = vpack.c.bf16 %v10648, %v10647
      %v10676 = vpack.c.bf16 %v10650, %v10649
      %v10677 = vpack.c.bf16 %v10652, %v10651
      %v10678 = vpack.c.bf16 %v10654, %v10653
      %v10679 = vpack.c.bf16 %v10656, %v10655
      %v10680 = vpack.c.bf16 %v10658, %v10657
      %v10681 = vpack.c.bf16 %v10660, %v10659
      %v10682 = vpack.c.bf16 %v10662, %v10661
      %v10683 = vpack.c.bf16 %v10664, %v10663
      %v10684 = vpack.c.bf16 %v10666, %v10665
      %v10685 = vpack.c.bf16 %v10668, %v10667
      %v10686 = vpack.c.bf16 %v10670, %v10669
      %vm10687 = vcmask 27648
      %10688 = vst.msk [vmem:[#allocation5] sm:$0xf] %vm10687, 0
      %10689 = vst.msk [vmem:[#allocation5 + $0x4] sm:$0xf] %vm10687, 0
      %10690 = vst.msk [vmem:[#allocation5 + $0x8] sm:$0xf] %vm10687, 0
      %10691 = vst.msk [vmem:[#allocation5 + $0xc] sm:$0xf] %vm10687, 0
      %s10692 = scalar_lea.vmem [#allocation5], 272
      %10693 = vst.msk [vmem:[%s10692] sm:$0xf] %vm10687, 0
      %10694 = vst.msk [vmem:[%s10692 + $0x4] sm:$0xf] %vm10687, 0
      %10695 = vst.msk [vmem:[%s10692 + $0x8] sm:$0xf] %vm10687, 0
      %10696 = vst.msk [vmem:[%s10692 + $0xc] sm:$0xf] %vm10687, 0
      %vm10697 = vcmask 27651
      %vm10698 = vmand %vm10697, %vm4694
      %v10699 = vld [vmem:[#allocation5] sm:$0x8]
      %v10700 = vsel %vm10698, 0, %v10699
      %10701 = vst [vmem:[#allocation5] sm:$0x8] %v10700
      %v10702 = vld [vmem:[#allocation5 + $0x10] sm:$0x8]
      %v10703 = vsel %vm10698, 0, %v10702
      %10704 = vst [vmem:[#allocation5 + $0x10] sm:$0x8] %v10703
      %v10705 = vld [vmem:[#allocation5 + $0x20] sm:$0x8]
      %v10706 = vsel %vm10698, 0, %v10705
      %10707 = vst [vmem:[#allocation5 + $0x20] sm:$0x8] %v10706
      %v10708 = vld [vmem:[#allocation5 + $0x30] sm:$0x8]
      %v10709 = vsel %vm10698, 0, %v10708
      %10710 = vst [vmem:[#allocation5 + $0x30] sm:$0x8] %v10709
      %v10711 = vld [vmem:[#allocation5 + $0x40] sm:$0x8]
      %v10712 = vsel %vm10698, 0, %v10711
      %10713 = vst [vmem:[#allocation5 + $0x40] sm:$0x8] %v10712
      %v10714 = vld [vmem:[#allocation5 + $0x50] sm:$0x8]
      %v10715 = vsel %vm10698, 0, %v10714
      %10716 = vst [vmem:[#allocation5 + $0x50] sm:$0x8] %v10715
      %v10717 = vld [vmem:[#allocation5 + $0x60] sm:$0x8]
      %v10718 = vsel %vm10698, 0, %v10717
      %10719 = vst [vmem:[#allocation5 + $0x60] sm:$0x8] %v10718
      %v10720 = vld [vmem:[#allocation5 + $0x70] sm:$0x8]
      %v10721 = vsel %vm10698, 0, %v10720
      %10722 = vst [vmem:[#allocation5 + $0x70] sm:$0x8] %v10721
      %v10723 = vld [vmem:[#allocation5 + $0x80] sm:$0x8]
      %v10724 = vsel %vm10698, 0, %v10723
      %10725 = vst [vmem:[#allocation5 + $0x80] sm:$0x8] %v10724
      %v10726 = vld [vmem:[#allocation5 + $0x90] sm:$0x8]
      %v10727 = vsel %vm10698, 0, %v10726
      %10728 = vst [vmem:[#allocation5 + $0x90] sm:$0x8] %v10727
      %v10729 = vld [vmem:[#allocation5 + $0xa0] sm:$0x8]
      %v10730 = vsel %vm10698, 0, %v10729
      %10731 = vst [vmem:[#allocation5 + $0xa0] sm:$0x8] %v10730
      %v10732 = vld [vmem:[#allocation5 + $0xb0] sm:$0x8]
      %v10733 = vsel %vm10698, 0, %v10732
      %10734 = vst [vmem:[#allocation5 + $0xb0] sm:$0x8] %v10733
      %v10735 = vld [vmem:[#allocation5 + $0xc0] sm:$0x8]
      %v10736 = vsel %vm10698, 0, %v10735
      %10737 = vst [vmem:[#allocation5 + $0xc0] sm:$0x8] %v10736
      %v10738 = vld [vmem:[#allocation5 + $0xd0] sm:$0x8]
      %v10739 = vsel %vm10698, 0, %v10738
      %10740 = vst [vmem:[#allocation5 + $0xd0] sm:$0x8] %v10739
      %v10741 = vld [vmem:[#allocation5 + $0xe0] sm:$0x8]
      %v10742 = vsel %vm10698, 0, %v10741
      %10743 = vst [vmem:[#allocation5 + $0xe0] sm:$0x8] %v10742
      %v10744 = vld [vmem:[#allocation5 + $0xf0] sm:$0x8]
      %v10745 = vsel %vm10698, 0, %v10744
      %10746 = vst [vmem:[#allocation5 + $0xf0] sm:$0x8] %v10745
      %v10747 = vld [vmem:[#allocation5 + $0x100] sm:$0x8]
      %v10748 = vsel %vm10698, 0, %v10747
      %10749 = vst [vmem:[#allocation5 + $0x100] sm:$0x8] %v10748
      %v10750 = vld [vmem:[#allocation5 + $0x110] sm:$0x8]
      %v10751 = vsel %vm10698, 0, %v10750
      %10752 = vst [vmem:[#allocation5 + $0x110] sm:$0x8] %v10751
      %vm10753 = vcmask 24576
      %vm10754 = vmand %vm10753, %vm4751
      %v10755 = vld [vmem:[#allocation5 + $0xc] sm:$0x1]
      %v10756 = vsel %vm10754, 0, %v10755
      %10757 = vst [vmem:[#allocation5 + $0xc] sm:$0x1] %v10756
      %v10758 = vld [vmem:[#allocation5 + $0x1c] sm:$0x1]
      %v10759 = vsel %vm10754, 0, %v10758
      %10760 = vst [vmem:[#allocation5 + $0x1c] sm:$0x1] %v10759
      %v10761 = vld [vmem:[#allocation5 + $0x2c] sm:$0x1]
      %v10762 = vsel %vm10754, 0, %v10761
      %10763 = vst [vmem:[#allocation5 + $0x2c] sm:$0x1] %v10762
      %v10764 = vld [vmem:[#allocation5 + $0x3c] sm:$0x1]
      %v10765 = vsel %vm10754, 0, %v10764
      %10766 = vst [vmem:[#allocation5 + $0x3c] sm:$0x1] %v10765
      %v10767 = vld [vmem:[#allocation5 + $0x4c] sm:$0x1]
      %v10768 = vsel %vm10754, 0, %v10767
      %10769 = vst [vmem:[#allocation5 + $0x4c] sm:$0x1] %v10768
      %v10770 = vld [vmem:[#allocation5 + $0x5c] sm:$0x1]
      %v10771 = vsel %vm10754, 0, %v10770
      %10772 = vst [vmem:[#allocation5 + $0x5c] sm:$0x1] %v10771
      %v10773 = vld [vmem:[#allocation5 + $0x6c] sm:$0x1]
      %v10774 = vsel %vm10754, 0, %v10773
      %10775 = vst [vmem:[#allocation5 + $0x6c] sm:$0x1] %v10774
      %v10776 = vld [vmem:[#allocation5 + $0x7c] sm:$0x1]
      %v10777 = vsel %vm10754, 0, %v10776
      %10778 = vst [vmem:[#allocation5 + $0x7c] sm:$0x1] %v10777
      %v10779 = vld [vmem:[#allocation5 + $0x8c] sm:$0x1]
      %v10780 = vsel %vm10754, 0, %v10779
      %10781 = vst [vmem:[#allocation5 + $0x8c] sm:$0x1] %v10780
      %v10782 = vld [vmem:[#allocation5 + $0x9c] sm:$0x1]
      %v10783 = vsel %vm10754, 0, %v10782
      %10784 = vst [vmem:[#allocation5 + $0x9c] sm:$0x1] %v10783
      %v10785 = vld [vmem:[#allocation5 + $0xac] sm:$0x1]
      %v10786 = vsel %vm10754, 0, %v10785
      %10787 = vst [vmem:[#allocation5 + $0xac] sm:$0x1] %v10786
      %v10788 = vld [vmem:[#allocation5 + $0xbc] sm:$0x1]
      %v10789 = vsel %vm10754, 0, %v10788
      %10790 = vst [vmem:[#allocation5 + $0xbc] sm:$0x1] %v10789
      %v10791 = vld [vmem:[#allocation5 + $0xcc] sm:$0x1]
      %v10792 = vsel %vm10754, 0, %v10791
      %10793 = vst [vmem:[#allocation5 + $0xcc] sm:$0x1] %v10792
      %v10794 = vld [vmem:[#allocation5 + $0xdc] sm:$0x1]
      %v10795 = vsel %vm10754, 0, %v10794
      %10796 = vst [vmem:[#allocation5 + $0xdc] sm:$0x1] %v10795
      %v10797 = vld [vmem:[#allocation5 + $0xec] sm:$0x1]
      %v10798 = vsel %vm10754, 0, %v10797
      %10799 = vst [vmem:[#allocation5 + $0xec] sm:$0x1] %v10798
      %v10800 = vld [vmem:[#allocation5 + $0xfc] sm:$0x1]
      %v10801 = vsel %vm10754, 0, %v10800
      %10802 = vst [vmem:[#allocation5 + $0xfc] sm:$0x1] %v10801
      %v10803 = vld [vmem:[#allocation5 + $0x10c] sm:$0x1]
      %v10804 = vsel %vm10754, 0, %v10803
      %10805 = vst [vmem:[#allocation5 + $0x10c] sm:$0x1] %v10804
      %v10806 = vld [vmem:[#allocation5 + $0x11c] sm:$0x1]
      %v10807 = vsel %vm10754, 0, %v10806
      %10808 = vst [vmem:[#allocation5 + $0x11c] sm:$0x1] %v10807
      %s10809 = scalar_lea.vmem [#allocation5], 16
      %10810 = vst.msk [vmem:[%s10809 + $0x4] sm:$0xf] %vm10687, %v334
      %10811 = vst.msk [vmem:[%s10809 + $0x8] sm:$0xf] %vm10687, %v335
      %10812 = vst.msk [vmem:[%s10809 + $0x14] sm:$0xf] %vm10687, %v336
      %10813 = vst.msk [vmem:[%s10809 + $0x18] sm:$0xf] %vm10687, %v337
      %10814 = vst.msk [vmem:[%s10809 + $0x24] sm:$0xf] %vm10687, %v338
      %10815 = vst.msk [vmem:[%s10809 + $0x28] sm:$0xf] %vm10687, %v339
      %10816 = vst.msk [vmem:[%s10809 + $0x34] sm:$0xf] %vm10687, %v340
      %10817 = vst.msk [vmem:[%s10809 + $0x38] sm:$0xf] %vm10687, %v341
      %10818 = vst.msk [vmem:[%s10809 + $0x44] sm:$0xf] %vm10687, %v342
      %10819 = vst.msk [vmem:[%s10809 + $0x48] sm:$0xf] %vm10687, %v343
      %10820 = vst.msk [vmem:[%s10809 + $0x54] sm:$0xf] %vm10687, %v344
      %10821 = vst.msk [vmem:[%s10809 + $0x58] sm:$0xf] %vm10687, %v345
      %10822 = vst.msk [vmem:[%s10809 + $0x64] sm:$0xf] %vm10687, %v346
      %10823 = vst.msk [vmem:[%s10809 + $0x68] sm:$0xf] %vm10687, %v347
      %10824 = vst.msk [vmem:[%s10809 + $0x74] sm:$0xf] %vm10687, %v348
      %10825 = vst.msk [vmem:[%s10809 + $0x78] sm:$0xf] %vm10687, %v349
      %10826 = vst.msk [vmem:[%s10809 + $0x84] sm:$0xf] %vm10687, %v350
      %10827 = vst.msk [vmem:[%s10809 + $0x88] sm:$0xf] %vm10687, %v351
      %10828 = vst.msk [vmem:[%s10809 + $0x94] sm:$0xf] %vm10687, %v352
      %10829 = vst.msk [vmem:[%s10809 + $0x98] sm:$0xf] %vm10687, %v353
      %10830 = vst.msk [vmem:[%s10809 + $0xa4] sm:$0xf] %vm10687, %v354
      %10831 = vst.msk [vmem:[%s10809 + $0xa8] sm:$0xf] %vm10687, %v355
      %10832 = vst.msk [vmem:[%s10809 + $0xb4] sm:$0xf] %vm10687, %v356
      %10833 = vst.msk [vmem:[%s10809 + $0xb8] sm:$0xf] %vm10687, %v357
      %10834 = vst.msk [vmem:[%s10809 + $0xc4] sm:$0xf] %vm10687, %v358
      %10835 = vst.msk [vmem:[%s10809 + $0xc8] sm:$0xf] %vm10687, %v359
      %10836 = vst.msk [vmem:[%s10809 + $0xd4] sm:$0xf] %vm10687, %v360
      %10837 = vst.msk [vmem:[%s10809 + $0xd8] sm:$0xf] %vm10687, %v361
      %10838 = vst.msk [vmem:[%s10809 + $0xe4] sm:$0xf] %vm10687, %v362
      %10839 = vst.msk [vmem:[%s10809 + $0xe8] sm:$0xf] %vm10687, %v363
      %10840 = vst.msk [vmem:[%s10809 + $0xf4] sm:$0xf] %vm10687, %v364
      %10841 = vst.msk [vmem:[%s10809 + $0xf8] sm:$0xf] %vm10687, %v365
      %v10842 = vld [vmem:[#allocation5] sm:$0x8]
      %v10843 = vld [vmem:[#allocation5 + $0x4] sm:$0xf]
      %v10844 = vld [vmem:[#allocation5 + $0x8] sm:$0xf]
      %v10845 = vld [vmem:[#allocation5 + $0x10] sm:$0x8]
      %v10846 = vld [vmem:[#allocation5 + $0x14] sm:$0xf]
      %v10847 = vld [vmem:[#allocation5 + $0x18] sm:$0xf]
      %v10848 = vld [vmem:[#allocation5 + $0x20] sm:$0x8]
      %v10849 = vld [vmem:[#allocation5 + $0x24] sm:$0xf]
      %v10850 = vld [vmem:[#allocation5 + $0x28] sm:$0xf]
      %v10851 = vld [vmem:[#allocation5 + $0x30] sm:$0x8]
      %v10852 = vld [vmem:[#allocation5 + $0x34] sm:$0xf]
      %v10853 = vld [vmem:[#allocation5 + $0x38] sm:$0xf]
      %v10854 = vld [vmem:[#allocation5 + $0x40] sm:$0x8]
      %v10855 = vld [vmem:[#allocation5 + $0x44] sm:$0xf]
      %v10856 = vld [vmem:[#allocation5 + $0x48] sm:$0xf]
      %v10857 = vld [vmem:[#allocation5 + $0x50] sm:$0x8]
      %v10858 = vld [vmem:[#allocation5 + $0x54] sm:$0xf]
      %v10859 = vld [vmem:[#allocation5 + $0x58] sm:$0xf]
      %v10860 = vld [vmem:[#allocation5 + $0x60] sm:$0x8]
      %v10861 = vld [vmem:[#allocation5 + $0x64] sm:$0xf]
      %v10862 = vld [vmem:[#allocation5 + $0x68] sm:$0xf]
      %v10863 = vld [vmem:[#allocation5 + $0x70] sm:$0x8]
      %v10864 = vld [vmem:[#allocation5 + $0x74] sm:$0xf]
      %v10865 = vld [vmem:[#allocation5 + $0x78] sm:$0xf]
      %v10866 = vld [vmem:[#allocation5 + $0x80] sm:$0x8]
      %v10867 = vld [vmem:[#allocation5 + $0x84] sm:$0xf]
      %v10868 = vld [vmem:[#allocation5 + $0x88] sm:$0xf]
      %v10869 = vld [vmem:[#allocation5 + $0x90] sm:$0x8]
      %v10870 = vld [vmem:[#allocation5 + $0x94] sm:$0xf]
      %v10871 = vld [vmem:[#allocation5 + $0x98] sm:$0xf]
      %v10872 = vld [vmem:[#allocation5 + $0xa0] sm:$0x8]
      %v10873 = vld [vmem:[#allocation5 + $0xa4] sm:$0xf]
      %v10874 = vld [vmem:[#allocation5 + $0xa8] sm:$0xf]
      %v10875 = vld [vmem:[#allocation5 + $0xb0] sm:$0x8]
      %v10876 = vld [vmem:[#allocation5 + $0xb4] sm:$0xf]
      %v10877 = vld [vmem:[#allocation5 + $0xb8] sm:$0xf]
      %v10878 = vld [vmem:[#allocation5 + $0xc0] sm:$0x8]
      %v10879 = vld [vmem:[#allocation5 + $0xc4] sm:$0xf]
      %v10880 = vld [vmem:[#allocation5 + $0xc8] sm:$0xf]
      %v10881 = vld [vmem:[#allocation5 + $0xd0] sm:$0x8]
      %v10882 = vld [vmem:[#allocation5 + $0xd4] sm:$0xf]
      %v10883 = vld [vmem:[#allocation5 + $0xd8] sm:$0xf]
      %v10884 = vld [vmem:[#allocation5 + $0xe0] sm:$0x8]
      %v10885 = vld [vmem:[#allocation5 + $0xe4] sm:$0xf]
      %v10886 = vld [vmem:[#allocation5 + $0xe8] sm:$0xf]
      %v10887 = vld [vmem:[#allocation5 + $0xf0] sm:$0x8]
      %v10888 = vld [vmem:[#allocation5 + $0xf4] sm:$0xf]
      %v10889 = vld [vmem:[#allocation5 + $0xf8] sm:$0xf]
      %v10890 = vld [vmem:[#allocation5 + $0x100] sm:$0x8]
      %v10891 = vld [vmem:[#allocation5 + $0x104] sm:$0xf]
      %v10892 = vld [vmem:[#allocation5 + $0x108] sm:$0xf]
      %v10893 = vld [vmem:[#allocation5 + $0x110] sm:$0x8]
      %v10894 = vld [vmem:[#allocation5 + $0x114] sm:$0xf]
      %v10895 = vld [vmem:[#allocation5 + $0x118] sm:$0xf]
      %v10896 = vunpack.c.l.bf16 %v10842
      %v10897 = vunpack.c.l.bf16 %v10843
      %v10898 = vunpack.c.l.bf16 %v10844
      %v10899 = vunpack.c.l.bf16 %v10845
      %v10900 = vunpack.c.l.bf16 %v10846
      %v10901 = vunpack.c.l.bf16 %v10847
      %v10902 = vunpack.c.l.bf16 %v10848
      %v10903 = vunpack.c.l.bf16 %v10849
      %v10904 = vunpack.c.l.bf16 %v10850
      %v10905 = vunpack.c.l.bf16 %v10851
      %v10906 = vunpack.c.l.bf16 %v10852
      %v10907 = vunpack.c.l.bf16 %v10853
      %v10908 = vunpack.c.l.bf16 %v10854
      %v10909 = vunpack.c.l.bf16 %v10855
      %v10910 = vunpack.c.l.bf16 %v10856
      %v10911 = vunpack.c.l.bf16 %v10857
      %v10912 = vunpack.c.l.bf16 %v10858
      %v10913 = vunpack.c.l.bf16 %v10859
      %v10914 = vunpack.c.l.bf16 %v10860
      %v10915 = vunpack.c.l.bf16 %v10861
      %v10916 = vunpack.c.l.bf16 %v10862
      %v10917 = vunpack.c.l.bf16 %v10863
      %v10918 = vunpack.c.l.bf16 %v10864
      %v10919 = vunpack.c.l.bf16 %v10865
      %v10920 = vunpack.c.l.bf16 %v10866
      %v10921 = vunpack.c.l.bf16 %v10867
      %v10922 = vunpack.c.l.bf16 %v10868
      %v10923 = vunpack.c.l.bf16 %v10869
      %v10924 = vunpack.c.l.bf16 %v10870
      %v10925 = vunpack.c.l.bf16 %v10871
      %v10926 = vunpack.c.l.bf16 %v10872
      %v10927 = vunpack.c.l.bf16 %v10873
      %v10928 = vunpack.c.l.bf16 %v10874
      %v10929 = vunpack.c.l.bf16 %v10875
      %v10930 = vunpack.c.l.bf16 %v10876
      %v10931 = vunpack.c.l.bf16 %v10877
      %v10932 = vunpack.c.l.bf16 %v10878
      %v10933 = vunpack.c.l.bf16 %v10879
      %v10934 = vunpack.c.l.bf16 %v10880
      %v10935 = vunpack.c.l.bf16 %v10881
      %v10936 = vunpack.c.l.bf16 %v10882
      %v10937 = vunpack.c.l.bf16 %v10883
      %v10938 = vunpack.c.l.bf16 %v10884
      %v10939 = vunpack.c.l.bf16 %v10885
      %v10940 = vunpack.c.l.bf16 %v10886
      %v10941 = vunpack.c.l.bf16 %v10887
      %v10942 = vunpack.c.l.bf16 %v10888
      %v10943 = vunpack.c.l.bf16 %v10889
      %v10944 = vunpack.c.l.bf16 %v10890
      %v10945 = vunpack.c.l.bf16 %v10891
      %v10946 = vunpack.c.l.bf16 %v10892
      %v10947 = vunpack.c.l.bf16 %v10893
      %v10948 = vunpack.c.l.bf16 %v10894
      %v10949 = vunpack.c.l.bf16 %v10895
      %vm10986 = vcmask 1046528
      %v10987 = vrot.slane %v10897, 1
      %v10988 = vrot.slane %v10898, 1
      %v10989 = vsel %vm10986, %v10987, %v10988
      %v10990 = vrot.slane %v10900, 1
      %v10991 = vrot.slane %v10901, 1
      %v10992 = vsel %vm10986, %v10990, %v10991
      %v10993 = vrot.slane %v10903, 1
      %v10994 = vrot.slane %v10904, 1
      %v10995 = vsel %vm10986, %v10993, %v10994
      %v10996 = vrot.slane %v10906, 1
      %v10997 = vrot.slane %v10907, 1
      %v10998 = vsel %vm10986, %v10996, %v10997
      %v10999 = vrot.slane %v10909, 1
      %v11000 = vrot.slane %v10910, 1
      %v11001 = vsel %vm10986, %v10999, %v11000
      %v11002 = vrot.slane %v10912, 1
      %v11003 = vrot.slane %v10913, 1
      %v11004 = vsel %vm10986, %v11002, %v11003
      %v11005 = vrot.slane %v10915, 1
      %v11006 = vrot.slane %v10916, 1
      %v11007 = vsel %vm10986, %v11005, %v11006
      %v11008 = vrot.slane %v10918, 1
      %v11009 = vrot.slane %v10919, 1
      %v11010 = vsel %vm10986, %v11008, %v11009
      %v11011 = vrot.slane %v10921, 1
      %v11012 = vrot.slane %v10922, 1
      %v11013 = vsel %vm10986, %v11011, %v11012
      %v11014 = vrot.slane %v10924, 1
      %v11015 = vrot.slane %v10925, 1
      %v11016 = vsel %vm10986, %v11014, %v11015
      %v11017 = vrot.slane %v10927, 1
      %v11018 = vrot.slane %v10928, 1
      %v11019 = vsel %vm10986, %v11017, %v11018
      %v11020 = vrot.slane %v10930, 1
      %v11021 = vrot.slane %v10931, 1
      %v11022 = vsel %vm10986, %v11020, %v11021
      %v11023 = vrot.slane %v10933, 1
      %v11024 = vrot.slane %v10934, 1
      %v11025 = vsel %vm10986, %v11023, %v11024
      %v11026 = vrot.slane %v10936, 1
      %v11027 = vrot.slane %v10937, 1
      %v11028 = vsel %vm10986, %v11026, %v11027
      %v11029 = vrot.slane %v10939, 1
      %v11030 = vrot.slane %v10940, 1
      %v11031 = vsel %vm10986, %v11029, %v11030
      %v11032 = vrot.slane %v10942, 1
      %v11033 = vrot.slane %v10943, 1
      %v11034 = vsel %vm10986, %v11032, %v11033
      %v11035 = vrot.slane %v10945, 1
      %v11036 = vrot.slane %v10946, 1
      %v11037 = vsel %vm10986, %v11035, %v11036
      %v11038 = vrot.slane %v10948, 1
      %v11039 = vrot.slane %v10949, 1
      %v11040 = vsel %vm10986, %v11038, %v11039
      %v11095 = vadd.f32 %v10896, %v10987
      %v11096 = vadd.f32 %v10897, %v10989
      %v11097 = vadd.f32 %v10898, %v10988
      %v11098 = vadd.f32 %v10899, %v10990
      %v11099 = vadd.f32 %v10900, %v10992
      %v11100 = vadd.f32 %v10901, %v10991
      %v11101 = vadd.f32 %v10902, %v10993
      %v11102 = vadd.f32 %v10903, %v10995
      %v11103 = vadd.f32 %v10904, %v10994
      %v11104 = vadd.f32 %v10905, %v10996
      %v11105 = vadd.f32 %v10906, %v10998
      %v11106 = vadd.f32 %v10907, %v10997
      %v11107 = vadd.f32 %v10908, %v10999
      %v11108 = vadd.f32 %v10909, %v11001
      %v11109 = vadd.f32 %v10910, %v11000
      %v11110 = vadd.f32 %v10911, %v11002
      %v11111 = vadd.f32 %v10912, %v11004
      %v11112 = vadd.f32 %v10913, %v11003
      %v11113 = vadd.f32 %v10914, %v11005
      %v11114 = vadd.f32 %v10915, %v11007
      %v11115 = vadd.f32 %v10916, %v11006
      %v11116 = vadd.f32 %v10917, %v11008
      %v11117 = vadd.f32 %v10918, %v11010
      %v11118 = vadd.f32 %v10919, %v11009
      %v11119 = vadd.f32 %v10920, %v11011
      %v11120 = vadd.f32 %v10921, %v11013
      %v11121 = vadd.f32 %v10922, %v11012
      %v11122 = vadd.f32 %v10923, %v11014
      %v11123 = vadd.f32 %v10924, %v11016
      %v11124 = vadd.f32 %v10925, %v11015
      %v11125 = vadd.f32 %v10926, %v11017
      %v11126 = vadd.f32 %v10927, %v11019
      %v11127 = vadd.f32 %v10928, %v11018
      %v11128 = vadd.f32 %v10929, %v11020
      %v11129 = vadd.f32 %v10930, %v11022
      %v11130 = vadd.f32 %v10931, %v11021
      %v11131 = vadd.f32 %v10932, %v11023
      %v11132 = vadd.f32 %v10933, %v11025
      %v11133 = vadd.f32 %v10934, %v11024
      %v11134 = vadd.f32 %v10935, %v11026
      %v11135 = vadd.f32 %v10936, %v11028
      %v11136 = vadd.f32 %v10937, %v11027
      %v11137 = vadd.f32 %v10938, %v11029
      %v11138 = vadd.f32 %v10939, %v11031
      %v11139 = vadd.f32 %v10940, %v11030
      %v11140 = vadd.f32 %v10941, %v11032
      %v11141 = vadd.f32 %v10942, %v11034
      %v11142 = vadd.f32 %v10943, %v11033
      %v11143 = vadd.f32 %v10944, %v11035
      %v11144 = vadd.f32 %v10945, %v11037
      %v11145 = vadd.f32 %v10946, %v11036
      %v11146 = vadd.f32 %v10947, %v11038
      %v11147 = vadd.f32 %v10948, %v11040
      %v11148 = vadd.f32 %v10949, %v11039
      %v11149 = vld [vmem:[#allocation5 + $0xc] sm:$0x1]
      %v11150 = vld [vmem:[#allocation5 + $0x1c] sm:$0x1]
      %v11151 = vld [vmem:[#allocation5 + $0x2c] sm:$0x1]
      %v11152 = vld [vmem:[#allocation5 + $0x3c] sm:$0x1]
      %v11153 = vld [vmem:[#allocation5 + $0x4c] sm:$0x1]
      %v11154 = vld [vmem:[#allocation5 + $0x5c] sm:$0x1]
      %v11155 = vld [vmem:[#allocation5 + $0x6c] sm:$0x1]
      %v11156 = vld [vmem:[#allocation5 + $0x7c] sm:$0x1]
      %v11157 = vld [vmem:[#allocation5 + $0x8c] sm:$0x1]
      %v11158 = vld [vmem:[#allocation5 + $0x9c] sm:$0x1]
      %v11159 = vld [vmem:[#allocation5 + $0xac] sm:$0x1]
      %v11160 = vld [vmem:[#allocation5 + $0xbc] sm:$0x1]
      %v11161 = vld [vmem:[#allocation5 + $0xcc] sm:$0x1]
      %v11162 = vld [vmem:[#allocation5 + $0xdc] sm:$0x1]
      %v11163 = vld [vmem:[#allocation5 + $0xec] sm:$0x1]
      %v11164 = vld [vmem:[#allocation5 + $0xfc] sm:$0x1]
      %v11165 = vld [vmem:[#allocation5 + $0x10c] sm:$0x1]
      %v11166 = vld [vmem:[#allocation5 + $0x11c] sm:$0x1]
      %v11167 = vunpack.c.l.bf16 %v11149
      %v11168 = vunpack.c.l.bf16 %v11150
      %v11169 = vunpack.c.l.bf16 %v11151
      %v11170 = vunpack.c.l.bf16 %v11152
      %v11171 = vunpack.c.l.bf16 %v11153
      %v11172 = vunpack.c.l.bf16 %v11154
      %v11173 = vunpack.c.l.bf16 %v11155
      %v11174 = vunpack.c.l.bf16 %v11156
      %v11175 = vunpack.c.l.bf16 %v11157
      %v11176 = vunpack.c.l.bf16 %v11158
      %v11177 = vunpack.c.l.bf16 %v11159
      %v11178 = vunpack.c.l.bf16 %v11160
      %v11179 = vunpack.c.l.bf16 %v11161
      %v11180 = vunpack.c.l.bf16 %v11162
      %v11181 = vunpack.c.l.bf16 %v11163
      %v11182 = vunpack.c.l.bf16 %v11164
      %v11183 = vunpack.c.l.bf16 %v11165
      %v11184 = vunpack.c.l.bf16 %v11166
      %vm11203 = vcmask 1045504
      %v11204 = vrot.slane %v10897, 2
      %v11205 = vrot.slane %v10898, 2
      %v11206 = vsel %vm11203, %v11204, %v11205
      %v11207 = vrot.slane %v11167, 2
      %v11208 = vsel %vm11203, %v11205, %v11207
      %v11209 = vrot.slane %v10900, 2
      %v11210 = vrot.slane %v10901, 2
      %v11211 = vsel %vm11203, %v11209, %v11210
      %v11212 = vrot.slane %v11168, 2
      %v11213 = vsel %vm11203, %v11210, %v11212
      %v11214 = vrot.slane %v10903, 2
      %v11215 = vrot.slane %v10904, 2
      %v11216 = vsel %vm11203, %v11214, %v11215
      %v11217 = vrot.slane %v11169, 2
      %v11218 = vsel %vm11203, %v11215, %v11217
      %v11219 = vrot.slane %v10906, 2
      %v11220 = vrot.slane %v10907, 2
      %v11221 = vsel %vm11203, %v11219, %v11220
      %v11222 = vrot.slane %v11170, 2
      %v11223 = vsel %vm11203, %v11220, %v11222
      %v11224 = vrot.slane %v10909, 2
      %v11225 = vrot.slane %v10910, 2
      %v11226 = vsel %vm11203, %v11224, %v11225
      %v11227 = vrot.slane %v11171, 2
      %v11228 = vsel %vm11203, %v11225, %v11227
      %v11229 = vrot.slane %v10912, 2
      %v11230 = vrot.slane %v10913, 2
      %v11231 = vsel %vm11203, %v11229, %v11230
      %v11232 = vrot.slane %v11172, 2
      %v11233 = vsel %vm11203, %v11230, %v11232
      %v11234 = vrot.slane %v10915, 2
      %v11235 = vrot.slane %v10916, 2
      %v11236 = vsel %vm11203, %v11234, %v11235
      %v11237 = vrot.slane %v11173, 2
      %v11238 = vsel %vm11203, %v11235, %v11237
      %v11239 = vrot.slane %v10918, 2
      %v11240 = vrot.slane %v10919, 2
      %v11241 = vsel %vm11203, %v11239, %v11240
      %v11242 = vrot.slane %v11174, 2
      %v11243 = vsel %vm11203, %v11240, %v11242
      %v11244 = vrot.slane %v10921, 2
      %v11245 = vrot.slane %v10922, 2
      %v11246 = vsel %vm11203, %v11244, %v11245
      %v11247 = vrot.slane %v11175, 2
      %v11248 = vsel %vm11203, %v11245, %v11247
      %v11249 = vrot.slane %v10924, 2
      %v11250 = vrot.slane %v10925, 2
      %v11251 = vsel %vm11203, %v11249, %v11250
      %v11252 = vrot.slane %v11176, 2
      %v11253 = vsel %vm11203, %v11250, %v11252
      %v11254 = vrot.slane %v10927, 2
      %v11255 = vrot.slane %v10928, 2
      %v11256 = vsel %vm11203, %v11254, %v11255
      %v11257 = vrot.slane %v11177, 2
      %v11258 = vsel %vm11203, %v11255, %v11257
      %v11259 = vrot.slane %v10930, 2
      %v11260 = vrot.slane %v10931, 2
      %v11261 = vsel %vm11203, %v11259, %v11260
      %v11262 = vrot.slane %v11178, 2
      %v11263 = vsel %vm11203, %v11260, %v11262
      %v11264 = vrot.slane %v10933, 2
      %v11265 = vrot.slane %v10934, 2
      %v11266 = vsel %vm11203, %v11264, %v11265
      %v11267 = vrot.slane %v11179, 2
      %v11268 = vsel %vm11203, %v11265, %v11267
      %v11269 = vrot.slane %v10936, 2
      %v11270 = vrot.slane %v10937, 2
      %v11271 = vsel %vm11203, %v11269, %v11270
      %v11272 = vrot.slane %v11180, 2
      %v11273 = vsel %vm11203, %v11270, %v11272
      %v11274 = vrot.slane %v10939, 2
      %v11275 = vrot.slane %v10940, 2
      %v11276 = vsel %vm11203, %v11274, %v11275
      %v11277 = vrot.slane %v11181, 2
      %v11278 = vsel %vm11203, %v11275, %v11277
      %v11279 = vrot.slane %v10942, 2
      %v11280 = vrot.slane %v10943, 2
      %v11281 = vsel %vm11203, %v11279, %v11280
      %v11282 = vrot.slane %v11182, 2
      %v11283 = vsel %vm11203, %v11280, %v11282
      %v11284 = vrot.slane %v10945, 2
      %v11285 = vrot.slane %v10946, 2
      %v11286 = vsel %vm11203, %v11284, %v11285
      %v11287 = vrot.slane %v11183, 2
      %v11288 = vsel %vm11203, %v11285, %v11287
      %v11289 = vrot.slane %v10948, 2
      %v11290 = vrot.slane %v10949, 2
      %v11291 = vsel %vm11203, %v11289, %v11290
      %v11292 = vrot.slane %v11184, 2
      %v11293 = vsel %vm11203, %v11290, %v11292
      %v11348 = vadd.f32 %v11095, %v11204
      %v11349 = vadd.f32 %v11096, %v11206
      %v11350 = vadd.f32 %v11097, %v11208
      %v11351 = vadd.f32 %v11098, %v11209
      %v11352 = vadd.f32 %v11099, %v11211
      %v11353 = vadd.f32 %v11100, %v11213
      %v11354 = vadd.f32 %v11101, %v11214
      %v11355 = vadd.f32 %v11102, %v11216
      %v11356 = vadd.f32 %v11103, %v11218
      %v11357 = vadd.f32 %v11104, %v11219
      %v11358 = vadd.f32 %v11105, %v11221
      %v11359 = vadd.f32 %v11106, %v11223
      %v11360 = vadd.f32 %v11107, %v11224
      %v11361 = vadd.f32 %v11108, %v11226
      %v11362 = vadd.f32 %v11109, %v11228
      %v11363 = vadd.f32 %v11110, %v11229
      %v11364 = vadd.f32 %v11111, %v11231
      %v11365 = vadd.f32 %v11112, %v11233
      %v11366 = vadd.f32 %v11113, %v11234
      %v11367 = vadd.f32 %v11114, %v11236
      %v11368 = vadd.f32 %v11115, %v11238
      %v11369 = vadd.f32 %v11116, %v11239
      %v11370 = vadd.f32 %v11117, %v11241
      %v11371 = vadd.f32 %v11118, %v11243
      %v11372 = vadd.f32 %v11119, %v11244
      %v11373 = vadd.f32 %v11120, %v11246
      %v11374 = vadd.f32 %v11121, %v11248
      %v11375 = vadd.f32 %v11122, %v11249
      %v11376 = vadd.f32 %v11123, %v11251
      %v11377 = vadd.f32 %v11124, %v11253
      %v11378 = vadd.f32 %v11125, %v11254
      %v11379 = vadd.f32 %v11126, %v11256
      %v11380 = vadd.f32 %v11127, %v11258
      %v11381 = vadd.f32 %v11128, %v11259
      %v11382 = vadd.f32 %v11129, %v11261
      %v11383 = vadd.f32 %v11130, %v11263
      %v11384 = vadd.f32 %v11131, %v11264
      %v11385 = vadd.f32 %v11132, %v11266
      %v11386 = vadd.f32 %v11133, %v11268
      %v11387 = vadd.f32 %v11134, %v11269
      %v11388 = vadd.f32 %v11135, %v11271
      %v11389 = vadd.f32 %v11136, %v11273
      %v11390 = vadd.f32 %v11137, %v11274
      %v11391 = vadd.f32 %v11138, %v11276
      %v11392 = vadd.f32 %v11139, %v11278
      %v11393 = vadd.f32 %v11140, %v11279
      %v11394 = vadd.f32 %v11141, %v11281
      %v11395 = vadd.f32 %v11142, %v11283
      %v11396 = vadd.f32 %v11143, %v11284
      %v11397 = vadd.f32 %v11144, %v11286
      %v11398 = vadd.f32 %v11145, %v11288
      %v11399 = vadd.f32 %v11146, %v11289
      %v11400 = vadd.f32 %v11147, %v11291
      %v11401 = vadd.f32 %v11148, %v11293
      %v11402 = vadd.f32 %v11348, %v11351
      %v11403 = vadd.f32 %v11349, %v11352
      %v11404 = vadd.f32 %v11350, %v11353
      %v11405 = vadd.f32 %v11351, %v11354
      %v11406 = vadd.f32 %v11352, %v11355
      %v11407 = vadd.f32 %v11353, %v11356
      %v11408 = vadd.f32 %v11354, %v11357
      %v11409 = vadd.f32 %v11355, %v11358
      %v11410 = vadd.f32 %v11356, %v11359
      %v11411 = vadd.f32 %v11357, %v11360
      %v11412 = vadd.f32 %v11358, %v11361
      %v11413 = vadd.f32 %v11359, %v11362
      %v11414 = vadd.f32 %v11360, %v11363
      %v11415 = vadd.f32 %v11361, %v11364
      %v11416 = vadd.f32 %v11362, %v11365
      %v11417 = vadd.f32 %v11363, %v11366
      %v11418 = vadd.f32 %v11364, %v11367
      %v11419 = vadd.f32 %v11365, %v11368
      %v11420 = vadd.f32 %v11366, %v11369
      %v11421 = vadd.f32 %v11367, %v11370
      %v11422 = vadd.f32 %v11368, %v11371
      %v11423 = vadd.f32 %v11369, %v11372
      %v11424 = vadd.f32 %v11370, %v11373
      %v11425 = vadd.f32 %v11371, %v11374
      %v11426 = vadd.f32 %v11372, %v11375
      %v11427 = vadd.f32 %v11373, %v11376
      %v11428 = vadd.f32 %v11374, %v11377
      %v11429 = vadd.f32 %v11375, %v11378
      %v11430 = vadd.f32 %v11376, %v11379
      %v11431 = vadd.f32 %v11377, %v11380
      %v11432 = vadd.f32 %v11378, %v11381
      %v11433 = vadd.f32 %v11379, %v11382
      %v11434 = vadd.f32 %v11380, %v11383
      %v11435 = vadd.f32 %v11381, %v11384
      %v11436 = vadd.f32 %v11382, %v11385
      %v11437 = vadd.f32 %v11383, %v11386
      %v11438 = vadd.f32 %v11384, %v11387
      %v11439 = vadd.f32 %v11385, %v11388
      %v11440 = vadd.f32 %v11386, %v11389
      %v11441 = vadd.f32 %v11387, %v11390
      %v11442 = vadd.f32 %v11388, %v11391
      %v11443 = vadd.f32 %v11389, %v11392
      %v11444 = vadd.f32 %v11390, %v11393
      %v11445 = vadd.f32 %v11391, %v11394
      %v11446 = vadd.f32 %v11392, %v11395
      %v11447 = vadd.f32 %v11393, %v11396
      %v11448 = vadd.f32 %v11394, %v11397
      %v11449 = vadd.f32 %v11395, %v11398
      %v11450 = vadd.f32 %v11402, %v11354
      %v11451 = vadd.f32 %v11403, %v11355
      %v11452 = vadd.f32 %v11404, %v11356
      %v11453 = vadd.f32 %v11405, %v11357
      %v11454 = vadd.f32 %v11406, %v11358
      %v11455 = vadd.f32 %v11407, %v11359
      %v11456 = vadd.f32 %v11408, %v11360
      %v11457 = vadd.f32 %v11409, %v11361
      %v11458 = vadd.f32 %v11410, %v11362
      %v11459 = vadd.f32 %v11411, %v11363
      %v11460 = vadd.f32 %v11412, %v11364
      %v11461 = vadd.f32 %v11413, %v11365
      %v11462 = vadd.f32 %v11414, %v11366
      %v11463 = vadd.f32 %v11415, %v11367
      %v11464 = vadd.f32 %v11416, %v11368
      %v11465 = vadd.f32 %v11417, %v11369
      %v11466 = vadd.f32 %v11418, %v11370
      %v11467 = vadd.f32 %v11419, %v11371
      %v11468 = vadd.f32 %v11420, %v11372
      %v11469 = vadd.f32 %v11421, %v11373
      %v11470 = vadd.f32 %v11422, %v11374
      %v11471 = vadd.f32 %v11423, %v11375
      %v11472 = vadd.f32 %v11424, %v11376
      %v11473 = vadd.f32 %v11425, %v11377
      %v11474 = vadd.f32 %v11426, %v11378
      %v11475 = vadd.f32 %v11427, %v11379
      %v11476 = vadd.f32 %v11428, %v11380
      %v11477 = vadd.f32 %v11429, %v11381
      %v11478 = vadd.f32 %v11430, %v11382
      %v11479 = vadd.f32 %v11431, %v11383
      %v11480 = vadd.f32 %v11432, %v11384
      %v11481 = vadd.f32 %v11433, %v11385
      %v11482 = vadd.f32 %v11434, %v11386
      %v11483 = vadd.f32 %v11435, %v11387
      %v11484 = vadd.f32 %v11436, %v11388
      %v11485 = vadd.f32 %v11437, %v11389
      %v11486 = vadd.f32 %v11438, %v11390
      %v11487 = vadd.f32 %v11439, %v11391
      %v11488 = vadd.f32 %v11440, %v11392
      %v11489 = vadd.f32 %v11441, %v11393
      %v11490 = vadd.f32 %v11442, %v11394
      %v11491 = vadd.f32 %v11443, %v11395
      %v11492 = vadd.f32 %v11444, %v11396
      %v11493 = vadd.f32 %v11445, %v11397
      %v11494 = vadd.f32 %v11446, %v11398
      %v11495 = vadd.f32 %v11447, %v11399
      %v11496 = vadd.f32 %v11448, %v11400
      %v11497 = vadd.f32 %v11449, %v11401
      %v11498 = vmul.f32 %v11450, 0.11111111
      %v11499 = vmul.f32 %v11451, 0.11111111
      %v11500 = vmul.f32 %v11452, 0.11111111
      %v11501 = vmul.f32 %v11453, 0.11111111
      %v11502 = vmul.f32 %v11454, 0.11111111
      %v11503 = vmul.f32 %v11455, 0.11111111
      %v11504 = vmul.f32 %v11456, 0.11111111
      %v11505 = vmul.f32 %v11457, 0.11111111
      %v11506 = vmul.f32 %v11458, 0.11111111
      %v11507 = vmul.f32 %v11459, 0.11111111
      %v11508 = vmul.f32 %v11460, 0.11111111
      %v11509 = vmul.f32 %v11461, 0.11111111
      %v11510 = vmul.f32 %v11462, 0.11111111
      %v11511 = vmul.f32 %v11463, 0.11111111
      %v11512 = vmul.f32 %v11464, 0.11111111
      %v11513 = vmul.f32 %v11465, 0.11111111
      %v11514 = vmul.f32 %v11466, 0.11111111
      %v11515 = vmul.f32 %v11467, 0.11111111
      %v11516 = vmul.f32 %v11468, 0.11111111
      %v11517 = vmul.f32 %v11469, 0.11111111
      %v11518 = vmul.f32 %v11470, 0.11111111
      %v11519 = vmul.f32 %v11471, 0.11111111
      %v11520 = vmul.f32 %v11472, 0.11111111
      %v11521 = vmul.f32 %v11473, 0.11111111
      %v11522 = vmul.f32 %v11474, 0.11111111
      %v11523 = vmul.f32 %v11475, 0.11111111
      %v11524 = vmul.f32 %v11476, 0.11111111
      %v11525 = vmul.f32 %v11477, 0.11111111
      %v11526 = vmul.f32 %v11478, 0.11111111
      %v11527 = vmul.f32 %v11479, 0.11111111
      %v11528 = vmul.f32 %v11480, 0.11111111
      %v11529 = vmul.f32 %v11481, 0.11111111
      %v11530 = vmul.f32 %v11482, 0.11111111
      %v11531 = vmul.f32 %v11483, 0.11111111
      %v11532 = vmul.f32 %v11484, 0.11111111
      %v11533 = vmul.f32 %v11485, 0.11111111
      %v11534 = vmul.f32 %v11486, 0.11111111
      %v11535 = vmul.f32 %v11487, 0.11111111
      %v11536 = vmul.f32 %v11488, 0.11111111
      %v11537 = vmul.f32 %v11489, 0.11111111
      %v11538 = vmul.f32 %v11490, 0.11111111
      %v11539 = vmul.f32 %v11491, 0.11111111
      %v11540 = vmul.f32 %v11492, 0.11111111
      %v11541 = vmul.f32 %v11493, 0.11111111
      %v11542 = vmul.f32 %v11494, 0.11111111
      %v11543 = vmul.f32 %v11495, 0.11111111
      %v11544 = vmul.f32 %v11496, 0.11111111
      %v11545 = vmul.f32 %v11497, 0.11111111
      %v11546 = vpack.c.bf16 %v11499, %v11498
      %v11547 = vpack.c.bf16 %v11500, %v11500
      %v11548 = vpack.c.bf16 %v11502, %v11501
      %v11549 = vpack.c.bf16 %v11503, %v11503
      %v11550 = vpack.c.bf16 %v11505, %v11504
      %v11551 = vpack.c.bf16 %v11506, %v11506
      %v11552 = vpack.c.bf16 %v11508, %v11507
      %v11553 = vpack.c.bf16 %v11509, %v11509
      %v11554 = vpack.c.bf16 %v11511, %v11510
      %v11555 = vpack.c.bf16 %v11512, %v11512
      %v11556 = vpack.c.bf16 %v11514, %v11513
      %v11557 = vpack.c.bf16 %v11515, %v11515
      %v11558 = vpack.c.bf16 %v11517, %v11516
      %v11559 = vpack.c.bf16 %v11518, %v11518
      %v11560 = vpack.c.bf16 %v11520, %v11519
      %v11561 = vpack.c.bf16 %v11521, %v11521
      %v11562 = vpack.c.bf16 %v11523, %v11522
      %v11563 = vpack.c.bf16 %v11524, %v11524
      %v11564 = vpack.c.bf16 %v11526, %v11525
      %v11565 = vpack.c.bf16 %v11527, %v11527
      %v11566 = vpack.c.bf16 %v11529, %v11528
      %v11567 = vpack.c.bf16 %v11530, %v11530
      %v11568 = vpack.c.bf16 %v11532, %v11531
      %v11569 = vpack.c.bf16 %v11533, %v11533
      %v11570 = vpack.c.bf16 %v11535, %v11534
      %v11571 = vpack.c.bf16 %v11536, %v11536
      %v11572 = vpack.c.bf16 %v11538, %v11537
      %v11573 = vpack.c.bf16 %v11539, %v11539
      %v11574 = vpack.c.bf16 %v11541, %v11540
      %v11575 = vpack.c.bf16 %v11542, %v11542
      %v11576 = vpack.c.bf16 %v11544, %v11543
      %v11577 = vpack.c.bf16 %v11545, %v11545
      %v11579 = vshrl.u32 %v11546, 16
      %v11581 = vrot.slane %v11579, 3
      %v11582 = vshll.u32 %v11546, 16
      %v11584 = vrot.slane %v11582, 4
      %v11585 = vor.u32 %v11581, %v11584
      %v11587 = vshrl.u32 %v11547, 16
      %v11589 = vrot.slane %v11587, 3
      %v11590 = vshll.u32 %v11547, 16
      %v11592 = vrot.slane %v11590, 4
      %v11593 = vor.u32 %v11589, %v11592
      %v11594 = vsel %vm5694, %v11585, %v11593
      %v11596 = vshrl.u32 %v11548, 16
      %v11598 = vrot.slane %v11596, 3
      %v11599 = vshll.u32 %v11548, 16
      %v11601 = vrot.slane %v11599, 4
      %v11602 = vor.u32 %v11598, %v11601
      %v11604 = vshrl.u32 %v11549, 16
      %v11606 = vrot.slane %v11604, 3
      %v11607 = vshll.u32 %v11549, 16
      %v11609 = vrot.slane %v11607, 4
      %v11610 = vor.u32 %v11606, %v11609
      %v11611 = vsel %vm5694, %v11602, %v11610
      %v11613 = vshrl.u32 %v11550, 16
      %v11615 = vrot.slane %v11613, 3
      %v11616 = vshll.u32 %v11550, 16
      %v11618 = vrot.slane %v11616, 4
      %v11619 = vor.u32 %v11615, %v11618
      %v11621 = vshrl.u32 %v11551, 16
      %v11623 = vrot.slane %v11621, 3
      %v11624 = vshll.u32 %v11551, 16
      %v11626 = vrot.slane %v11624, 4
      %v11627 = vor.u32 %v11623, %v11626
      %v11628 = vsel %vm5694, %v11619, %v11627
      %v11630 = vshrl.u32 %v11552, 16
      %v11632 = vrot.slane %v11630, 3
      %v11633 = vshll.u32 %v11552, 16
      %v11635 = vrot.slane %v11633, 4
      %v11636 = vor.u32 %v11632, %v11635
      %v11638 = vshrl.u32 %v11553, 16
      %v11640 = vrot.slane %v11638, 3
      %v11641 = vshll.u32 %v11553, 16
      %v11643 = vrot.slane %v11641, 4
      %v11644 = vor.u32 %v11640, %v11643
      %v11645 = vsel %vm5694, %v11636, %v11644
      %v11647 = vshrl.u32 %v11554, 16
      %v11649 = vrot.slane %v11647, 3
      %v11650 = vshll.u32 %v11554, 16
      %v11652 = vrot.slane %v11650, 4
      %v11653 = vor.u32 %v11649, %v11652
      %v11655 = vshrl.u32 %v11555, 16
      %v11657 = vrot.slane %v11655, 3
      %v11658 = vshll.u32 %v11555, 16
      %v11660 = vrot.slane %v11658, 4
      %v11661 = vor.u32 %v11657, %v11660
      %v11662 = vsel %vm5694, %v11653, %v11661
      %v11664 = vshrl.u32 %v11556, 16
      %v11666 = vrot.slane %v11664, 3
      %v11667 = vshll.u32 %v11556, 16
      %v11669 = vrot.slane %v11667, 4
      %v11670 = vor.u32 %v11666, %v11669
      %v11672 = vshrl.u32 %v11557, 16
      %v11674 = vrot.slane %v11672, 3
      %v11675 = vshll.u32 %v11557, 16
      %v11677 = vrot.slane %v11675, 4
      %v11678 = vor.u32 %v11674, %v11677
      %v11679 = vsel %vm5694, %v11670, %v11678
      %v11681 = vshrl.u32 %v11558, 16
      %v11683 = vrot.slane %v11681, 3
      %v11684 = vshll.u32 %v11558, 16
      %v11686 = vrot.slane %v11684, 4
      %v11687 = vor.u32 %v11683, %v11686
      %v11689 = vshrl.u32 %v11559, 16
      %v11691 = vrot.slane %v11689, 3
      %v11692 = vshll.u32 %v11559, 16
      %v11694 = vrot.slane %v11692, 4
      %v11695 = vor.u32 %v11691, %v11694
      %v11696 = vsel %vm5694, %v11687, %v11695
      %v11698 = vshrl.u32 %v11560, 16
      %v11700 = vrot.slane %v11698, 3
      %v11701 = vshll.u32 %v11560, 16
      %v11703 = vrot.slane %v11701, 4
      %v11704 = vor.u32 %v11700, %v11703
      %v11706 = vshrl.u32 %v11561, 16
      %v11708 = vrot.slane %v11706, 3
      %v11709 = vshll.u32 %v11561, 16
      %v11711 = vrot.slane %v11709, 4
      %v11712 = vor.u32 %v11708, %v11711
      %v11713 = vsel %vm5694, %v11704, %v11712
      %v11715 = vshrl.u32 %v11562, 16
      %v11717 = vrot.slane %v11715, 3
      %v11718 = vshll.u32 %v11562, 16
      %v11720 = vrot.slane %v11718, 4
      %v11721 = vor.u32 %v11717, %v11720
      %v11723 = vshrl.u32 %v11563, 16
      %v11725 = vrot.slane %v11723, 3
      %v11726 = vshll.u32 %v11563, 16
      %v11728 = vrot.slane %v11726, 4
      %v11729 = vor.u32 %v11725, %v11728
      %v11730 = vsel %vm5694, %v11721, %v11729
      %v11732 = vshrl.u32 %v11564, 16
      %v11734 = vrot.slane %v11732, 3
      %v11735 = vshll.u32 %v11564, 16
      %v11737 = vrot.slane %v11735, 4
      %v11738 = vor.u32 %v11734, %v11737
      %v11740 = vshrl.u32 %v11565, 16
      %v11742 = vrot.slane %v11740, 3
      %v11743 = vshll.u32 %v11565, 16
      %v11745 = vrot.slane %v11743, 4
      %v11746 = vor.u32 %v11742, %v11745
      %v11747 = vsel %vm5694, %v11738, %v11746
      %v11749 = vshrl.u32 %v11566, 16
      %v11751 = vrot.slane %v11749, 3
      %v11752 = vshll.u32 %v11566, 16
      %v11754 = vrot.slane %v11752, 4
      %v11755 = vor.u32 %v11751, %v11754
      %v11757 = vshrl.u32 %v11567, 16
      %v11759 = vrot.slane %v11757, 3
      %v11760 = vshll.u32 %v11567, 16
      %v11762 = vrot.slane %v11760, 4
      %v11763 = vor.u32 %v11759, %v11762
      %v11764 = vsel %vm5694, %v11755, %v11763
      %v11766 = vshrl.u32 %v11568, 16
      %v11768 = vrot.slane %v11766, 3
      %v11769 = vshll.u32 %v11568, 16
      %v11771 = vrot.slane %v11769, 4
      %v11772 = vor.u32 %v11768, %v11771
      %v11774 = vshrl.u32 %v11569, 16
      %v11776 = vrot.slane %v11774, 3
      %v11777 = vshll.u32 %v11569, 16
      %v11779 = vrot.slane %v11777, 4
      %v11780 = vor.u32 %v11776, %v11779
      %v11781 = vsel %vm5694, %v11772, %v11780
      %v11783 = vshrl.u32 %v11570, 16
      %v11785 = vrot.slane %v11783, 3
      %v11786 = vshll.u32 %v11570, 16
      %v11788 = vrot.slane %v11786, 4
      %v11789 = vor.u32 %v11785, %v11788
      %v11791 = vshrl.u32 %v11571, 16
      %v11793 = vrot.slane %v11791, 3
      %v11794 = vshll.u32 %v11571, 16
      %v11796 = vrot.slane %v11794, 4
      %v11797 = vor.u32 %v11793, %v11796
      %v11798 = vsel %vm5694, %v11789, %v11797
      %v11800 = vshrl.u32 %v11572, 16
      %v11802 = vrot.slane %v11800, 3
      %v11803 = vshll.u32 %v11572, 16
      %v11805 = vrot.slane %v11803, 4
      %v11806 = vor.u32 %v11802, %v11805
      %v11808 = vshrl.u32 %v11573, 16
      %v11810 = vrot.slane %v11808, 3
      %v11811 = vshll.u32 %v11573, 16
      %v11813 = vrot.slane %v11811, 4
      %v11814 = vor.u32 %v11810, %v11813
      %v11815 = vsel %vm5694, %v11806, %v11814
      %v11817 = vshrl.u32 %v11574, 16
      %v11819 = vrot.slane %v11817, 3
      %v11820 = vshll.u32 %v11574, 16
      %v11822 = vrot.slane %v11820, 4
      %v11823 = vor.u32 %v11819, %v11822
      %v11825 = vshrl.u32 %v11575, 16
      %v11827 = vrot.slane %v11825, 3
      %v11828 = vshll.u32 %v11575, 16
      %v11830 = vrot.slane %v11828, 4
      %v11831 = vor.u32 %v11827, %v11830
      %v11832 = vsel %vm5694, %v11823, %v11831
      %v11834 = vshrl.u32 %v11576, 16
      %v11836 = vrot.slane %v11834, 3
      %v11837 = vshll.u32 %v11576, 16
      %v11839 = vrot.slane %v11837, 4
      %v11840 = vor.u32 %v11836, %v11839
      %v11842 = vshrl.u32 %v11577, 16
      %v11844 = vrot.slane %v11842, 3
      %v11845 = vshll.u32 %v11577, 16
      %v11847 = vrot.slane %v11845, 4
      %v11848 = vor.u32 %v11844, %v11847
      %v11849 = vsel %vm5694, %v11840, %v11848
      %v11850 = vld [vmem:[%s2] sm:$0x3]
      %v11851 = vld [vmem:[%s8 + $0x1] sm:$0x1]
      %v11853 = vlaneseq
      %v11854 = vshrl.u32 %v11853, 7
      %v11855 = vsub.s32 0, %v11854
      %v11856 = vrot.slane %v11851, %v11855
      %11857 = vrot.lane.b32.xlu0 %v11856, 96
      %v11858 = vpop.permute.xlu0 %11857
      %v11861 = vsel %vm468, %v11594, 0
      %v11864 = vsel %vm468, %v11611, 0
      %v11867 = vsel %vm468, %v11628, 0
      %v11870 = vsel %vm468, %v11645, 0
      %v11873 = vsel %vm468, %v11662, 0
      %v11876 = vsel %vm468, %v11679, 0
      %v11879 = vsel %vm468, %v11696, 0
      %v11882 = vsel %vm468, %v11713, 0
      %v11885 = vsel %vm468, %v11730, 0
      %v11888 = vsel %vm468, %v11747, 0
      %v11891 = vsel %vm468, %v11764, 0
      %v11894 = vsel %vm468, %v11781, 0
      %v11897 = vsel %vm468, %v11798, 0
      %v11900 = vsel %vm468, %v11815, 0
      %v11903 = vsel %vm468, %v11832, 0
      %v11906 = vsel %vm468, %v11849, 0
      %v11909 = vsel %vm517, %v11850, 0
      %11911 = vmatprep.subr.bf16.mxu0 0
      %11912 = vmatpush1.bf16.msra.mxu0 0
      %11913 = vmatprep.subr.bf16.mxu0 0
      %11914 = vmatpush1.bf16.msra.mxu0 0
      %11915 = vmatprep.subr.bf16.mxu0 0
      %11916 = vmatpush1.bf16.msra.mxu0 0
      %11917 = vmatprep.subr.bf16.mxu0 0
      %11918 = vmatpush1.bf16.msra.mxu0 0
      %11919 = vmatprep.subr.bf16.mxu0 0
      %11920 = vmatpush1.bf16.msra.mxu0 0
      %11921 = vmatprep.subr.bf16.mxu0 0
      %11922 = vmatpush1.bf16.msra.mxu0 0
      %11923 = vmatprep.subr.bf16.mxu0 0
      %11924 = vmatpush1.bf16.msra.mxu0 0
      %11925 = vmatprep.subr.bf16.mxu0 0
      %11926 = vmatpush1.bf16.msra.mxu0 %v11909
      %11927 = vmatprep.subr.bf16.mxu0 0
      %11928 = vmatpush2.bf16.msra.mxu0 0
      %11929 = vmatprep.subr.bf16.mxu0 0
      %11930 = vmatpush2.bf16.msra.mxu0 0
      %11931 = vmatprep.subr.bf16.mxu0 0
      %11932 = vmatpush2.bf16.msra.mxu0 0
      %11933 = vmatprep.subr.bf16.mxu0 0
      %11934 = vmatpush2.bf16.msra.mxu0 0
      %11935 = vmatprep.subr.bf16.mxu0 0
      %11936 = vmatpush2.bf16.msra.mxu0 0
      %11937 = vmatprep.subr.bf16.mxu0 0
      %11938 = vmatpush2.bf16.msra.mxu0 0
      %11939 = vmatprep.subr.bf16.mxu0 0
      %11940 = vmatpush2.bf16.msra.mxu0 0
      %11941 = vmatprep.subr.bf16.mxu0 0
      %11942 = vmatpush2.bf16.msra.mxu0 0
      %11943 = vmatprep.mubr.bf16.mxu0 0
      %11944 = vmatmul.mubr.bf16.gmra.mxu0 %v11861
      %v11945 = vpop.f32.mrf.mxu0
      %v11946 = vadd.f32 %v11858, %v11945
      %v11947 = vpop.f32.mrf.mxu0
      %v11948 = vpop.f32.mrf.mxu0
      %v11949 = vadd.f32 %v11858, %v11948
      %v11950 = vpop.f32.mrf.mxu0
      %11951 = vmatprep.mubr.bf16.mxu0 0
      %11952 = vmatmul.mubr.bf16.gmra.mxu0 %v11864
      %v11953 = vpop.f32.mrf.mxu0
      %v11954 = vadd.f32 %v11858, %v11953
      %v11955 = vpop.f32.mrf.mxu0
      %v11956 = vpop.f32.mrf.mxu0
      %v11957 = vadd.f32 %v11858, %v11956
      %v11958 = vpop.f32.mrf.mxu0
      %11959 = vmatprep.mubr.bf16.mxu0 0
      %11960 = vmatmul.mubr.bf16.gmra.mxu0 %v11867
      %v11961 = vpop.f32.mrf.mxu0
      %v11962 = vadd.f32 %v11858, %v11961
      %v11963 = vpop.f32.mrf.mxu0
      %v11964 = vpop.f32.mrf.mxu0
      %v11965 = vadd.f32 %v11858, %v11964
      %v11966 = vpop.f32.mrf.mxu0
      %11967 = vmatprep.mubr.bf16.mxu0 0
      %11968 = vmatmul.mubr.bf16.gmra.mxu0 %v11870
      %v11969 = vpop.f32.mrf.mxu0
      %v11970 = vadd.f32 %v11858, %v11969
      %v11971 = vpop.f32.mrf.mxu0
      %v11972 = vpop.f32.mrf.mxu0
      %v11973 = vadd.f32 %v11858, %v11972
      %v11974 = vpop.f32.mrf.mxu0
      %11975 = vmatprep.mubr.bf16.mxu0 0
      %11976 = vmatmul.mubr.bf16.gmra.mxu0 %v11873
      %v11977 = vpop.f32.mrf.mxu0
      %v11978 = vadd.f32 %v11858, %v11977
      %v11979 = vpop.f32.mrf.mxu0
      %v11980 = vpop.f32.mrf.mxu0
      %v11981 = vadd.f32 %v11858, %v11980
      %v11982 = vpop.f32.mrf.mxu0
      %11983 = vmatprep.mubr.bf16.mxu0 0
      %11984 = vmatmul.mubr.bf16.gmra.mxu0 %v11876
      %v11985 = vpop.f32.mrf.mxu0
      %v11986 = vadd.f32 %v11858, %v11985
      %v11987 = vpop.f32.mrf.mxu0
      %v11988 = vpop.f32.mrf.mxu0
      %v11989 = vadd.f32 %v11858, %v11988
      %v11990 = vpop.f32.mrf.mxu0
      %11991 = vmatprep.mubr.bf16.mxu0 0
      %11992 = vmatmul.mubr.bf16.gmra.mxu0 %v11879
      %v11993 = vpop.f32.mrf.mxu0
      %v11994 = vadd.f32 %v11858, %v11993
      %v11995 = vpop.f32.mrf.mxu0
      %v11996 = vpop.f32.mrf.mxu0
      %v11997 = vadd.f32 %v11858, %v11996
      %v11998 = vpop.f32.mrf.mxu0
      %11999 = vmatprep.mubr.bf16.mxu0 0
      %12000 = vmatmul.mubr.bf16.gmra.mxu0 %v11882
      %v12001 = vpop.f32.mrf.mxu0
      %v12002 = vadd.f32 %v11858, %v12001
      %v12003 = vpop.f32.mrf.mxu0
      %v12004 = vpop.f32.mrf.mxu0
      %v12005 = vadd.f32 %v11858, %v12004
      %v12006 = vpop.f32.mrf.mxu0
      %12007 = vmatprep.mubr.bf16.mxu0 0
      %12008 = vmatmul.mubr.bf16.gmra.mxu0 %v11885
      %v12009 = vpop.f32.mrf.mxu0
      %v12010 = vadd.f32 %v11858, %v12009
      %v12011 = vpop.f32.mrf.mxu0
      %v12012 = vpop.f32.mrf.mxu0
      %v12013 = vadd.f32 %v11858, %v12012
      %v12014 = vpop.f32.mrf.mxu0
      %12015 = vmatprep.mubr.bf16.mxu0 0
      %12016 = vmatmul.mubr.bf16.gmra.mxu0 %v11888
      %v12017 = vpop.f32.mrf.mxu0
      %v12018 = vadd.f32 %v11858, %v12017
      %v12019 = vpop.f32.mrf.mxu0
      %v12020 = vpop.f32.mrf.mxu0
      %v12021 = vadd.f32 %v11858, %v12020
      %v12022 = vpop.f32.mrf.mxu0
      %12023 = vmatprep.mubr.bf16.mxu0 0
      %12024 = vmatmul.mubr.bf16.gmra.mxu0 %v11891
      %v12025 = vpop.f32.mrf.mxu0
      %v12026 = vadd.f32 %v11858, %v12025
      %v12027 = vpop.f32.mrf.mxu0
      %v12028 = vpop.f32.mrf.mxu0
      %v12029 = vadd.f32 %v11858, %v12028
      %v12030 = vpop.f32.mrf.mxu0
      %12031 = vmatprep.mubr.bf16.mxu0 0
      %12032 = vmatmul.mubr.bf16.gmra.mxu0 %v11894
      %v12033 = vpop.f32.mrf.mxu0
      %v12034 = vadd.f32 %v11858, %v12033
      %v12035 = vpop.f32.mrf.mxu0
      %v12036 = vpop.f32.mrf.mxu0
      %v12037 = vadd.f32 %v11858, %v12036
      %v12038 = vpop.f32.mrf.mxu0
      %12039 = vmatprep.mubr.bf16.mxu0 0
      %12040 = vmatmul.mubr.bf16.gmra.mxu0 %v11897
      %v12041 = vpop.f32.mrf.mxu0
      %v12042 = vadd.f32 %v11858, %v12041
      %v12043 = vpop.f32.mrf.mxu0
      %v12044 = vpop.f32.mrf.mxu0
      %v12045 = vadd.f32 %v11858, %v12044
      %v12046 = vpop.f32.mrf.mxu0
      %12047 = vmatprep.mubr.bf16.mxu0 0
      %12048 = vmatmul.mubr.bf16.gmra.mxu0 %v11900
      %v12049 = vpop.f32.mrf.mxu0
      %v12050 = vadd.f32 %v11858, %v12049
      %v12051 = vpop.f32.mrf.mxu0
      %v12052 = vpop.f32.mrf.mxu0
      %v12053 = vadd.f32 %v11858, %v12052
      %v12054 = vpop.f32.mrf.mxu0
      %12055 = vmatprep.mubr.bf16.mxu0 0
      %12056 = vmatmul.mubr.bf16.gmra.mxu0 %v11903
      %v12057 = vpop.f32.mrf.mxu0
      %v12058 = vadd.f32 %v11858, %v12057
      %v12059 = vpop.f32.mrf.mxu0
      %v12060 = vpop.f32.mrf.mxu0
      %v12061 = vadd.f32 %v11858, %v12060
      %v12062 = vpop.f32.mrf.mxu0
      %12063 = vmatprep.mubr.bf16.mxu0 0
      %12064 = vmatmul.mubr.bf16.gmra.mxu0 %v11906
      %v12065 = vpop.f32.mrf.mxu0
      %v12066 = vadd.f32 %v11858, %v12065
      %v12067 = vpop.f32.mrf.mxu0
      %v12068 = vpop.f32.mrf.mxu0
      %v12069 = vadd.f32 %v11858, %v12068
      %v12070 = vpop.f32.mrf.mxu0
      %12071 = vdwg.mxu0
      %v12072 = vmax.f32 %v11946, 0.0
      %v12073 = vmax.f32 %v11949, 0.0
      %v12074 = vmax.f32 %v11954, 0.0
      %v12075 = vmax.f32 %v11957, 0.0
      %v12076 = vmax.f32 %v11962, 0.0
      %v12077 = vmax.f32 %v11965, 0.0
      %v12078 = vmax.f32 %v11970, 0.0
      %v12079 = vmax.f32 %v11973, 0.0
      %v12080 = vmax.f32 %v11978, 0.0
      %v12081 = vmax.f32 %v11981, 0.0
      %v12082 = vmax.f32 %v11986, 0.0
      %v12083 = vmax.f32 %v11989, 0.0
      %v12084 = vmax.f32 %v11994, 0.0
      %v12085 = vmax.f32 %v11997, 0.0
      %v12086 = vmax.f32 %v12002, 0.0
      %v12087 = vmax.f32 %v12005, 0.0
      %v12088 = vmax.f32 %v12010, 0.0
      %v12089 = vmax.f32 %v12013, 0.0
      %v12090 = vmax.f32 %v12018, 0.0
      %v12091 = vmax.f32 %v12021, 0.0
      %v12092 = vmax.f32 %v12026, 0.0
      %v12093 = vmax.f32 %v12029, 0.0
      %v12094 = vmax.f32 %v12034, 0.0
      %v12095 = vmax.f32 %v12037, 0.0
      %v12096 = vmax.f32 %v12042, 0.0
      %v12097 = vmax.f32 %v12045, 0.0
      %v12098 = vmax.f32 %v12050, 0.0
      %v12099 = vmax.f32 %v12053, 0.0
      %v12100 = vmax.f32 %v12058, 0.0
      %v12101 = vmax.f32 %v12061, 0.0
      %v12102 = vmax.f32 %v12066, 0.0
      %v12103 = vmax.f32 %v12069, 0.0
      %v12104 = vpack.c.bf16 %v12073, %v12072
      %v12105 = vpack.c.bf16 %v12075, %v12074
      %v12106 = vpack.c.bf16 %v12077, %v12076
      %v12107 = vpack.c.bf16 %v12079, %v12078
      %v12108 = vpack.c.bf16 %v12081, %v12080
      %v12109 = vpack.c.bf16 %v12083, %v12082
      %v12110 = vpack.c.bf16 %v12085, %v12084
      %v12111 = vpack.c.bf16 %v12087, %v12086
      %v12112 = vpack.c.bf16 %v12089, %v12088
      %v12113 = vpack.c.bf16 %v12091, %v12090
      %v12114 = vpack.c.bf16 %v12093, %v12092
      %v12115 = vpack.c.bf16 %v12095, %v12094
      %v12116 = vpack.c.bf16 %v12097, %v12096
      %v12117 = vpack.c.bf16 %v12099, %v12098
      %v12118 = vpack.c.bf16 %v12101, %v12100
      %v12119 = vpack.c.bf16 %v12103, %v12102
      %12136 = vrot.lane.b32.xlu0 %v4667, 64
      %v12137 = vpop.permute.xlu0 %12136
      %12138 = vrot.lane.b32.xlu0 %v4668, 64
      %v12139 = vpop.permute.xlu0 %12138
      %12140 = vrot.lane.b32.xlu0 %v4669, 64
      %v12141 = vpop.permute.xlu0 %12140
      %12142 = vrot.lane.b32.xlu0 %v4670, 64
      %v12143 = vpop.permute.xlu0 %12142
      %12144 = vrot.lane.b32.xlu0 %v4671, 64
      %v12145 = vpop.permute.xlu0 %12144
      %12146 = vrot.lane.b32.xlu0 %v4672, 64
      %v12147 = vpop.permute.xlu0 %12146
      %12148 = vrot.lane.b32.xlu0 %v4673, 64
      %v12149 = vpop.permute.xlu0 %12148
      %12150 = vrot.lane.b32.xlu0 %v4674, 64
      %v12151 = vpop.permute.xlu0 %12150
      %12152 = vrot.lane.b32.xlu0 %v4675, 64
      %v12153 = vpop.permute.xlu0 %12152
      %12154 = vrot.lane.b32.xlu0 %v4676, 64
      %v12155 = vpop.permute.xlu0 %12154
      %12156 = vrot.lane.b32.xlu0 %v4677, 64
      %v12157 = vpop.permute.xlu0 %12156
      %12158 = vrot.lane.b32.xlu0 %v4678, 64
      %v12159 = vpop.permute.xlu0 %12158
      %12160 = vrot.lane.b32.xlu0 %v4679, 64
      %v12161 = vpop.permute.xlu0 %12160
      %12162 = vrot.lane.b32.xlu0 %v4680, 64
      %v12163 = vpop.permute.xlu0 %12162
      %12164 = vrot.lane.b32.xlu0 %v4681, 64
      %v12165 = vpop.permute.xlu0 %12164
      %12166 = vrot.lane.b32.xlu0 %v4682, 64
      %v12167 = vpop.permute.xlu0 %12166
      %12184 = vrot.lane.b32.xlu0 %v12104, 96
      %v12185 = vpop.permute.xlu0 %12184
      %12186 = vrot.lane.b32.xlu0 %v12105, 96
      %v12187 = vpop.permute.xlu0 %12186
      %12188 = vrot.lane.b32.xlu0 %v12106, 96
      %v12189 = vpop.permute.xlu0 %12188
      %12190 = vrot.lane.b32.xlu0 %v12107, 96
      %v12191 = vpop.permute.xlu0 %12190
      %12192 = vrot.lane.b32.xlu0 %v12108, 96
      %v12193 = vpop.permute.xlu0 %12192
      %12194 = vrot.lane.b32.xlu0 %v12109, 96
      %v12195 = vpop.permute.xlu0 %12194
      %12196 = vrot.lane.b32.xlu0 %v12110, 96
      %v12197 = vpop.permute.xlu0 %12196
      %12198 = vrot.lane.b32.xlu0 %v12111, 96
      %v12199 = vpop.permute.xlu0 %12198
      %12200 = vrot.lane.b32.xlu0 %v12112, 96
      %v12201 = vpop.permute.xlu0 %12200
      %12202 = vrot.lane.b32.xlu0 %v12113, 96
      %v12203 = vpop.permute.xlu0 %12202
      %12204 = vrot.lane.b32.xlu0 %v12114, 96
      %v12205 = vpop.permute.xlu0 %12204
      %12206 = vrot.lane.b32.xlu0 %v12115, 96
      %v12207 = vpop.permute.xlu0 %12206
      %12208 = vrot.lane.b32.xlu0 %v12116, 96
      %v12209 = vpop.permute.xlu0 %12208
      %12210 = vrot.lane.b32.xlu0 %v12117, 96
      %v12211 = vpop.permute.xlu0 %12210
      %12212 = vrot.lane.b32.xlu0 %v12118, 96
      %v12213 = vpop.permute.xlu0 %12212
      %12214 = vrot.lane.b32.xlu0 %v12119, 96
      %v12215 = vpop.permute.xlu0 %12214
      %v12218 = vsel %vm2728, %v781, %v12137
      %v12221 = vsel %vm2728, %v782, %v12139
      %v12224 = vsel %vm2728, %v783, %v12141
      %v12227 = vsel %vm2728, %v784, %v12143
      %v12230 = vsel %vm2728, %v785, %v12145
      %v12233 = vsel %vm2728, %v786, %v12147
      %v12236 = vsel %vm2728, %v787, %v12149
      %v12239 = vsel %vm2728, %v788, %v12151
      %v12242 = vsel %vm2728, %v789, %v12153
      %v12245 = vsel %vm2728, %v790, %v12155
      %v12248 = vsel %vm2728, %v791, %v12157
      %v12251 = vsel %vm2728, %v792, %v12159
      %v12254 = vsel %vm2728, %v793, %v12161
      %v12257 = vsel %vm2728, %v794, %v12163
      %v12260 = vsel %vm2728, %v795, %v12165
      %v12263 = vsel %vm2728, %v796, %v12167
      %v12266 = vsel %vm2586, %v10671, %v12185
      %v12269 = vsel %vm2586, %v10672, %v12187
      %v12272 = vsel %vm2586, %v10673, %v12189
      %v12275 = vsel %vm2586, %v10674, %v12191
      %v12278 = vsel %vm2586, %v10675, %v12193
      %v12281 = vsel %vm2586, %v10676, %v12195
      %v12284 = vsel %vm2586, %v10677, %v12197
      %v12287 = vsel %vm2586, %v10678, %v12199
      %v12290 = vsel %vm2586, %v10679, %v12201
      %v12293 = vsel %vm2586, %v10680, %v12203
      %v12296 = vsel %vm2586, %v10681, %v12205
      %v12299 = vsel %vm2586, %v10682, %v12207
      %v12302 = vsel %vm2586, %v10683, %v12209
      %v12305 = vsel %vm2586, %v10684, %v12211
      %v12308 = vsel %vm2586, %v10685, %v12213
      %v12311 = vsel %vm2586, %v10686, %v12215
      %v12344 = vunpack.c.l.b16 %v12218
      %v12345 = vunpack.c.l.b16 %v12266
      %v12346 = vunpack.c.h.b16 %v12218
      %v12347 = vunpack.c.h.b16 %v12266
      %v12348 = vunpack.c.l.b16 %v12221
      %v12349 = vunpack.c.l.b16 %v12269
      %v12350 = vunpack.c.h.b16 %v12221
      %v12351 = vunpack.c.h.b16 %v12269
      %v12352 = vunpack.c.l.b16 %v12224
      %v12353 = vunpack.c.l.b16 %v12272
      %v12354 = vunpack.c.h.b16 %v12224
      %v12355 = vunpack.c.h.b16 %v12272
      %v12356 = vunpack.c.l.b16 %v12227
      %v12357 = vunpack.c.l.b16 %v12275
      %v12358 = vunpack.c.h.b16 %v12227
      %v12359 = vunpack.c.h.b16 %v12275
      %v12360 = vunpack.c.l.b16 %v12230
      %v12361 = vunpack.c.l.b16 %v12278
      %v12362 = vunpack.c.h.b16 %v12230
      %v12363 = vunpack.c.h.b16 %v12278
      %v12364 = vunpack.c.l.b16 %v12233
      %v12365 = vunpack.c.l.b16 %v12281
      %v12366 = vunpack.c.h.b16 %v12233
      %v12367 = vunpack.c.h.b16 %v12281
      %v12368 = vunpack.c.l.b16 %v12236
      %v12369 = vunpack.c.l.b16 %v12284
      %v12370 = vunpack.c.h.b16 %v12236
      %v12371 = vunpack.c.h.b16 %v12284
      %v12372 = vunpack.c.l.b16 %v12239
      %v12373 = vunpack.c.l.b16 %v12287
      %v12374 = vunpack.c.h.b16 %v12239
      %v12375 = vunpack.c.h.b16 %v12287
      %v12376 = vunpack.c.l.b16 %v12242
      %v12377 = vunpack.c.l.b16 %v12290
      %v12378 = vunpack.c.h.b16 %v12242
      %v12379 = vunpack.c.h.b16 %v12290
      %v12380 = vunpack.c.l.b16 %v12245
      %v12381 = vunpack.c.l.b16 %v12293
      %v12382 = vunpack.c.h.b16 %v12245
      %v12383 = vunpack.c.h.b16 %v12293
      %v12384 = vunpack.c.l.b16 %v12248
      %v12385 = vunpack.c.l.b16 %v12296
      %v12386 = vunpack.c.h.b16 %v12248
      %v12387 = vunpack.c.h.b16 %v12296
      %v12388 = vunpack.c.l.b16 %v12251
      %v12389 = vunpack.c.l.b16 %v12299
      %v12390 = vunpack.c.h.b16 %v12251
      %v12391 = vunpack.c.h.b16 %v12299
      %v12392 = vunpack.c.l.b16 %v12254
      %v12393 = vunpack.c.l.b16 %v12302
      %v12394 = vunpack.c.h.b16 %v12254
      %v12395 = vunpack.c.h.b16 %v12302
      %v12396 = vunpack.c.l.b16 %v12257
      %v12397 = vunpack.c.l.b16 %v12305
      %v12398 = vunpack.c.h.b16 %v12257
      %v12399 = vunpack.c.h.b16 %v12305
      %v12400 = vunpack.c.l.b16 %v12260
      %v12401 = vunpack.c.l.b16 %v12308
      %v12402 = vunpack.c.h.b16 %v12260
      %v12403 = vunpack.c.h.b16 %v12308
      %v12404 = vunpack.c.l.b16 %v12263
      %v12405 = vunpack.c.l.b16 %v12311
      %v12406 = vunpack.c.h.b16 %v12263
      %v12407 = vunpack.c.h.b16 %v12311
      %v12408 = vpack.c.b16 %v12345, %v12344
      %v12409 = vpack.c.b16 %v12347, %v12346
      %v12410 = vpack.c.b16 %v12349, %v12348
      %v12411 = vpack.c.b16 %v12351, %v12350
      %v12412 = vpack.c.b16 %v12353, %v12352
      %v12413 = vpack.c.b16 %v12355, %v12354
      %v12414 = vpack.c.b16 %v12357, %v12356
      %v12415 = vpack.c.b16 %v12359, %v12358
      %v12416 = vpack.c.b16 %v12361, %v12360
      %v12417 = vpack.c.b16 %v12363, %v12362
      %v12418 = vpack.c.b16 %v12365, %v12364
      %v12419 = vpack.c.b16 %v12367, %v12366
      %v12420 = vpack.c.b16 %v12369, %v12368
      %v12421 = vpack.c.b16 %v12371, %v12370
      %v12422 = vpack.c.b16 %v12373, %v12372
      %v12423 = vpack.c.b16 %v12375, %v12374
      %v12424 = vpack.c.b16 %v12377, %v12376
      %v12425 = vpack.c.b16 %v12379, %v12378
      %v12426 = vpack.c.b16 %v12381, %v12380
      %v12427 = vpack.c.b16 %v12383, %v12382
      %v12428 = vpack.c.b16 %v12385, %v12384
      %v12429 = vpack.c.b16 %v12387, %v12386
      %v12430 = vpack.c.b16 %v12389, %v12388
      %v12431 = vpack.c.b16 %v12391, %v12390
      %v12432 = vpack.c.b16 %v12393, %v12392
      %v12433 = vpack.c.b16 %v12395, %v12394
      %v12434 = vpack.c.b16 %v12397, %v12396
      %v12435 = vpack.c.b16 %v12399, %v12398
      %v12436 = vpack.c.b16 %v12401, %v12400
      %v12437 = vpack.c.b16 %v12403, %v12402
      %v12438 = vpack.c.b16 %v12405, %v12404
      %v12439 = vpack.c.b16 %v12407, %v12406
      %12472 = vst [vmem:[%s332] sm:$0xff] %v12408
      %12473 = vst [vmem:[%s332 + $0x8] sm:$0xff] %v12409
      %12474 = vst [vmem:[%s332 + $0x10] sm:$0xff] %v12410
      %12475 = vst [vmem:[%s332 + $0x18] sm:$0xff] %v12411
      %12476 = vst [vmem:[%s332 + $0x20] sm:$0xff] %v12412
      %12477 = vst [vmem:[%s332 + $0x28] sm:$0xff] %v12413
      %12478 = vst [vmem:[%s332 + $0x30] sm:$0xff] %v12414
      %12479 = vst [vmem:[%s332 + $0x38] sm:$0xff] %v12415
      %12480 = vst [vmem:[%s332 + $0x40] sm:$0xff] %v12416
      %12481 = vst [vmem:[%s332 + $0x48] sm:$0xff] %v12417
      %12482 = vst [vmem:[%s332 + $0x50] sm:$0xff] %v12418
      %12483 = vst [vmem:[%s332 + $0x58] sm:$0xff] %v12419
      %12484 = vst [vmem:[%s332 + $0x60] sm:$0xff] %v12420
      %12485 = vst [vmem:[%s332 + $0x68] sm:$0xff] %v12421
      %12486 = vst [vmem:[%s332 + $0x70] sm:$0xff] %v12422
      %12487 = vst [vmem:[%s332 + $0x78] sm:$0xff] %v12423
      %12488 = vst [vmem:[%s332 + $0x80] sm:$0xff] %v12424
      %12489 = vst [vmem:[%s332 + $0x88] sm:$0xff] %v12425
      %12490 = vst [vmem:[%s332 + $0x90] sm:$0xff] %v12426
      %12491 = vst [vmem:[%s332 + $0x98] sm:$0xff] %v12427
      %12492 = vst [vmem:[%s332 + $0xa0] sm:$0xff] %v12428
      %12493 = vst [vmem:[%s332 + $0xa8] sm:$0xff] %v12429
      %12494 = vst [vmem:[%s332 + $0xb0] sm:$0xff] %v12430
      %12495 = vst [vmem:[%s332 + $0xb8] sm:$0xff] %v12431
      %12496 = vst [vmem:[%s332 + $0xc0] sm:$0xff] %v12432
      %12497 = vst [vmem:[%s332 + $0xc8] sm:$0xff] %v12433
      %12498 = vst [vmem:[%s332 + $0xd0] sm:$0xff] %v12434
      %12499 = vst [vmem:[%s332 + $0xd8] sm:$0xff] %v12435
      %12500 = vst [vmem:[%s332 + $0xe0] sm:$0xff] %v12436
      %12501 = vst [vmem:[%s332 + $0xe8] sm:$0xff] %v12437
      %12502 = vst [vmem:[%s332 + $0xf0] sm:$0xff] %v12438
      %12503 = vst [vmem:[%s332 + $0xf8] sm:$0xff] %v12439
      %p12504 = scmp.lt.s32.totalorder %s20, 1
      %s12505 = scalar_select %p12504, %s20, 1
      %s12506 = smul.addr %s12505, 64
      %s12507 = smul.addr %s12506, 4
      %s12508 = scalar_lea.vmem %s9, %s12507
      // Predicated region
      $region57: #{inception_block_a.1} parent=55 // pred_check
        %p12509 = pneg %p232
      $region58: #{inception_block_a.1} parent=55 // pred_check_branch
        %12511 = sbr.rel (%p12509) target = $region60
      $region59: #{inception_block_a.1} parent=55 // pred_region
        _
      $region60: #{inception_block_a.1} parent=55 // pred_fallthru
        _
    $region56: #{inception_block_a.1} parent=5 // pred_fallthru
      _
    %p12512 = scmp.le.s32.totalorder 2, %s15
    // Predicated region
    $region61: #{inception_block_a.1} parent=5 // pred_check
      %p12513 = pneg %p12512
    $region62: #{inception_block_a.1} parent=5 // pred_check_branch
      %12515 = sbr.rel (%p12513) target = $region64
    $region63: #{inception_block_a.1} parent=5 // pred_region
      %s12516 = ssub.s32 %s15, 2
      // Predicated region
      $region65: #{inception_block_a.1} parent=63 // pred_check
        %p12517 = pneg %p238
      $region66: #{inception_block_a.1} parent=63 // pred_check_branch
        %12519 = sbr.rel (%p12517) target = $region68
      $region67: #{inception_block_a.1} parent=63 // pred_region
        %p12520 = scmp.lt.s32.totalorder %s21, 1
        %s12521 = scalar_select %p12520, %s21, 1
        %s12522 = smul.addr %s12521, 64
        %s12523 = smul.addr %s12522, 4
        %s12524 = scalar_lea.vmem %s9, %s12523
      $region68: #{inception_block_a.1} parent=63 // pred_fallthru
        _
    $region64: #{inception_block_a.1} parent=5 // pred_fallthru
      _
  $region6: #{inception_block_a.1} parent=0 // loop_footer
    %s19 = sadd.s32 1, %s15
  $region7: #{inception_block_a.1} parent=0 // loop_footer_branch
    %14 = sbr.rel target = $region3
  $region8: #{inception_block_a.1} parent=0 // loop_exit
    _

</llo_original>
